<compile_context>
chip_gen: v7x
topology: tpu7x:2x2x1
jax: 0.10.0
libtpu: 0.0.40
codegen_flags: <defaults>
</compile_context>

<pallas_src>
import functools

import jax
import jax.numpy as jnp
from jax.experimental import pallas as pl
from jax.experimental.pallas import tpu as pltpu

HIDDEN = 512
OUT_DIM = 2
LN_EPS = 1e-5
LANE = 128


def _round_up(v: int, m: int) -> int:
    return (v + m - 1) // m * m


def _graph_conv_kernel(a_ref, hfull_ref, hrow_ref, wrel_ref, wroot_ref, v_ref,
                       o_ref, *, apply_ln):
    """One GraphConv (+ optional LayerNorm) + ReLU for a TM-row block of nodes.

    a_ref     : [TM, N_pad]   bf16  weighted adjacency row slab (rows = targets)
    hfull_ref : [N_pad, F_in] bf16  full node features (resident across the grid)
    hrow_ref  : [TM, F_in]    bf16  this tile's own node rows (pipelined)
    wrel_ref  : [F_in, F_out] bf16  relation weight (resident)
    wroot_ref : [F_in, F_out] bf16  root weight (resident)
    v_ref     : [3, F_out]    f32   rows: bias, ln_gamma, ln_beta
    o_ref     : [TM, F_out]         output row block
    """
    # Aggregation: agg_i = sum_j A[i, j] * h_j   (PyG "add" aggregation), f32 acc.
    agg = jnp.dot(a_ref[...], hfull_ref[...], preferred_element_type=jnp.float32)

    # Rel + root projections (two MXU matmuls, f32 accumulation, no concat copy).
    out = jnp.dot(agg.astype(jnp.bfloat16), wrel_ref[...],
                  preferred_element_type=jnp.float32)
    out = out + jnp.dot(hrow_ref[...], wroot_ref[...],
                        preferred_element_type=jnp.float32)
    out = out + v_ref[0:1, :]

    if apply_ln:  # LayerNorm in f32 (matches torch.nn.LayerNorm, biased variance)
        gamma = v_ref[1:2, :]
        beta = v_ref[2:3, :]
        mu = jnp.mean(out, axis=-1, keepdims=True)
        var = jnp.mean((out - mu) * (out - mu), axis=-1, keepdims=True)
        out = (out - mu) * jax.lax.rsqrt(var + LN_EPS) * gamma + beta

    o_ref[...] = jnp.maximum(out, 0.0).astype(o_ref.dtype)


def _vmem_limit_bytes(tm, n_pad, f_in, f_out, out_itemsize):
    a_tile = tm * n_pad * 2              # bf16 adjacency row slab
    h_full = n_pad * f_in * 2            # bf16 resident features
    h_tile = tm * f_in * 2               # bf16 row tile of features
    w_full = 2 * f_in * f_out * 2        # bf16 rel + root weights
    vecs = 3 * f_out * 4                 # f32 bias/gamma/beta
    o_tile = tm * f_out * out_itemsize
    # double-buffered pipeline buffers + compiler scratch headroom
    need = 2 * (a_tile + h_full + h_tile + w_full + vecs + o_tile) + (4 << 20)
    return int(min(max(need, 16 << 20), 48 << 20))


def _graph_conv_layer(a_bf16, h_bf16, w_rel, w_root, vecs, *, tm, apply_ln,
                      out_dtype):
    n_pad = a_bf16.shape[0]
    f_in = h_bf16.shape[1]
    f_out = w_rel.shape[1]
    kernel = functools.partial(_graph_conv_kernel, apply_ln=apply_ln)
    return pl.pallas_call(
        kernel,
        out_shape=jax.ShapeDtypeStruct((n_pad, f_out), out_dtype),
        grid=(n_pad // tm,),
        in_specs=[
            pl.BlockSpec((tm, n_pad), lambda i: (i, 0)),     # A row slab (pipelined)
            pl.BlockSpec((n_pad, f_in), lambda i: (0, 0)),   # full h (resident)
            pl.BlockSpec((tm, f_in), lambda i: (i, 0)),      # this tile's h rows
            pl.BlockSpec((f_in, f_out), lambda i: (0, 0)),   # W_rel (resident)
            pl.BlockSpec((f_in, f_out), lambda i: (0, 0)),   # W_root (resident)
            pl.BlockSpec((3, f_out), lambda i: (0, 0)),      # bias / gamma / beta
        ],
        out_specs=pl.BlockSpec((tm, f_out), lambda i: (i, 0)),
        compiler_params=pltpu.CompilerParams(
            dimension_semantics=("parallel",),
            vmem_limit_bytes=_vmem_limit_bytes(
                tm, n_pad, f_in, f_out, jnp.dtype(out_dtype).itemsize),
        ),
    )(a_bf16, h_bf16, h_bf16, w_rel, w_root, vecs)


def init_params(features_size: int, key):
    """Deterministic synthetic parameters (shapes from GNNRegressor.__init__)."""
    ks = jax.random.split(key, 6)

    def lin(k, fin, fout):
        scale = 1.0 / jnp.sqrt(jnp.float32(fin))
        return jax.random.uniform(k, (fin, fout), jnp.float32, -1.0, 1.0) * scale

    return dict(
        w1_rel=lin(ks[0], features_size, HIDDEN),
        w1_root=lin(ks[1], features_size, HIDDEN),
        b1=jnp.zeros((1, HIDDEN), jnp.float32),
        g1=jnp.ones((1, HIDDEN), jnp.float32),
        be1=jnp.zeros((1, HIDDEN), jnp.float32),
        w2_rel=lin(ks[2], HIDDEN, HIDDEN),
        w2_root=lin(ks[3], HIDDEN, HIDDEN),
        b2=jnp.zeros((1, HIDDEN), jnp.float32),
        g2=jnp.ones((1, HIDDEN), jnp.float32),
        be2=jnp.zeros((1, HIDDEN), jnp.float32),
        w3_rel=lin(ks[4], HIDDEN, OUT_DIM),
        w3_root=lin(ks[5], HIDDEN, OUT_DIM),
        b3=jnp.zeros((1, OUT_DIM), jnp.float32),
    )


def gnn_regressor_forward(x, edge_index, pos, extent, params, *, tm=128):
    """x: [N, F] f32, edge_index: [2, E] int32, pos: [N] f32.
    `extent` is accepted (as in the PyTorch forward) but unused."""
    del extent  # unused in the reference forward pass
    N, F = x.shape
    n_pad = _round_up(N, tm)
    f_pad = _round_up(F, LANE)
    out_pad = _round_up(OUT_DIM, LANE)

    src = edge_index[0]
    dst = edge_index[1]
    # edge_weights = 1 / (pos[src] - pos[dst]); inf/nan if two connected nodes share
    # a position -- same precondition as the PyTorch module.
    edge_weights = 1.0 / (pos[src] - pos[dst])
    # Dense adjacency reproducing GraphConv's scatter-add onto targets (dst),
    # accumulated in f32; only the final matrix is downcast for the MXU.
    a = jnp.zeros((n_pad, n_pad), jnp.float32).at[dst, src].add(edge_weights)
    a_bf16 = a.astype(jnp.bfloat16)

    # Zero-pad features to a lane-dense width (free: zero rows/cols don't change dots).
    x_pad = jnp.pad(x, ((0, n_pad - N), (0, f_pad - F))).astype(jnp.bfloat16)

    # Layer 1: pad input rows F -> f_pad.
    w1r = jnp.pad(params["w1_rel"], ((0, f_pad - F), (0, 0))).astype(jnp.bfloat16)
    w1o = jnp.pad(params["w1_root"], ((0, f_pad - F), (0, 0))).astype(jnp.bfloat16)
    v1 = jnp.concatenate([params["b1"], params["g1"], params["be1"]], axis=0)

    w2r = params["w2_rel"].astype(jnp.bfloat16)
    w2o = params["w2_root"].astype(jnp.bfloat16)
    v2 = jnp.concatenate([params["b2"], params["g2"], params["be2"]], axis=0)

    # Layer 3: zero-pad the 2-wide output to a lane-dense 128 columns.
    w3r = jnp.pad(params["w3_rel"],
                  ((0, 0), (0, out_pad - OUT_DIM))).astype(jnp.bfloat16)
    w3o = jnp.pad(params["w3_root"],
                  ((0, 0), (0, out_pad - OUT_DIM))).astype(jnp.bfloat16)
    b3 = jnp.pad(params["b3"], ((0, 0), (0, out_pad - OUT_DIM)))
    v3 = jnp.concatenate(
        [b3, jnp.ones((1, out_pad), jnp.float32), jnp.zeros((1, out_pad), jnp.float32)],
        axis=0)  # gamma/beta rows unused (no LayerNorm on layer 3)

    # TODO(synk): for very large graphs (N >~ 4k on v7x's 64 MiB VMEM) additionally
    # K-tile the A @ h aggregation with a VMEM accumulator and pl.when init/finalize.
    h = _graph_conv_layer(a_bf16, x_pad, w1r, w1o, v1, tm=tm, apply_ln=True,
                          out_dtype=jnp.bfloat16)
    h = _graph_conv_layer(a_bf16, h, w2r, w2o, v2, tm=tm, apply_ln=True,
                          out_dtype=jnp.bfloat16)
    out = _graph_conv_layer(a_bf16, h, w3r, w3o, v3, tm=tm, apply_ln=False,
                            out_dtype=jnp.float32)
    return out[:N, :OUT_DIM]


def _reference_forward(x, edge_index, pos, params):
    """Pure-JAX reference mirroring the kernel's bf16-matmul / f32-accumulate math."""
    N = x.shape[0]
    src, dst = edge_index[0], edge_index[1]
    ew = 1.0 / (pos[src] - pos[dst])
    a = jnp.zeros((N, N), jnp.float32).at[dst, src].add(ew).astype(jnp.bfloat16)

    def gconv(h_f32, w_rel, w_root, b):
        h = h_f32.astype(jnp.bfloat16)
        agg = jnp.dot(a, h, preferred_element_type=jnp.float32).astype(jnp.bfloat16)
        return (jnp.dot(agg, w_rel.astype(jnp.bfloat16),
                        preferred_element_type=jnp.float32)
                + jnp.dot(h, w_root.astype(jnp.bfloat16),
                          preferred_element_type=jnp.float32)
                + b)

    def lnorm(h, g, be):
        mu = jnp.mean(h, axis=-1, keepdims=True)
        var = jnp.mean((h - mu) * (h - mu), axis=-1, keepdims=True)
        return (h - mu) * jax.lax.rsqrt(var + LN_EPS) * g + be

    h = jnp.maximum(lnorm(gconv(x, params["w1_rel"], params["w1_root"], params["b1"]),
                          params["g1"], params["be1"]), 0.0)
    h = jnp.maximum(lnorm(gconv(h, params["w2_rel"], params["w2_root"], params["b2"]),
                          params["g2"], params["be2"]), 0.0)
    return jnp.maximum(gconv(h, params["w3_rel"], params["w3_root"], params["b3"]), 0.0)


if __name__ == "__main__":
    key = jax.random.PRNGKey(0)
    k_x, k_pos, k_ext, k_params = jax.random.split(key, 4)

    N = 256            # nodes (2 row tiles of TM=128 -> exercises the pipelined grid)
    FEATURES = 16      # features_size

    x = jax.random.normal(k_x, (N, FEATURES), jnp.float32)
    pos = jax.random.normal(k_pos, (N,), jnp.float32)
    extent = jax.random.normal(k_ext, (N,), jnp.float32)  # unused in forward

    # Deterministic bidirectional ring graph: E = 2N edges.
    idx = jnp.arange(N, dtype=jnp.int32)
    nxt = (idx + 1) % N
    edge_index = jnp.stack(
        [jnp.concatenate([idx, nxt]), jnp.concatenate([nxt, idx])], axis=0)

    params = init_params(FEATURES, k_params)

    fwd = jax.jit(functools.partial(gnn_regressor_forward, tm=128))
    out = jax.block_until_ready(fwd(x, edge_index, pos, extent, params))
    assert out.shape == (N, OUT_DIM)
    assert bool(jnp.all(jnp.isfinite(out)))

    ref = jax.block_until_ready(_reference_forward(x, edge_index, pos, params))
    assert jnp.allclose(out, ref, rtol=1e-2, atol=1e-2), float(
        jnp.max(jnp.abs(out - ref)))

    print("KERNEL_OK")
</pallas_src>

<mosaic_0001>
module attributes {stable_mosaic.version = 11 : i64} {
  func.func private @main(%arg0: i32) attributes {dimension_semantics = [#tpu.dimension_semantics<core_parallel>], iteration_bounds = array<i64: 2>, tpu.core_type = #tpu.core_type<sc_scalar_subcore>, window_params = []} {
    return
  }
}

module attributes {stable_mosaic.version = 11 : i64} {
  func.func private @main(%arg0: i32) attributes {dimension_semantics = [#tpu.dimension_semantics<core_parallel>], iteration_bounds = array<i64: 2>, tpu.core_type = #tpu.core_type<sc_scalar_subcore>, window_params = []} {
    return
  }
}

module attributes {stable_mosaic.version = 11 : i64} {
  func.func @_graph_conv_kernel(%arg0: i32, %arg1: memref<128x256xbf16, #tpu.memory_space<vmem>>, %arg2: memref<256x128xbf16, #tpu.memory_space<vmem>>, %arg3: memref<128x128xbf16, #tpu.memory_space<vmem>>, %arg4: memref<128x512xbf16, #tpu.memory_space<vmem>>, %arg5: memref<128x512xbf16, #tpu.memory_space<vmem>>, %arg6: memref<3x512xf32, #tpu.memory_space<vmem>>, %arg7: memref<128x512xbf16, #tpu.memory_space<vmem>>) attributes {dimension_semantics = [#tpu.dimension_semantics<parallel>], iteration_bounds = array<i64: 2>, scalar_prefetch = 0 : i64, scratch_operands = 0 : i64, tpu.core_type = #tpu.core_type<tc>, window_params = [{transform_indices = @transform_0, window_bounds = array<i64: 128, 256>}, {pipeline_mode = #tpu.pipeline_mode<synchronous>, transform_indices = @transform_1, window_bounds = array<i64: 256, 128>}, {transform_indices = @transform_2, window_bounds = array<i64: 128, 128>}, {pipeline_mode = #tpu.pipeline_mode<synchronous>, transform_indices = @transform_3, window_bounds = array<i64: 128, 512>}, {pipeline_mode = #tpu.pipeline_mode<synchronous>, transform_indices = @transform_4, window_bounds = array<i64: 128, 512>}, {pipeline_mode = #tpu.pipeline_mode<synchronous>, transform_indices = @transform_5, window_bounds = array<i64: 3, 512>}, {transform_indices = @transform_6, window_bounds = array<i64: 128, 512>}]} {
    %c0 = arith.constant 0 : index
    %c0_0 = arith.constant 0 : index
    %0 = vector.load %arg1[%c0, %c0_0] : memref<128x256xbf16, #tpu.memory_space<vmem>>, vector<128x256xbf16>
    %c0_1 = arith.constant 0 : index
    %c0_2 = arith.constant 0 : index
    %1 = vector.load %arg2[%c0_1, %c0_2] : memref<256x128xbf16, #tpu.memory_space<vmem>>, vector<256x128xbf16>
    %cst = arith.constant dense<0.000000e+00> : vector<128x128xf32>
    %2 = tpu.matmul %0, %1, %cst {dimension_numbers = #tpu.dot_dimension_numbers<[1], [0], [0], [1], [0, 0, 1, 1], [], []>} : vector<128x256xbf16>, vector<256x128xbf16>, vector<128x128xf32> -> vector<128x128xf32>
    %3 = arith.truncf %2 : vector<128x128xf32> to vector<128x128xbf16>
    %c0_3 = arith.constant 0 : index
    %c0_4 = arith.constant 0 : index
    %4 = vector.load %arg4[%c0_3, %c0_4] : memref<128x512xbf16, #tpu.memory_space<vmem>>, vector<128x512xbf16>
    %cst_5 = arith.constant dense<0.000000e+00> : vector<128x512xf32>
    %5 = tpu.matmul %3, %4, %cst_5 {dimension_numbers = #tpu.dot_dimension_numbers<[1], [0], [0], [1], [0, 0, 1, 1], [], []>} : vector<128x128xbf16>, vector<128x512xbf16>, vector<128x512xf32> -> vector<128x512xf32>
    %c0_6 = arith.constant 0 : index
    %c0_7 = arith.constant 0 : index
    %6 = vector.load %arg3[%c0_6, %c0_7] : memref<128x128xbf16, #tpu.memory_space<vmem>>, vector<128x128xbf16>
    %c0_8 = arith.constant 0 : index
    %c0_9 = arith.constant 0 : index
    %7 = vector.load %arg5[%c0_8, %c0_9] : memref<128x512xbf16, #tpu.memory_space<vmem>>, vector<128x512xbf16>
    %cst_10 = arith.constant dense<0.000000e+00> : vector<128x512xf32>
    %8 = tpu.matmul %6, %7, %cst_10 {dimension_numbers = #tpu.dot_dimension_numbers<[1], [0], [0], [1], [0, 0, 1, 1], [], []>} : vector<128x128xbf16>, vector<128x512xbf16>, vector<128x512xf32> -> vector<128x512xf32>
    %9 = arith.addf %5, %8 : vector<128x512xf32>
    %c0_11 = arith.constant 0 : index
    %c0_12 = arith.constant 0 : index
    %10 = vector.load %arg6[%c0_11, %c0_12] : memref<3x512xf32, #tpu.memory_space<vmem>>, vector<1x512xf32>
    %11 = vector.broadcast %10 : vector<1x512xf32> to vector<128x512xf32>
    %12 = arith.addf %9, %11 : vector<128x512xf32>
    %c1 = arith.constant 1 : index
    %c0_13 = arith.constant 0 : index
    %13 = vector.load %arg6[%c1, %c0_13] : memref<3x512xf32, #tpu.memory_space<vmem>>, vector<1x512xf32>
    %c2 = arith.constant 2 : index
    %c0_14 = arith.constant 0 : index
    %14 = vector.load %arg6[%c2, %c0_14] : memref<3x512xf32, #tpu.memory_space<vmem>>, vector<1x512xf32>
    %cst_15 = arith.constant dense<0.000000e+00> : vector<128xf32>
    %15 = vector.multi_reduction <add>, %12, %cst_15 [1] : vector<128x512xf32> to vector<128xf32>
    %16 = vector.shape_cast %15 : vector<128xf32> to vector<128x1xf32>
    %cst_16 = arith.constant 5.120000e+02 : f32
    %17 = vector.broadcast %cst_16 : f32 to vector<128x1xf32>
    %18 = arith.divf %16, %17 : vector<128x1xf32>
    %19 = vector.broadcast %18 : vector<128x1xf32> to vector<128x512xf32>
    %20 = arith.subf %12, %19 : vector<128x512xf32>
    %21 = vector.broadcast %18 : vector<128x1xf32> to vector<128x512xf32>
    %22 = arith.subf %12, %21 : vector<128x512xf32>
    %23 = arith.mulf %20, %22 : vector<128x512xf32>
    %cst_17 = arith.constant dense<0.000000e+00> : vector<128xf32>
    %24 = vector.multi_reduction <add>, %23, %cst_17 [1] : vector<128x512xf32> to vector<128xf32>
    %25 = vector.shape_cast %24 : vector<128xf32> to vector<128x1xf32>
    %cst_18 = arith.constant 5.120000e+02 : f32
    %26 = vector.broadcast %cst_18 : f32 to vector<128x1xf32>
    %27 = arith.divf %25, %26 : vector<128x1xf32>
    %28 = vector.broadcast %18 : vector<128x1xf32> to vector<128x512xf32>
    %29 = arith.subf %12, %28 : vector<128x512xf32>
    %cst_19 = arith.constant 9.99999974E-6 : f32
    %30 = vector.broadcast %cst_19 : f32 to vector<128x1xf32>
    %31 = arith.addf %27, %30 : vector<128x1xf32>
    %32 = math.rsqrt %31 : vector<128x1xf32>
    %33 = vector.broadcast %32 : vector<128x1xf32> to vector<128x512xf32>
    %34 = arith.mulf %29, %33 : vector<128x512xf32>
    %35 = vector.broadcast %13 : vector<1x512xf32> to vector<128x512xf32>
    %36 = arith.mulf %34, %35 : vector<128x512xf32>
    %37 = vector.broadcast %14 : vector<1x512xf32> to vector<128x512xf32>
    %38 = arith.addf %36, %37 : vector<128x512xf32>
    %cst_20 = arith.constant 0.000000e+00 : f32
    %39 = vector.broadcast %cst_20 : f32 to vector<128x512xf32>
    %40 = arith.maximumf %38, %39 : vector<128x512xf32>
    %41 = arith.truncf %40 : vector<128x512xf32> to vector<128x512xbf16>
    %c0_21 = arith.constant 0 : index
    %c0_22 = arith.constant 0 : index
    %42 = vector.load %arg7[%c0_21, %c0_22] : memref<128x512xbf16, #tpu.memory_space<vmem>>, vector<128x512xbf16>
    tpu.vector_store %arg7[%c0_21, %c0_22], %41 {strides = array<i32>} : memref<128x512xbf16, #tpu.memory_space<vmem>>, vector<128x512xbf16>,
    return
  }
  func.func @transform_0(%arg0: i32) -> (i32, i32) {
    %c0_i32 = arith.constant 0 : i32
    %c0_i32_0 = arith.constant 0 : i32
    return %arg0, %c0_i32 : i32, i32
  }
  func.func @transform_1(%arg0: i32) -> (i32, i32) {
    %c0_i32 = arith.constant 0 : i32
    %c0_i32_0 = arith.constant 0 : i32
    %c0_i32_1 = arith.constant 0 : i32
    return %c0_i32, %c0_i32_0 : i32, i32
  }
  func.func @transform_2(%arg0: i32) -> (i32, i32) {
    %c0_i32 = arith.constant 0 : i32
    %c0_i32_0 = arith.constant 0 : i32
    return %arg0, %c0_i32 : i32, i32
  }
  func.func @transform_3(%arg0: i32) -> (i32, i32) {
    %c0_i32 = arith.constant 0 : i32
    %c0_i32_0 = arith.constant 0 : i32
    %c0_i32_1 = arith.constant 0 : i32
    return %c0_i32, %c0_i32_0 : i32, i32
  }
  func.func @transform_4(%arg0: i32) -> (i32, i32) {
    %c0_i32 = arith.constant 0 : i32
    %c0_i32_0 = arith.constant 0 : i32
    %c0_i32_1 = arith.constant 0 : i32
    return %c0_i32, %c0_i32_0 : i32, i32
  }
  func.func @transform_5(%arg0: i32) -> (i32, i32) {
    %c0_i32 = arith.constant 0 : i32
    %c0_i32_0 = arith.constant 0 : i32
    %c0_i32_1 = arith.constant 0 : i32
    return %c0_i32, %c0_i32_0 : i32, i32
  }
  func.func @transform_6(%arg0: i32) -> (i32, i32) {
    %c0_i32 = arith.constant 0 : i32
    %c0_i32_0 = arith.constant 0 : i32
    return %arg0, %c0_i32 : i32, i32
  }
}

module attributes {stable_mosaic.version = 11 : i64} {
  func.func @_graph_conv_kernel(%arg0: i32, %arg1: memref<128x256xbf16, #tpu.memory_space<vmem>>, %arg2: memref<256x512xbf16, #tpu.memory_space<vmem>>, %arg3: memref<128x512xbf16, #tpu.memory_space<vmem>>, %arg4: memref<512x512xbf16, #tpu.memory_space<vmem>>, %arg5: memref<512x512xbf16, #tpu.memory_space<vmem>>, %arg6: memref<3x512xf32, #tpu.memory_space<vmem>>, %arg7: memref<128x512xbf16, #tpu.memory_space<vmem>>) attributes {dimension_semantics = [#tpu.dimension_semantics<parallel>], iteration_bounds = array<i64: 2>, scalar_prefetch = 0 : i64, scratch_operands = 0 : i64, tpu.core_type = #tpu.core_type<tc>, window_params = [{transform_indices = @transform_0, window_bounds = array<i64: 128, 256>}, {pipeline_mode = #tpu.pipeline_mode<synchronous>, transform_indices = @transform_1, window_bounds = array<i64: 256, 512>}, {transform_indices = @transform_2, window_bounds = array<i64: 128, 512>}, {pipeline_mode = #tpu.pipeline_mode<synchronous>, transform_indices = @transform_3, window_bounds = array<i64: 512, 512>}, {pipeline_mode = #tpu.pipeline_mode<synchronous>, transform_indices = @transform_4, window_bounds = array<i64: 512, 512>}, {pipeline_mode = #tpu.pipeline_mode<synchronous>, transform_indices = @transform_5, window_bounds = array<i64: 3, 512>}, {transform_indices = @transform_6, window_bounds = array<i64: 128, 512>}]} {
    %c0 = arith.constant 0 : index
    %c0_0 = arith.constant 0 : index
    %0 = vector.load %arg1[%c0, %c0_0] : memref<128x256xbf16, #tpu.memory_space<vmem>>, vector<128x256xbf16>
    %c0_1 = arith.constant 0 : index
    %c0_2 = arith.constant 0 : index
    %1 = vector.load %arg2[%c0_1, %c0_2] : memref<256x512xbf16, #tpu.memory_space<vmem>>, vector<256x512xbf16>
    %cst = arith.constant dense<0.000000e+00> : vector<128x512xf32>
    %2 = tpu.matmul %0, %1, %cst {dimension_numbers = #tpu.dot_dimension_numbers<[1], [0], [0], [1], [0, 0, 1, 1], [], []>} : vector<128x256xbf16>, vector<256x512xbf16>, vector<128x512xf32> -> vector<128x512xf32>
    %3 = arith.truncf %2 : vector<128x512xf32> to vector<128x512xbf16>
    %c0_3 = arith.constant 0 : index
    %c0_4 = arith.constant 0 : index
    %4 = vector.load %arg4[%c0_3, %c0_4] : memref<512x512xbf16, #tpu.memory_space<vmem>>, vector<512x512xbf16>
    %cst_5 = arith.constant dense<0.000000e+00> : vector<128x512xf32>
    %5 = tpu.matmul %3, %4, %cst_5 {dimension_numbers = #tpu.dot_dimension_numbers<[1], [0], [0], [1], [0, 0, 1, 1], [], []>} : vector<128x512xbf16>, vector<512x512xbf16>, vector<128x512xf32> -> vector<128x512xf32>
    %c0_6 = arith.constant 0 : index
    %c0_7 = arith.constant 0 : index
    %6 = vector.load %arg3[%c0_6, %c0_7] : memref<128x512xbf16, #tpu.memory_space<vmem>>, vector<128x512xbf16>
    %c0_8 = arith.constant 0 : index
    %c0_9 = arith.constant 0 : index
    %7 = vector.load %arg5[%c0_8, %c0_9] : memref<512x512xbf16, #tpu.memory_space<vmem>>, vector<512x512xbf16>
    %cst_10 = arith.constant dense<0.000000e+00> : vector<128x512xf32>
    %8 = tpu.matmul %6, %7, %cst_10 {dimension_numbers = #tpu.dot_dimension_numbers<[1], [0], [0], [1], [0, 0, 1, 1], [], []>} : vector<128x512xbf16>, vector<512x512xbf16>, vector<128x512xf32> -> vector<128x512xf32>
    %9 = arith.addf %5, %8 : vector<128x512xf32>
    %c0_11 = arith.constant 0 : index
    %c0_12 = arith.constant 0 : index
    %10 = vector.load %arg6[%c0_11, %c0_12] : memref<3x512xf32, #tpu.memory_space<vmem>>, vector<1x512xf32>
    %11 = vector.broadcast %10 : vector<1x512xf32> to vector<128x512xf32>
    %12 = arith.addf %9, %11 : vector<128x512xf32>
    %c1 = arith.constant 1 : index
    %c0_13 = arith.constant 0 : index
    %13 = vector.load %arg6[%c1, %c0_13] : memref<3x512xf32, #tpu.memory_space<vmem>>, vector<1x512xf32>
    %c2 = arith.constant 2 : index
    %c0_14 = arith.constant 0 : index
    %14 = vector.load %arg6[%c2, %c0_14] : memref<3x512xf32, #tpu.memory_space<vmem>>, vector<1x512xf32>
    %cst_15 = arith.constant dense<0.000000e+00> : vector<128xf32>
    %15 = vector.multi_reduction <add>, %12, %cst_15 [1] : vector<128x512xf32> to vector<128xf32>
    %16 = vector.shape_cast %15 : vector<128xf32> to vector<128x1xf32>
    %cst_16 = arith.constant 5.120000e+02 : f32
    %17 = vector.broadcast %cst_16 : f32 to vector<128x1xf32>
    %18 = arith.divf %16, %17 : vector<128x1xf32>
    %19 = vector.broadcast %18 : vector<128x1xf32> to vector<128x512xf32>
    %20 = arith.subf %12, %19 : vector<128x512xf32>
    %21 = vector.broadcast %18 : vector<128x1xf32> to vector<128x512xf32>
    %22 = arith.subf %12, %21 : vector<128x512xf32>
    %23 = arith.mulf %20, %22 : vector<128x512xf32>
    %cst_17 = arith.constant dense<0.000000e+00> : vector<128xf32>
    %24 = vector.multi_reduction <add>, %23, %cst_17 [1] : vector<128x512xf32> to vector<128xf32>
    %25 = vector.shape_cast %24 : vector<128xf32> to vector<128x1xf32>
    %cst_18 = arith.constant 5.120000e+02 : f32
    %26 = vector.broadcast %cst_18 : f32 to vector<128x1xf32>
    %27 = arith.divf %25, %26 : vector<128x1xf32>
    %28 = vector.broadcast %18 : vector<128x1xf32> to vector<128x512xf32>
    %29 = arith.subf %12, %28 : vector<128x512xf32>
    %cst_19 = arith.constant 9.99999974E-6 : f32
    %30 = vector.broadcast %cst_19 : f32 to vector<128x1xf32>
    %31 = arith.addf %27, %30 : vector<128x1xf32>
    %32 = math.rsqrt %31 : vector<128x1xf32>
    %33 = vector.broadcast %32 : vector<128x1xf32> to vector<128x512xf32>
    %34 = arith.mulf %29, %33 : vector<128x512xf32>
    %35 = vector.broadcast %13 : vector<1x512xf32> to vector<128x512xf32>
    %36 = arith.mulf %34, %35 : vector<128x512xf32>
    %37 = vector.broadcast %14 : vector<1x512xf32> to vector<128x512xf32>
    %38 = arith.addf %36, %37 : vector<128x512xf32>
    %cst_20 = arith.constant 0.000000e+00 : f32
    %39 = vector.broadcast %cst_20 : f32 to vector<128x512xf32>
    %40 = arith.maximumf %38, %39 : vector<128x512xf32>
    %41 = arith.truncf %40 : vector<128x512xf32> to vector<128x512xbf16>
    %c0_21 = arith.constant 0 : index
    %c0_22 = arith.constant 0 : index
    %42 = vector.load %arg7[%c0_21, %c0_22] : memref<128x512xbf16, #tpu.memory_space<vmem>>, vector<128x512xbf16>
    tpu.vector_store %arg7[%c0_21, %c0_22], %41 {strides = array<i32>} : memref<128x512xbf16, #tpu.memory_space<vmem>>, vector<128x512xbf16>,
    return
  }
  func.func @transform_0(%arg0: i32) -> (i32, i32) {
    %c0_i32 = arith.constant 0 : i32
    %c0_i32_0 = arith.constant 0 : i32
    return %arg0, %c0_i32 : i32, i32
  }
  func.func @transform_1(%arg0: i32) -> (i32, i32) {
    %c0_i32 = arith.constant 0 : i32
    %c0_i32_0 = arith.constant 0 : i32
    %c0_i32_1 = arith.constant 0 : i32
    return %c0_i32, %c0_i32_0 : i32, i32
  }
  func.func @transform_2(%arg0: i32) -> (i32, i32) {
    %c0_i32 = arith.constant 0 : i32
    %c0_i32_0 = arith.constant 0 : i32
    return %arg0, %c0_i32 : i32, i32
  }
  func.func @transform_3(%arg0: i32) -> (i32, i32) {
    %c0_i32 = arith.constant 0 : i32
    %c0_i32_0 = arith.constant 0 : i32
    %c0_i32_1 = arith.constant 0 : i32
    return %c0_i32, %c0_i32_0 : i32, i32
  }
  func.func @transform_4(%arg0: i32) -> (i32, i32) {
    %c0_i32 = arith.constant 0 : i32
    %c0_i32_0 = arith.constant 0 : i32
    %c0_i32_1 = arith.constant 0 : i32
    return %c0_i32, %c0_i32_0 : i32, i32
  }
  func.func @transform_5(%arg0: i32) -> (i32, i32) {
    %c0_i32 = arith.constant 0 : i32
    %c0_i32_0 = arith.constant 0 : i32
    %c0_i32_1 = arith.constant 0 : i32
    return %c0_i32, %c0_i32_0 : i32, i32
  }
  func.func @transform_6(%arg0: i32) -> (i32, i32) {
    %c0_i32 = arith.constant 0 : i32
    %c0_i32_0 = arith.constant 0 : i32
    return %arg0, %c0_i32 : i32, i32
  }
}

module attributes {stable_mosaic.version = 11 : i64} {
  func.func @_graph_conv_kernel(%arg0: i32, %arg1: memref<128x256xbf16, #tpu.memory_space<vmem>>, %arg2: memref<256x512xbf16, #tpu.memory_space<vmem>>, %arg3: memref<128x512xbf16, #tpu.memory_space<vmem>>, %arg4: memref<512x128xbf16, #tpu.memory_space<vmem>>, %arg5: memref<512x128xbf16, #tpu.memory_space<vmem>>, %arg6: memref<3x128xf32, #tpu.memory_space<vmem>>, %arg7: memref<128x128xf32, #tpu.memory_space<vmem>>) attributes {dimension_semantics = [#tpu.dimension_semantics<parallel>], iteration_bounds = array<i64: 2>, scalar_prefetch = 0 : i64, scratch_operands = 0 : i64, tpu.core_type = #tpu.core_type<tc>, window_params = [{transform_indices = @transform_0, window_bounds = array<i64: 128, 256>}, {pipeline_mode = #tpu.pipeline_mode<synchronous>, transform_indices = @transform_1, window_bounds = array<i64: 256, 512>}, {transform_indices = @transform_2, window_bounds = array<i64: 128, 512>}, {pipeline_mode = #tpu.pipeline_mode<synchronous>, transform_indices = @transform_3, window_bounds = array<i64: 512, 128>}, {pipeline_mode = #tpu.pipeline_mode<synchronous>, transform_indices = @transform_4, window_bounds = array<i64: 512, 128>}, {pipeline_mode = #tpu.pipeline_mode<synchronous>, transform_indices = @transform_5, window_bounds = array<i64: 3, 128>}, {transform_indices = @transform_6, window_bounds = array<i64: 128, 128>}]} {
    %c0 = arith.constant 0 : index
    %c0_0 = arith.constant 0 : index
    %0 = vector.load %arg1[%c0, %c0_0] : memref<128x256xbf16, #tpu.memory_space<vmem>>, vector<128x256xbf16>
    %c0_1 = arith.constant 0 : index
    %c0_2 = arith.constant 0 : index
    %1 = vector.load %arg2[%c0_1, %c0_2] : memref<256x512xbf16, #tpu.memory_space<vmem>>, vector<256x512xbf16>
    %cst = arith.constant dense<0.000000e+00> : vector<128x512xf32>
    %2 = tpu.matmul %0, %1, %cst {dimension_numbers = #tpu.dot_dimension_numbers<[1], [0], [0], [1], [0, 0, 1, 1], [], []>} : vector<128x256xbf16>, vector<256x512xbf16>, vector<128x512xf32> -> vector<128x512xf32>
    %3 = arith.truncf %2 : vector<128x512xf32> to vector<128x512xbf16>
    %c0_3 = arith.constant 0 : index
    %c0_4 = arith.constant 0 : index
    %4 = vector.load %arg4[%c0_3, %c0_4] : memref<512x128xbf16, #tpu.memory_space<vmem>>, vector<512x128xbf16>
    %cst_5 = arith.constant dense<0.000000e+00> : vector<128x128xf32>
    %5 = tpu.matmul %3, %4, %cst_5 {dimension_numbers = #tpu.dot_dimension_numbers<[1], [0], [0], [1], [0, 0, 1, 1], [], []>} : vector<128x512xbf16>, vector<512x128xbf16>, vector<128x128xf32> -> vector<128x128xf32>
    %c0_6 = arith.constant 0 : index
    %c0_7 = arith.constant 0 : index
    %6 = vector.load %arg3[%c0_6, %c0_7] : memref<128x512xbf16, #tpu.memory_space<vmem>>, vector<128x512xbf16>
    %c0_8 = arith.constant 0 : index
    %c0_9 = arith.constant 0 : index
    %7 = vector.load %arg5[%c0_8, %c0_9] : memref<512x128xbf16, #tpu.memory_space<vmem>>, vector<512x128xbf16>
    %cst_10 = arith.constant dense<0.000000e+00> : vector<128x128xf32>
    %8 = tpu.matmul %6, %7, %cst_10 {dimension_numbers = #tpu.dot_dimension_numbers<[1], [0], [0], [1], [0, 0, 1, 1], [], []>} : vector<128x512xbf16>, vector<512x128xbf16>, vector<128x128xf32> -> vector<128x128xf32>
    %9 = arith.addf %5, %8 : vector<128x128xf32>
    %c0_11 = arith.constant 0 : index
    %c0_12 = arith.constant 0 : index
    %10 = vector.load %arg6[%c0_11, %c0_12] : memref<3x128xf32, #tpu.memory_space<vmem>>, vector<1x128xf32>
    %11 = vector.broadcast %10 : vector<1x128xf32> to vector<128x128xf32>
    %12 = arith.addf %9, %11 : vector<128x128xf32>
    %cst_13 = arith.constant 0.000000e+00 : f32
    %13 = vector.broadcast %cst_13 : f32 to vector<128x128xf32>
    %14 = arith.maximumf %12, %13 : vector<128x128xf32>
    %c0_14 = arith.constant 0 : index
    %c0_15 = arith.constant 0 : index
    %15 = vector.load %arg7[%c0_14, %c0_15] : memref<128x128xf32, #tpu.memory_space<vmem>>, vector<128x128xf32>
    tpu.vector_store %arg7[%c0_14, %c0_15], %14 {strides = array<i32>} : memref<128x128xf32, #tpu.memory_space<vmem>>, vector<128x128xf32>,
    return
  }
  func.func @transform_0(%arg0: i32) -> (i32, i32) {
    %c0_i32 = arith.constant 0 : i32
    %c0_i32_0 = arith.constant 0 : i32
    return %arg0, %c0_i32 : i32, i32
  }
  func.func @transform_1(%arg0: i32) -> (i32, i32) {
    %c0_i32 = arith.constant 0 : i32
    %c0_i32_0 = arith.constant 0 : i32
    %c0_i32_1 = arith.constant 0 : i32
    return %c0_i32, %c0_i32_0 : i32, i32
  }
  func.func @transform_2(%arg0: i32) -> (i32, i32) {
    %c0_i32 = arith.constant 0 : i32
    %c0_i32_0 = arith.constant 0 : i32
    return %arg0, %c0_i32 : i32, i32
  }
  func.func @transform_3(%arg0: i32) -> (i32, i32) {
    %c0_i32 = arith.constant 0 : i32
    %c0_i32_0 = arith.constant 0 : i32
    %c0_i32_1 = arith.constant 0 : i32
    return %c0_i32, %c0_i32_0 : i32, i32
  }
  func.func @transform_4(%arg0: i32) -> (i32, i32) {
    %c0_i32 = arith.constant 0 : i32
    %c0_i32_0 = arith.constant 0 : i32
    %c0_i32_1 = arith.constant 0 : i32
    return %c0_i32, %c0_i32_0 : i32, i32
  }
  func.func @transform_5(%arg0: i32) -> (i32, i32) {
    %c0_i32 = arith.constant 0 : i32
    %c0_i32_0 = arith.constant 0 : i32
    %c0_i32_1 = arith.constant 0 : i32
    return %c0_i32, %c0_i32_0 : i32, i32
  }
  func.func @transform_6(%arg0: i32) -> (i32, i32) {
    %c0_i32 = arith.constant 0 : i32
    %c0_i32_0 = arith.constant 0 : i32
    return %arg0, %c0_i32 : i32, i32
  }
}

</mosaic_0001>

<llo_original>
// kernel: gnn_regressor_forward.3
$region0: #{gnn_regressor_forward.3}
  #allocation0 [shape = 'u32[]', space=smem, size = 0x4, offset = 0x4, fixed_abs, tag = 'smem constant byte address 0x4 - core index']
  #allocation1 [shape = 'u32[144,128]{1,0:T(1,128)}', space=vmem, size = 0x12000, scoped, tag = 'internal scratch']
  %s0 = inlined_call_operand.vmem [shape: bf16[256,256], index: 0, kind: input, shape index: {}]
  %s1 = inlined_call_operand.vmem [shape: bf16[256,128], index: 1, kind: input, shape index: {}, may-alias: {1,2}]
  %s2 = inlined_call_operand.vmem [shape: bf16[256,128], index: 2, kind: input, shape index: {}, may-alias: {1,2}]
  %s3 = inlined_call_operand.vmem [shape: bf16[128,512], index: 3, kind: input, shape index: {}]
  %s4 = inlined_call_operand.vmem [shape: bf16[128,512], index: 4, kind: input, shape index: {}]
  %s5 = inlined_call_operand.vmem [shape: f32[3,512], index: 5, kind: input, shape index: {}]
  %s6 = inlined_call_operand.vmem [shape: bf16[256,512], index: 6, kind: output, shape index: {}]
  %s7 = sld [smem:[#allocation0]]
  $region57: #{gnn_regressor_forward.3} parent=0
    _
  %s9 = ssub.s32 1, %s7
  %s10 = scalar_select 0, %s9, %s7
  loop: start=0, step=1, limit=4
  $region2: #{gnn_regressor_forward.3} parent=0 // loop_pre_header
    _
  $region3: #{gnn_regressor_forward.3} parent=0 // loop_header
    %s12 = sphi 0, %s16
    %p13 = scmp.ge.s32.totalorder %s12, 4
    %s22 = sphi 0, %s24
    %s25 = sphi 0, %s22
    %s26 = sphi 0, %s25
    %s42 = sphi 0, %s26
    %s46 = sphi 0, %s46
    %s48 = sphi 0, %s46
    %s49 = sphi 0, %s48
    %s63 = sphi 0, %s49
    %s69 = sphi 0, %s71
    %s72 = sphi 0, %s69
    %s73 = sphi 0, %s72
    %s89 = sphi 0, %s73
    %s93 = sphi 0, %s93
    %s95 = sphi 0, %s93
    %s96 = sphi 0, %s95
    %s110 = sphi 0, %s96
    %s114 = sphi 0, %s114
    %s116 = sphi 0, %s114
    %s117 = sphi 0, %s116
    %s131 = sphi 0, %s117
    %s135 = sphi 0, %s135
    %s137 = sphi 0, %s135
    %s138 = sphi 0, %s137
    %s152 = sphi 0, %s138
    %s158 = sphi 0, %s160
    %s161 = sphi 0, %s158
    %s162 = sphi 0, %s161
    %s178 = sphi 0, %s162
  $region4: #{gnn_regressor_forward.3} parent=0 // loop_header_branch
    %15 = sbr.rel (%p13) target = $region8
  $region5: #{gnn_regressor_forward.3} parent=0 // loop_body
    %s17 = ssub.s32 %s12, 1
    %s18 = ssub.s32 %s12, 2
    %s19 = sadd.s32 %s12, 1
    %s20 = ssub.s32 %s12, %s19
    %p21 = scmp.eq.s32.totalorder %s20, 0
    %s23 = sadd.s32 %s22, 1
    %s24 = scalar_select %p21, %s22, %s23
    %p27 = pneg %p21
    %p28 = scmp.eq.s32.totalorder %s12, 1
    %p29 = por %p27, %p28
    %p30 = scmp.ne.s32.totalorder %s22, %s25
    %p31 = scmp.eq.s32.totalorder %s12, 0
    %p32 = por %p30, %p31
    %p33 = scmp.ne.s32.totalorder %s22, %s25
    %p34 = scmp.eq.s32.totalorder %s17, 1
    %p35 = por %p33, %p34
    %p36 = scmp.ne.s32.totalorder %s25, %s26
    %p37 = scmp.eq.s32.totalorder %s17, 0
    %p38 = por %p36, %p37
    %p39 = scmp.ne.s32.totalorder %s25, %s26
    %p40 = scmp.eq.s32.totalorder %s18, 1
    %p41 = por %p39, %p40
    %p43 = scmp.ne.s32.totalorder %s26, %s42
    %p44 = scmp.eq.s32.totalorder %s18, 0
    %p45 = por %p43, %p44
    %s47 = sadd.s32 %s46, 1
    %p50 = scmp.eq.s32.totalorder %s12, 1
    %p51 = scmp.ne.s32.totalorder %s46, %s48
    %p52 = scmp.eq.s32.totalorder %s12, 0
    %p53 = por %p51, %p52
    %p54 = scmp.ne.s32.totalorder %s46, %s48
    %p55 = scmp.eq.s32.totalorder %s17, 1
    %p56 = por %p54, %p55
    %p57 = scmp.ne.s32.totalorder %s48, %s49
    %p58 = scmp.eq.s32.totalorder %s17, 0
    %p59 = por %p57, %p58
    %p60 = scmp.ne.s32.totalorder %s48, %s49
    %p61 = scmp.eq.s32.totalorder %s18, 1
    %p62 = por %p60, %p61
    %p64 = scmp.ne.s32.totalorder %s49, %s63
    %p65 = scmp.eq.s32.totalorder %s18, 0
    %p66 = por %p64, %p65
    %s67 = ssub.s32 %s12, %s19
    %p68 = scmp.eq.s32.totalorder %s67, 0
    %s70 = sadd.s32 %s69, 1
    %s71 = scalar_select %p68, %s69, %s70
    %p74 = pneg %p68
    %p75 = scmp.eq.s32.totalorder %s12, 1
    %p76 = por %p74, %p75
    %p77 = scmp.ne.s32.totalorder %s69, %s72
    %p78 = scmp.eq.s32.totalorder %s12, 0
    %p79 = por %p77, %p78
    %p80 = scmp.ne.s32.totalorder %s69, %s72
    %p81 = scmp.eq.s32.totalorder %s17, 1
    %p82 = por %p80, %p81
    %p83 = scmp.ne.s32.totalorder %s72, %s73
    %p84 = scmp.eq.s32.totalorder %s17, 0
    %p85 = por %p83, %p84
    %p86 = scmp.ne.s32.totalorder %s72, %s73
    %p87 = scmp.eq.s32.totalorder %s18, 1
    %p88 = por %p86, %p87
    %p90 = scmp.ne.s32.totalorder %s73, %s89
    %p91 = scmp.eq.s32.totalorder %s18, 0
    %p92 = por %p90, %p91
    %s94 = sadd.s32 %s93, 1
    %p97 = scmp.eq.s32.totalorder %s12, 1
    %p98 = scmp.ne.s32.totalorder %s93, %s95
    %p99 = scmp.eq.s32.totalorder %s12, 0
    %p100 = por %p98, %p99
    %p101 = scmp.ne.s32.totalorder %s93, %s95
    %p102 = scmp.eq.s32.totalorder %s17, 1
    %p103 = por %p101, %p102
    %p104 = scmp.ne.s32.totalorder %s95, %s96
    %p105 = scmp.eq.s32.totalorder %s17, 0
    %p106 = por %p104, %p105
    %p107 = scmp.ne.s32.totalorder %s95, %s96
    %p108 = scmp.eq.s32.totalorder %s18, 1
    %p109 = por %p107, %p108
    %p111 = scmp.ne.s32.totalorder %s96, %s110
    %p112 = scmp.eq.s32.totalorder %s18, 0
    %p113 = por %p111, %p112
    %s115 = sadd.s32 %s114, 1
    %p118 = scmp.eq.s32.totalorder %s12, 1
    %p119 = scmp.ne.s32.totalorder %s114, %s116
    %p120 = scmp.eq.s32.totalorder %s12, 0
    %p121 = por %p119, %p120
    %p122 = scmp.ne.s32.totalorder %s114, %s116
    %p123 = scmp.eq.s32.totalorder %s17, 1
    %p124 = por %p122, %p123
    %p125 = scmp.ne.s32.totalorder %s116, %s117
    %p126 = scmp.eq.s32.totalorder %s17, 0
    %p127 = por %p125, %p126
    %p128 = scmp.ne.s32.totalorder %s116, %s117
    %p129 = scmp.eq.s32.totalorder %s18, 1
    %p130 = por %p128, %p129
    %p132 = scmp.ne.s32.totalorder %s117, %s131
    %p133 = scmp.eq.s32.totalorder %s18, 0
    %p134 = por %p132, %p133
    %s136 = sadd.s32 %s135, 1
    %p139 = scmp.eq.s32.totalorder %s12, 1
    %p140 = scmp.ne.s32.totalorder %s135, %s137
    %p141 = scmp.eq.s32.totalorder %s12, 0
    %p142 = por %p140, %p141
    %p143 = scmp.ne.s32.totalorder %s135, %s137
    %p144 = scmp.eq.s32.totalorder %s17, 1
    %p145 = por %p143, %p144
    %p146 = scmp.ne.s32.totalorder %s137, %s138
    %p147 = scmp.eq.s32.totalorder %s17, 0
    %p148 = por %p146, %p147
    %p149 = scmp.ne.s32.totalorder %s137, %s138
    %p150 = scmp.eq.s32.totalorder %s18, 1
    %p151 = por %p149, %p150
    %p153 = scmp.ne.s32.totalorder %s138, %s152
    %p154 = scmp.eq.s32.totalorder %s18, 0
    %p155 = por %p153, %p154
    %s156 = ssub.s32 %s12, %s19
    %p157 = scmp.eq.s32.totalorder %s156, 0
    %s159 = sadd.s32 %s158, 1
    %s160 = scalar_select %p157, %s158, %s159
    %p163 = pneg %p157
    %p164 = scmp.eq.s32.totalorder %s12, 1
    %p165 = por %p163, %p164
    %p166 = scmp.ne.s32.totalorder %s158, %s161
    %p167 = scmp.eq.s32.totalorder %s12, 0
    %p168 = por %p166, %p167
    %p169 = scmp.ne.s32.totalorder %s158, %s161
    %p170 = scmp.eq.s32.totalorder %s17, 1
    %p171 = por %p169, %p170
    %p172 = scmp.ne.s32.totalorder %s161, %s162
    %p173 = scmp.eq.s32.totalorder %s17, 0
    %p174 = por %p172, %p173
    %p175 = scmp.ne.s32.totalorder %s161, %s162
    %p176 = scmp.eq.s32.totalorder %s18, 1
    %p177 = por %p175, %p176
    %p179 = scmp.ne.s32.totalorder %s162, %s178
    %p180 = scmp.eq.s32.totalorder %s18, 0
    %p181 = por %p179, %p180
    %p182 = scmp.le.s32.totalorder 1, %s12
    %p183 = scmp.lt.s32.totalorder %s12, 3
    %p184 = pnand %p182, %p183
    %p185 = pneg %p184
    // Predicated region
    $region9: #{gnn_regressor_forward.3} parent=5 // pred_check
      _
    $region10: #{gnn_regressor_forward.3} parent=5 // pred_check_branch
      %187 = sbr.rel (%p184) target = $region12
    $region11: #{gnn_regressor_forward.3} parent=5 // pred_region
      %s188 = ssub.s32 %s12, 1
      // Predicated region
      $region13: #{gnn_regressor_forward.3} parent=11 // pred_check
        %p189 = pneg %p59
      $region14: #{gnn_regressor_forward.3} parent=11 // pred_check_branch
        %191 = sbr.rel (%p189) target = $region16
      $region15: #{gnn_regressor_forward.3} parent=11 // pred_region
        _
      $region16: #{gnn_regressor_forward.3} parent=11 // pred_fallthru
        _
      // Predicated region
      $region17: #{gnn_regressor_forward.3} parent=11 // pred_check
        %p192 = pneg %p106
      $region18: #{gnn_regressor_forward.3} parent=11 // pred_check_branch
        %194 = sbr.rel (%p192) target = $region20
      $region19: #{gnn_regressor_forward.3} parent=11 // pred_region
        _
      $region20: #{gnn_regressor_forward.3} parent=11 // pred_fallthru
        _
      // Predicated region
      $region21: #{gnn_regressor_forward.3} parent=11 // pred_check
        %p195 = pneg %p127
      $region22: #{gnn_regressor_forward.3} parent=11 // pred_check_branch
        %197 = sbr.rel (%p195) target = $region24
      $region23: #{gnn_regressor_forward.3} parent=11 // pred_region
        _
      $region24: #{gnn_regressor_forward.3} parent=11 // pred_fallthru
        _
      // Predicated region
      $region25: #{gnn_regressor_forward.3} parent=11 // pred_check
        %p198 = pneg %p148
      $region26: #{gnn_regressor_forward.3} parent=11 // pred_check_branch
        %200 = sbr.rel (%p198) target = $region28
      $region27: #{gnn_regressor_forward.3} parent=11 // pred_region
        _
      $region28: #{gnn_regressor_forward.3} parent=11 // pred_fallthru
        _
    $region12: #{gnn_regressor_forward.3} parent=5 // pred_fallthru
      _
    %p201 = scmp.lt.s32.totalorder %s12, 2
    // Predicated region
    $region29: #{gnn_regressor_forward.3} parent=5 // pred_check
      %p202 = pneg %p201
    $region30: #{gnn_regressor_forward.3} parent=5 // pred_check_branch
      %204 = sbr.rel (%p202) target = $region32
    $region31: #{gnn_regressor_forward.3} parent=5 // pred_region
      // Predicated region
      $region33: #{gnn_regressor_forward.3} parent=31 // pred_check
        %p205 = pneg %p32
      $region34: #{gnn_regressor_forward.3} parent=31 // pred_check_branch
        %207 = sbr.rel (%p205) target = $region36
      $region35: #{gnn_regressor_forward.3} parent=31 // pred_region
        %s208 = smul.u32 16, %s12
        %p209 = scmp.lt.s32.totalorder %s208, 31
        %s210 = scalar_select %p209, %s208, 31
        %s211 = smul.addr %s210, 2
        %s212 = smul.addr %s211, 4
        %s213 = scalar_lea.vmem %s0, %s212
        %s214 = smul.u32 16, %s12
      $region36: #{gnn_regressor_forward.3} parent=31 // pred_fallthru
        _
      // Predicated region
      $region37: #{gnn_regressor_forward.3} parent=31 // pred_check
        %p215 = pneg %p79
      $region38: #{gnn_regressor_forward.3} parent=31 // pred_check_branch
        %217 = sbr.rel (%p215) target = $region40
      $region39: #{gnn_regressor_forward.3} parent=31 // pred_region
        %s218 = smul.u32 16, %s12
        %p219 = scmp.lt.s32.totalorder %s218, 31
        %s220 = scalar_select %p219, %s218, 31
        %s221 = smul.addr %s220, 4
        %s222 = scalar_lea.vmem %s2, %s221
        %s223 = smul.u32 16, %s12
      $region40: #{gnn_regressor_forward.3} parent=31 // pred_fallthru
        _
    $region32: #{gnn_regressor_forward.3} parent=5 // pred_fallthru
      _
    %p224 = scmp.le.s32.totalorder 1, %s12
    %p225 = scmp.lt.s32.totalorder %s12, 3
    %p226 = pnand %p224, %p225
    %p227 = pneg %p226
    // Predicated region
    $region41: #{gnn_regressor_forward.3} parent=5 // pred_check
      _
    $region42: #{gnn_regressor_forward.3} parent=5 // pred_check_branch
      %229 = sbr.rel (%p226) target = $region44
    $region43: #{gnn_regressor_forward.3} parent=5 // pred_region
      %s230 = ssub.s32 %s12, 1
      %s231 = smul.u32 16, %s17
      %p232 = scmp.lt.s32.totalorder %s231, 31
      %s233 = scalar_select %p232, %s231, 31
      %s234 = smul.addr %s233, 2
      %s235 = smul.addr %s234, 4
      %s236 = scalar_lea.vmem %s0, %s235
      %p237 = pneg %p38
      %p238 = pneg %p35
      %p239 = pneg %p59
      %p240 = pneg %p56
      %s241 = smul.u32 16, %s17
      %p242 = scmp.lt.s32.totalorder %s241, 31
      %s243 = scalar_select %p242, %s241, 31
      %s244 = smul.addr %s243, 4
      %s245 = scalar_lea.vmem %s2, %s244
      %p246 = pneg %p85
      %p247 = pneg %p82
      %p248 = pneg %p106
      %p249 = pneg %p103
      %p250 = pneg %p127
      %p251 = pneg %p124
      %p252 = pneg %p148
      %p253 = pneg %p145
      %p254 = pneg %p174
      %p255 = pneg %p171
      %s256 = smul.u32 16, %s17
      %p257 = scmp.lt.s32.totalorder %s256, 31
      %s258 = scalar_select %p257, %s256, 31
      %s259 = smul.addr %s258, 4
      %s260 = smul.addr %s259, 4
      %s261 = scalar_lea.vmem %s6, %s260
      %s262 = smul.u32 16, %s17
      %p263 = scmp.lt.s32.totalorder %s262, 31
      %s264 = scalar_select %p263, %s262, 31
      %s265 = smul.addr %s264, 2
      %s266 = smul.addr %s265, 4
      %s267 = scalar_lea.vmem %s0, %s266
      %s268 = smul.u32 16, %s17
      %s269 = smul.u32 16, %s17
      %p270 = scmp.lt.s32.totalorder %s269, 31
      %s271 = scalar_select %p270, %s269, 31
      %s272 = smul.addr %s271, 4
      %s273 = scalar_lea.vmem %s2, %s272
      %s274 = smul.u32 16, %s17
      %s275 = smul.u32 16, %s17
      %p276 = scmp.lt.s32.totalorder %s275, 31
      %s277 = scalar_select %p276, %s275, 31
      %s278 = smul.addr %s277, 4
      %s279 = smul.addr %s278, 4
      %s280 = scalar_lea.vmem %s6, %s279
      %s281 = smul.u32 16, %s17
      %v283 = vld [vmem:[%s267] sm:$0xff]
      %v284 = vld [vmem:[%s267 + $0x8] sm:$0xff]
      %v285 = vld [vmem:[%s267 + $0x10] sm:$0xff]
      %v286 = vld [vmem:[%s267 + $0x18] sm:$0xff]
      %v287 = vld [vmem:[%s267 + $0x20] sm:$0xff]
      %v288 = vld [vmem:[%s267 + $0x28] sm:$0xff]
      %v289 = vld [vmem:[%s267 + $0x30] sm:$0xff]
      %v290 = vld [vmem:[%s267 + $0x38] sm:$0xff]
      %v291 = vld [vmem:[%s267 + $0x40] sm:$0xff]
      %v292 = vld [vmem:[%s267 + $0x48] sm:$0xff]
      %v293 = vld [vmem:[%s267 + $0x50] sm:$0xff]
      %v294 = vld [vmem:[%s267 + $0x58] sm:$0xff]
      %v295 = vld [vmem:[%s267 + $0x60] sm:$0xff]
      %v296 = vld [vmem:[%s267 + $0x68] sm:$0xff]
      %v297 = vld [vmem:[%s267 + $0x70] sm:$0xff]
      %v298 = vld [vmem:[%s267 + $0x78] sm:$0xff]
      %v299 = vld [vmem:[%s1] sm:$0xf]
      %v300 = vld [vmem:[%s1 + $0x4] sm:$0xf]
      %v301 = vld [vmem:[%s1 + $0x8] sm:$0xf]
      %v302 = vld [vmem:[%s1 + $0xc] sm:$0xf]
      %v303 = vld [vmem:[%s1 + $0x10] sm:$0xf]
      %v304 = vld [vmem:[%s1 + $0x14] sm:$0xf]
      %v305 = vld [vmem:[%s1 + $0x18] sm:$0xf]
      %v306 = vld [vmem:[%s1 + $0x1c] sm:$0xf]
      %v307 = vld [vmem:[%s1 + $0x20] sm:$0xf]
      %v308 = vld [vmem:[%s1 + $0x24] sm:$0xf]
      %v309 = vld [vmem:[%s1 + $0x28] sm:$0xf]
      %v310 = vld [vmem:[%s1 + $0x2c] sm:$0xf]
      %v311 = vld [vmem:[%s1 + $0x30] sm:$0xf]
      %v312 = vld [vmem:[%s1 + $0x34] sm:$0xf]
      %v313 = vld [vmem:[%s1 + $0x38] sm:$0xf]
      %v314 = vld [vmem:[%s1 + $0x3c] sm:$0xf]
      %v315 = vld [vmem:[%s1 + $0x40] sm:$0xf]
      %v316 = vld [vmem:[%s1 + $0x44] sm:$0xf]
      %v317 = vld [vmem:[%s1 + $0x48] sm:$0xf]
      %v318 = vld [vmem:[%s1 + $0x4c] sm:$0xf]
      %v319 = vld [vmem:[%s1 + $0x50] sm:$0xf]
      %v320 = vld [vmem:[%s1 + $0x54] sm:$0xf]
      %v321 = vld [vmem:[%s1 + $0x58] sm:$0xf]
      %v322 = vld [vmem:[%s1 + $0x5c] sm:$0xf]
      %v323 = vld [vmem:[%s1 + $0x60] sm:$0xf]
      %v324 = vld [vmem:[%s1 + $0x64] sm:$0xf]
      %v325 = vld [vmem:[%s1 + $0x68] sm:$0xf]
      %v326 = vld [vmem:[%s1 + $0x6c] sm:$0xf]
      %v327 = vld [vmem:[%s1 + $0x70] sm:$0xf]
      %v328 = vld [vmem:[%s1 + $0x74] sm:$0xf]
      %v329 = vld [vmem:[%s1 + $0x78] sm:$0xf]
      %v330 = vld [vmem:[%s1 + $0x7c] sm:$0xf]
      %v347 = vunpack.c.l.b16 %v283
      %v348 = vunpack.c.h.b16 %v283
      %v349 = vunpack.c.l.b16 %v284
      %v350 = vunpack.c.h.b16 %v284
      %v351 = vunpack.c.l.b16 %v285
      %v352 = vunpack.c.h.b16 %v285
      %v353 = vunpack.c.l.b16 %v286
      %v354 = vunpack.c.h.b16 %v286
      %v355 = vunpack.c.l.b16 %v287
      %v356 = vunpack.c.h.b16 %v287
      %v357 = vunpack.c.l.b16 %v288
      %v358 = vunpack.c.h.b16 %v288
      %v359 = vunpack.c.l.b16 %v289
      %v360 = vunpack.c.h.b16 %v289
      %v361 = vunpack.c.l.b16 %v290
      %v362 = vunpack.c.h.b16 %v290
      %v363 = vunpack.c.l.b16 %v291
      %v364 = vunpack.c.h.b16 %v291
      %v365 = vunpack.c.l.b16 %v292
      %v366 = vunpack.c.h.b16 %v292
      %v367 = vunpack.c.l.b16 %v293
      %v368 = vunpack.c.h.b16 %v293
      %v369 = vunpack.c.l.b16 %v294
      %v370 = vunpack.c.h.b16 %v294
      %v371 = vunpack.c.l.b16 %v295
      %v372 = vunpack.c.h.b16 %v295
      %v373 = vunpack.c.l.b16 %v296
      %v374 = vunpack.c.h.b16 %v296
      %v375 = vunpack.c.l.b16 %v297
      %v376 = vunpack.c.h.b16 %v297
      %v377 = vunpack.c.l.b16 %v298
      %v378 = vunpack.c.h.b16 %v298
      %v379 = vpack.c.b16 %v349, %v347
      %v380 = vpack.c.b16 %v350, %v348
      %v381 = vpack.c.b16 %v353, %v351
      %v382 = vpack.c.b16 %v354, %v352
      %v383 = vpack.c.b16 %v357, %v355
      %v384 = vpack.c.b16 %v358, %v356
      %v385 = vpack.c.b16 %v361, %v359
      %v386 = vpack.c.b16 %v362, %v360
      %v387 = vpack.c.b16 %v365, %v363
      %v388 = vpack.c.b16 %v366, %v364
      %v389 = vpack.c.b16 %v369, %v367
      %v390 = vpack.c.b16 %v370, %v368
      %v391 = vpack.c.b16 %v373, %v371
      %v392 = vpack.c.b16 %v374, %v372
      %v393 = vpack.c.b16 %v377, %v375
      %v394 = vpack.c.b16 %v378, %v376
      %v443 = vunpack.c.l.b16 %v299
      %v444 = vunpack.c.l.b16 %v300
      %v445 = vunpack.c.l.b16 %v301
      %v446 = vunpack.c.l.b16 %v302
      %v447 = vunpack.c.l.b16 %v303
      %v448 = vunpack.c.l.b16 %v304
      %v449 = vunpack.c.l.b16 %v305
      %v450 = vunpack.c.l.b16 %v306
      %v451 = vunpack.c.l.b16 %v307
      %v452 = vunpack.c.l.b16 %v308
      %v453 = vunpack.c.l.b16 %v309
      %v454 = vunpack.c.l.b16 %v310
      %v455 = vunpack.c.l.b16 %v311
      %v456 = vunpack.c.l.b16 %v312
      %v457 = vunpack.c.l.b16 %v313
      %v458 = vunpack.c.l.b16 %v314
      %v459 = vunpack.c.l.b16 %v315
      %v460 = vunpack.c.l.b16 %v316
      %v461 = vunpack.c.l.b16 %v317
      %v462 = vunpack.c.l.b16 %v318
      %v463 = vunpack.c.l.b16 %v319
      %v464 = vunpack.c.l.b16 %v320
      %v465 = vunpack.c.l.b16 %v321
      %v466 = vunpack.c.l.b16 %v322
      %v467 = vunpack.c.l.b16 %v323
      %v468 = vunpack.c.l.b16 %v324
      %v469 = vunpack.c.l.b16 %v325
      %v470 = vunpack.c.l.b16 %v326
      %v471 = vunpack.c.l.b16 %v327
      %v472 = vunpack.c.l.b16 %v328
      %v473 = vunpack.c.l.b16 %v329
      %v474 = vunpack.c.l.b16 %v330
      %v475 = vpack.c.b16 %v444, %v443
      %v476 = vpack.c.b16 %v446, %v445
      %v477 = vpack.c.b16 %v448, %v447
      %v478 = vpack.c.b16 %v450, %v449
      %v479 = vpack.c.b16 %v452, %v451
      %v480 = vpack.c.b16 %v454, %v453
      %v481 = vpack.c.b16 %v456, %v455
      %v482 = vpack.c.b16 %v458, %v457
      %v483 = vpack.c.b16 %v460, %v459
      %v484 = vpack.c.b16 %v462, %v461
      %v485 = vpack.c.b16 %v464, %v463
      %v486 = vpack.c.b16 %v466, %v465
      %v487 = vpack.c.b16 %v468, %v467
      %v488 = vpack.c.b16 %v470, %v469
      %v489 = vpack.c.b16 %v472, %v471
      %v490 = vpack.c.b16 %v474, %v473
      %507 = vmatprep.subr.bf16.mxu0 0
      %508 = vmatpush1.bf16.msra.mxu0 %v475
      %509 = vmatprep.subr.bf16.mxu0 0
      %510 = vmatpush1.bf16.msra.mxu0 %v476
      %511 = vmatprep.subr.bf16.mxu0 0
      %512 = vmatpush1.bf16.msra.mxu0 %v477
      %513 = vmatprep.subr.bf16.mxu0 0
      %514 = vmatpush1.bf16.msra.mxu0 %v478
      %515 = vmatprep.subr.bf16.mxu0 0
      %516 = vmatpush1.bf16.msra.mxu0 %v479
      %517 = vmatprep.subr.bf16.mxu0 0
      %518 = vmatpush1.bf16.msra.mxu0 %v480
      %519 = vmatprep.subr.bf16.mxu0 0
      %520 = vmatpush1.bf16.msra.mxu0 %v481
      %521 = vmatprep.subr.bf16.mxu0 0
      %522 = vmatpush1.bf16.msra.mxu0 %v482
      %523 = vmatprep.subr.bf16.mxu0 0
      %524 = vmatpush1.bf16.msra.mxu0 %v483
      %525 = vmatprep.subr.bf16.mxu0 0
      %526 = vmatpush1.bf16.msra.mxu0 %v484
      %527 = vmatprep.subr.bf16.mxu0 0
      %528 = vmatpush1.bf16.msra.mxu0 %v485
      %529 = vmatprep.subr.bf16.mxu0 0
      %530 = vmatpush1.bf16.msra.mxu0 %v486
      %531 = vmatprep.subr.bf16.mxu0 0
      %532 = vmatpush1.bf16.msra.mxu0 %v487
      %533 = vmatprep.subr.bf16.mxu0 0
      %534 = vmatpush1.bf16.msra.mxu0 %v488
      %535 = vmatprep.subr.bf16.mxu0 0
      %536 = vmatpush1.bf16.msra.mxu0 %v489
      %537 = vmatprep.subr.bf16.mxu0 0
      %538 = vmatpush1.bf16.msra.mxu0 %v490
      %539 = vmatprep.mubr.bf16.mxu0 %v380
      %540 = vmatmul.mubr.bf16.gmra.mrb[0].mxu0 %v379
      %v541 = vpop.f32.mrb[0].mxu0
      %v542 = vadd.f32 0.0, %v541
      %v543 = vpop.f32.mrb[0].mxu0
      %v544 = vpop.f32.mrb[0].mxu0
      %v545 = vadd.f32 0.0, %v544
      %v546 = vpop.f32.mrb[0].mxu0
      %547 = vmatprep.mubr.bf16.mxu0 %v382
      %548 = vmatmul.mubr.bf16.gmra.mrb[0].mxu0 %v381
      %v549 = vpop.f32.mrb[0].mxu0
      %v550 = vadd.f32 0.0, %v549
      %v551 = vpop.f32.mrb[0].mxu0
      %v552 = vpop.f32.mrb[0].mxu0
      %v553 = vadd.f32 0.0, %v552
      %v554 = vpop.f32.mrb[0].mxu0
      %555 = vmatprep.mubr.bf16.mxu0 %v384
      %556 = vmatmul.mubr.bf16.gmra.mrb[0].mxu0 %v383
      %v557 = vpop.f32.mrb[0].mxu0
      %v558 = vadd.f32 0.0, %v557
      %v559 = vpop.f32.mrb[0].mxu0
      %v560 = vpop.f32.mrb[0].mxu0
      %v561 = vadd.f32 0.0, %v560
      %v562 = vpop.f32.mrb[0].mxu0
      %563 = vmatprep.mubr.bf16.mxu0 %v386
      %564 = vmatmul.mubr.bf16.gmra.mrb[0].mxu0 %v385
      %v565 = vpop.f32.mrb[0].mxu0
      %v566 = vadd.f32 0.0, %v565
      %v567 = vpop.f32.mrb[0].mxu0
      %v568 = vpop.f32.mrb[0].mxu0
      %v569 = vadd.f32 0.0, %v568
      %v570 = vpop.f32.mrb[0].mxu0
      %571 = vmatprep.mubr.bf16.mxu0 %v388
      %572 = vmatmul.mubr.bf16.gmra.mrb[0].mxu0 %v387
      %v573 = vpop.f32.mrb[0].mxu0
      %v574 = vadd.f32 0.0, %v573
      %v575 = vpop.f32.mrb[0].mxu0
      %v576 = vpop.f32.mrb[0].mxu0
      %v577 = vadd.f32 0.0, %v576
      %v578 = vpop.f32.mrb[0].mxu0
      %579 = vmatprep.mubr.bf16.mxu0 %v390
      %580 = vmatmul.mubr.bf16.gmra.mrb[0].mxu0 %v389
      %v581 = vpop.f32.mrb[0].mxu0
      %v582 = vadd.f32 0.0, %v581
      %v583 = vpop.f32.mrb[0].mxu0
      %v584 = vpop.f32.mrb[0].mxu0
      %v585 = vadd.f32 0.0, %v584
      %v586 = vpop.f32.mrb[0].mxu0
      %587 = vmatprep.mubr.bf16.mxu0 %v392
      %588 = vmatmul.mubr.bf16.gmra.mrb[0].mxu0 %v391
      %v589 = vpop.f32.mrb[0].mxu0
      %v590 = vadd.f32 0.0, %v589
      %v591 = vpop.f32.mrb[0].mxu0
      %v592 = vpop.f32.mrb[0].mxu0
      %v593 = vadd.f32 0.0, %v592
      %v594 = vpop.f32.mrb[0].mxu0
      %595 = vmatprep.mubr.bf16.mxu0 %v394
      %596 = vmatmul.mubr.bf16.gmra.mrb[0].mxu0 %v393
      %v597 = vpop.f32.mrb[0].mxu0
      %v598 = vadd.f32 0.0, %v597
      %v599 = vpop.f32.mrb[0].mxu0
      %v600 = vpop.f32.mrb[0].mxu0
      %v601 = vadd.f32 0.0, %v600
      %v602 = vpop.f32.mrb[0].mxu0
      %603 = vdwg.mxu0
      %v604 = vpack.c.bf16 %v545, %v542
      %v605 = vpack.c.bf16 %v553, %v550
      %v606 = vpack.c.bf16 %v561, %v558
      %v607 = vpack.c.bf16 %v569, %v566
      %v608 = vpack.c.bf16 %v577, %v574
      %v609 = vpack.c.bf16 %v585, %v582
      %v610 = vpack.c.bf16 %v593, %v590
      %v611 = vpack.c.bf16 %v601, %v598
      %v612 = vld [vmem:[%s3] sm:$0xff]
      %v613 = vld [vmem:[%s3 + $0x8] sm:$0xff]
      %v614 = vld [vmem:[%s3 + $0x10] sm:$0xff]
      %v615 = vld [vmem:[%s3 + $0x18] sm:$0xff]
      %v616 = vld [vmem:[%s3 + $0x20] sm:$0xff]
      %v617 = vld [vmem:[%s3 + $0x28] sm:$0xff]
      %v618 = vld [vmem:[%s3 + $0x30] sm:$0xff]
      %v619 = vld [vmem:[%s3 + $0x38] sm:$0xff]
      %v620 = vld [vmem:[%s3 + $0x40] sm:$0xff]
      %v621 = vld [vmem:[%s3 + $0x48] sm:$0xff]
      %v622 = vld [vmem:[%s3 + $0x50] sm:$0xff]
      %v623 = vld [vmem:[%s3 + $0x58] sm:$0xff]
      %v624 = vld [vmem:[%s3 + $0x60] sm:$0xff]
      %v625 = vld [vmem:[%s3 + $0x68] sm:$0xff]
      %v626 = vld [vmem:[%s3 + $0x70] sm:$0xff]
      %v627 = vld [vmem:[%s3 + $0x78] sm:$0xff]
      %v628 = vld [vmem:[%s3 + $0x80] sm:$0xff]
      %v629 = vld [vmem:[%s3 + $0x88] sm:$0xff]
      %v630 = vld [vmem:[%s3 + $0x90] sm:$0xff]
      %v631 = vld [vmem:[%s3 + $0x98] sm:$0xff]
      %v632 = vld [vmem:[%s3 + $0xa0] sm:$0xff]
      %v633 = vld [vmem:[%s3 + $0xa8] sm:$0xff]
      %v634 = vld [vmem:[%s3 + $0xb0] sm:$0xff]
      %v635 = vld [vmem:[%s3 + $0xb8] sm:$0xff]
      %v636 = vld [vmem:[%s3 + $0xc0] sm:$0xff]
      %v637 = vld [vmem:[%s3 + $0xc8] sm:$0xff]
      %v638 = vld [vmem:[%s3 + $0xd0] sm:$0xff]
      %v639 = vld [vmem:[%s3 + $0xd8] sm:$0xff]
      %v640 = vld [vmem:[%s3 + $0xe0] sm:$0xff]
      %v641 = vld [vmem:[%s3 + $0xe8] sm:$0xff]
      %v642 = vld [vmem:[%s3 + $0xf0] sm:$0xff]
      %v643 = vld [vmem:[%s3 + $0xf8] sm:$0xff]
      %v644 = vld [vmem:[%s273] sm:$0xf]
      %v645 = vld [vmem:[%s273 + $0x4] sm:$0xf]
      %v646 = vld [vmem:[%s273 + $0x8] sm:$0xf]
      %v647 = vld [vmem:[%s273 + $0xc] sm:$0xf]
      %v648 = vld [vmem:[%s273 + $0x10] sm:$0xf]
      %v649 = vld [vmem:[%s273 + $0x14] sm:$0xf]
      %v650 = vld [vmem:[%s273 + $0x18] sm:$0xf]
      %v651 = vld [vmem:[%s273 + $0x1c] sm:$0xf]
      %v652 = vld [vmem:[%s273 + $0x20] sm:$0xf]
      %v653 = vld [vmem:[%s273 + $0x24] sm:$0xf]
      %v654 = vld [vmem:[%s273 + $0x28] sm:$0xf]
      %v655 = vld [vmem:[%s273 + $0x2c] sm:$0xf]
      %v656 = vld [vmem:[%s273 + $0x30] sm:$0xf]
      %v657 = vld [vmem:[%s273 + $0x34] sm:$0xf]
      %v658 = vld [vmem:[%s273 + $0x38] sm:$0xf]
      %v659 = vld [vmem:[%s273 + $0x3c] sm:$0xf]
      %v660 = vld [vmem:[%s4] sm:$0xff]
      %v661 = vld [vmem:[%s4 + $0x8] sm:$0xff]
      %v662 = vld [vmem:[%s4 + $0x10] sm:$0xff]
      %v663 = vld [vmem:[%s4 + $0x18] sm:$0xff]
      %v664 = vld [vmem:[%s4 + $0x20] sm:$0xff]
      %v665 = vld [vmem:[%s4 + $0x28] sm:$0xff]
      %v666 = vld [vmem:[%s4 + $0x30] sm:$0xff]
      %v667 = vld [vmem:[%s4 + $0x38] sm:$0xff]
      %v668 = vld [vmem:[%s4 + $0x40] sm:$0xff]
      %v669 = vld [vmem:[%s4 + $0x48] sm:$0xff]
      %v670 = vld [vmem:[%s4 + $0x50] sm:$0xff]
      %v671 = vld [vmem:[%s4 + $0x58] sm:$0xff]
      %v672 = vld [vmem:[%s4 + $0x60] sm:$0xff]
      %v673 = vld [vmem:[%s4 + $0x68] sm:$0xff]
      %v674 = vld [vmem:[%s4 + $0x70] sm:$0xff]
      %v675 = vld [vmem:[%s4 + $0x78] sm:$0xff]
      %v676 = vld [vmem:[%s4 + $0x80] sm:$0xff]
      %v677 = vld [vmem:[%s4 + $0x88] sm:$0xff]
      %v678 = vld [vmem:[%s4 + $0x90] sm:$0xff]
      %v679 = vld [vmem:[%s4 + $0x98] sm:$0xff]
      %v680 = vld [vmem:[%s4 + $0xa0] sm:$0xff]
      %v681 = vld [vmem:[%s4 + $0xa8] sm:$0xff]
      %v682 = vld [vmem:[%s4 + $0xb0] sm:$0xff]
      %v683 = vld [vmem:[%s4 + $0xb8] sm:$0xff]
      %v684 = vld [vmem:[%s4 + $0xc0] sm:$0xff]
      %v685 = vld [vmem:[%s4 + $0xc8] sm:$0xff]
      %v686 = vld [vmem:[%s4 + $0xd0] sm:$0xff]
      %v687 = vld [vmem:[%s4 + $0xd8] sm:$0xff]
      %v688 = vld [vmem:[%s4 + $0xe0] sm:$0xff]
      %v689 = vld [vmem:[%s4 + $0xe8] sm:$0xff]
      %v690 = vld [vmem:[%s4 + $0xf0] sm:$0xff]
      %v691 = vld [vmem:[%s4 + $0xf8] sm:$0xff]
      %v708 = vunpack.c.l.b16 %v644
      %v709 = vunpack.c.l.b16 %v645
      %v710 = vunpack.c.l.b16 %v646
      %v711 = vunpack.c.l.b16 %v647
      %v712 = vunpack.c.l.b16 %v648
      %v713 = vunpack.c.l.b16 %v649
      %v714 = vunpack.c.l.b16 %v650
      %v715 = vunpack.c.l.b16 %v651
      %v716 = vunpack.c.l.b16 %v652
      %v717 = vunpack.c.l.b16 %v653
      %v718 = vunpack.c.l.b16 %v654
      %v719 = vunpack.c.l.b16 %v655
      %v720 = vunpack.c.l.b16 %v656
      %v721 = vunpack.c.l.b16 %v657
      %v722 = vunpack.c.l.b16 %v658
      %v723 = vunpack.c.l.b16 %v659
      %v724 = vpack.c.b16 %v709, %v708
      %v725 = vpack.c.b16 %v711, %v710
      %v726 = vpack.c.b16 %v713, %v712
      %v727 = vpack.c.b16 %v715, %v714
      %v728 = vpack.c.b16 %v717, %v716
      %v729 = vpack.c.b16 %v719, %v718
      %v730 = vpack.c.b16 %v721, %v720
      %v731 = vpack.c.b16 %v723, %v722
      %v772 = vunpack.c.l.b16 %v660
      %v773 = vunpack.c.h.b16 %v660
      %v774 = vunpack.c.l.b16 %v661
      %v775 = vunpack.c.h.b16 %v661
      %v776 = vunpack.c.l.b16 %v662
      %v777 = vunpack.c.h.b16 %v662
      %v778 = vunpack.c.l.b16 %v663
      %v779 = vunpack.c.h.b16 %v663
      %v780 = vunpack.c.l.b16 %v664
      %v781 = vunpack.c.h.b16 %v664
      %v782 = vunpack.c.l.b16 %v665
      %v783 = vunpack.c.h.b16 %v665
      %v784 = vunpack.c.l.b16 %v666
      %v785 = vunpack.c.h.b16 %v666
      %v786 = vunpack.c.l.b16 %v667
      %v787 = vunpack.c.h.b16 %v667
      %v788 = vunpack.c.l.b16 %v668
      %v789 = vunpack.c.h.b16 %v668
      %v790 = vunpack.c.l.b16 %v669
      %v791 = vunpack.c.h.b16 %v669
      %v792 = vunpack.c.l.b16 %v670
      %v793 = vunpack.c.h.b16 %v670
      %v794 = vunpack.c.l.b16 %v671
      %v795 = vunpack.c.h.b16 %v671
      %v796 = vunpack.c.l.b16 %v672
      %v797 = vunpack.c.h.b16 %v672
      %v798 = vunpack.c.l.b16 %v673
      %v799 = vunpack.c.h.b16 %v673
      %v800 = vunpack.c.l.b16 %v674
      %v801 = vunpack.c.h.b16 %v674
      %v802 = vunpack.c.l.b16 %v675
      %v803 = vunpack.c.h.b16 %v675
      %v804 = vunpack.c.l.b16 %v676
      %v805 = vunpack.c.h.b16 %v676
      %v806 = vunpack.c.l.b16 %v677
      %v807 = vunpack.c.h.b16 %v677
      %v808 = vunpack.c.l.b16 %v678
      %v809 = vunpack.c.h.b16 %v678
      %v810 = vunpack.c.l.b16 %v679
      %v811 = vunpack.c.h.b16 %v679
      %v812 = vunpack.c.l.b16 %v680
      %v813 = vunpack.c.h.b16 %v680
      %v814 = vunpack.c.l.b16 %v681
      %v815 = vunpack.c.h.b16 %v681
      %v816 = vunpack.c.l.b16 %v682
      %v817 = vunpack.c.h.b16 %v682
      %v818 = vunpack.c.l.b16 %v683
      %v819 = vunpack.c.h.b16 %v683
      %v820 = vunpack.c.l.b16 %v684
      %v821 = vunpack.c.h.b16 %v684
      %v822 = vunpack.c.l.b16 %v685
      %v823 = vunpack.c.h.b16 %v685
      %v824 = vunpack.c.l.b16 %v686
      %v825 = vunpack.c.h.b16 %v686
      %v826 = vunpack.c.l.b16 %v687
      %v827 = vunpack.c.h.b16 %v687
      %v828 = vunpack.c.l.b16 %v688
      %v829 = vunpack.c.h.b16 %v688
      %v830 = vunpack.c.l.b16 %v689
      %v831 = vunpack.c.h.b16 %v689
      %v832 = vunpack.c.l.b16 %v690
      %v833 = vunpack.c.h.b16 %v690
      %v834 = vunpack.c.l.b16 %v691
      %v835 = vunpack.c.h.b16 %v691
      %v836 = vpack.c.b16 %v776, %v772
      %v837 = vpack.c.b16 %v777, %v773
      %v838 = vpack.c.b16 %v778, %v774
      %v839 = vpack.c.b16 %v779, %v775
      %v840 = vpack.c.b16 %v784, %v780
      %v841 = vpack.c.b16 %v785, %v781
      %v842 = vpack.c.b16 %v786, %v782
      %v843 = vpack.c.b16 %v787, %v783
      %v844 = vpack.c.b16 %v792, %v788
      %v845 = vpack.c.b16 %v793, %v789
      %v846 = vpack.c.b16 %v794, %v790
      %v847 = vpack.c.b16 %v795, %v791
      %v848 = vpack.c.b16 %v800, %v796
      %v849 = vpack.c.b16 %v801, %v797
      %v850 = vpack.c.b16 %v802, %v798
      %v851 = vpack.c.b16 %v803, %v799
      %v852 = vpack.c.b16 %v808, %v804
      %v853 = vpack.c.b16 %v809, %v805
      %v854 = vpack.c.b16 %v810, %v806
      %v855 = vpack.c.b16 %v811, %v807
      %v856 = vpack.c.b16 %v816, %v812
      %v857 = vpack.c.b16 %v817, %v813
      %v858 = vpack.c.b16 %v818, %v814
      %v859 = vpack.c.b16 %v819, %v815
      %v860 = vpack.c.b16 %v824, %v820
      %v861 = vpack.c.b16 %v825, %v821
      %v862 = vpack.c.b16 %v826, %v822
      %v863 = vpack.c.b16 %v827, %v823
      %v864 = vpack.c.b16 %v832, %v828
      %v865 = vpack.c.b16 %v833, %v829
      %v866 = vpack.c.b16 %v834, %v830
      %v867 = vpack.c.b16 %v835, %v831
      %900 = vmatprep.subr.bf16.mxu0 %v837
      %901 = vmatpush1.bf16.msra.mxu0 %v836
      %902 = vmatprep.subr.bf16.mxu0 %v841
      %903 = vmatpush1.bf16.msra.mxu0 %v840
      %904 = vmatprep.subr.bf16.mxu0 %v845
      %905 = vmatpush1.bf16.msra.mxu0 %v844
      %906 = vmatprep.subr.bf16.mxu0 %v849
      %907 = vmatpush1.bf16.msra.mxu0 %v848
      %908 = vmatprep.subr.bf16.mxu0 %v853
      %909 = vmatpush1.bf16.msra.mxu0 %v852
      %910 = vmatprep.subr.bf16.mxu0 %v857
      %911 = vmatpush1.bf16.msra.mxu0 %v856
      %912 = vmatprep.subr.bf16.mxu0 %v861
      %913 = vmatpush1.bf16.msra.mxu0 %v860
      %914 = vmatprep.subr.bf16.mxu0 %v865
      %915 = vmatpush1.bf16.msra.mxu0 %v864
      %916 = vmatprep.subr.bf16.mxu0 0
      %917 = vmatpush1.bf16.msra.mxu0 0
      %918 = vmatprep.subr.bf16.mxu0 0
      %919 = vmatpush1.bf16.msra.mxu0 0
      %920 = vmatprep.subr.bf16.mxu0 0
      %921 = vmatpush1.bf16.msra.mxu0 0
      %922 = vmatprep.subr.bf16.mxu0 0
      %923 = vmatpush1.bf16.msra.mxu0 0
      %924 = vmatprep.subr.bf16.mxu0 0
      %925 = vmatpush1.bf16.msra.mxu0 0
      %926 = vmatprep.subr.bf16.mxu0 0
      %927 = vmatpush1.bf16.msra.mxu0 0
      %928 = vmatprep.subr.bf16.mxu0 0
      %929 = vmatpush1.bf16.msra.mxu0 0
      %930 = vmatprep.subr.bf16.mxu0 0
      %931 = vmatpush1.bf16.msra.mxu0 0
      %932 = vmatprep.mubr.bf16.mxu0 0
      %933 = vmatmul.mubr.bf16.gmra.mrb[0].mxu0 %v724
      %v934 = vpop.f32.mrb[0].mxu0
      %v935 = vadd.f32 0.0, %v934
      %v936 = vpop.f32.mrb[0].mxu0
      %v937 = vadd.f32 0.0, %v936
      %v938 = vpop.f32.mrb[0].mxu0
      %v939 = vadd.f32 0.0, %v938
      %v940 = vpop.f32.mrb[0].mxu0
      %v941 = vadd.f32 0.0, %v940
      %942 = vmatprep.mubr.bf16.mxu0 0
      %943 = vmatmul.mubr.bf16.gmra.mrb[0].mxu0 %v725
      %v944 = vpop.f32.mrb[0].mxu0
      %v945 = vadd.f32 0.0, %v944
      %v946 = vpop.f32.mrb[0].mxu0
      %v947 = vadd.f32 0.0, %v946
      %v948 = vpop.f32.mrb[0].mxu0
      %v949 = vadd.f32 0.0, %v948
      %v950 = vpop.f32.mrb[0].mxu0
      %v951 = vadd.f32 0.0, %v950
      %952 = vmatprep.mubr.bf16.mxu0 0
      %953 = vmatmul.mubr.bf16.gmra.mrb[0].mxu0 %v726
      %v954 = vpop.f32.mrb[0].mxu0
      %v955 = vadd.f32 0.0, %v954
      %v956 = vpop.f32.mrb[0].mxu0
      %v957 = vadd.f32 0.0, %v956
      %v958 = vpop.f32.mrb[0].mxu0
      %v959 = vadd.f32 0.0, %v958
      %v960 = vpop.f32.mrb[0].mxu0
      %v961 = vadd.f32 0.0, %v960
      %962 = vmatprep.mubr.bf16.mxu0 0
      %963 = vmatmul.mubr.bf16.gmra.mrb[0].mxu0 %v727
      %v964 = vpop.f32.mrb[0].mxu0
      %v965 = vadd.f32 0.0, %v964
      %v966 = vpop.f32.mrb[0].mxu0
      %v967 = vadd.f32 0.0, %v966
      %v968 = vpop.f32.mrb[0].mxu0
      %v969 = vadd.f32 0.0, %v968
      %v970 = vpop.f32.mrb[0].mxu0
      %v971 = vadd.f32 0.0, %v970
      %972 = vmatprep.mubr.bf16.mxu0 0
      %973 = vmatmul.mubr.bf16.gmra.mrb[0].mxu0 %v728
      %v974 = vpop.f32.mrb[0].mxu0
      %v975 = vadd.f32 0.0, %v974
      %v976 = vpop.f32.mrb[0].mxu0
      %v977 = vadd.f32 0.0, %v976
      %v978 = vpop.f32.mrb[0].mxu0
      %v979 = vadd.f32 0.0, %v978
      %v980 = vpop.f32.mrb[0].mxu0
      %v981 = vadd.f32 0.0, %v980
      %982 = vmatprep.mubr.bf16.mxu0 0
      %983 = vmatmul.mubr.bf16.gmra.mrb[0].mxu0 %v729
      %v984 = vpop.f32.mrb[0].mxu0
      %v985 = vadd.f32 0.0, %v984
      %v986 = vpop.f32.mrb[0].mxu0
      %v987 = vadd.f32 0.0, %v986
      %v988 = vpop.f32.mrb[0].mxu0
      %v989 = vadd.f32 0.0, %v988
      %v990 = vpop.f32.mrb[0].mxu0
      %v991 = vadd.f32 0.0, %v990
      %992 = vmatprep.mubr.bf16.mxu0 0
      %993 = vmatmul.mubr.bf16.gmra.mrb[0].mxu0 %v730
      %v994 = vpop.f32.mrb[0].mxu0
      %v995 = vadd.f32 0.0, %v994
      %v996 = vpop.f32.mrb[0].mxu0
      %v997 = vadd.f32 0.0, %v996
      %v998 = vpop.f32.mrb[0].mxu0
      %v999 = vadd.f32 0.0, %v998
      %v1000 = vpop.f32.mrb[0].mxu0
      %v1001 = vadd.f32 0.0, %v1000
      %1002 = vmatprep.mubr.bf16.mxu0 0
      %1003 = vmatmul.mubr.bf16.gmra.mrb[0].mxu0 %v731
      %v1004 = vpop.f32.mrb[0].mxu0
      %v1005 = vadd.f32 0.0, %v1004
      %v1006 = vpop.f32.mrb[0].mxu0
      %v1007 = vadd.f32 0.0, %v1006
      %v1008 = vpop.f32.mrb[0].mxu0
      %v1009 = vadd.f32 0.0, %v1008
      %v1010 = vpop.f32.mrb[0].mxu0
      %v1011 = vadd.f32 0.0, %v1010
      %1012 = vdwg.mxu0
      %1013 = vmatprep.subr.bf16.mxu0 %v839
      %1014 = vmatpush1.bf16.msra.mxu0 %v838
      %1015 = vmatprep.subr.bf16.mxu0 %v843
      %1016 = vmatpush1.bf16.msra.mxu0 %v842
      %1017 = vmatprep.subr.bf16.mxu0 %v847
      %1018 = vmatpush1.bf16.msra.mxu0 %v846
      %1019 = vmatprep.subr.bf16.mxu0 %v851
      %1020 = vmatpush1.bf16.msra.mxu0 %v850
      %1021 = vmatprep.subr.bf16.mxu0 %v855
      %1022 = vmatpush1.bf16.msra.mxu0 %v854
      %1023 = vmatprep.subr.bf16.mxu0 %v859
      %1024 = vmatpush1.bf16.msra.mxu0 %v858
      %1025 = vmatprep.subr.bf16.mxu0 %v863
      %1026 = vmatpush1.bf16.msra.mxu0 %v862
      %1027 = vmatprep.subr.bf16.mxu0 %v867
      %1028 = vmatpush1.bf16.msra.mxu0 %v866
      %1029 = vmatprep.subr.bf16.mxu0 0
      %1030 = vmatpush1.bf16.msra.mxu0 0
      %1031 = vmatprep.subr.bf16.mxu0 0
      %1032 = vmatpush1.bf16.msra.mxu0 0
      %1033 = vmatprep.subr.bf16.mxu0 0
      %1034 = vmatpush1.bf16.msra.mxu0 0
      %1035 = vmatprep.subr.bf16.mxu0 0
      %1036 = vmatpush1.bf16.msra.mxu0 0
      %1037 = vmatprep.subr.bf16.mxu0 0
      %1038 = vmatpush1.bf16.msra.mxu0 0
      %1039 = vmatprep.subr.bf16.mxu0 0
      %1040 = vmatpush1.bf16.msra.mxu0 0
      %1041 = vmatprep.subr.bf16.mxu0 0
      %1042 = vmatpush1.bf16.msra.mxu0 0
      %1043 = vmatprep.subr.bf16.mxu0 0
      %1044 = vmatpush1.bf16.msra.mxu0 0
      %1045 = vmatprep.mubr.bf16.mxu0 0
      %1046 = vmatmul.mubr.bf16.gmra.mrb[0].mxu0 %v724
      %v1047 = vpop.f32.mrb[0].mxu0
      %v1048 = vadd.f32 0.0, %v1047
      %v1049 = vpop.f32.mrb[0].mxu0
      %v1050 = vadd.f32 0.0, %v1049
      %v1051 = vpop.f32.mrb[0].mxu0
      %v1052 = vadd.f32 0.0, %v1051
      %v1053 = vpop.f32.mrb[0].mxu0
      %v1054 = vadd.f32 0.0, %v1053
      %1055 = vmatprep.mubr.bf16.mxu0 0
      %1056 = vmatmul.mubr.bf16.gmra.mrb[0].mxu0 %v725
      %v1057 = vpop.f32.mrb[0].mxu0
      %v1058 = vadd.f32 0.0, %v1057
      %v1059 = vpop.f32.mrb[0].mxu0
      %v1060 = vadd.f32 0.0, %v1059
      %v1061 = vpop.f32.mrb[0].mxu0
      %v1062 = vadd.f32 0.0, %v1061
      %v1063 = vpop.f32.mrb[0].mxu0
      %v1064 = vadd.f32 0.0, %v1063
      %1065 = vmatprep.mubr.bf16.mxu0 0
      %1066 = vmatmul.mubr.bf16.gmra.mrb[0].mxu0 %v726
      %v1067 = vpop.f32.mrb[0].mxu0
      %v1068 = vadd.f32 0.0, %v1067
      %v1069 = vpop.f32.mrb[0].mxu0
      %v1070 = vadd.f32 0.0, %v1069
      %v1071 = vpop.f32.mrb[0].mxu0
      %v1072 = vadd.f32 0.0, %v1071
      %v1073 = vpop.f32.mrb[0].mxu0
      %v1074 = vadd.f32 0.0, %v1073
      %1075 = vmatprep.mubr.bf16.mxu0 0
      %1076 = vmatmul.mubr.bf16.gmra.mrb[0].mxu0 %v727
      %v1077 = vpop.f32.mrb[0].mxu0
      %v1078 = vadd.f32 0.0, %v1077
      %v1079 = vpop.f32.mrb[0].mxu0
      %v1080 = vadd.f32 0.0, %v1079
      %v1081 = vpop.f32.mrb[0].mxu0
      %v1082 = vadd.f32 0.0, %v1081
      %v1083 = vpop.f32.mrb[0].mxu0
      %v1084 = vadd.f32 0.0, %v1083
      %1085 = vmatprep.mubr.bf16.mxu0 0
      %1086 = vmatmul.mubr.bf16.gmra.mrb[0].mxu0 %v728
      %v1087 = vpop.f32.mrb[0].mxu0
      %v1088 = vadd.f32 0.0, %v1087
      %v1089 = vpop.f32.mrb[0].mxu0
      %v1090 = vadd.f32 0.0, %v1089
      %v1091 = vpop.f32.mrb[0].mxu0
      %v1092 = vadd.f32 0.0, %v1091
      %v1093 = vpop.f32.mrb[0].mxu0
      %v1094 = vadd.f32 0.0, %v1093
      %1095 = vmatprep.mubr.bf16.mxu0 0
      %1096 = vmatmul.mubr.bf16.gmra.mrb[0].mxu0 %v729
      %v1097 = vpop.f32.mrb[0].mxu0
      %v1098 = vadd.f32 0.0, %v1097
      %v1099 = vpop.f32.mrb[0].mxu0
      %v1100 = vadd.f32 0.0, %v1099
      %v1101 = vpop.f32.mrb[0].mxu0
      %v1102 = vadd.f32 0.0, %v1101
      %v1103 = vpop.f32.mrb[0].mxu0
      %v1104 = vadd.f32 0.0, %v1103
      %1105 = vmatprep.mubr.bf16.mxu0 0
      %1106 = vmatmul.mubr.bf16.gmra.mrb[0].mxu0 %v730
      %v1107 = vpop.f32.mrb[0].mxu0
      %v1108 = vadd.f32 0.0, %v1107
      %v1109 = vpop.f32.mrb[0].mxu0
      %v1110 = vadd.f32 0.0, %v1109
      %v1111 = vpop.f32.mrb[0].mxu0
      %v1112 = vadd.f32 0.0, %v1111
      %v1113 = vpop.f32.mrb[0].mxu0
      %v1114 = vadd.f32 0.0, %v1113
      %1115 = vmatprep.mubr.bf16.mxu0 0
      %1116 = vmatmul.mubr.bf16.gmra.mrb[0].mxu0 %v731
      %v1117 = vpop.f32.mrb[0].mxu0
      %v1118 = vadd.f32 0.0, %v1117
      %v1119 = vpop.f32.mrb[0].mxu0
      %v1120 = vadd.f32 0.0, %v1119
      %v1121 = vpop.f32.mrb[0].mxu0
      %v1122 = vadd.f32 0.0, %v1121
      %v1123 = vpop.f32.mrb[0].mxu0
      %v1124 = vadd.f32 0.0, %v1123
      %1125 = vdwg.mxu0
      %v1158 = vunpack.c.l.b16 %v612
      %v1159 = vunpack.c.h.b16 %v612
      %v1160 = vunpack.c.l.b16 %v613
      %v1161 = vunpack.c.h.b16 %v613
      %v1162 = vunpack.c.l.b16 %v614
      %v1163 = vunpack.c.h.b16 %v614
      %v1164 = vunpack.c.l.b16 %v615
      %v1165 = vunpack.c.h.b16 %v615
      %v1166 = vunpack.c.l.b16 %v616
      %v1167 = vunpack.c.h.b16 %v616
      %v1168 = vunpack.c.l.b16 %v617
      %v1169 = vunpack.c.h.b16 %v617
      %v1170 = vunpack.c.l.b16 %v618
      %v1171 = vunpack.c.h.b16 %v618
      %v1172 = vunpack.c.l.b16 %v619
      %v1173 = vunpack.c.h.b16 %v619
      %v1174 = vunpack.c.l.b16 %v620
      %v1175 = vunpack.c.h.b16 %v620
      %v1176 = vunpack.c.l.b16 %v621
      %v1177 = vunpack.c.h.b16 %v621
      %v1178 = vunpack.c.l.b16 %v622
      %v1179 = vunpack.c.h.b16 %v622
      %v1180 = vunpack.c.l.b16 %v623
      %v1181 = vunpack.c.h.b16 %v623
      %v1182 = vunpack.c.l.b16 %v624
      %v1183 = vunpack.c.h.b16 %v624
      %v1184 = vunpack.c.l.b16 %v625
      %v1185 = vunpack.c.h.b16 %v625
      %v1186 = vunpack.c.l.b16 %v626
      %v1187 = vunpack.c.h.b16 %v626
      %v1188 = vunpack.c.l.b16 %v627
      %v1189 = vunpack.c.h.b16 %v627
      %v1190 = vunpack.c.l.b16 %v628
      %v1191 = vunpack.c.h.b16 %v628
      %v1192 = vunpack.c.l.b16 %v629
      %v1193 = vunpack.c.h.b16 %v629
      %v1194 = vunpack.c.l.b16 %v630
      %v1195 = vunpack.c.h.b16 %v630
      %v1196 = vunpack.c.l.b16 %v631
      %v1197 = vunpack.c.h.b16 %v631
      %v1198 = vunpack.c.l.b16 %v632
      %v1199 = vunpack.c.h.b16 %v632
      %v1200 = vunpack.c.l.b16 %v633
      %v1201 = vunpack.c.h.b16 %v633
      %v1202 = vunpack.c.l.b16 %v634
      %v1203 = vunpack.c.h.b16 %v634
      %v1204 = vunpack.c.l.b16 %v635
      %v1205 = vunpack.c.h.b16 %v635
      %v1206 = vunpack.c.l.b16 %v636
      %v1207 = vunpack.c.h.b16 %v636
      %v1208 = vunpack.c.l.b16 %v637
      %v1209 = vunpack.c.h.b16 %v637
      %v1210 = vunpack.c.l.b16 %v638
      %v1211 = vunpack.c.h.b16 %v638
      %v1212 = vunpack.c.l.b16 %v639
      %v1213 = vunpack.c.h.b16 %v639
      %v1214 = vunpack.c.l.b16 %v640
      %v1215 = vunpack.c.h.b16 %v640
      %v1216 = vunpack.c.l.b16 %v641
      %v1217 = vunpack.c.h.b16 %v641
      %v1218 = vunpack.c.l.b16 %v642
      %v1219 = vunpack.c.h.b16 %v642
      %v1220 = vunpack.c.l.b16 %v643
      %v1221 = vunpack.c.h.b16 %v643
      %v1222 = vpack.c.b16 %v1162, %v1158
      %v1223 = vpack.c.b16 %v1163, %v1159
      %v1224 = vpack.c.b16 %v1164, %v1160
      %v1225 = vpack.c.b16 %v1165, %v1161
      %v1226 = vpack.c.b16 %v1170, %v1166
      %v1227 = vpack.c.b16 %v1171, %v1167
      %v1228 = vpack.c.b16 %v1172, %v1168
      %v1229 = vpack.c.b16 %v1173, %v1169
      %v1230 = vpack.c.b16 %v1178, %v1174
      %v1231 = vpack.c.b16 %v1179, %v1175
      %v1232 = vpack.c.b16 %v1180, %v1176
      %v1233 = vpack.c.b16 %v1181, %v1177
      %v1234 = vpack.c.b16 %v1186, %v1182
      %v1235 = vpack.c.b16 %v1187, %v1183
      %v1236 = vpack.c.b16 %v1188, %v1184
      %v1237 = vpack.c.b16 %v1189, %v1185
      %v1238 = vpack.c.b16 %v1194, %v1190
      %v1239 = vpack.c.b16 %v1195, %v1191
      %v1240 = vpack.c.b16 %v1196, %v1192
      %v1241 = vpack.c.b16 %v1197, %v1193
      %v1242 = vpack.c.b16 %v1202, %v1198
      %v1243 = vpack.c.b16 %v1203, %v1199
      %v1244 = vpack.c.b16 %v1204, %v1200
      %v1245 = vpack.c.b16 %v1205, %v1201
      %v1246 = vpack.c.b16 %v1210, %v1206
      %v1247 = vpack.c.b16 %v1211, %v1207
      %v1248 = vpack.c.b16 %v1212, %v1208
      %v1249 = vpack.c.b16 %v1213, %v1209
      %v1250 = vpack.c.b16 %v1218, %v1214
      %v1251 = vpack.c.b16 %v1219, %v1215
      %v1252 = vpack.c.b16 %v1220, %v1216
      %v1253 = vpack.c.b16 %v1221, %v1217
      %1286 = vmatprep.subr.bf16.mxu0 %v1223
      %1287 = vmatpush1.bf16.msra.mxu0 %v1222
      %1288 = vmatprep.subr.bf16.mxu0 %v1227
      %1289 = vmatpush1.bf16.msra.mxu0 %v1226
      %1290 = vmatprep.subr.bf16.mxu0 %v1231
      %1291 = vmatpush1.bf16.msra.mxu0 %v1230
      %1292 = vmatprep.subr.bf16.mxu0 %v1235
      %1293 = vmatpush1.bf16.msra.mxu0 %v1234
      %1294 = vmatprep.subr.bf16.mxu0 %v1239
      %1295 = vmatpush1.bf16.msra.mxu0 %v1238
      %1296 = vmatprep.subr.bf16.mxu0 %v1243
      %1297 = vmatpush1.bf16.msra.mxu0 %v1242
      %1298 = vmatprep.subr.bf16.mxu0 %v1247
      %1299 = vmatpush1.bf16.msra.mxu0 %v1246
      %1300 = vmatprep.subr.bf16.mxu0 %v1251
      %1301 = vmatpush1.bf16.msra.mxu0 %v1250
      %1302 = vmatprep.subr.bf16.mxu0 0
      %1303 = vmatpush1.bf16.msra.mxu0 0
      %1304 = vmatprep.subr.bf16.mxu0 0
      %1305 = vmatpush1.bf16.msra.mxu0 0
      %1306 = vmatprep.subr.bf16.mxu0 0
      %1307 = vmatpush1.bf16.msra.mxu0 0
      %1308 = vmatprep.subr.bf16.mxu0 0
      %1309 = vmatpush1.bf16.msra.mxu0 0
      %1310 = vmatprep.subr.bf16.mxu0 0
      %1311 = vmatpush1.bf16.msra.mxu0 0
      %1312 = vmatprep.subr.bf16.mxu0 0
      %1313 = vmatpush1.bf16.msra.mxu0 0
      %1314 = vmatprep.subr.bf16.mxu0 0
      %1315 = vmatpush1.bf16.msra.mxu0 0
      %1316 = vmatprep.subr.bf16.mxu0 0
      %1317 = vmatpush1.bf16.msra.mxu0 0
      %1318 = vmatprep.mubr.bf16.mxu0 0
      %1319 = vmatmul.mubr.bf16.gmra.mrb[0].mxu0 %v604
      %v1320 = vpop.f32.mrb[0].mxu0
      %v1321 = vadd.f32 %v935, %v1320
      %v1322 = vpop.f32.mrb[0].mxu0
      %v1323 = vadd.f32 %v937, %v1322
      %v1324 = vpop.f32.mrb[0].mxu0
      %v1325 = vadd.f32 %v939, %v1324
      %v1326 = vpop.f32.mrb[0].mxu0
      %v1327 = vadd.f32 %v941, %v1326
      %1328 = vmatprep.mubr.bf16.mxu0 0
      %1329 = vmatmul.mubr.bf16.gmra.mrb[0].mxu0 %v605
      %v1330 = vpop.f32.mrb[0].mxu0
      %v1331 = vadd.f32 %v945, %v1330
      %v1332 = vpop.f32.mrb[0].mxu0
      %v1333 = vadd.f32 %v947, %v1332
      %v1334 = vpop.f32.mrb[0].mxu0
      %v1335 = vadd.f32 %v949, %v1334
      %v1336 = vpop.f32.mrb[0].mxu0
      %v1337 = vadd.f32 %v951, %v1336
      %1338 = vmatprep.mubr.bf16.mxu0 0
      %1339 = vmatmul.mubr.bf16.gmra.mrb[0].mxu0 %v606
      %v1340 = vpop.f32.mrb[0].mxu0
      %v1341 = vadd.f32 %v955, %v1340
      %v1342 = vpop.f32.mrb[0].mxu0
      %v1343 = vadd.f32 %v957, %v1342
      %v1344 = vpop.f32.mrb[0].mxu0
      %v1345 = vadd.f32 %v959, %v1344
      %v1346 = vpop.f32.mrb[0].mxu0
      %v1347 = vadd.f32 %v961, %v1346
      %1348 = vmatprep.mubr.bf16.mxu0 0
      %1349 = vmatmul.mubr.bf16.gmra.mrb[0].mxu0 %v607
      %v1350 = vpop.f32.mrb[0].mxu0
      %v1351 = vadd.f32 %v965, %v1350
      %v1352 = vpop.f32.mrb[0].mxu0
      %v1353 = vadd.f32 %v967, %v1352
      %v1354 = vpop.f32.mrb[0].mxu0
      %v1355 = vadd.f32 %v969, %v1354
      %v1356 = vpop.f32.mrb[0].mxu0
      %v1357 = vadd.f32 %v971, %v1356
      %1358 = vmatprep.mubr.bf16.mxu0 0
      %1359 = vmatmul.mubr.bf16.gmra.mrb[0].mxu0 %v608
      %v1360 = vpop.f32.mrb[0].mxu0
      %v1361 = vadd.f32 %v975, %v1360
      %v1362 = vpop.f32.mrb[0].mxu0
      %v1363 = vadd.f32 %v977, %v1362
      %v1364 = vpop.f32.mrb[0].mxu0
      %v1365 = vadd.f32 %v979, %v1364
      %v1366 = vpop.f32.mrb[0].mxu0
      %v1367 = vadd.f32 %v981, %v1366
      %1368 = vmatprep.mubr.bf16.mxu0 0
      %1369 = vmatmul.mubr.bf16.gmra.mrb[0].mxu0 %v609
      %v1370 = vpop.f32.mrb[0].mxu0
      %v1371 = vadd.f32 %v985, %v1370
      %v1372 = vpop.f32.mrb[0].mxu0
      %v1373 = vadd.f32 %v987, %v1372
      %v1374 = vpop.f32.mrb[0].mxu0
      %v1375 = vadd.f32 %v989, %v1374
      %v1376 = vpop.f32.mrb[0].mxu0
      %v1377 = vadd.f32 %v991, %v1376
      %1378 = vmatprep.mubr.bf16.mxu0 0
      %1379 = vmatmul.mubr.bf16.gmra.mrb[0].mxu0 %v610
      %v1380 = vpop.f32.mrb[0].mxu0
      %v1381 = vadd.f32 %v995, %v1380
      %v1382 = vpop.f32.mrb[0].mxu0
      %v1383 = vadd.f32 %v997, %v1382
      %v1384 = vpop.f32.mrb[0].mxu0
      %v1385 = vadd.f32 %v999, %v1384
      %v1386 = vpop.f32.mrb[0].mxu0
      %v1387 = vadd.f32 %v1001, %v1386
      %1388 = vmatprep.mubr.bf16.mxu0 0
      %1389 = vmatmul.mubr.bf16.gmra.mrb[0].mxu0 %v611
      %v1390 = vpop.f32.mrb[0].mxu0
      %v1391 = vadd.f32 %v1005, %v1390
      %v1392 = vpop.f32.mrb[0].mxu0
      %v1393 = vadd.f32 %v1007, %v1392
      %v1394 = vpop.f32.mrb[0].mxu0
      %v1395 = vadd.f32 %v1009, %v1394
      %v1396 = vpop.f32.mrb[0].mxu0
      %v1397 = vadd.f32 %v1011, %v1396
      %1398 = vdwg.mxu0
      %1399 = vmatprep.subr.bf16.mxu0 %v1225
      %1400 = vmatpush1.bf16.msra.mxu0 %v1224
      %1401 = vmatprep.subr.bf16.mxu0 %v1229
      %1402 = vmatpush1.bf16.msra.mxu0 %v1228
      %1403 = vmatprep.subr.bf16.mxu0 %v1233
      %1404 = vmatpush1.bf16.msra.mxu0 %v1232
      %1405 = vmatprep.subr.bf16.mxu0 %v1237
      %1406 = vmatpush1.bf16.msra.mxu0 %v1236
      %1407 = vmatprep.subr.bf16.mxu0 %v1241
      %1408 = vmatpush1.bf16.msra.mxu0 %v1240
      %1409 = vmatprep.subr.bf16.mxu0 %v1245
      %1410 = vmatpush1.bf16.msra.mxu0 %v1244
      %1411 = vmatprep.subr.bf16.mxu0 %v1249
      %1412 = vmatpush1.bf16.msra.mxu0 %v1248
      %1413 = vmatprep.subr.bf16.mxu0 %v1253
      %1414 = vmatpush1.bf16.msra.mxu0 %v1252
      %1415 = vmatprep.subr.bf16.mxu0 0
      %1416 = vmatpush1.bf16.msra.mxu0 0
      %1417 = vmatprep.subr.bf16.mxu0 0
      %1418 = vmatpush1.bf16.msra.mxu0 0
      %1419 = vmatprep.subr.bf16.mxu0 0
      %1420 = vmatpush1.bf16.msra.mxu0 0
      %1421 = vmatprep.subr.bf16.mxu0 0
      %1422 = vmatpush1.bf16.msra.mxu0 0
      %1423 = vmatprep.subr.bf16.mxu0 0
      %1424 = vmatpush1.bf16.msra.mxu0 0
      %1425 = vmatprep.subr.bf16.mxu0 0
      %1426 = vmatpush1.bf16.msra.mxu0 0
      %1427 = vmatprep.subr.bf16.mxu0 0
      %1428 = vmatpush1.bf16.msra.mxu0 0
      %1429 = vmatprep.subr.bf16.mxu0 0
      %1430 = vmatpush1.bf16.msra.mxu0 0
      %1431 = vmatprep.mubr.bf16.mxu0 0
      %1432 = vmatmul.mubr.bf16.gmra.mrb[0].mxu0 %v604
      %v1433 = vpop.f32.mrb[0].mxu0
      %v1434 = vadd.f32 %v1048, %v1433
      %v1435 = vpop.f32.mrb[0].mxu0
      %v1436 = vadd.f32 %v1050, %v1435
      %v1437 = vpop.f32.mrb[0].mxu0
      %v1438 = vadd.f32 %v1052, %v1437
      %v1439 = vpop.f32.mrb[0].mxu0
      %v1440 = vadd.f32 %v1054, %v1439
      %1441 = vmatprep.mubr.bf16.mxu0 0
      %1442 = vmatmul.mubr.bf16.gmra.mrb[0].mxu0 %v605
      %v1443 = vpop.f32.mrb[0].mxu0
      %v1444 = vadd.f32 %v1058, %v1443
      %v1445 = vpop.f32.mrb[0].mxu0
      %v1446 = vadd.f32 %v1060, %v1445
      %v1447 = vpop.f32.mrb[0].mxu0
      %v1448 = vadd.f32 %v1062, %v1447
      %v1449 = vpop.f32.mrb[0].mxu0
      %v1450 = vadd.f32 %v1064, %v1449
      %1451 = vmatprep.mubr.bf16.mxu0 0
      %1452 = vmatmul.mubr.bf16.gmra.mrb[0].mxu0 %v606
      %v1453 = vpop.f32.mrb[0].mxu0
      %v1454 = vadd.f32 %v1068, %v1453
      %v1455 = vpop.f32.mrb[0].mxu0
      %v1456 = vadd.f32 %v1070, %v1455
      %v1457 = vpop.f32.mrb[0].mxu0
      %v1458 = vadd.f32 %v1072, %v1457
      %v1459 = vpop.f32.mrb[0].mxu0
      %v1460 = vadd.f32 %v1074, %v1459
      %1461 = vmatprep.mubr.bf16.mxu0 0
      %1462 = vmatmul.mubr.bf16.gmra.mrb[0].mxu0 %v607
      %v1463 = vpop.f32.mrb[0].mxu0
      %v1464 = vadd.f32 %v1078, %v1463
      %v1465 = vpop.f32.mrb[0].mxu0
      %v1466 = vadd.f32 %v1080, %v1465
      %v1467 = vpop.f32.mrb[0].mxu0
      %v1468 = vadd.f32 %v1082, %v1467
      %v1469 = vpop.f32.mrb[0].mxu0
      %v1470 = vadd.f32 %v1084, %v1469
      %1471 = vmatprep.mubr.bf16.mxu0 0
      %1472 = vmatmul.mubr.bf16.gmra.mrb[0].mxu0 %v608
      %v1473 = vpop.f32.mrb[0].mxu0
      %v1474 = vadd.f32 %v1088, %v1473
      %v1475 = vpop.f32.mrb[0].mxu0
      %v1476 = vadd.f32 %v1090, %v1475
      %v1477 = vpop.f32.mrb[0].mxu0
      %v1478 = vadd.f32 %v1092, %v1477
      %v1479 = vpop.f32.mrb[0].mxu0
      %v1480 = vadd.f32 %v1094, %v1479
      %1481 = vmatprep.mubr.bf16.mxu0 0
      %1482 = vmatmul.mubr.bf16.gmra.mrb[0].mxu0 %v609
      %v1483 = vpop.f32.mrb[0].mxu0
      %v1484 = vadd.f32 %v1098, %v1483
      %v1485 = vpop.f32.mrb[0].mxu0
      %v1486 = vadd.f32 %v1100, %v1485
      %v1487 = vpop.f32.mrb[0].mxu0
      %v1488 = vadd.f32 %v1102, %v1487
      %v1489 = vpop.f32.mrb[0].mxu0
      %v1490 = vadd.f32 %v1104, %v1489
      %1491 = vmatprep.mubr.bf16.mxu0 0
      %1492 = vmatmul.mubr.bf16.gmra.mrb[0].mxu0 %v610
      %v1493 = vpop.f32.mrb[0].mxu0
      %v1494 = vadd.f32 %v1108, %v1493
      %v1495 = vpop.f32.mrb[0].mxu0
      %v1496 = vadd.f32 %v1110, %v1495
      %v1497 = vpop.f32.mrb[0].mxu0
      %v1498 = vadd.f32 %v1112, %v1497
      %v1499 = vpop.f32.mrb[0].mxu0
      %v1500 = vadd.f32 %v1114, %v1499
      %1501 = vmatprep.mubr.bf16.mxu0 0
      %1502 = vmatmul.mubr.bf16.gmra.mrb[0].mxu0 %v611
      %v1503 = vpop.f32.mrb[0].mxu0
      %v1504 = vadd.f32 %v1118, %v1503
      %v1505 = vpop.f32.mrb[0].mxu0
      %v1506 = vadd.f32 %v1120, %v1505
      %v1507 = vpop.f32.mrb[0].mxu0
      %v1508 = vadd.f32 %v1122, %v1507
      %v1509 = vpop.f32.mrb[0].mxu0
      %v1510 = vadd.f32 %v1124, %v1509
      %1511 = vdwg.mxu0
      %v1512 = vld [vmem:[%s5] ss:$4 sm:$0xf]
      %v1514 = vlaneseq
      %v1515 = vshrl.u32 %v1514, 7
      %v1516 = vsub.s32 0, %v1515
      %v1517 = vrot.slane %v1512, %v1516
      %v1518 = vlaneseq
      %v1519 = vshrl.u32 %v1518, 7
      %v1520 = vsub.s32 1, %v1519
      %v1521 = vrot.slane %v1512, %v1520
      %v1522 = vlaneseq
      %v1523 = vshrl.u32 %v1522, 7
      %v1524 = vsub.s32 2, %v1523
      %v1525 = vrot.slane %v1512, %v1524
      %v1526 = vlaneseq
      %v1527 = vshrl.u32 %v1526, 7
      %v1528 = vsub.s32 3, %v1527
      %v1529 = vrot.slane %v1512, %v1528
      %v1534 = vadd.f32 %v1321, %v1517
      %v1535 = vadd.f32 %v1323, %v1521
      %v1536 = vadd.f32 %v1434, %v1525
      %v1537 = vadd.f32 %v1436, %v1529
      %v1538 = vadd.f32 %v1325, %v1517
      %v1539 = vadd.f32 %v1327, %v1521
      %v1540 = vadd.f32 %v1438, %v1525
      %v1541 = vadd.f32 %v1440, %v1529
      %v1542 = vadd.f32 %v1331, %v1517
      %v1543 = vadd.f32 %v1333, %v1521
      %v1544 = vadd.f32 %v1444, %v1525
      %v1545 = vadd.f32 %v1446, %v1529
      %v1546 = vadd.f32 %v1335, %v1517
      %v1547 = vadd.f32 %v1337, %v1521
      %v1548 = vadd.f32 %v1448, %v1525
      %v1549 = vadd.f32 %v1450, %v1529
      %v1550 = vadd.f32 %v1341, %v1517
      %v1551 = vadd.f32 %v1343, %v1521
      %v1552 = vadd.f32 %v1454, %v1525
      %v1553 = vadd.f32 %v1456, %v1529
      %v1554 = vadd.f32 %v1345, %v1517
      %v1555 = vadd.f32 %v1347, %v1521
      %v1556 = vadd.f32 %v1458, %v1525
      %v1557 = vadd.f32 %v1460, %v1529
      %v1558 = vadd.f32 %v1351, %v1517
      %v1559 = vadd.f32 %v1353, %v1521
      %v1560 = vadd.f32 %v1464, %v1525
      %v1561 = vadd.f32 %v1466, %v1529
      %v1562 = vadd.f32 %v1355, %v1517
      %v1563 = vadd.f32 %v1357, %v1521
      %v1564 = vadd.f32 %v1468, %v1525
      %v1565 = vadd.f32 %v1470, %v1529
      %v1566 = vadd.f32 %v1361, %v1517
      %v1567 = vadd.f32 %v1363, %v1521
      %v1568 = vadd.f32 %v1474, %v1525
      %v1569 = vadd.f32 %v1476, %v1529
      %v1570 = vadd.f32 %v1365, %v1517
      %v1571 = vadd.f32 %v1367, %v1521
      %v1572 = vadd.f32 %v1478, %v1525
      %v1573 = vadd.f32 %v1480, %v1529
      %v1574 = vadd.f32 %v1371, %v1517
      %v1575 = vadd.f32 %v1373, %v1521
      %v1576 = vadd.f32 %v1484, %v1525
      %v1577 = vadd.f32 %v1486, %v1529
      %v1578 = vadd.f32 %v1375, %v1517
      %v1579 = vadd.f32 %v1377, %v1521
      %v1580 = vadd.f32 %v1488, %v1525
      %v1581 = vadd.f32 %v1490, %v1529
      %v1582 = vadd.f32 %v1381, %v1517
      %v1583 = vadd.f32 %v1383, %v1521
      %v1584 = vadd.f32 %v1494, %v1525
      %v1585 = vadd.f32 %v1496, %v1529
      %v1586 = vadd.f32 %v1385, %v1517
      %v1587 = vadd.f32 %v1387, %v1521
      %v1588 = vadd.f32 %v1498, %v1525
      %v1589 = vadd.f32 %v1500, %v1529
      %v1590 = vadd.f32 %v1391, %v1517
      %v1591 = vadd.f32 %v1393, %v1521
      %v1592 = vadd.f32 %v1504, %v1525
      %v1593 = vadd.f32 %v1506, %v1529
      %v1594 = vadd.f32 %v1395, %v1517
      %v1595 = vadd.f32 %v1397, %v1521
      %v1596 = vadd.f32 %v1508, %v1525
      %v1597 = vadd.f32 %v1510, %v1529
      %s1598 = scalar_lea.vmem %s5, 1
      %v1599 = vld [vmem:[%s1598] ss:$4 sm:$0xf]
      %s1600 = scalar_lea.vmem %s5, 2
      %v1601 = vld [vmem:[%s1600] ss:$4 sm:$0xf]
      %v1602 = vadd.f32 %v1534, %v1535
      %v1603 = vadd.f32 %v1602, %v1536
      %v1604 = vadd.f32 %v1603, %v1537
      %1605 = vadd.xlane.f32.xlu0 %v1604
      %v1606 = vpop.xlane.xlu0 %1605
      %v1607 = vadd.f32 %v1538, %v1539
      %v1608 = vadd.f32 %v1607, %v1540
      %v1609 = vadd.f32 %v1608, %v1541
      %1610 = vadd.xlane.f32.xlu0 %v1609
      %v1611 = vpop.xlane.xlu0 %1610
      %v1612 = vadd.f32 %v1542, %v1543
      %v1613 = vadd.f32 %v1612, %v1544
      %v1614 = vadd.f32 %v1613, %v1545
      %1615 = vadd.xlane.f32.xlu0 %v1614
      %v1616 = vpop.xlane.xlu0 %1615
      %v1617 = vadd.f32 %v1546, %v1547
      %v1618 = vadd.f32 %v1617, %v1548
      %v1619 = vadd.f32 %v1618, %v1549
      %1620 = vadd.xlane.f32.xlu0 %v1619
      %v1621 = vpop.xlane.xlu0 %1620
      %v1622 = vadd.f32 %v1550, %v1551
      %v1623 = vadd.f32 %v1622, %v1552
      %v1624 = vadd.f32 %v1623, %v1553
      %1625 = vadd.xlane.f32.xlu0 %v1624
      %v1626 = vpop.xlane.xlu0 %1625
      %v1627 = vadd.f32 %v1554, %v1555
      %v1628 = vadd.f32 %v1627, %v1556
      %v1629 = vadd.f32 %v1628, %v1557
      %1630 = vadd.xlane.f32.xlu0 %v1629
      %v1631 = vpop.xlane.xlu0 %1630
      %v1632 = vadd.f32 %v1558, %v1559
      %v1633 = vadd.f32 %v1632, %v1560
      %v1634 = vadd.f32 %v1633, %v1561
      %1635 = vadd.xlane.f32.xlu0 %v1634
      %v1636 = vpop.xlane.xlu0 %1635
      %v1637 = vadd.f32 %v1562, %v1563
      %v1638 = vadd.f32 %v1637, %v1564
      %v1639 = vadd.f32 %v1638, %v1565
      %1640 = vadd.xlane.f32.xlu0 %v1639
      %v1641 = vpop.xlane.xlu0 %1640
      %v1642 = vadd.f32 %v1566, %v1567
      %v1643 = vadd.f32 %v1642, %v1568
      %v1644 = vadd.f32 %v1643, %v1569
      %1645 = vadd.xlane.f32.xlu0 %v1644
      %v1646 = vpop.xlane.xlu0 %1645
      %v1647 = vadd.f32 %v1570, %v1571
      %v1648 = vadd.f32 %v1647, %v1572
      %v1649 = vadd.f32 %v1648, %v1573
      %1650 = vadd.xlane.f32.xlu0 %v1649
      %v1651 = vpop.xlane.xlu0 %1650
      %v1652 = vadd.f32 %v1574, %v1575
      %v1653 = vadd.f32 %v1652, %v1576
      %v1654 = vadd.f32 %v1653, %v1577
      %1655 = vadd.xlane.f32.xlu0 %v1654
      %v1656 = vpop.xlane.xlu0 %1655
      %v1657 = vadd.f32 %v1578, %v1579
      %v1658 = vadd.f32 %v1657, %v1580
      %v1659 = vadd.f32 %v1658, %v1581
      %1660 = vadd.xlane.f32.xlu0 %v1659
      %v1661 = vpop.xlane.xlu0 %1660
      %v1662 = vadd.f32 %v1582, %v1583
      %v1663 = vadd.f32 %v1662, %v1584
      %v1664 = vadd.f32 %v1663, %v1585
      %1665 = vadd.xlane.f32.xlu0 %v1664
      %v1666 = vpop.xlane.xlu0 %1665
      %v1667 = vadd.f32 %v1586, %v1587
      %v1668 = vadd.f32 %v1667, %v1588
      %v1669 = vadd.f32 %v1668, %v1589
      %1670 = vadd.xlane.f32.xlu0 %v1669
      %v1671 = vpop.xlane.xlu0 %1670
      %v1672 = vadd.f32 %v1590, %v1591
      %v1673 = vadd.f32 %v1672, %v1592
      %v1674 = vadd.f32 %v1673, %v1593
      %1675 = vadd.xlane.f32.xlu0 %v1674
      %v1676 = vpop.xlane.xlu0 %1675
      %v1677 = vadd.f32 %v1594, %v1595
      %v1678 = vadd.f32 %v1677, %v1596
      %v1679 = vadd.f32 %v1678, %v1597
      %1680 = vadd.xlane.f32.xlu0 %v1679
      %v1681 = vpop.xlane.xlu0 %1680
      %v1682 = vrcp.pop 512.0
      %v1683 = vmul.f32 %v1606, %v1682
      %v1684 = vmul.f32 %v1611, %v1682
      %v1685 = vmul.f32 %v1616, %v1682
      %v1686 = vmul.f32 %v1621, %v1682
      %v1687 = vmul.f32 %v1626, %v1682
      %v1688 = vmul.f32 %v1631, %v1682
      %v1689 = vmul.f32 %v1636, %v1682
      %v1690 = vmul.f32 %v1641, %v1682
      %v1691 = vmul.f32 %v1646, %v1682
      %v1692 = vmul.f32 %v1651, %v1682
      %v1693 = vmul.f32 %v1656, %v1682
      %v1694 = vmul.f32 %v1661, %v1682
      %v1695 = vmul.f32 %v1666, %v1682
      %v1696 = vmul.f32 %v1671, %v1682
      %v1697 = vmul.f32 %v1676, %v1682
      %v1698 = vmul.f32 %v1681, %v1682
      %v1699 = vsub.f32 %v1534, %v1683
      %v1700 = vsub.f32 %v1535, %v1683
      %v1701 = vsub.f32 %v1536, %v1683
      %v1702 = vsub.f32 %v1537, %v1683
      %v1703 = vsub.f32 %v1538, %v1684
      %v1704 = vsub.f32 %v1539, %v1684
      %v1705 = vsub.f32 %v1540, %v1684
      %v1706 = vsub.f32 %v1541, %v1684
      %v1707 = vsub.f32 %v1542, %v1685
      %v1708 = vsub.f32 %v1543, %v1685
      %v1709 = vsub.f32 %v1544, %v1685
      %v1710 = vsub.f32 %v1545, %v1685
      %v1711 = vsub.f32 %v1546, %v1686
      %v1712 = vsub.f32 %v1547, %v1686
      %v1713 = vsub.f32 %v1548, %v1686
      %v1714 = vsub.f32 %v1549, %v1686
      %v1715 = vsub.f32 %v1550, %v1687
      %v1716 = vsub.f32 %v1551, %v1687
      %v1717 = vsub.f32 %v1552, %v1687
      %v1718 = vsub.f32 %v1553, %v1687
      %v1719 = vsub.f32 %v1554, %v1688
      %v1720 = vsub.f32 %v1555, %v1688
      %v1721 = vsub.f32 %v1556, %v1688
      %v1722 = vsub.f32 %v1557, %v1688
      %v1723 = vsub.f32 %v1558, %v1689
      %v1724 = vsub.f32 %v1559, %v1689
      %v1725 = vsub.f32 %v1560, %v1689
      %v1726 = vsub.f32 %v1561, %v1689
      %v1727 = vsub.f32 %v1562, %v1690
      %v1728 = vsub.f32 %v1563, %v1690
      %v1729 = vsub.f32 %v1564, %v1690
      %v1730 = vsub.f32 %v1565, %v1690
      %v1731 = vsub.f32 %v1566, %v1691
      %v1732 = vsub.f32 %v1567, %v1691
      %v1733 = vsub.f32 %v1568, %v1691
      %v1734 = vsub.f32 %v1569, %v1691
      %v1735 = vsub.f32 %v1570, %v1692
      %v1736 = vsub.f32 %v1571, %v1692
      %v1737 = vsub.f32 %v1572, %v1692
      %v1738 = vsub.f32 %v1573, %v1692
      %v1739 = vsub.f32 %v1574, %v1693
      %v1740 = vsub.f32 %v1575, %v1693
      %v1741 = vsub.f32 %v1576, %v1693
      %v1742 = vsub.f32 %v1577, %v1693
      %v1743 = vsub.f32 %v1578, %v1694
      %v1744 = vsub.f32 %v1579, %v1694
      %v1745 = vsub.f32 %v1580, %v1694
      %v1746 = vsub.f32 %v1581, %v1694
      %v1747 = vsub.f32 %v1582, %v1695
      %v1748 = vsub.f32 %v1583, %v1695
      %v1749 = vsub.f32 %v1584, %v1695
      %v1750 = vsub.f32 %v1585, %v1695
      %v1751 = vsub.f32 %v1586, %v1696
      %v1752 = vsub.f32 %v1587, %v1696
      %v1753 = vsub.f32 %v1588, %v1696
      %v1754 = vsub.f32 %v1589, %v1696
      %v1755 = vsub.f32 %v1590, %v1697
      %v1756 = vsub.f32 %v1591, %v1697
      %v1757 = vsub.f32 %v1592, %v1697
      %v1758 = vsub.f32 %v1593, %v1697
      %v1759 = vsub.f32 %v1594, %v1698
      %v1760 = vsub.f32 %v1595, %v1698
      %v1761 = vsub.f32 %v1596, %v1698
      %v1762 = vsub.f32 %v1597, %v1698
      %v1763 = vmul.f32 %v1699, %v1699
      %v1764 = vmul.f32 %v1700, %v1700
      %v1765 = vmul.f32 %v1701, %v1701
      %v1766 = vmul.f32 %v1702, %v1702
      %v1767 = vmul.f32 %v1703, %v1703
      %v1768 = vmul.f32 %v1704, %v1704
      %v1769 = vmul.f32 %v1705, %v1705
      %v1770 = vmul.f32 %v1706, %v1706
      %v1771 = vmul.f32 %v1707, %v1707
      %v1772 = vmul.f32 %v1708, %v1708
      %v1773 = vmul.f32 %v1709, %v1709
      %v1774 = vmul.f32 %v1710, %v1710
      %v1775 = vmul.f32 %v1711, %v1711
      %v1776 = vmul.f32 %v1712, %v1712
      %v1777 = vmul.f32 %v1713, %v1713
      %v1778 = vmul.f32 %v1714, %v1714
      %v1779 = vmul.f32 %v1715, %v1715
      %v1780 = vmul.f32 %v1716, %v1716
      %v1781 = vmul.f32 %v1717, %v1717
      %v1782 = vmul.f32 %v1718, %v1718
      %v1783 = vmul.f32 %v1719, %v1719
      %v1784 = vmul.f32 %v1720, %v1720
      %v1785 = vmul.f32 %v1721, %v1721
      %v1786 = vmul.f32 %v1722, %v1722
      %v1787 = vmul.f32 %v1723, %v1723
      %v1788 = vmul.f32 %v1724, %v1724
      %v1789 = vmul.f32 %v1725, %v1725
      %v1790 = vmul.f32 %v1726, %v1726
      %v1791 = vmul.f32 %v1727, %v1727
      %v1792 = vmul.f32 %v1728, %v1728
      %v1793 = vmul.f32 %v1729, %v1729
      %v1794 = vmul.f32 %v1730, %v1730
      %v1795 = vmul.f32 %v1731, %v1731
      %v1796 = vmul.f32 %v1732, %v1732
      %v1797 = vmul.f32 %v1733, %v1733
      %v1798 = vmul.f32 %v1734, %v1734
      %v1799 = vmul.f32 %v1735, %v1735
      %v1800 = vmul.f32 %v1736, %v1736
      %v1801 = vmul.f32 %v1737, %v1737
      %v1802 = vmul.f32 %v1738, %v1738
      %v1803 = vmul.f32 %v1739, %v1739
      %v1804 = vmul.f32 %v1740, %v1740
      %v1805 = vmul.f32 %v1741, %v1741
      %v1806 = vmul.f32 %v1742, %v1742
      %v1807 = vmul.f32 %v1743, %v1743
      %v1808 = vmul.f32 %v1744, %v1744
      %v1809 = vmul.f32 %v1745, %v1745
      %v1810 = vmul.f32 %v1746, %v1746
      %v1811 = vmul.f32 %v1747, %v1747
      %v1812 = vmul.f32 %v1748, %v1748
      %v1813 = vmul.f32 %v1749, %v1749
      %v1814 = vmul.f32 %v1750, %v1750
      %v1815 = vmul.f32 %v1751, %v1751
      %v1816 = vmul.f32 %v1752, %v1752
      %v1817 = vmul.f32 %v1753, %v1753
      %v1818 = vmul.f32 %v1754, %v1754
      %v1819 = vmul.f32 %v1755, %v1755
      %v1820 = vmul.f32 %v1756, %v1756
      %v1821 = vmul.f32 %v1757, %v1757
      %v1822 = vmul.f32 %v1758, %v1758
      %v1823 = vmul.f32 %v1759, %v1759
      %v1824 = vmul.f32 %v1760, %v1760
      %v1825 = vmul.f32 %v1761, %v1761
      %v1826 = vmul.f32 %v1762, %v1762
      %v1827 = vadd.f32 %v1763, %v1764
      %v1828 = vadd.f32 %v1827, %v1765
      %v1829 = vadd.f32 %v1828, %v1766
      %1830 = vadd.xlane.f32.xlu0 %v1829
      %v1831 = vpop.xlane.xlu0 %1830
      %v1832 = vadd.f32 %v1767, %v1768
      %v1833 = vadd.f32 %v1832, %v1769
      %v1834 = vadd.f32 %v1833, %v1770
      %1835 = vadd.xlane.f32.xlu0 %v1834
      %v1836 = vpop.xlane.xlu0 %1835
      %v1837 = vadd.f32 %v1771, %v1772
      %v1838 = vadd.f32 %v1837, %v1773
      %v1839 = vadd.f32 %v1838, %v1774
      %1840 = vadd.xlane.f32.xlu0 %v1839
      %v1841 = vpop.xlane.xlu0 %1840
      %v1842 = vadd.f32 %v1775, %v1776
      %v1843 = vadd.f32 %v1842, %v1777
      %v1844 = vadd.f32 %v1843, %v1778
      %1845 = vadd.xlane.f32.xlu0 %v1844
      %v1846 = vpop.xlane.xlu0 %1845
      %v1847 = vadd.f32 %v1779, %v1780
      %v1848 = vadd.f32 %v1847, %v1781
      %v1849 = vadd.f32 %v1848, %v1782
      %1850 = vadd.xlane.f32.xlu0 %v1849
      %v1851 = vpop.xlane.xlu0 %1850
      %v1852 = vadd.f32 %v1783, %v1784
      %v1853 = vadd.f32 %v1852, %v1785
      %v1854 = vadd.f32 %v1853, %v1786
      %1855 = vadd.xlane.f32.xlu0 %v1854
      %v1856 = vpop.xlane.xlu0 %1855
      %v1857 = vadd.f32 %v1787, %v1788
      %v1858 = vadd.f32 %v1857, %v1789
      %v1859 = vadd.f32 %v1858, %v1790
      %1860 = vadd.xlane.f32.xlu0 %v1859
      %v1861 = vpop.xlane.xlu0 %1860
      %v1862 = vadd.f32 %v1791, %v1792
      %v1863 = vadd.f32 %v1862, %v1793
      %v1864 = vadd.f32 %v1863, %v1794
      %1865 = vadd.xlane.f32.xlu0 %v1864
      %v1866 = vpop.xlane.xlu0 %1865
      %v1867 = vadd.f32 %v1795, %v1796
      %v1868 = vadd.f32 %v1867, %v1797
      %v1869 = vadd.f32 %v1868, %v1798
      %1870 = vadd.xlane.f32.xlu0 %v1869
      %v1871 = vpop.xlane.xlu0 %1870
      %v1872 = vadd.f32 %v1799, %v1800
      %v1873 = vadd.f32 %v1872, %v1801
      %v1874 = vadd.f32 %v1873, %v1802
      %1875 = vadd.xlane.f32.xlu0 %v1874
      %v1876 = vpop.xlane.xlu0 %1875
      %v1877 = vadd.f32 %v1803, %v1804
      %v1878 = vadd.f32 %v1877, %v1805
      %v1879 = vadd.f32 %v1878, %v1806
      %1880 = vadd.xlane.f32.xlu0 %v1879
      %v1881 = vpop.xlane.xlu0 %1880
      %v1882 = vadd.f32 %v1807, %v1808
      %v1883 = vadd.f32 %v1882, %v1809
      %v1884 = vadd.f32 %v1883, %v1810
      %1885 = vadd.xlane.f32.xlu0 %v1884
      %v1886 = vpop.xlane.xlu0 %1885
      %v1887 = vadd.f32 %v1811, %v1812
      %v1888 = vadd.f32 %v1887, %v1813
      %v1889 = vadd.f32 %v1888, %v1814
      %1890 = vadd.xlane.f32.xlu0 %v1889
      %v1891 = vpop.xlane.xlu0 %1890
      %v1892 = vadd.f32 %v1815, %v1816
      %v1893 = vadd.f32 %v1892, %v1817
      %v1894 = vadd.f32 %v1893, %v1818
      %1895 = vadd.xlane.f32.xlu0 %v1894
      %v1896 = vpop.xlane.xlu0 %1895
      %v1897 = vadd.f32 %v1819, %v1820
      %v1898 = vadd.f32 %v1897, %v1821
      %v1899 = vadd.f32 %v1898, %v1822
      %1900 = vadd.xlane.f32.xlu0 %v1899
      %v1901 = vpop.xlane.xlu0 %1900
      %v1902 = vadd.f32 %v1823, %v1824
      %v1903 = vadd.f32 %v1902, %v1825
      %v1904 = vadd.f32 %v1903, %v1826
      %1905 = vadd.xlane.f32.xlu0 %v1904
      %v1906 = vpop.xlane.xlu0 %1905
      %v1907 = vmul.f32 %v1831, %v1682
      %v1908 = vmul.f32 %v1836, %v1682
      %v1909 = vmul.f32 %v1841, %v1682
      %v1910 = vmul.f32 %v1846, %v1682
      %v1911 = vmul.f32 %v1851, %v1682
      %v1912 = vmul.f32 %v1856, %v1682
      %v1913 = vmul.f32 %v1861, %v1682
      %v1914 = vmul.f32 %v1866, %v1682
      %v1915 = vmul.f32 %v1871, %v1682
      %v1916 = vmul.f32 %v1876, %v1682
      %v1917 = vmul.f32 %v1881, %v1682
      %v1918 = vmul.f32 %v1886, %v1682
      %v1919 = vmul.f32 %v1891, %v1682
      %v1920 = vmul.f32 %v1896, %v1682
      %v1921 = vmul.f32 %v1901, %v1682
      %v1922 = vmul.f32 %v1906, %v1682
      %v1923 = vadd.f32 %v1907, 1e-05
      %v1924 = vadd.f32 %v1908, 1e-05
      %v1925 = vadd.f32 %v1909, 1e-05
      %v1926 = vadd.f32 %v1910, 1e-05
      %v1927 = vadd.f32 %v1911, 1e-05
      %v1928 = vadd.f32 %v1912, 1e-05
      %v1929 = vadd.f32 %v1913, 1e-05
      %v1930 = vadd.f32 %v1914, 1e-05
      %v1931 = vadd.f32 %v1915, 1e-05
      %v1932 = vadd.f32 %v1916, 1e-05
      %v1933 = vadd.f32 %v1917, 1e-05
      %v1934 = vadd.f32 %v1918, 1e-05
      %v1935 = vadd.f32 %v1919, 1e-05
      %v1936 = vadd.f32 %v1920, 1e-05
      %v1937 = vadd.f32 %v1921, 1e-05
      %v1938 = vadd.f32 %v1922, 1e-05
      %v1939 = vrsqrt.pop %v1923
      %v1940 = vrsqrt.pop %v1924
      %v1941 = vrsqrt.pop %v1925
      %v1942 = vrsqrt.pop %v1926
      %v1943 = vrsqrt.pop %v1927
      %v1944 = vrsqrt.pop %v1928
      %v1945 = vrsqrt.pop %v1929
      %v1946 = vrsqrt.pop %v1930
      %v1947 = vrsqrt.pop %v1931
      %v1948 = vrsqrt.pop %v1932
      %v1949 = vrsqrt.pop %v1933
      %v1950 = vrsqrt.pop %v1934
      %v1951 = vrsqrt.pop %v1935
      %v1952 = vrsqrt.pop %v1936
      %v1953 = vrsqrt.pop %v1937
      %v1954 = vrsqrt.pop %v1938
      %v1955 = vmul.f32 %v1699, %v1939
      %v1956 = vmul.f32 %v1700, %v1939
      %v1957 = vmul.f32 %v1701, %v1939
      %v1958 = vmul.f32 %v1702, %v1939
      %v1959 = vmul.f32 %v1703, %v1940
      %v1960 = vmul.f32 %v1704, %v1940
      %v1961 = vmul.f32 %v1705, %v1940
      %v1962 = vmul.f32 %v1706, %v1940
      %v1963 = vmul.f32 %v1707, %v1941
      %v1964 = vmul.f32 %v1708, %v1941
      %v1965 = vmul.f32 %v1709, %v1941
      %v1966 = vmul.f32 %v1710, %v1941
      %v1967 = vmul.f32 %v1711, %v1942
      %v1968 = vmul.f32 %v1712, %v1942
      %v1969 = vmul.f32 %v1713, %v1942
      %v1970 = vmul.f32 %v1714, %v1942
      %v1971 = vmul.f32 %v1715, %v1943
      %v1972 = vmul.f32 %v1716, %v1943
      %v1973 = vmul.f32 %v1717, %v1943
      %v1974 = vmul.f32 %v1718, %v1943
      %v1975 = vmul.f32 %v1719, %v1944
      %v1976 = vmul.f32 %v1720, %v1944
      %v1977 = vmul.f32 %v1721, %v1944
      %v1978 = vmul.f32 %v1722, %v1944
      %v1979 = vmul.f32 %v1723, %v1945
      %v1980 = vmul.f32 %v1724, %v1945
      %v1981 = vmul.f32 %v1725, %v1945
      %v1982 = vmul.f32 %v1726, %v1945
      %v1983 = vmul.f32 %v1727, %v1946
      %v1984 = vmul.f32 %v1728, %v1946
      %v1985 = vmul.f32 %v1729, %v1946
      %v1986 = vmul.f32 %v1730, %v1946
      %v1987 = vmul.f32 %v1731, %v1947
      %v1988 = vmul.f32 %v1732, %v1947
      %v1989 = vmul.f32 %v1733, %v1947
      %v1990 = vmul.f32 %v1734, %v1947
      %v1991 = vmul.f32 %v1735, %v1948
      %v1992 = vmul.f32 %v1736, %v1948
      %v1993 = vmul.f32 %v1737, %v1948
      %v1994 = vmul.f32 %v1738, %v1948
      %v1995 = vmul.f32 %v1739, %v1949
      %v1996 = vmul.f32 %v1740, %v1949
      %v1997 = vmul.f32 %v1741, %v1949
      %v1998 = vmul.f32 %v1742, %v1949
      %v1999 = vmul.f32 %v1743, %v1950
      %v2000 = vmul.f32 %v1744, %v1950
      %v2001 = vmul.f32 %v1745, %v1950
      %v2002 = vmul.f32 %v1746, %v1950
      %v2003 = vmul.f32 %v1747, %v1951
      %v2004 = vmul.f32 %v1748, %v1951
      %v2005 = vmul.f32 %v1749, %v1951
      %v2006 = vmul.f32 %v1750, %v1951
      %v2007 = vmul.f32 %v1751, %v1952
      %v2008 = vmul.f32 %v1752, %v1952
      %v2009 = vmul.f32 %v1753, %v1952
      %v2010 = vmul.f32 %v1754, %v1952
      %v2011 = vmul.f32 %v1755, %v1953
      %v2012 = vmul.f32 %v1756, %v1953
      %v2013 = vmul.f32 %v1757, %v1953
      %v2014 = vmul.f32 %v1758, %v1953
      %v2015 = vmul.f32 %v1759, %v1954
      %v2016 = vmul.f32 %v1760, %v1954
      %v2017 = vmul.f32 %v1761, %v1954
      %v2018 = vmul.f32 %v1762, %v1954
      %v2020 = vlaneseq
      %v2021 = vshrl.u32 %v2020, 7
      %v2022 = vsub.s32 0, %v2021
      %v2023 = vrot.slane %v1599, %v2022
      %v2024 = vlaneseq
      %v2025 = vshrl.u32 %v2024, 7
      %v2026 = vsub.s32 1, %v2025
      %v2027 = vrot.slane %v1599, %v2026
      %v2028 = vlaneseq
      %v2029 = vshrl.u32 %v2028, 7
      %v2030 = vsub.s32 2, %v2029
      %v2031 = vrot.slane %v1599, %v2030
      %v2032 = vlaneseq
      %v2033 = vshrl.u32 %v2032, 7
      %v2034 = vsub.s32 3, %v2033
      %v2035 = vrot.slane %v1599, %v2034
      %v2040 = vmul.f32 %v1955, %v2023
      %v2041 = vmul.f32 %v1956, %v2027
      %v2042 = vmul.f32 %v1957, %v2031
      %v2043 = vmul.f32 %v1958, %v2035
      %v2044 = vmul.f32 %v1959, %v2023
      %v2045 = vmul.f32 %v1960, %v2027
      %v2046 = vmul.f32 %v1961, %v2031
      %v2047 = vmul.f32 %v1962, %v2035
      %v2048 = vmul.f32 %v1963, %v2023
      %v2049 = vmul.f32 %v1964, %v2027
      %v2050 = vmul.f32 %v1965, %v2031
      %v2051 = vmul.f32 %v1966, %v2035
      %v2052 = vmul.f32 %v1967, %v2023
      %v2053 = vmul.f32 %v1968, %v2027
      %v2054 = vmul.f32 %v1969, %v2031
      %v2055 = vmul.f32 %v1970, %v2035
      %v2056 = vmul.f32 %v1971, %v2023
      %v2057 = vmul.f32 %v1972, %v2027
      %v2058 = vmul.f32 %v1973, %v2031
      %v2059 = vmul.f32 %v1974, %v2035
      %v2060 = vmul.f32 %v1975, %v2023
      %v2061 = vmul.f32 %v1976, %v2027
      %v2062 = vmul.f32 %v1977, %v2031
      %v2063 = vmul.f32 %v1978, %v2035
      %v2064 = vmul.f32 %v1979, %v2023
      %v2065 = vmul.f32 %v1980, %v2027
      %v2066 = vmul.f32 %v1981, %v2031
      %v2067 = vmul.f32 %v1982, %v2035
      %v2068 = vmul.f32 %v1983, %v2023
      %v2069 = vmul.f32 %v1984, %v2027
      %v2070 = vmul.f32 %v1985, %v2031
      %v2071 = vmul.f32 %v1986, %v2035
      %v2072 = vmul.f32 %v1987, %v2023
      %v2073 = vmul.f32 %v1988, %v2027
      %v2074 = vmul.f32 %v1989, %v2031
      %v2075 = vmul.f32 %v1990, %v2035
      %v2076 = vmul.f32 %v1991, %v2023
      %v2077 = vmul.f32 %v1992, %v2027
      %v2078 = vmul.f32 %v1993, %v2031
      %v2079 = vmul.f32 %v1994, %v2035
      %v2080 = vmul.f32 %v1995, %v2023
      %v2081 = vmul.f32 %v1996, %v2027
      %v2082 = vmul.f32 %v1997, %v2031
      %v2083 = vmul.f32 %v1998, %v2035
      %v2084 = vmul.f32 %v1999, %v2023
      %v2085 = vmul.f32 %v2000, %v2027
      %v2086 = vmul.f32 %v2001, %v2031
      %v2087 = vmul.f32 %v2002, %v2035
      %v2088 = vmul.f32 %v2003, %v2023
      %v2089 = vmul.f32 %v2004, %v2027
      %v2090 = vmul.f32 %v2005, %v2031
      %v2091 = vmul.f32 %v2006, %v2035
      %v2092 = vmul.f32 %v2007, %v2023
      %v2093 = vmul.f32 %v2008, %v2027
      %v2094 = vmul.f32 %v2009, %v2031
      %v2095 = vmul.f32 %v2010, %v2035
      %v2096 = vmul.f32 %v2011, %v2023
      %v2097 = vmul.f32 %v2012, %v2027
      %v2098 = vmul.f32 %v2013, %v2031
      %v2099 = vmul.f32 %v2014, %v2035
      %v2100 = vmul.f32 %v2015, %v2023
      %v2101 = vmul.f32 %v2016, %v2027
      %v2102 = vmul.f32 %v2017, %v2031
      %v2103 = vmul.f32 %v2018, %v2035
      %v2105 = vlaneseq
      %v2106 = vshrl.u32 %v2105, 7
      %v2107 = vsub.s32 0, %v2106
      %v2108 = vrot.slane %v1601, %v2107
      %v2109 = vlaneseq
      %v2110 = vshrl.u32 %v2109, 7
      %v2111 = vsub.s32 1, %v2110
      %v2112 = vrot.slane %v1601, %v2111
      %v2113 = vlaneseq
      %v2114 = vshrl.u32 %v2113, 7
      %v2115 = vsub.s32 2, %v2114
      %v2116 = vrot.slane %v1601, %v2115
      %v2117 = vlaneseq
      %v2118 = vshrl.u32 %v2117, 7
      %v2119 = vsub.s32 3, %v2118
      %v2120 = vrot.slane %v1601, %v2119
      %v2125 = vadd.f32 %v2040, %v2108
      %v2126 = vadd.f32 %v2041, %v2112
      %v2127 = vadd.f32 %v2042, %v2116
      %v2128 = vadd.f32 %v2043, %v2120
      %v2129 = vadd.f32 %v2044, %v2108
      %v2130 = vadd.f32 %v2045, %v2112
      %v2131 = vadd.f32 %v2046, %v2116
      %v2132 = vadd.f32 %v2047, %v2120
      %v2133 = vadd.f32 %v2048, %v2108
      %v2134 = vadd.f32 %v2049, %v2112
      %v2135 = vadd.f32 %v2050, %v2116
      %v2136 = vadd.f32 %v2051, %v2120
      %v2137 = vadd.f32 %v2052, %v2108
      %v2138 = vadd.f32 %v2053, %v2112
      %v2139 = vadd.f32 %v2054, %v2116
      %v2140 = vadd.f32 %v2055, %v2120
      %v2141 = vadd.f32 %v2056, %v2108
      %v2142 = vadd.f32 %v2057, %v2112
      %v2143 = vadd.f32 %v2058, %v2116
      %v2144 = vadd.f32 %v2059, %v2120
      %v2145 = vadd.f32 %v2060, %v2108
      %v2146 = vadd.f32 %v2061, %v2112
      %v2147 = vadd.f32 %v2062, %v2116
      %v2148 = vadd.f32 %v2063, %v2120
      %v2149 = vadd.f32 %v2064, %v2108
      %v2150 = vadd.f32 %v2065, %v2112
      %v2151 = vadd.f32 %v2066, %v2116
      %v2152 = vadd.f32 %v2067, %v2120
      %v2153 = vadd.f32 %v2068, %v2108
      %v2154 = vadd.f32 %v2069, %v2112
      %v2155 = vadd.f32 %v2070, %v2116
      %v2156 = vadd.f32 %v2071, %v2120
      %v2157 = vadd.f32 %v2072, %v2108
      %v2158 = vadd.f32 %v2073, %v2112
      %v2159 = vadd.f32 %v2074, %v2116
      %v2160 = vadd.f32 %v2075, %v2120
      %v2161 = vadd.f32 %v2076, %v2108
      %v2162 = vadd.f32 %v2077, %v2112
      %v2163 = vadd.f32 %v2078, %v2116
      %v2164 = vadd.f32 %v2079, %v2120
      %v2165 = vadd.f32 %v2080, %v2108
      %v2166 = vadd.f32 %v2081, %v2112
      %v2167 = vadd.f32 %v2082, %v2116
      %v2168 = vadd.f32 %v2083, %v2120
      %v2169 = vadd.f32 %v2084, %v2108
      %v2170 = vadd.f32 %v2085, %v2112
      %v2171 = vadd.f32 %v2086, %v2116
      %v2172 = vadd.f32 %v2087, %v2120
      %v2173 = vadd.f32 %v2088, %v2108
      %v2174 = vadd.f32 %v2089, %v2112
      %v2175 = vadd.f32 %v2090, %v2116
      %v2176 = vadd.f32 %v2091, %v2120
      %v2177 = vadd.f32 %v2092, %v2108
      %v2178 = vadd.f32 %v2093, %v2112
      %v2179 = vadd.f32 %v2094, %v2116
      %v2180 = vadd.f32 %v2095, %v2120
      %v2181 = vadd.f32 %v2096, %v2108
      %v2182 = vadd.f32 %v2097, %v2112
      %v2183 = vadd.f32 %v2098, %v2116
      %v2184 = vadd.f32 %v2099, %v2120
      %v2185 = vadd.f32 %v2100, %v2108
      %v2186 = vadd.f32 %v2101, %v2112
      %v2187 = vadd.f32 %v2102, %v2116
      %v2188 = vadd.f32 %v2103, %v2120
      %v2189 = vmax.f32 %v2125, 0.0
      %v2190 = vmax.f32 %v2126, 0.0
      %v2191 = vmax.f32 %v2127, 0.0
      %v2192 = vmax.f32 %v2128, 0.0
      %v2193 = vmax.f32 %v2129, 0.0
      %v2194 = vmax.f32 %v2130, 0.0
      %v2195 = vmax.f32 %v2131, 0.0
      %v2196 = vmax.f32 %v2132, 0.0
      %v2197 = vmax.f32 %v2133, 0.0
      %v2198 = vmax.f32 %v2134, 0.0
      %v2199 = vmax.f32 %v2135, 0.0
      %v2200 = vmax.f32 %v2136, 0.0
      %v2201 = vmax.f32 %v2137, 0.0
      %v2202 = vmax.f32 %v2138, 0.0
      %v2203 = vmax.f32 %v2139, 0.0
      %v2204 = vmax.f32 %v2140, 0.0
      %v2205 = vmax.f32 %v2141, 0.0
      %v2206 = vmax.f32 %v2142, 0.0
      %v2207 = vmax.f32 %v2143, 0.0
      %v2208 = vmax.f32 %v2144, 0.0
      %v2209 = vmax.f32 %v2145, 0.0
      %v2210 = vmax.f32 %v2146, 0.0
      %v2211 = vmax.f32 %v2147, 0.0
      %v2212 = vmax.f32 %v2148, 0.0
      %v2213 = vmax.f32 %v2149, 0.0
      %v2214 = vmax.f32 %v2150, 0.0
      %v2215 = vmax.f32 %v2151, 0.0
      %v2216 = vmax.f32 %v2152, 0.0
      %v2217 = vmax.f32 %v2153, 0.0
      %v2218 = vmax.f32 %v2154, 0.0
      %v2219 = vmax.f32 %v2155, 0.0
      %v2220 = vmax.f32 %v2156, 0.0
      %v2221 = vmax.f32 %v2157, 0.0
      %v2222 = vmax.f32 %v2158, 0.0
      %v2223 = vmax.f32 %v2159, 0.0
      %v2224 = vmax.f32 %v2160, 0.0
      %v2225 = vmax.f32 %v2161, 0.0
      %v2226 = vmax.f32 %v2162, 0.0
      %v2227 = vmax.f32 %v2163, 0.0
      %v2228 = vmax.f32 %v2164, 0.0
      %v2229 = vmax.f32 %v2165, 0.0
      %v2230 = vmax.f32 %v2166, 0.0
      %v2231 = vmax.f32 %v2167, 0.0
      %v2232 = vmax.f32 %v2168, 0.0
      %v2233 = vmax.f32 %v2169, 0.0
      %v2234 = vmax.f32 %v2170, 0.0
      %v2235 = vmax.f32 %v2171, 0.0
      %v2236 = vmax.f32 %v2172, 0.0
      %v2237 = vmax.f32 %v2173, 0.0
      %v2238 = vmax.f32 %v2174, 0.0
      %v2239 = vmax.f32 %v2175, 0.0
      %v2240 = vmax.f32 %v2176, 0.0
      %v2241 = vmax.f32 %v2177, 0.0
      %v2242 = vmax.f32 %v2178, 0.0
      %v2243 = vmax.f32 %v2179, 0.0
      %v2244 = vmax.f32 %v2180, 0.0
      %v2245 = vmax.f32 %v2181, 0.0
      %v2246 = vmax.f32 %v2182, 0.0
      %v2247 = vmax.f32 %v2183, 0.0
      %v2248 = vmax.f32 %v2184, 0.0
      %v2249 = vmax.f32 %v2185, 0.0
      %v2250 = vmax.f32 %v2186, 0.0
      %v2251 = vmax.f32 %v2187, 0.0
      %v2252 = vmax.f32 %v2188, 0.0
      %v2253 = vpack.c.bf16 %v2193, %v2189
      %v2254 = vpack.c.bf16 %v2194, %v2190
      %v2255 = vpack.c.bf16 %v2195, %v2191
      %v2256 = vpack.c.bf16 %v2196, %v2192
      %v2257 = vpack.c.bf16 %v2201, %v2197
      %v2258 = vpack.c.bf16 %v2202, %v2198
      %v2259 = vpack.c.bf16 %v2203, %v2199
      %v2260 = vpack.c.bf16 %v2204, %v2200
      %v2261 = vpack.c.bf16 %v2209, %v2205
      %v2262 = vpack.c.bf16 %v2210, %v2206
      %v2263 = vpack.c.bf16 %v2211, %v2207
      %v2264 = vpack.c.bf16 %v2212, %v2208
      %v2265 = vpack.c.bf16 %v2217, %v2213
      %v2266 = vpack.c.bf16 %v2218, %v2214
      %v2267 = vpack.c.bf16 %v2219, %v2215
      %v2268 = vpack.c.bf16 %v2220, %v2216
      %v2269 = vpack.c.bf16 %v2225, %v2221
      %v2270 = vpack.c.bf16 %v2226, %v2222
      %v2271 = vpack.c.bf16 %v2227, %v2223
      %v2272 = vpack.c.bf16 %v2228, %v2224
      %v2273 = vpack.c.bf16 %v2233, %v2229
      %v2274 = vpack.c.bf16 %v2234, %v2230
      %v2275 = vpack.c.bf16 %v2235, %v2231
      %v2276 = vpack.c.bf16 %v2236, %v2232
      %v2277 = vpack.c.bf16 %v2241, %v2237
      %v2278 = vpack.c.bf16 %v2242, %v2238
      %v2279 = vpack.c.bf16 %v2243, %v2239
      %v2280 = vpack.c.bf16 %v2244, %v2240
      %v2281 = vpack.c.bf16 %v2249, %v2245
      %v2282 = vpack.c.bf16 %v2250, %v2246
      %v2283 = vpack.c.bf16 %v2251, %v2247
      %v2284 = vpack.c.bf16 %v2252, %v2248
      %v2317 = vunpack.c.l.b16 %v2253
      %v2318 = vunpack.c.l.b16 %v2254
      %v2319 = vunpack.c.l.b16 %v2255
      %v2320 = vunpack.c.l.b16 %v2256
      %v2321 = vunpack.c.h.b16 %v2253
      %v2322 = vunpack.c.h.b16 %v2254
      %v2323 = vunpack.c.h.b16 %v2255
      %v2324 = vunpack.c.h.b16 %v2256
      %v2325 = vunpack.c.l.b16 %v2257
      %v2326 = vunpack.c.l.b16 %v2258
      %v2327 = vunpack.c.l.b16 %v2259
      %v2328 = vunpack.c.l.b16 %v2260
      %v2329 = vunpack.c.h.b16 %v2257
      %v2330 = vunpack.c.h.b16 %v2258
      %v2331 = vunpack.c.h.b16 %v2259
      %v2332 = vunpack.c.h.b16 %v2260
      %v2333 = vunpack.c.l.b16 %v2261
      %v2334 = vunpack.c.l.b16 %v2262
      %v2335 = vunpack.c.l.b16 %v2263
      %v2336 = vunpack.c.l.b16 %v2264
      %v2337 = vunpack.c.h.b16 %v2261
      %v2338 = vunpack.c.h.b16 %v2262
      %v2339 = vunpack.c.h.b16 %v2263
      %v2340 = vunpack.c.h.b16 %v2264
      %v2341 = vunpack.c.l.b16 %v2265
      %v2342 = vunpack.c.l.b16 %v2266
      %v2343 = vunpack.c.l.b16 %v2267
      %v2344 = vunpack.c.l.b16 %v2268
      %v2345 = vunpack.c.h.b16 %v2265
      %v2346 = vunpack.c.h.b16 %v2266
      %v2347 = vunpack.c.h.b16 %v2267
      %v2348 = vunpack.c.h.b16 %v2268
      %v2349 = vunpack.c.l.b16 %v2269
      %v2350 = vunpack.c.l.b16 %v2270
      %v2351 = vunpack.c.l.b16 %v2271
      %v2352 = vunpack.c.l.b16 %v2272
      %v2353 = vunpack.c.h.b16 %v2269
      %v2354 = vunpack.c.h.b16 %v2270
      %v2355 = vunpack.c.h.b16 %v2271
      %v2356 = vunpack.c.h.b16 %v2272
      %v2357 = vunpack.c.l.b16 %v2273
      %v2358 = vunpack.c.l.b16 %v2274
      %v2359 = vunpack.c.l.b16 %v2275
      %v2360 = vunpack.c.l.b16 %v2276
      %v2361 = vunpack.c.h.b16 %v2273
      %v2362 = vunpack.c.h.b16 %v2274
      %v2363 = vunpack.c.h.b16 %v2275
      %v2364 = vunpack.c.h.b16 %v2276
      %v2365 = vunpack.c.l.b16 %v2277
      %v2366 = vunpack.c.l.b16 %v2278
      %v2367 = vunpack.c.l.b16 %v2279
      %v2368 = vunpack.c.l.b16 %v2280
      %v2369 = vunpack.c.h.b16 %v2277
      %v2370 = vunpack.c.h.b16 %v2278
      %v2371 = vunpack.c.h.b16 %v2279
      %v2372 = vunpack.c.h.b16 %v2280
      %v2373 = vunpack.c.l.b16 %v2281
      %v2374 = vunpack.c.l.b16 %v2282
      %v2375 = vunpack.c.l.b16 %v2283
      %v2376 = vunpack.c.l.b16 %v2284
      %v2377 = vunpack.c.h.b16 %v2281
      %v2378 = vunpack.c.h.b16 %v2282
      %v2379 = vunpack.c.h.b16 %v2283
      %v2380 = vunpack.c.h.b16 %v2284
      %v2381 = vpack.c.b16 %v2318, %v2317
      %v2382 = vpack.c.b16 %v2320, %v2319
      %v2383 = vpack.c.b16 %v2322, %v2321
      %v2384 = vpack.c.b16 %v2324, %v2323
      %v2385 = vpack.c.b16 %v2326, %v2325
      %v2386 = vpack.c.b16 %v2328, %v2327
      %v2387 = vpack.c.b16 %v2330, %v2329
      %v2388 = vpack.c.b16 %v2332, %v2331
      %v2389 = vpack.c.b16 %v2334, %v2333
      %v2390 = vpack.c.b16 %v2336, %v2335
      %v2391 = vpack.c.b16 %v2338, %v2337
      %v2392 = vpack.c.b16 %v2340, %v2339
      %v2393 = vpack.c.b16 %v2342, %v2341
      %v2394 = vpack.c.b16 %v2344, %v2343
      %v2395 = vpack.c.b16 %v2346, %v2345
      %v2396 = vpack.c.b16 %v2348, %v2347
      %v2397 = vpack.c.b16 %v2350, %v2349
      %v2398 = vpack.c.b16 %v2352, %v2351
      %v2399 = vpack.c.b16 %v2354, %v2353
      %v2400 = vpack.c.b16 %v2356, %v2355
      %v2401 = vpack.c.b16 %v2358, %v2357
      %v2402 = vpack.c.b16 %v2360, %v2359
      %v2403 = vpack.c.b16 %v2362, %v2361
      %v2404 = vpack.c.b16 %v2364, %v2363
      %v2405 = vpack.c.b16 %v2366, %v2365
      %v2406 = vpack.c.b16 %v2368, %v2367
      %v2407 = vpack.c.b16 %v2370, %v2369
      %v2408 = vpack.c.b16 %v2372, %v2371
      %v2409 = vpack.c.b16 %v2374, %v2373
      %v2410 = vpack.c.b16 %v2376, %v2375
      %v2411 = vpack.c.b16 %v2378, %v2377
      %v2412 = vpack.c.b16 %v2380, %v2379
      %2445 = vst [vmem:[%s280] sm:$0xff] %v2381
      %2446 = vst [vmem:[%s280 + $0x8] sm:$0xff] %v2382
      %2447 = vst [vmem:[%s280 + $0x10] sm:$0xff] %v2383
      %2448 = vst [vmem:[%s280 + $0x18] sm:$0xff] %v2384
      %2449 = vst [vmem:[%s280 + $0x20] sm:$0xff] %v2385
      %2450 = vst [vmem:[%s280 + $0x28] sm:$0xff] %v2386
      %2451 = vst [vmem:[%s280 + $0x30] sm:$0xff] %v2387
      %2452 = vst [vmem:[%s280 + $0x38] sm:$0xff] %v2388
      %2453 = vst [vmem:[%s280 + $0x40] sm:$0xff] %v2389
      %2454 = vst [vmem:[%s280 + $0x48] sm:$0xff] %v2390
      %2455 = vst [vmem:[%s280 + $0x50] sm:$0xff] %v2391
      %2456 = vst [vmem:[%s280 + $0x58] sm:$0xff] %v2392
      %2457 = vst [vmem:[%s280 + $0x60] sm:$0xff] %v2393
      %2458 = vst [vmem:[%s280 + $0x68] sm:$0xff] %v2394
      %2459 = vst [vmem:[%s280 + $0x70] sm:$0xff] %v2395
      %2460 = vst [vmem:[%s280 + $0x78] sm:$0xff] %v2396
      %2461 = vst [vmem:[%s280 + $0x80] sm:$0xff] %v2397
      %2462 = vst [vmem:[%s280 + $0x88] sm:$0xff] %v2398
      %2463 = vst [vmem:[%s280 + $0x90] sm:$0xff] %v2399
      %2464 = vst [vmem:[%s280 + $0x98] sm:$0xff] %v2400
      %2465 = vst [vmem:[%s280 + $0xa0] sm:$0xff] %v2401
      %2466 = vst [vmem:[%s280 + $0xa8] sm:$0xff] %v2402
      %2467 = vst [vmem:[%s280 + $0xb0] sm:$0xff] %v2403
      %2468 = vst [vmem:[%s280 + $0xb8] sm:$0xff] %v2404
      %2469 = vst [vmem:[%s280 + $0xc0] sm:$0xff] %v2405
      %2470 = vst [vmem:[%s280 + $0xc8] sm:$0xff] %v2406
      %2471 = vst [vmem:[%s280 + $0xd0] sm:$0xff] %v2407
      %2472 = vst [vmem:[%s280 + $0xd8] sm:$0xff] %v2408
      %2473 = vst [vmem:[%s280 + $0xe0] sm:$0xff] %v2409
      %2474 = vst [vmem:[%s280 + $0xe8] sm:$0xff] %v2410
      %2475 = vst [vmem:[%s280 + $0xf0] sm:$0xff] %v2411
      %2476 = vst [vmem:[%s280 + $0xf8] sm:$0xff] %v2412
      %s2477 = smul.u32 16, %s17
      %p2478 = scmp.lt.s32.totalorder %s2477, 31
      %s2479 = scalar_select %p2478, %s2477, 31
      %s2480 = smul.addr %s2479, 4
      %s2481 = smul.addr %s2480, 4
      %s2482 = scalar_lea.vmem %s6, %s2481
      // Predicated region
      $region45: #{gnn_regressor_forward.3} parent=43 // pred_check
        %p2483 = pneg %p171
      $region46: #{gnn_regressor_forward.3} parent=43 // pred_check_branch
        %2485 = sbr.rel (%p2483) target = $region48
      $region47: #{gnn_regressor_forward.3} parent=43 // pred_region
        %s2486 = smul.u32 16, %s17
      $region48: #{gnn_regressor_forward.3} parent=43 // pred_fallthru
        _
    $region44: #{gnn_regressor_forward.3} parent=5 // pred_fallthru
      _
    %p2487 = scmp.le.s32.totalorder 2, %s12
    // Predicated region
    $region49: #{gnn_regressor_forward.3} parent=5 // pred_check
      %p2488 = pneg %p2487
    $region50: #{gnn_regressor_forward.3} parent=5 // pred_check_branch
      %2490 = sbr.rel (%p2488) target = $region52
    $region51: #{gnn_regressor_forward.3} parent=5 // pred_region
      %s2491 = ssub.s32 %s12, 2
      // Predicated region
      $region53: #{gnn_regressor_forward.3} parent=51 // pred_check
        %p2492 = pneg %p177
      $region54: #{gnn_regressor_forward.3} parent=51 // pred_check_branch
        %2494 = sbr.rel (%p2492) target = $region56
      $region55: #{gnn_regressor_forward.3} parent=51 // pred_region
        %s2495 = smul.u32 16, %s18
        %p2496 = scmp.lt.s32.totalorder %s2495, 31
        %s2497 = scalar_select %p2496, %s2495, 31
        %s2498 = smul.addr %s2497, 4
        %s2499 = smul.addr %s2498, 4
        %s2500 = scalar_lea.vmem %s6, %s2499
      $region56: #{gnn_regressor_forward.3} parent=51 // pred_fallthru
        _
    $region52: #{gnn_regressor_forward.3} parent=5 // pred_fallthru
      _
  $region6: #{gnn_regressor_forward.3} parent=0 // loop_footer
    %s16 = sadd.s32 1, %s12
  $region7: #{gnn_regressor_forward.3} parent=0 // loop_footer_branch
    %11 = sbr.rel target = $region3
  $region8: #{gnn_regressor_forward.3} parent=0 // loop_exit
    _

// kernel: gnn_regressor_forward.5
$region0: #{gnn_regressor_forward.5}
  #allocation0 [shape = 'u32[]', space=smem, size = 0x4, offset = 0x4, fixed_abs, tag = 'smem constant byte address 0x4 - core index']
  #allocation1 [shape = 'u32[144,128]{1,0:T(1,128)}', space=vmem, size = 0x12000, scoped, tag = 'internal scratch']
  %s0 = inlined_call_operand.vmem [shape: bf16[256,256], index: 0, kind: input, shape index: {}]
  %s1 = inlined_call_operand.vmem [shape: bf16[256,512], index: 1, kind: input, shape index: {}, may-alias: {1,2}]
  %s2 = inlined_call_operand.vmem [shape: bf16[256,512], index: 2, kind: input, shape index: {}, may-alias: {1,2}]
  %s3 = inlined_call_operand.vmem [shape: bf16[512,128], index: 3, kind: input, shape index: {}]
  %s4 = inlined_call_operand.vmem [shape: bf16[512,128], index: 4, kind: input, shape index: {}]
  %s5 = inlined_call_operand.vmem [shape: f32[3,128], index: 5, kind: input, shape index: {}]
  %s6 = inlined_call_operand.vmem [shape: f32[256,128], index: 6, kind: output, shape index: {}]
  %s7 = sld [smem:[#allocation0]]
  $region57: #{gnn_regressor_forward.5} parent=0
    _
  %s9 = ssub.s32 1, %s7
  %s10 = scalar_select 0, %s9, %s7
  loop: start=0, step=1, limit=4
  $region2: #{gnn_regressor_forward.5} parent=0 // loop_pre_header
    _
  $region3: #{gnn_regressor_forward.5} parent=0 // loop_header
    %s12 = sphi 0, %s16
    %p13 = scmp.ge.s32.totalorder %s12, 4
    %s22 = sphi 0, %s24
    %s25 = sphi 0, %s22
    %s26 = sphi 0, %s25
    %s42 = sphi 0, %s26
    %s46 = sphi 0, %s46
    %s48 = sphi 0, %s46
    %s49 = sphi 0, %s48
    %s63 = sphi 0, %s49
    %s69 = sphi 0, %s71
    %s72 = sphi 0, %s69
    %s73 = sphi 0, %s72
    %s89 = sphi 0, %s73
    %s93 = sphi 0, %s93
    %s95 = sphi 0, %s93
    %s96 = sphi 0, %s95
    %s110 = sphi 0, %s96
    %s114 = sphi 0, %s114
    %s116 = sphi 0, %s114
    %s117 = sphi 0, %s116
    %s131 = sphi 0, %s117
    %s135 = sphi 0, %s135
    %s137 = sphi 0, %s135
    %s138 = sphi 0, %s137
    %s152 = sphi 0, %s138
    %s158 = sphi 0, %s160
    %s161 = sphi 0, %s158
    %s162 = sphi 0, %s161
    %s178 = sphi 0, %s162
  $region4: #{gnn_regressor_forward.5} parent=0 // loop_header_branch
    %15 = sbr.rel (%p13) target = $region8
  $region5: #{gnn_regressor_forward.5} parent=0 // loop_body
    %s17 = ssub.s32 %s12, 1
    %s18 = ssub.s32 %s12, 2
    %s19 = sadd.s32 %s12, 1
    %s20 = ssub.s32 %s12, %s19
    %p21 = scmp.eq.s32.totalorder %s20, 0
    %s23 = sadd.s32 %s22, 1
    %s24 = scalar_select %p21, %s22, %s23
    %p27 = pneg %p21
    %p28 = scmp.eq.s32.totalorder %s12, 1
    %p29 = por %p27, %p28
    %p30 = scmp.ne.s32.totalorder %s22, %s25
    %p31 = scmp.eq.s32.totalorder %s12, 0
    %p32 = por %p30, %p31
    %p33 = scmp.ne.s32.totalorder %s22, %s25
    %p34 = scmp.eq.s32.totalorder %s17, 1
    %p35 = por %p33, %p34
    %p36 = scmp.ne.s32.totalorder %s25, %s26
    %p37 = scmp.eq.s32.totalorder %s17, 0
    %p38 = por %p36, %p37
    %p39 = scmp.ne.s32.totalorder %s25, %s26
    %p40 = scmp.eq.s32.totalorder %s18, 1
    %p41 = por %p39, %p40
    %p43 = scmp.ne.s32.totalorder %s26, %s42
    %p44 = scmp.eq.s32.totalorder %s18, 0
    %p45 = por %p43, %p44
    %s47 = sadd.s32 %s46, 1
    %p50 = scmp.eq.s32.totalorder %s12, 1
    %p51 = scmp.ne.s32.totalorder %s46, %s48
    %p52 = scmp.eq.s32.totalorder %s12, 0
    %p53 = por %p51, %p52
    %p54 = scmp.ne.s32.totalorder %s46, %s48
    %p55 = scmp.eq.s32.totalorder %s17, 1
    %p56 = por %p54, %p55
    %p57 = scmp.ne.s32.totalorder %s48, %s49
    %p58 = scmp.eq.s32.totalorder %s17, 0
    %p59 = por %p57, %p58
    %p60 = scmp.ne.s32.totalorder %s48, %s49
    %p61 = scmp.eq.s32.totalorder %s18, 1
    %p62 = por %p60, %p61
    %p64 = scmp.ne.s32.totalorder %s49, %s63
    %p65 = scmp.eq.s32.totalorder %s18, 0
    %p66 = por %p64, %p65
    %s67 = ssub.s32 %s12, %s19
    %p68 = scmp.eq.s32.totalorder %s67, 0
    %s70 = sadd.s32 %s69, 1
    %s71 = scalar_select %p68, %s69, %s70
    %p74 = pneg %p68
    %p75 = scmp.eq.s32.totalorder %s12, 1
    %p76 = por %p74, %p75
    %p77 = scmp.ne.s32.totalorder %s69, %s72
    %p78 = scmp.eq.s32.totalorder %s12, 0
    %p79 = por %p77, %p78
    %p80 = scmp.ne.s32.totalorder %s69, %s72
    %p81 = scmp.eq.s32.totalorder %s17, 1
    %p82 = por %p80, %p81
    %p83 = scmp.ne.s32.totalorder %s72, %s73
    %p84 = scmp.eq.s32.totalorder %s17, 0
    %p85 = por %p83, %p84
    %p86 = scmp.ne.s32.totalorder %s72, %s73
    %p87 = scmp.eq.s32.totalorder %s18, 1
    %p88 = por %p86, %p87
    %p90 = scmp.ne.s32.totalorder %s73, %s89
    %p91 = scmp.eq.s32.totalorder %s18, 0
    %p92 = por %p90, %p91
    %s94 = sadd.s32 %s93, 1
    %p97 = scmp.eq.s32.totalorder %s12, 1
    %p98 = scmp.ne.s32.totalorder %s93, %s95
    %p99 = scmp.eq.s32.totalorder %s12, 0
    %p100 = por %p98, %p99
    %p101 = scmp.ne.s32.totalorder %s93, %s95
    %p102 = scmp.eq.s32.totalorder %s17, 1
    %p103 = por %p101, %p102
    %p104 = scmp.ne.s32.totalorder %s95, %s96
    %p105 = scmp.eq.s32.totalorder %s17, 0
    %p106 = por %p104, %p105
    %p107 = scmp.ne.s32.totalorder %s95, %s96
    %p108 = scmp.eq.s32.totalorder %s18, 1
    %p109 = por %p107, %p108
    %p111 = scmp.ne.s32.totalorder %s96, %s110
    %p112 = scmp.eq.s32.totalorder %s18, 0
    %p113 = por %p111, %p112
    %s115 = sadd.s32 %s114, 1
    %p118 = scmp.eq.s32.totalorder %s12, 1
    %p119 = scmp.ne.s32.totalorder %s114, %s116
    %p120 = scmp.eq.s32.totalorder %s12, 0
    %p121 = por %p119, %p120
    %p122 = scmp.ne.s32.totalorder %s114, %s116
    %p123 = scmp.eq.s32.totalorder %s17, 1
    %p124 = por %p122, %p123
    %p125 = scmp.ne.s32.totalorder %s116, %s117
    %p126 = scmp.eq.s32.totalorder %s17, 0
    %p127 = por %p125, %p126
    %p128 = scmp.ne.s32.totalorder %s116, %s117
    %p129 = scmp.eq.s32.totalorder %s18, 1
    %p130 = por %p128, %p129
    %p132 = scmp.ne.s32.totalorder %s117, %s131
    %p133 = scmp.eq.s32.totalorder %s18, 0
    %p134 = por %p132, %p133
    %s136 = sadd.s32 %s135, 1
    %p139 = scmp.eq.s32.totalorder %s12, 1
    %p140 = scmp.ne.s32.totalorder %s135, %s137
    %p141 = scmp.eq.s32.totalorder %s12, 0
    %p142 = por %p140, %p141
    %p143 = scmp.ne.s32.totalorder %s135, %s137
    %p144 = scmp.eq.s32.totalorder %s17, 1
    %p145 = por %p143, %p144
    %p146 = scmp.ne.s32.totalorder %s137, %s138
    %p147 = scmp.eq.s32.totalorder %s17, 0
    %p148 = por %p146, %p147
    %p149 = scmp.ne.s32.totalorder %s137, %s138
    %p150 = scmp.eq.s32.totalorder %s18, 1
    %p151 = por %p149, %p150
    %p153 = scmp.ne.s32.totalorder %s138, %s152
    %p154 = scmp.eq.s32.totalorder %s18, 0
    %p155 = por %p153, %p154
    %s156 = ssub.s32 %s12, %s19
    %p157 = scmp.eq.s32.totalorder %s156, 0
    %s159 = sadd.s32 %s158, 1
    %s160 = scalar_select %p157, %s158, %s159
    %p163 = pneg %p157
    %p164 = scmp.eq.s32.totalorder %s12, 1
    %p165 = por %p163, %p164
    %p166 = scmp.ne.s32.totalorder %s158, %s161
    %p167 = scmp.eq.s32.totalorder %s12, 0
    %p168 = por %p166, %p167
    %p169 = scmp.ne.s32.totalorder %s158, %s161
    %p170 = scmp.eq.s32.totalorder %s17, 1
    %p171 = por %p169, %p170
    %p172 = scmp.ne.s32.totalorder %s161, %s162
    %p173 = scmp.eq.s32.totalorder %s17, 0
    %p174 = por %p172, %p173
    %p175 = scmp.ne.s32.totalorder %s161, %s162
    %p176 = scmp.eq.s32.totalorder %s18, 1
    %p177 = por %p175, %p176
    %p179 = scmp.ne.s32.totalorder %s162, %s178
    %p180 = scmp.eq.s32.totalorder %s18, 0
    %p181 = por %p179, %p180
    %p182 = scmp.le.s32.totalorder 1, %s12
    %p183 = scmp.lt.s32.totalorder %s12, 3
    %p184 = pnand %p182, %p183
    %p185 = pneg %p184
    // Predicated region
    $region9: #{gnn_regressor_forward.5} parent=5 // pred_check
      _
    $region10: #{gnn_regressor_forward.5} parent=5 // pred_check_branch
      %187 = sbr.rel (%p184) target = $region12
    $region11: #{gnn_regressor_forward.5} parent=5 // pred_region
      %s188 = ssub.s32 %s12, 1
      // Predicated region
      $region13: #{gnn_regressor_forward.5} parent=11 // pred_check
        %p189 = pneg %p59
      $region14: #{gnn_regressor_forward.5} parent=11 // pred_check_branch
        %191 = sbr.rel (%p189) target = $region16
      $region15: #{gnn_regressor_forward.5} parent=11 // pred_region
        _
      $region16: #{gnn_regressor_forward.5} parent=11 // pred_fallthru
        _
      // Predicated region
      $region17: #{gnn_regressor_forward.5} parent=11 // pred_check
        %p192 = pneg %p106
      $region18: #{gnn_regressor_forward.5} parent=11 // pred_check_branch
        %194 = sbr.rel (%p192) target = $region20
      $region19: #{gnn_regressor_forward.5} parent=11 // pred_region
        _
      $region20: #{gnn_regressor_forward.5} parent=11 // pred_fallthru
        _
      // Predicated region
      $region21: #{gnn_regressor_forward.5} parent=11 // pred_check
        %p195 = pneg %p127
      $region22: #{gnn_regressor_forward.5} parent=11 // pred_check_branch
        %197 = sbr.rel (%p195) target = $region24
      $region23: #{gnn_regressor_forward.5} parent=11 // pred_region
        _
      $region24: #{gnn_regressor_forward.5} parent=11 // pred_fallthru
        _
      // Predicated region
      $region25: #{gnn_regressor_forward.5} parent=11 // pred_check
        %p198 = pneg %p148
      $region26: #{gnn_regressor_forward.5} parent=11 // pred_check_branch
        %200 = sbr.rel (%p198) target = $region28
      $region27: #{gnn_regressor_forward.5} parent=11 // pred_region
        _
      $region28: #{gnn_regressor_forward.5} parent=11 // pred_fallthru
        _
    $region12: #{gnn_regressor_forward.5} parent=5 // pred_fallthru
      _
    %p201 = scmp.lt.s32.totalorder %s12, 2
    // Predicated region
    $region29: #{gnn_regressor_forward.5} parent=5 // pred_check
      %p202 = pneg %p201
    $region30: #{gnn_regressor_forward.5} parent=5 // pred_check_branch
      %204 = sbr.rel (%p202) target = $region32
    $region31: #{gnn_regressor_forward.5} parent=5 // pred_region
      // Predicated region
      $region33: #{gnn_regressor_forward.5} parent=31 // pred_check
        %p205 = pneg %p32
      $region34: #{gnn_regressor_forward.5} parent=31 // pred_check_branch
        %207 = sbr.rel (%p205) target = $region36
      $region35: #{gnn_regressor_forward.5} parent=31 // pred_region
        %s208 = smul.u32 16, %s12
        %p209 = scmp.lt.s32.totalorder %s208, 31
        %s210 = scalar_select %p209, %s208, 31
        %s211 = smul.addr %s210, 2
        %s212 = smul.addr %s211, 4
        %s213 = scalar_lea.vmem %s0, %s212
        %s214 = smul.u32 16, %s12
      $region36: #{gnn_regressor_forward.5} parent=31 // pred_fallthru
        _
      // Predicated region
      $region37: #{gnn_regressor_forward.5} parent=31 // pred_check
        %p215 = pneg %p79
      $region38: #{gnn_regressor_forward.5} parent=31 // pred_check_branch
        %217 = sbr.rel (%p215) target = $region40
      $region39: #{gnn_regressor_forward.5} parent=31 // pred_region
        %s218 = smul.u32 16, %s12
        %p219 = scmp.lt.s32.totalorder %s218, 31
        %s220 = scalar_select %p219, %s218, 31
        %s221 = smul.addr %s220, 4
        %s222 = smul.addr %s221, 4
        %s223 = scalar_lea.vmem %s2, %s222
        %s224 = smul.u32 16, %s12
      $region40: #{gnn_regressor_forward.5} parent=31 // pred_fallthru
        _
    $region32: #{gnn_regressor_forward.5} parent=5 // pred_fallthru
      _
    %p225 = scmp.le.s32.totalorder 1, %s12
    %p226 = scmp.lt.s32.totalorder %s12, 3
    %p227 = pnand %p225, %p226
    %p228 = pneg %p227
    // Predicated region
    $region41: #{gnn_regressor_forward.5} parent=5 // pred_check
      _
    $region42: #{gnn_regressor_forward.5} parent=5 // pred_check_branch
      %230 = sbr.rel (%p227) target = $region44
    $region43: #{gnn_regressor_forward.5} parent=5 // pred_region
      %s231 = ssub.s32 %s12, 1
      %s232 = smul.u32 16, %s17
      %p233 = scmp.lt.s32.totalorder %s232, 31
      %s234 = scalar_select %p233, %s232, 31
      %s235 = smul.addr %s234, 2
      %s236 = smul.addr %s235, 4
      %s237 = scalar_lea.vmem %s0, %s236
      %p238 = pneg %p38
      %p239 = pneg %p35
      %p240 = pneg %p59
      %p241 = pneg %p56
      %s242 = smul.u32 16, %s17
      %p243 = scmp.lt.s32.totalorder %s242, 31
      %s244 = scalar_select %p243, %s242, 31
      %s245 = smul.addr %s244, 4
      %s246 = smul.addr %s245, 4
      %s247 = scalar_lea.vmem %s2, %s246
      %p248 = pneg %p85
      %p249 = pneg %p82
      %p250 = pneg %p106
      %p251 = pneg %p103
      %p252 = pneg %p127
      %p253 = pneg %p124
      %p254 = pneg %p148
      %p255 = pneg %p145
      %p256 = pneg %p174
      %p257 = pneg %p171
      %s258 = smul.u32 16, %s17
      %p259 = scmp.lt.s32.totalorder %s258, 31
      %s260 = scalar_select %p259, %s258, 31
      %s261 = smul.addr %s260, 8
      %s262 = scalar_lea.vmem %s6, %s261
      %s263 = smul.u32 16, %s17
      %p264 = scmp.lt.s32.totalorder %s263, 31
      %s265 = scalar_select %p264, %s263, 31
      %s266 = smul.addr %s265, 2
      %s267 = smul.addr %s266, 4
      %s268 = scalar_lea.vmem %s0, %s267
      %s269 = smul.u32 16, %s17
      %s270 = smul.u32 16, %s17
      %p271 = scmp.lt.s32.totalorder %s270, 31
      %s272 = scalar_select %p271, %s270, 31
      %s273 = smul.addr %s272, 4
      %s274 = smul.addr %s273, 4
      %s275 = scalar_lea.vmem %s2, %s274
      %s276 = smul.u32 16, %s17
      %s277 = smul.u32 16, %s17
      %p278 = scmp.lt.s32.totalorder %s277, 31
      %s279 = scalar_select %p278, %s277, 31
      %s280 = smul.addr %s279, 8
      %s281 = scalar_lea.vmem %s6, %s280
      %s282 = smul.u32 16, %s17
      %v284 = vld [vmem:[%s268] sm:$0xff]
      %v285 = vld [vmem:[%s268 + $0x8] sm:$0xff]
      %v286 = vld [vmem:[%s268 + $0x10] sm:$0xff]
      %v287 = vld [vmem:[%s268 + $0x18] sm:$0xff]
      %v288 = vld [vmem:[%s268 + $0x20] sm:$0xff]
      %v289 = vld [vmem:[%s268 + $0x28] sm:$0xff]
      %v290 = vld [vmem:[%s268 + $0x30] sm:$0xff]
      %v291 = vld [vmem:[%s268 + $0x38] sm:$0xff]
      %v292 = vld [vmem:[%s268 + $0x40] sm:$0xff]
      %v293 = vld [vmem:[%s268 + $0x48] sm:$0xff]
      %v294 = vld [vmem:[%s268 + $0x50] sm:$0xff]
      %v295 = vld [vmem:[%s268 + $0x58] sm:$0xff]
      %v296 = vld [vmem:[%s268 + $0x60] sm:$0xff]
      %v297 = vld [vmem:[%s268 + $0x68] sm:$0xff]
      %v298 = vld [vmem:[%s268 + $0x70] sm:$0xff]
      %v299 = vld [vmem:[%s268 + $0x78] sm:$0xff]
      %v300 = vld [vmem:[%s1] sm:$0xff]
      %v301 = vld [vmem:[%s1 + $0x8] sm:$0xff]
      %v302 = vld [vmem:[%s1 + $0x10] sm:$0xff]
      %v303 = vld [vmem:[%s1 + $0x18] sm:$0xff]
      %v304 = vld [vmem:[%s1 + $0x20] sm:$0xff]
      %v305 = vld [vmem:[%s1 + $0x28] sm:$0xff]
      %v306 = vld [vmem:[%s1 + $0x30] sm:$0xff]
      %v307 = vld [vmem:[%s1 + $0x38] sm:$0xff]
      %v308 = vld [vmem:[%s1 + $0x40] sm:$0xff]
      %v309 = vld [vmem:[%s1 + $0x48] sm:$0xff]
      %v310 = vld [vmem:[%s1 + $0x50] sm:$0xff]
      %v311 = vld [vmem:[%s1 + $0x58] sm:$0xff]
      %v312 = vld [vmem:[%s1 + $0x60] sm:$0xff]
      %v313 = vld [vmem:[%s1 + $0x68] sm:$0xff]
      %v314 = vld [vmem:[%s1 + $0x70] sm:$0xff]
      %v315 = vld [vmem:[%s1 + $0x78] sm:$0xff]
      %v316 = vld [vmem:[%s1 + $0x80] sm:$0xff]
      %v317 = vld [vmem:[%s1 + $0x88] sm:$0xff]
      %v318 = vld [vmem:[%s1 + $0x90] sm:$0xff]
      %v319 = vld [vmem:[%s1 + $0x98] sm:$0xff]
      %v320 = vld [vmem:[%s1 + $0xa0] sm:$0xff]
      %v321 = vld [vmem:[%s1 + $0xa8] sm:$0xff]
      %v322 = vld [vmem:[%s1 + $0xb0] sm:$0xff]
      %v323 = vld [vmem:[%s1 + $0xb8] sm:$0xff]
      %v324 = vld [vmem:[%s1 + $0xc0] sm:$0xff]
      %v325 = vld [vmem:[%s1 + $0xc8] sm:$0xff]
      %v326 = vld [vmem:[%s1 + $0xd0] sm:$0xff]
      %v327 = vld [vmem:[%s1 + $0xd8] sm:$0xff]
      %v328 = vld [vmem:[%s1 + $0xe0] sm:$0xff]
      %v329 = vld [vmem:[%s1 + $0xe8] sm:$0xff]
      %v330 = vld [vmem:[%s1 + $0xf0] sm:$0xff]
      %v331 = vld [vmem:[%s1 + $0xf8] sm:$0xff]
      %v332 = vld [vmem:[%s1 + $0x100] sm:$0xff]
      %v333 = vld [vmem:[%s1 + $0x108] sm:$0xff]
      %v334 = vld [vmem:[%s1 + $0x110] sm:$0xff]
      %v335 = vld [vmem:[%s1 + $0x118] sm:$0xff]
      %v336 = vld [vmem:[%s1 + $0x120] sm:$0xff]
      %v337 = vld [vmem:[%s1 + $0x128] sm:$0xff]
      %v338 = vld [vmem:[%s1 + $0x130] sm:$0xff]
      %v339 = vld [vmem:[%s1 + $0x138] sm:$0xff]
      %v340 = vld [vmem:[%s1 + $0x140] sm:$0xff]
      %v341 = vld [vmem:[%s1 + $0x148] sm:$0xff]
      %v342 = vld [vmem:[%s1 + $0x150] sm:$0xff]
      %v343 = vld [vmem:[%s1 + $0x158] sm:$0xff]
      %v344 = vld [vmem:[%s1 + $0x160] sm:$0xff]
      %v345 = vld [vmem:[%s1 + $0x168] sm:$0xff]
      %v346 = vld [vmem:[%s1 + $0x170] sm:$0xff]
      %v347 = vld [vmem:[%s1 + $0x178] sm:$0xff]
      %v348 = vld [vmem:[%s1 + $0x180] sm:$0xff]
      %v349 = vld [vmem:[%s1 + $0x188] sm:$0xff]
      %v350 = vld [vmem:[%s1 + $0x190] sm:$0xff]
      %v351 = vld [vmem:[%s1 + $0x198] sm:$0xff]
      %v352 = vld [vmem:[%s1 + $0x1a0] sm:$0xff]
      %v353 = vld [vmem:[%s1 + $0x1a8] sm:$0xff]
      %v354 = vld [vmem:[%s1 + $0x1b0] sm:$0xff]
      %v355 = vld [vmem:[%s1 + $0x1b8] sm:$0xff]
      %v356 = vld [vmem:[%s1 + $0x1c0] sm:$0xff]
      %v357 = vld [vmem:[%s1 + $0x1c8] sm:$0xff]
      %v358 = vld [vmem:[%s1 + $0x1d0] sm:$0xff]
      %v359 = vld [vmem:[%s1 + $0x1d8] sm:$0xff]
      %v360 = vld [vmem:[%s1 + $0x1e0] sm:$0xff]
      %v361 = vld [vmem:[%s1 + $0x1e8] sm:$0xff]
      %v362 = vld [vmem:[%s1 + $0x1f0] sm:$0xff]
      %v363 = vld [vmem:[%s1 + $0x1f8] sm:$0xff]
      %v380 = vunpack.c.l.b16 %v284
      %v381 = vunpack.c.h.b16 %v284
      %v382 = vunpack.c.l.b16 %v285
      %v383 = vunpack.c.h.b16 %v285
      %v384 = vunpack.c.l.b16 %v286
      %v385 = vunpack.c.h.b16 %v286
      %v386 = vunpack.c.l.b16 %v287
      %v387 = vunpack.c.h.b16 %v287
      %v388 = vunpack.c.l.b16 %v288
      %v389 = vunpack.c.h.b16 %v288
      %v390 = vunpack.c.l.b16 %v289
      %v391 = vunpack.c.h.b16 %v289
      %v392 = vunpack.c.l.b16 %v290
      %v393 = vunpack.c.h.b16 %v290
      %v394 = vunpack.c.l.b16 %v291
      %v395 = vunpack.c.h.b16 %v291
      %v396 = vunpack.c.l.b16 %v292
      %v397 = vunpack.c.h.b16 %v292
      %v398 = vunpack.c.l.b16 %v293
      %v399 = vunpack.c.h.b16 %v293
      %v400 = vunpack.c.l.b16 %v294
      %v401 = vunpack.c.h.b16 %v294
      %v402 = vunpack.c.l.b16 %v295
      %v403 = vunpack.c.h.b16 %v295
      %v404 = vunpack.c.l.b16 %v296
      %v405 = vunpack.c.h.b16 %v296
      %v406 = vunpack.c.l.b16 %v297
      %v407 = vunpack.c.h.b16 %v297
      %v408 = vunpack.c.l.b16 %v298
      %v409 = vunpack.c.h.b16 %v298
      %v410 = vunpack.c.l.b16 %v299
      %v411 = vunpack.c.h.b16 %v299
      %v412 = vpack.c.b16 %v382, %v380
      %v413 = vpack.c.b16 %v383, %v381
      %v414 = vpack.c.b16 %v386, %v384
      %v415 = vpack.c.b16 %v387, %v385
      %v416 = vpack.c.b16 %v390, %v388
      %v417 = vpack.c.b16 %v391, %v389
      %v418 = vpack.c.b16 %v394, %v392
      %v419 = vpack.c.b16 %v395, %v393
      %v420 = vpack.c.b16 %v398, %v396
      %v421 = vpack.c.b16 %v399, %v397
      %v422 = vpack.c.b16 %v402, %v400
      %v423 = vpack.c.b16 %v403, %v401
      %v424 = vpack.c.b16 %v406, %v404
      %v425 = vpack.c.b16 %v407, %v405
      %v426 = vpack.c.b16 %v410, %v408
      %v427 = vpack.c.b16 %v411, %v409
      %v508 = vunpack.c.l.b16 %v300
      %v509 = vunpack.c.h.b16 %v300
      %v510 = vunpack.c.l.b16 %v301
      %v511 = vunpack.c.h.b16 %v301
      %v512 = vunpack.c.l.b16 %v302
      %v513 = vunpack.c.h.b16 %v302
      %v514 = vunpack.c.l.b16 %v303
      %v515 = vunpack.c.h.b16 %v303
      %v516 = vunpack.c.l.b16 %v304
      %v517 = vunpack.c.h.b16 %v304
      %v518 = vunpack.c.l.b16 %v305
      %v519 = vunpack.c.h.b16 %v305
      %v520 = vunpack.c.l.b16 %v306
      %v521 = vunpack.c.h.b16 %v306
      %v522 = vunpack.c.l.b16 %v307
      %v523 = vunpack.c.h.b16 %v307
      %v524 = vunpack.c.l.b16 %v308
      %v525 = vunpack.c.h.b16 %v308
      %v526 = vunpack.c.l.b16 %v309
      %v527 = vunpack.c.h.b16 %v309
      %v528 = vunpack.c.l.b16 %v310
      %v529 = vunpack.c.h.b16 %v310
      %v530 = vunpack.c.l.b16 %v311
      %v531 = vunpack.c.h.b16 %v311
      %v532 = vunpack.c.l.b16 %v312
      %v533 = vunpack.c.h.b16 %v312
      %v534 = vunpack.c.l.b16 %v313
      %v535 = vunpack.c.h.b16 %v313
      %v536 = vunpack.c.l.b16 %v314
      %v537 = vunpack.c.h.b16 %v314
      %v538 = vunpack.c.l.b16 %v315
      %v539 = vunpack.c.h.b16 %v315
      %v540 = vunpack.c.l.b16 %v316
      %v541 = vunpack.c.h.b16 %v316
      %v542 = vunpack.c.l.b16 %v317
      %v543 = vunpack.c.h.b16 %v317
      %v544 = vunpack.c.l.b16 %v318
      %v545 = vunpack.c.h.b16 %v318
      %v546 = vunpack.c.l.b16 %v319
      %v547 = vunpack.c.h.b16 %v319
      %v548 = vunpack.c.l.b16 %v320
      %v549 = vunpack.c.h.b16 %v320
      %v550 = vunpack.c.l.b16 %v321
      %v551 = vunpack.c.h.b16 %v321
      %v552 = vunpack.c.l.b16 %v322
      %v553 = vunpack.c.h.b16 %v322
      %v554 = vunpack.c.l.b16 %v323
      %v555 = vunpack.c.h.b16 %v323
      %v556 = vunpack.c.l.b16 %v324
      %v557 = vunpack.c.h.b16 %v324
      %v558 = vunpack.c.l.b16 %v325
      %v559 = vunpack.c.h.b16 %v325
      %v560 = vunpack.c.l.b16 %v326
      %v561 = vunpack.c.h.b16 %v326
      %v562 = vunpack.c.l.b16 %v327
      %v563 = vunpack.c.h.b16 %v327
      %v564 = vunpack.c.l.b16 %v328
      %v565 = vunpack.c.h.b16 %v328
      %v566 = vunpack.c.l.b16 %v329
      %v567 = vunpack.c.h.b16 %v329
      %v568 = vunpack.c.l.b16 %v330
      %v569 = vunpack.c.h.b16 %v330
      %v570 = vunpack.c.l.b16 %v331
      %v571 = vunpack.c.h.b16 %v331
      %v572 = vunpack.c.l.b16 %v332
      %v573 = vunpack.c.h.b16 %v332
      %v574 = vunpack.c.l.b16 %v333
      %v575 = vunpack.c.h.b16 %v333
      %v576 = vunpack.c.l.b16 %v334
      %v577 = vunpack.c.h.b16 %v334
      %v578 = vunpack.c.l.b16 %v335
      %v579 = vunpack.c.h.b16 %v335
      %v580 = vunpack.c.l.b16 %v336
      %v581 = vunpack.c.h.b16 %v336
      %v582 = vunpack.c.l.b16 %v337
      %v583 = vunpack.c.h.b16 %v337
      %v584 = vunpack.c.l.b16 %v338
      %v585 = vunpack.c.h.b16 %v338
      %v586 = vunpack.c.l.b16 %v339
      %v587 = vunpack.c.h.b16 %v339
      %v588 = vunpack.c.l.b16 %v340
      %v589 = vunpack.c.h.b16 %v340
      %v590 = vunpack.c.l.b16 %v341
      %v591 = vunpack.c.h.b16 %v341
      %v592 = vunpack.c.l.b16 %v342
      %v593 = vunpack.c.h.b16 %v342
      %v594 = vunpack.c.l.b16 %v343
      %v595 = vunpack.c.h.b16 %v343
      %v596 = vunpack.c.l.b16 %v344
      %v597 = vunpack.c.h.b16 %v344
      %v598 = vunpack.c.l.b16 %v345
      %v599 = vunpack.c.h.b16 %v345
      %v600 = vunpack.c.l.b16 %v346
      %v601 = vunpack.c.h.b16 %v346
      %v602 = vunpack.c.l.b16 %v347
      %v603 = vunpack.c.h.b16 %v347
      %v604 = vunpack.c.l.b16 %v348
      %v605 = vunpack.c.h.b16 %v348
      %v606 = vunpack.c.l.b16 %v349
      %v607 = vunpack.c.h.b16 %v349
      %v608 = vunpack.c.l.b16 %v350
      %v609 = vunpack.c.h.b16 %v350
      %v610 = vunpack.c.l.b16 %v351
      %v611 = vunpack.c.h.b16 %v351
      %v612 = vunpack.c.l.b16 %v352
      %v613 = vunpack.c.h.b16 %v352
      %v614 = vunpack.c.l.b16 %v353
      %v615 = vunpack.c.h.b16 %v353
      %v616 = vunpack.c.l.b16 %v354
      %v617 = vunpack.c.h.b16 %v354
      %v618 = vunpack.c.l.b16 %v355
      %v619 = vunpack.c.h.b16 %v355
      %v620 = vunpack.c.l.b16 %v356
      %v621 = vunpack.c.h.b16 %v356
      %v622 = vunpack.c.l.b16 %v357
      %v623 = vunpack.c.h.b16 %v357
      %v624 = vunpack.c.l.b16 %v358
      %v625 = vunpack.c.h.b16 %v358
      %v626 = vunpack.c.l.b16 %v359
      %v627 = vunpack.c.h.b16 %v359
      %v628 = vunpack.c.l.b16 %v360
      %v629 = vunpack.c.h.b16 %v360
      %v630 = vunpack.c.l.b16 %v361
      %v631 = vunpack.c.h.b16 %v361
      %v632 = vunpack.c.l.b16 %v362
      %v633 = vunpack.c.h.b16 %v362
      %v634 = vunpack.c.l.b16 %v363
      %v635 = vunpack.c.h.b16 %v363
      %v636 = vpack.c.b16 %v512, %v508
      %v637 = vpack.c.b16 %v513, %v509
      %v638 = vpack.c.b16 %v514, %v510
      %v639 = vpack.c.b16 %v515, %v511
      %v640 = vpack.c.b16 %v520, %v516
      %v641 = vpack.c.b16 %v521, %v517
      %v642 = vpack.c.b16 %v522, %v518
      %v643 = vpack.c.b16 %v523, %v519
      %v644 = vpack.c.b16 %v528, %v524
      %v645 = vpack.c.b16 %v529, %v525
      %v646 = vpack.c.b16 %v530, %v526
      %v647 = vpack.c.b16 %v531, %v527
      %v648 = vpack.c.b16 %v536, %v532
      %v649 = vpack.c.b16 %v537, %v533
      %v650 = vpack.c.b16 %v538, %v534
      %v651 = vpack.c.b16 %v539, %v535
      %v652 = vpack.c.b16 %v544, %v540
      %v653 = vpack.c.b16 %v545, %v541
      %v654 = vpack.c.b16 %v546, %v542
      %v655 = vpack.c.b16 %v547, %v543
      %v656 = vpack.c.b16 %v552, %v548
      %v657 = vpack.c.b16 %v553, %v549
      %v658 = vpack.c.b16 %v554, %v550
      %v659 = vpack.c.b16 %v555, %v551
      %v660 = vpack.c.b16 %v560, %v556
      %v661 = vpack.c.b16 %v561, %v557
      %v662 = vpack.c.b16 %v562, %v558
      %v663 = vpack.c.b16 %v563, %v559
      %v664 = vpack.c.b16 %v568, %v564
      %v665 = vpack.c.b16 %v569, %v565
      %v666 = vpack.c.b16 %v570, %v566
      %v667 = vpack.c.b16 %v571, %v567
      %v668 = vpack.c.b16 %v576, %v572
      %v669 = vpack.c.b16 %v577, %v573
      %v670 = vpack.c.b16 %v578, %v574
      %v671 = vpack.c.b16 %v579, %v575
      %v672 = vpack.c.b16 %v584, %v580
      %v673 = vpack.c.b16 %v585, %v581
      %v674 = vpack.c.b16 %v586, %v582
      %v675 = vpack.c.b16 %v587, %v583
      %v676 = vpack.c.b16 %v592, %v588
      %v677 = vpack.c.b16 %v593, %v589
      %v678 = vpack.c.b16 %v594, %v590
      %v679 = vpack.c.b16 %v595, %v591
      %v680 = vpack.c.b16 %v600, %v596
      %v681 = vpack.c.b16 %v601, %v597
      %v682 = vpack.c.b16 %v602, %v598
      %v683 = vpack.c.b16 %v603, %v599
      %v684 = vpack.c.b16 %v608, %v604
      %v685 = vpack.c.b16 %v609, %v605
      %v686 = vpack.c.b16 %v610, %v606
      %v687 = vpack.c.b16 %v611, %v607
      %v688 = vpack.c.b16 %v616, %v612
      %v689 = vpack.c.b16 %v617, %v613
      %v690 = vpack.c.b16 %v618, %v614
      %v691 = vpack.c.b16 %v619, %v615
      %v692 = vpack.c.b16 %v624, %v620
      %v693 = vpack.c.b16 %v625, %v621
      %v694 = vpack.c.b16 %v626, %v622
      %v695 = vpack.c.b16 %v627, %v623
      %v696 = vpack.c.b16 %v632, %v628
      %v697 = vpack.c.b16 %v633, %v629
      %v698 = vpack.c.b16 %v634, %v630
      %v699 = vpack.c.b16 %v635, %v631
      %764 = vmatprep.subr.bf16.mxu0 %v637
      %765 = vmatpush1.bf16.msra.mxu0 %v636
      %766 = vmatprep.subr.bf16.mxu0 %v641
      %767 = vmatpush1.bf16.msra.mxu0 %v640
      %768 = vmatprep.subr.bf16.mxu0 %v645
      %769 = vmatpush1.bf16.msra.mxu0 %v644
      %770 = vmatprep.subr.bf16.mxu0 %v649
      %771 = vmatpush1.bf16.msra.mxu0 %v648
      %772 = vmatprep.subr.bf16.mxu0 %v653
      %773 = vmatpush1.bf16.msra.mxu0 %v652
      %774 = vmatprep.subr.bf16.mxu0 %v657
      %775 = vmatpush1.bf16.msra.mxu0 %v656
      %776 = vmatprep.subr.bf16.mxu0 %v661
      %777 = vmatpush1.bf16.msra.mxu0 %v660
      %778 = vmatprep.subr.bf16.mxu0 %v665
      %779 = vmatpush1.bf16.msra.mxu0 %v664
      %780 = vmatprep.subr.bf16.mxu0 %v669
      %781 = vmatpush1.bf16.msra.mxu0 %v668
      %782 = vmatprep.subr.bf16.mxu0 %v673
      %783 = vmatpush1.bf16.msra.mxu0 %v672
      %784 = vmatprep.subr.bf16.mxu0 %v677
      %785 = vmatpush1.bf16.msra.mxu0 %v676
      %786 = vmatprep.subr.bf16.mxu0 %v681
      %787 = vmatpush1.bf16.msra.mxu0 %v680
      %788 = vmatprep.subr.bf16.mxu0 %v685
      %789 = vmatpush1.bf16.msra.mxu0 %v684
      %790 = vmatprep.subr.bf16.mxu0 %v689
      %791 = vmatpush1.bf16.msra.mxu0 %v688
      %792 = vmatprep.subr.bf16.mxu0 %v693
      %793 = vmatpush1.bf16.msra.mxu0 %v692
      %794 = vmatprep.subr.bf16.mxu0 %v697
      %795 = vmatpush1.bf16.msra.mxu0 %v696
      %796 = vmatprep.mubr.bf16.mxu0 %v413
      %797 = vmatmul.mubr.bf16.gmra.mrb[0].mxu0 %v412
      %v798 = vpop.f32.mrb[0].mxu0
      %v799 = vadd.f32 0.0, %v798
      %v800 = vpop.f32.mrb[0].mxu0
      %v801 = vadd.f32 0.0, %v800
      %v802 = vpop.f32.mrb[0].mxu0
      %v803 = vadd.f32 0.0, %v802
      %v804 = vpop.f32.mrb[0].mxu0
      %v805 = vadd.f32 0.0, %v804
      %806 = vmatprep.mubr.bf16.mxu0 %v415
      %807 = vmatmul.mubr.bf16.gmra.mrb[0].mxu0 %v414
      %v808 = vpop.f32.mrb[0].mxu0
      %v809 = vadd.f32 0.0, %v808
      %v810 = vpop.f32.mrb[0].mxu0
      %v811 = vadd.f32 0.0, %v810
      %v812 = vpop.f32.mrb[0].mxu0
      %v813 = vadd.f32 0.0, %v812
      %v814 = vpop.f32.mrb[0].mxu0
      %v815 = vadd.f32 0.0, %v814
      %816 = vmatprep.mubr.bf16.mxu0 %v417
      %817 = vmatmul.mubr.bf16.gmra.mrb[0].mxu0 %v416
      %v818 = vpop.f32.mrb[0].mxu0
      %v819 = vadd.f32 0.0, %v818
      %v820 = vpop.f32.mrb[0].mxu0
      %v821 = vadd.f32 0.0, %v820
      %v822 = vpop.f32.mrb[0].mxu0
      %v823 = vadd.f32 0.0, %v822
      %v824 = vpop.f32.mrb[0].mxu0
      %v825 = vadd.f32 0.0, %v824
      %826 = vmatprep.mubr.bf16.mxu0 %v419
      %827 = vmatmul.mubr.bf16.gmra.mrb[0].mxu0 %v418
      %v828 = vpop.f32.mrb[0].mxu0
      %v829 = vadd.f32 0.0, %v828
      %v830 = vpop.f32.mrb[0].mxu0
      %v831 = vadd.f32 0.0, %v830
      %v832 = vpop.f32.mrb[0].mxu0
      %v833 = vadd.f32 0.0, %v832
      %v834 = vpop.f32.mrb[0].mxu0
      %v835 = vadd.f32 0.0, %v834
      %836 = vmatprep.mubr.bf16.mxu0 %v421
      %837 = vmatmul.mubr.bf16.gmra.mrb[0].mxu0 %v420
      %v838 = vpop.f32.mrb[0].mxu0
      %v839 = vadd.f32 0.0, %v838
      %v840 = vpop.f32.mrb[0].mxu0
      %v841 = vadd.f32 0.0, %v840
      %v842 = vpop.f32.mrb[0].mxu0
      %v843 = vadd.f32 0.0, %v842
      %v844 = vpop.f32.mrb[0].mxu0
      %v845 = vadd.f32 0.0, %v844
      %846 = vmatprep.mubr.bf16.mxu0 %v423
      %847 = vmatmul.mubr.bf16.gmra.mrb[0].mxu0 %v422
      %v848 = vpop.f32.mrb[0].mxu0
      %v849 = vadd.f32 0.0, %v848
      %v850 = vpop.f32.mrb[0].mxu0
      %v851 = vadd.f32 0.0, %v850
      %v852 = vpop.f32.mrb[0].mxu0
      %v853 = vadd.f32 0.0, %v852
      %v854 = vpop.f32.mrb[0].mxu0
      %v855 = vadd.f32 0.0, %v854
      %856 = vmatprep.mubr.bf16.mxu0 %v425
      %857 = vmatmul.mubr.bf16.gmra.mrb[0].mxu0 %v424
      %v858 = vpop.f32.mrb[0].mxu0
      %v859 = vadd.f32 0.0, %v858
      %v860 = vpop.f32.mrb[0].mxu0
      %v861 = vadd.f32 0.0, %v860
      %v862 = vpop.f32.mrb[0].mxu0
      %v863 = vadd.f32 0.0, %v862
      %v864 = vpop.f32.mrb[0].mxu0
      %v865 = vadd.f32 0.0, %v864
      %866 = vmatprep.mubr.bf16.mxu0 %v427
      %867 = vmatmul.mubr.bf16.gmra.mrb[0].mxu0 %v426
      %v868 = vpop.f32.mrb[0].mxu0
      %v869 = vadd.f32 0.0, %v868
      %v870 = vpop.f32.mrb[0].mxu0
      %v871 = vadd.f32 0.0, %v870
      %v872 = vpop.f32.mrb[0].mxu0
      %v873 = vadd.f32 0.0, %v872
      %v874 = vpop.f32.mrb[0].mxu0
      %v875 = vadd.f32 0.0, %v874
      %876 = vdwg.mxu0
      %877 = vmatprep.subr.bf16.mxu0 %v639
      %878 = vmatpush1.bf16.msra.mxu0 %v638
      %879 = vmatprep.subr.bf16.mxu0 %v643
      %880 = vmatpush1.bf16.msra.mxu0 %v642
      %881 = vmatprep.subr.bf16.mxu0 %v647
      %882 = vmatpush1.bf16.msra.mxu0 %v646
      %883 = vmatprep.subr.bf16.mxu0 %v651
      %884 = vmatpush1.bf16.msra.mxu0 %v650
      %885 = vmatprep.subr.bf16.mxu0 %v655
      %886 = vmatpush1.bf16.msra.mxu0 %v654
      %887 = vmatprep.subr.bf16.mxu0 %v659
      %888 = vmatpush1.bf16.msra.mxu0 %v658
      %889 = vmatprep.subr.bf16.mxu0 %v663
      %890 = vmatpush1.bf16.msra.mxu0 %v662
      %891 = vmatprep.subr.bf16.mxu0 %v667
      %892 = vmatpush1.bf16.msra.mxu0 %v666
      %893 = vmatprep.subr.bf16.mxu0 %v671
      %894 = vmatpush1.bf16.msra.mxu0 %v670
      %895 = vmatprep.subr.bf16.mxu0 %v675
      %896 = vmatpush1.bf16.msra.mxu0 %v674
      %897 = vmatprep.subr.bf16.mxu0 %v679
      %898 = vmatpush1.bf16.msra.mxu0 %v678
      %899 = vmatprep.subr.bf16.mxu0 %v683
      %900 = vmatpush1.bf16.msra.mxu0 %v682
      %901 = vmatprep.subr.bf16.mxu0 %v687
      %902 = vmatpush1.bf16.msra.mxu0 %v686
      %903 = vmatprep.subr.bf16.mxu0 %v691
      %904 = vmatpush1.bf16.msra.mxu0 %v690
      %905 = vmatprep.subr.bf16.mxu0 %v695
      %906 = vmatpush1.bf16.msra.mxu0 %v694
      %907 = vmatprep.subr.bf16.mxu0 %v699
      %908 = vmatpush1.bf16.msra.mxu0 %v698
      %909 = vmatprep.mubr.bf16.mxu0 %v413
      %910 = vmatmul.mubr.bf16.gmra.mrb[0].mxu0 %v412
      %v911 = vpop.f32.mrb[0].mxu0
      %v912 = vadd.f32 0.0, %v911
      %v913 = vpop.f32.mrb[0].mxu0
      %v914 = vadd.f32 0.0, %v913
      %v915 = vpop.f32.mrb[0].mxu0
      %v916 = vadd.f32 0.0, %v915
      %v917 = vpop.f32.mrb[0].mxu0
      %v918 = vadd.f32 0.0, %v917
      %919 = vmatprep.mubr.bf16.mxu0 %v415
      %920 = vmatmul.mubr.bf16.gmra.mrb[0].mxu0 %v414
      %v921 = vpop.f32.mrb[0].mxu0
      %v922 = vadd.f32 0.0, %v921
      %v923 = vpop.f32.mrb[0].mxu0
      %v924 = vadd.f32 0.0, %v923
      %v925 = vpop.f32.mrb[0].mxu0
      %v926 = vadd.f32 0.0, %v925
      %v927 = vpop.f32.mrb[0].mxu0
      %v928 = vadd.f32 0.0, %v927
      %929 = vmatprep.mubr.bf16.mxu0 %v417
      %930 = vmatmul.mubr.bf16.gmra.mrb[0].mxu0 %v416
      %v931 = vpop.f32.mrb[0].mxu0
      %v932 = vadd.f32 0.0, %v931
      %v933 = vpop.f32.mrb[0].mxu0
      %v934 = vadd.f32 0.0, %v933
      %v935 = vpop.f32.mrb[0].mxu0
      %v936 = vadd.f32 0.0, %v935
      %v937 = vpop.f32.mrb[0].mxu0
      %v938 = vadd.f32 0.0, %v937
      %939 = vmatprep.mubr.bf16.mxu0 %v419
      %940 = vmatmul.mubr.bf16.gmra.mrb[0].mxu0 %v418
      %v941 = vpop.f32.mrb[0].mxu0
      %v942 = vadd.f32 0.0, %v941
      %v943 = vpop.f32.mrb[0].mxu0
      %v944 = vadd.f32 0.0, %v943
      %v945 = vpop.f32.mrb[0].mxu0
      %v946 = vadd.f32 0.0, %v945
      %v947 = vpop.f32.mrb[0].mxu0
      %v948 = vadd.f32 0.0, %v947
      %949 = vmatprep.mubr.bf16.mxu0 %v421
      %950 = vmatmul.mubr.bf16.gmra.mrb[0].mxu0 %v420
      %v951 = vpop.f32.mrb[0].mxu0
      %v952 = vadd.f32 0.0, %v951
      %v953 = vpop.f32.mrb[0].mxu0
      %v954 = vadd.f32 0.0, %v953
      %v955 = vpop.f32.mrb[0].mxu0
      %v956 = vadd.f32 0.0, %v955
      %v957 = vpop.f32.mrb[0].mxu0
      %v958 = vadd.f32 0.0, %v957
      %959 = vmatprep.mubr.bf16.mxu0 %v423
      %960 = vmatmul.mubr.bf16.gmra.mrb[0].mxu0 %v422
      %v961 = vpop.f32.mrb[0].mxu0
      %v962 = vadd.f32 0.0, %v961
      %v963 = vpop.f32.mrb[0].mxu0
      %v964 = vadd.f32 0.0, %v963
      %v965 = vpop.f32.mrb[0].mxu0
      %v966 = vadd.f32 0.0, %v965
      %v967 = vpop.f32.mrb[0].mxu0
      %v968 = vadd.f32 0.0, %v967
      %969 = vmatprep.mubr.bf16.mxu0 %v425
      %970 = vmatmul.mubr.bf16.gmra.mrb[0].mxu0 %v424
      %v971 = vpop.f32.mrb[0].mxu0
      %v972 = vadd.f32 0.0, %v971
      %v973 = vpop.f32.mrb[0].mxu0
      %v974 = vadd.f32 0.0, %v973
      %v975 = vpop.f32.mrb[0].mxu0
      %v976 = vadd.f32 0.0, %v975
      %v977 = vpop.f32.mrb[0].mxu0
      %v978 = vadd.f32 0.0, %v977
      %979 = vmatprep.mubr.bf16.mxu0 %v427
      %980 = vmatmul.mubr.bf16.gmra.mrb[0].mxu0 %v426
      %v981 = vpop.f32.mrb[0].mxu0
      %v982 = vadd.f32 0.0, %v981
      %v983 = vpop.f32.mrb[0].mxu0
      %v984 = vadd.f32 0.0, %v983
      %v985 = vpop.f32.mrb[0].mxu0
      %v986 = vadd.f32 0.0, %v985
      %v987 = vpop.f32.mrb[0].mxu0
      %v988 = vadd.f32 0.0, %v987
      %989 = vdwg.mxu0
      %v990 = vpack.c.bf16 %v803, %v799
      %v991 = vpack.c.bf16 %v805, %v801
      %v992 = vpack.c.bf16 %v916, %v912
      %v993 = vpack.c.bf16 %v918, %v914
      %v994 = vpack.c.bf16 %v813, %v809
      %v995 = vpack.c.bf16 %v815, %v811
      %v996 = vpack.c.bf16 %v926, %v922
      %v997 = vpack.c.bf16 %v928, %v924
      %v998 = vpack.c.bf16 %v823, %v819
      %v999 = vpack.c.bf16 %v825, %v821
      %v1000 = vpack.c.bf16 %v936, %v932
      %v1001 = vpack.c.bf16 %v938, %v934
      %v1002 = vpack.c.bf16 %v833, %v829
      %v1003 = vpack.c.bf16 %v835, %v831
      %v1004 = vpack.c.bf16 %v946, %v942
      %v1005 = vpack.c.bf16 %v948, %v944
      %v1006 = vpack.c.bf16 %v843, %v839
      %v1007 = vpack.c.bf16 %v845, %v841
      %v1008 = vpack.c.bf16 %v956, %v952
      %v1009 = vpack.c.bf16 %v958, %v954
      %v1010 = vpack.c.bf16 %v853, %v849
      %v1011 = vpack.c.bf16 %v855, %v851
      %v1012 = vpack.c.bf16 %v966, %v962
      %v1013 = vpack.c.bf16 %v968, %v964
      %v1014 = vpack.c.bf16 %v863, %v859
      %v1015 = vpack.c.bf16 %v865, %v861
      %v1016 = vpack.c.bf16 %v976, %v972
      %v1017 = vpack.c.bf16 %v978, %v974
      %v1018 = vpack.c.bf16 %v873, %v869
      %v1019 = vpack.c.bf16 %v875, %v871
      %v1020 = vpack.c.bf16 %v986, %v982
      %v1021 = vpack.c.bf16 %v988, %v984
      %v1022 = vld [vmem:[%s3] sm:$0xf]
      %v1023 = vld [vmem:[%s3 + $0x4] sm:$0xf]
      %v1024 = vld [vmem:[%s3 + $0x8] sm:$0xf]
      %v1025 = vld [vmem:[%s3 + $0xc] sm:$0xf]
      %v1026 = vld [vmem:[%s3 + $0x10] sm:$0xf]
      %v1027 = vld [vmem:[%s3 + $0x14] sm:$0xf]
      %v1028 = vld [vmem:[%s3 + $0x18] sm:$0xf]
      %v1029 = vld [vmem:[%s3 + $0x1c] sm:$0xf]
      %v1030 = vld [vmem:[%s3 + $0x20] sm:$0xf]
      %v1031 = vld [vmem:[%s3 + $0x24] sm:$0xf]
      %v1032 = vld [vmem:[%s3 + $0x28] sm:$0xf]
      %v1033 = vld [vmem:[%s3 + $0x2c] sm:$0xf]
      %v1034 = vld [vmem:[%s3 + $0x30] sm:$0xf]
      %v1035 = vld [vmem:[%s3 + $0x34] sm:$0xf]
      %v1036 = vld [vmem:[%s3 + $0x38] sm:$0xf]
      %v1037 = vld [vmem:[%s3 + $0x3c] sm:$0xf]
      %v1038 = vld [vmem:[%s3 + $0x40] sm:$0xf]
      %v1039 = vld [vmem:[%s3 + $0x44] sm:$0xf]
      %v1040 = vld [vmem:[%s3 + $0x48] sm:$0xf]
      %v1041 = vld [vmem:[%s3 + $0x4c] sm:$0xf]
      %v1042 = vld [vmem:[%s3 + $0x50] sm:$0xf]
      %v1043 = vld [vmem:[%s3 + $0x54] sm:$0xf]
      %v1044 = vld [vmem:[%s3 + $0x58] sm:$0xf]
      %v1045 = vld [vmem:[%s3 + $0x5c] sm:$0xf]
      %v1046 = vld [vmem:[%s3 + $0x60] sm:$0xf]
      %v1047 = vld [vmem:[%s3 + $0x64] sm:$0xf]
      %v1048 = vld [vmem:[%s3 + $0x68] sm:$0xf]
      %v1049 = vld [vmem:[%s3 + $0x6c] sm:$0xf]
      %v1050 = vld [vmem:[%s3 + $0x70] sm:$0xf]
      %v1051 = vld [vmem:[%s3 + $0x74] sm:$0xf]
      %v1052 = vld [vmem:[%s3 + $0x78] sm:$0xf]
      %v1053 = vld [vmem:[%s3 + $0x7c] sm:$0xf]
      %v1054 = vld [vmem:[%s3 + $0x80] sm:$0xf]
      %v1055 = vld [vmem:[%s3 + $0x84] sm:$0xf]
      %v1056 = vld [vmem:[%s3 + $0x88] sm:$0xf]
      %v1057 = vld [vmem:[%s3 + $0x8c] sm:$0xf]
      %v1058 = vld [vmem:[%s3 + $0x90] sm:$0xf]
      %v1059 = vld [vmem:[%s3 + $0x94] sm:$0xf]
      %v1060 = vld [vmem:[%s3 + $0x98] sm:$0xf]
      %v1061 = vld [vmem:[%s3 + $0x9c] sm:$0xf]
      %v1062 = vld [vmem:[%s3 + $0xa0] sm:$0xf]
      %v1063 = vld [vmem:[%s3 + $0xa4] sm:$0xf]
      %v1064 = vld [vmem:[%s3 + $0xa8] sm:$0xf]
      %v1065 = vld [vmem:[%s3 + $0xac] sm:$0xf]
      %v1066 = vld [vmem:[%s3 + $0xb0] sm:$0xf]
      %v1067 = vld [vmem:[%s3 + $0xb4] sm:$0xf]
      %v1068 = vld [vmem:[%s3 + $0xb8] sm:$0xf]
      %v1069 = vld [vmem:[%s3 + $0xbc] sm:$0xf]
      %v1070 = vld [vmem:[%s3 + $0xc0] sm:$0xf]
      %v1071 = vld [vmem:[%s3 + $0xc4] sm:$0xf]
      %v1072 = vld [vmem:[%s3 + $0xc8] sm:$0xf]
      %v1073 = vld [vmem:[%s3 + $0xcc] sm:$0xf]
      %v1074 = vld [vmem:[%s3 + $0xd0] sm:$0xf]
      %v1075 = vld [vmem:[%s3 + $0xd4] sm:$0xf]
      %v1076 = vld [vmem:[%s3 + $0xd8] sm:$0xf]
      %v1077 = vld [vmem:[%s3 + $0xdc] sm:$0xf]
      %v1078 = vld [vmem:[%s3 + $0xe0] sm:$0xf]
      %v1079 = vld [vmem:[%s3 + $0xe4] sm:$0xf]
      %v1080 = vld [vmem:[%s3 + $0xe8] sm:$0xf]
      %v1081 = vld [vmem:[%s3 + $0xec] sm:$0xf]
      %v1082 = vld [vmem:[%s3 + $0xf0] sm:$0xf]
      %v1083 = vld [vmem:[%s3 + $0xf4] sm:$0xf]
      %v1084 = vld [vmem:[%s3 + $0xf8] sm:$0xf]
      %v1085 = vld [vmem:[%s3 + $0xfc] sm:$0xf]
      %v1086 = vld [vmem:[%s275] sm:$0xff]
      %v1087 = vld [vmem:[%s275 + $0x8] sm:$0xff]
      %v1088 = vld [vmem:[%s275 + $0x10] sm:$0xff]
      %v1089 = vld [vmem:[%s275 + $0x18] sm:$0xff]
      %v1090 = vld [vmem:[%s275 + $0x20] sm:$0xff]
      %v1091 = vld [vmem:[%s275 + $0x28] sm:$0xff]
      %v1092 = vld [vmem:[%s275 + $0x30] sm:$0xff]
      %v1093 = vld [vmem:[%s275 + $0x38] sm:$0xff]
      %v1094 = vld [vmem:[%s275 + $0x40] sm:$0xff]
      %v1095 = vld [vmem:[%s275 + $0x48] sm:$0xff]
      %v1096 = vld [vmem:[%s275 + $0x50] sm:$0xff]
      %v1097 = vld [vmem:[%s275 + $0x58] sm:$0xff]
      %v1098 = vld [vmem:[%s275 + $0x60] sm:$0xff]
      %v1099 = vld [vmem:[%s275 + $0x68] sm:$0xff]
      %v1100 = vld [vmem:[%s275 + $0x70] sm:$0xff]
      %v1101 = vld [vmem:[%s275 + $0x78] sm:$0xff]
      %v1102 = vld [vmem:[%s275 + $0x80] sm:$0xff]
      %v1103 = vld [vmem:[%s275 + $0x88] sm:$0xff]
      %v1104 = vld [vmem:[%s275 + $0x90] sm:$0xff]
      %v1105 = vld [vmem:[%s275 + $0x98] sm:$0xff]
      %v1106 = vld [vmem:[%s275 + $0xa0] sm:$0xff]
      %v1107 = vld [vmem:[%s275 + $0xa8] sm:$0xff]
      %v1108 = vld [vmem:[%s275 + $0xb0] sm:$0xff]
      %v1109 = vld [vmem:[%s275 + $0xb8] sm:$0xff]
      %v1110 = vld [vmem:[%s275 + $0xc0] sm:$0xff]
      %v1111 = vld [vmem:[%s275 + $0xc8] sm:$0xff]
      %v1112 = vld [vmem:[%s275 + $0xd0] sm:$0xff]
      %v1113 = vld [vmem:[%s275 + $0xd8] sm:$0xff]
      %v1114 = vld [vmem:[%s275 + $0xe0] sm:$0xff]
      %v1115 = vld [vmem:[%s275 + $0xe8] sm:$0xff]
      %v1116 = vld [vmem:[%s275 + $0xf0] sm:$0xff]
      %v1117 = vld [vmem:[%s275 + $0xf8] sm:$0xff]
      %v1118 = vld [vmem:[%s4] sm:$0xf]
      %v1119 = vld [vmem:[%s4 + $0x4] sm:$0xf]
      %v1120 = vld [vmem:[%s4 + $0x8] sm:$0xf]
      %v1121 = vld [vmem:[%s4 + $0xc] sm:$0xf]
      %v1122 = vld [vmem:[%s4 + $0x10] sm:$0xf]
      %v1123 = vld [vmem:[%s4 + $0x14] sm:$0xf]
      %v1124 = vld [vmem:[%s4 + $0x18] sm:$0xf]
      %v1125 = vld [vmem:[%s4 + $0x1c] sm:$0xf]
      %v1126 = vld [vmem:[%s4 + $0x20] sm:$0xf]
      %v1127 = vld [vmem:[%s4 + $0x24] sm:$0xf]
      %v1128 = vld [vmem:[%s4 + $0x28] sm:$0xf]
      %v1129 = vld [vmem:[%s4 + $0x2c] sm:$0xf]
      %v1130 = vld [vmem:[%s4 + $0x30] sm:$0xf]
      %v1131 = vld [vmem:[%s4 + $0x34] sm:$0xf]
      %v1132 = vld [vmem:[%s4 + $0x38] sm:$0xf]
      %v1133 = vld [vmem:[%s4 + $0x3c] sm:$0xf]
      %v1134 = vld [vmem:[%s4 + $0x40] sm:$0xf]
      %v1135 = vld [vmem:[%s4 + $0x44] sm:$0xf]
      %v1136 = vld [vmem:[%s4 + $0x48] sm:$0xf]
      %v1137 = vld [vmem:[%s4 + $0x4c] sm:$0xf]
      %v1138 = vld [vmem:[%s4 + $0x50] sm:$0xf]
      %v1139 = vld [vmem:[%s4 + $0x54] sm:$0xf]
      %v1140 = vld [vmem:[%s4 + $0x58] sm:$0xf]
      %v1141 = vld [vmem:[%s4 + $0x5c] sm:$0xf]
      %v1142 = vld [vmem:[%s4 + $0x60] sm:$0xf]
      %v1143 = vld [vmem:[%s4 + $0x64] sm:$0xf]
      %v1144 = vld [vmem:[%s4 + $0x68] sm:$0xf]
      %v1145 = vld [vmem:[%s4 + $0x6c] sm:$0xf]
      %v1146 = vld [vmem:[%s4 + $0x70] sm:$0xf]
      %v1147 = vld [vmem:[%s4 + $0x74] sm:$0xf]
      %v1148 = vld [vmem:[%s4 + $0x78] sm:$0xf]
      %v1149 = vld [vmem:[%s4 + $0x7c] sm:$0xf]
      %v1150 = vld [vmem:[%s4 + $0x80] sm:$0xf]
      %v1151 = vld [vmem:[%s4 + $0x84] sm:$0xf]
      %v1152 = vld [vmem:[%s4 + $0x88] sm:$0xf]
      %v1153 = vld [vmem:[%s4 + $0x8c] sm:$0xf]
      %v1154 = vld [vmem:[%s4 + $0x90] sm:$0xf]
      %v1155 = vld [vmem:[%s4 + $0x94] sm:$0xf]
      %v1156 = vld [vmem:[%s4 + $0x98] sm:$0xf]
      %v1157 = vld [vmem:[%s4 + $0x9c] sm:$0xf]
      %v1158 = vld [vmem:[%s4 + $0xa0] sm:$0xf]
      %v1159 = vld [vmem:[%s4 + $0xa4] sm:$0xf]
      %v1160 = vld [vmem:[%s4 + $0xa8] sm:$0xf]
      %v1161 = vld [vmem:[%s4 + $0xac] sm:$0xf]
      %v1162 = vld [vmem:[%s4 + $0xb0] sm:$0xf]
      %v1163 = vld [vmem:[%s4 + $0xb4] sm:$0xf]
      %v1164 = vld [vmem:[%s4 + $0xb8] sm:$0xf]
      %v1165 = vld [vmem:[%s4 + $0xbc] sm:$0xf]
      %v1166 = vld [vmem:[%s4 + $0xc0] sm:$0xf]
      %v1167 = vld [vmem:[%s4 + $0xc4] sm:$0xf]
      %v1168 = vld [vmem:[%s4 + $0xc8] sm:$0xf]
      %v1169 = vld [vmem:[%s4 + $0xcc] sm:$0xf]
      %v1170 = vld [vmem:[%s4 + $0xd0] sm:$0xf]
      %v1171 = vld [vmem:[%s4 + $0xd4] sm:$0xf]
      %v1172 = vld [vmem:[%s4 + $0xd8] sm:$0xf]
      %v1173 = vld [vmem:[%s4 + $0xdc] sm:$0xf]
      %v1174 = vld [vmem:[%s4 + $0xe0] sm:$0xf]
      %v1175 = vld [vmem:[%s4 + $0xe4] sm:$0xf]
      %v1176 = vld [vmem:[%s4 + $0xe8] sm:$0xf]
      %v1177 = vld [vmem:[%s4 + $0xec] sm:$0xf]
      %v1178 = vld [vmem:[%s4 + $0xf0] sm:$0xf]
      %v1179 = vld [vmem:[%s4 + $0xf4] sm:$0xf]
      %v1180 = vld [vmem:[%s4 + $0xf8] sm:$0xf]
      %v1181 = vld [vmem:[%s4 + $0xfc] sm:$0xf]
      %v1214 = vunpack.c.l.b16 %v1086
      %v1215 = vunpack.c.h.b16 %v1086
      %v1216 = vunpack.c.l.b16 %v1087
      %v1217 = vunpack.c.h.b16 %v1087
      %v1218 = vunpack.c.l.b16 %v1088
      %v1219 = vunpack.c.h.b16 %v1088
      %v1220 = vunpack.c.l.b16 %v1089
      %v1221 = vunpack.c.h.b16 %v1089
      %v1222 = vunpack.c.l.b16 %v1090
      %v1223 = vunpack.c.h.b16 %v1090
      %v1224 = vunpack.c.l.b16 %v1091
      %v1225 = vunpack.c.h.b16 %v1091
      %v1226 = vunpack.c.l.b16 %v1092
      %v1227 = vunpack.c.h.b16 %v1092
      %v1228 = vunpack.c.l.b16 %v1093
      %v1229 = vunpack.c.h.b16 %v1093
      %v1230 = vunpack.c.l.b16 %v1094
      %v1231 = vunpack.c.h.b16 %v1094
      %v1232 = vunpack.c.l.b16 %v1095
      %v1233 = vunpack.c.h.b16 %v1095
      %v1234 = vunpack.c.l.b16 %v1096
      %v1235 = vunpack.c.h.b16 %v1096
      %v1236 = vunpack.c.l.b16 %v1097
      %v1237 = vunpack.c.h.b16 %v1097
      %v1238 = vunpack.c.l.b16 %v1098
      %v1239 = vunpack.c.h.b16 %v1098
      %v1240 = vunpack.c.l.b16 %v1099
      %v1241 = vunpack.c.h.b16 %v1099
      %v1242 = vunpack.c.l.b16 %v1100
      %v1243 = vunpack.c.h.b16 %v1100
      %v1244 = vunpack.c.l.b16 %v1101
      %v1245 = vunpack.c.h.b16 %v1101
      %v1246 = vunpack.c.l.b16 %v1102
      %v1247 = vunpack.c.h.b16 %v1102
      %v1248 = vunpack.c.l.b16 %v1103
      %v1249 = vunpack.c.h.b16 %v1103
      %v1250 = vunpack.c.l.b16 %v1104
      %v1251 = vunpack.c.h.b16 %v1104
      %v1252 = vunpack.c.l.b16 %v1105
      %v1253 = vunpack.c.h.b16 %v1105
      %v1254 = vunpack.c.l.b16 %v1106
      %v1255 = vunpack.c.h.b16 %v1106
      %v1256 = vunpack.c.l.b16 %v1107
      %v1257 = vunpack.c.h.b16 %v1107
      %v1258 = vunpack.c.l.b16 %v1108
      %v1259 = vunpack.c.h.b16 %v1108
      %v1260 = vunpack.c.l.b16 %v1109
      %v1261 = vunpack.c.h.b16 %v1109
      %v1262 = vunpack.c.l.b16 %v1110
      %v1263 = vunpack.c.h.b16 %v1110
      %v1264 = vunpack.c.l.b16 %v1111
      %v1265 = vunpack.c.h.b16 %v1111
      %v1266 = vunpack.c.l.b16 %v1112
      %v1267 = vunpack.c.h.b16 %v1112
      %v1268 = vunpack.c.l.b16 %v1113
      %v1269 = vunpack.c.h.b16 %v1113
      %v1270 = vunpack.c.l.b16 %v1114
      %v1271 = vunpack.c.h.b16 %v1114
      %v1272 = vunpack.c.l.b16 %v1115
      %v1273 = vunpack.c.h.b16 %v1115
      %v1274 = vunpack.c.l.b16 %v1116
      %v1275 = vunpack.c.h.b16 %v1116
      %v1276 = vunpack.c.l.b16 %v1117
      %v1277 = vunpack.c.h.b16 %v1117
      %v1278 = vpack.c.b16 %v1218, %v1214
      %v1279 = vpack.c.b16 %v1219, %v1215
      %v1280 = vpack.c.b16 %v1220, %v1216
      %v1281 = vpack.c.b16 %v1221, %v1217
      %v1282 = vpack.c.b16 %v1226, %v1222
      %v1283 = vpack.c.b16 %v1227, %v1223
      %v1284 = vpack.c.b16 %v1228, %v1224
      %v1285 = vpack.c.b16 %v1229, %v1225
      %v1286 = vpack.c.b16 %v1234, %v1230
      %v1287 = vpack.c.b16 %v1235, %v1231
      %v1288 = vpack.c.b16 %v1236, %v1232
      %v1289 = vpack.c.b16 %v1237, %v1233
      %v1290 = vpack.c.b16 %v1242, %v1238
      %v1291 = vpack.c.b16 %v1243, %v1239
      %v1292 = vpack.c.b16 %v1244, %v1240
      %v1293 = vpack.c.b16 %v1245, %v1241
      %v1294 = vpack.c.b16 %v1250, %v1246
      %v1295 = vpack.c.b16 %v1251, %v1247
      %v1296 = vpack.c.b16 %v1252, %v1248
      %v1297 = vpack.c.b16 %v1253, %v1249
      %v1298 = vpack.c.b16 %v1258, %v1254
      %v1299 = vpack.c.b16 %v1259, %v1255
      %v1300 = vpack.c.b16 %v1260, %v1256
      %v1301 = vpack.c.b16 %v1261, %v1257
      %v1302 = vpack.c.b16 %v1266, %v1262
      %v1303 = vpack.c.b16 %v1267, %v1263
      %v1304 = vpack.c.b16 %v1268, %v1264
      %v1305 = vpack.c.b16 %v1269, %v1265
      %v1306 = vpack.c.b16 %v1274, %v1270
      %v1307 = vpack.c.b16 %v1275, %v1271
      %v1308 = vpack.c.b16 %v1276, %v1272
      %v1309 = vpack.c.b16 %v1277, %v1273
      %v1406 = vunpack.c.l.b16 %v1118
      %v1407 = vunpack.c.l.b16 %v1119
      %v1408 = vunpack.c.l.b16 %v1120
      %v1409 = vunpack.c.l.b16 %v1121
      %v1410 = vunpack.c.l.b16 %v1122
      %v1411 = vunpack.c.l.b16 %v1123
      %v1412 = vunpack.c.l.b16 %v1124
      %v1413 = vunpack.c.l.b16 %v1125
      %v1414 = vunpack.c.l.b16 %v1126
      %v1415 = vunpack.c.l.b16 %v1127
      %v1416 = vunpack.c.l.b16 %v1128
      %v1417 = vunpack.c.l.b16 %v1129
      %v1418 = vunpack.c.l.b16 %v1130
      %v1419 = vunpack.c.l.b16 %v1131
      %v1420 = vunpack.c.l.b16 %v1132
      %v1421 = vunpack.c.l.b16 %v1133
      %v1422 = vunpack.c.l.b16 %v1134
      %v1423 = vunpack.c.l.b16 %v1135
      %v1424 = vunpack.c.l.b16 %v1136
      %v1425 = vunpack.c.l.b16 %v1137
      %v1426 = vunpack.c.l.b16 %v1138
      %v1427 = vunpack.c.l.b16 %v1139
      %v1428 = vunpack.c.l.b16 %v1140
      %v1429 = vunpack.c.l.b16 %v1141
      %v1430 = vunpack.c.l.b16 %v1142
      %v1431 = vunpack.c.l.b16 %v1143
      %v1432 = vunpack.c.l.b16 %v1144
      %v1433 = vunpack.c.l.b16 %v1145
      %v1434 = vunpack.c.l.b16 %v1146
      %v1435 = vunpack.c.l.b16 %v1147
      %v1436 = vunpack.c.l.b16 %v1148
      %v1437 = vunpack.c.l.b16 %v1149
      %v1438 = vunpack.c.l.b16 %v1150
      %v1439 = vunpack.c.l.b16 %v1151
      %v1440 = vunpack.c.l.b16 %v1152
      %v1441 = vunpack.c.l.b16 %v1153
      %v1442 = vunpack.c.l.b16 %v1154
      %v1443 = vunpack.c.l.b16 %v1155
      %v1444 = vunpack.c.l.b16 %v1156
      %v1445 = vunpack.c.l.b16 %v1157
      %v1446 = vunpack.c.l.b16 %v1158
      %v1447 = vunpack.c.l.b16 %v1159
      %v1448 = vunpack.c.l.b16 %v1160
      %v1449 = vunpack.c.l.b16 %v1161
      %v1450 = vunpack.c.l.b16 %v1162
      %v1451 = vunpack.c.l.b16 %v1163
      %v1452 = vunpack.c.l.b16 %v1164
      %v1453 = vunpack.c.l.b16 %v1165
      %v1454 = vunpack.c.l.b16 %v1166
      %v1455 = vunpack.c.l.b16 %v1167
      %v1456 = vunpack.c.l.b16 %v1168
      %v1457 = vunpack.c.l.b16 %v1169
      %v1458 = vunpack.c.l.b16 %v1170
      %v1459 = vunpack.c.l.b16 %v1171
      %v1460 = vunpack.c.l.b16 %v1172
      %v1461 = vunpack.c.l.b16 %v1173
      %v1462 = vunpack.c.l.b16 %v1174
      %v1463 = vunpack.c.l.b16 %v1175
      %v1464 = vunpack.c.l.b16 %v1176
      %v1465 = vunpack.c.l.b16 %v1177
      %v1466 = vunpack.c.l.b16 %v1178
      %v1467 = vunpack.c.l.b16 %v1179
      %v1468 = vunpack.c.l.b16 %v1180
      %v1469 = vunpack.c.l.b16 %v1181
      %v1470 = vpack.c.b16 %v1407, %v1406
      %v1471 = vpack.c.b16 %v1409, %v1408
      %v1472 = vpack.c.b16 %v1411, %v1410
      %v1473 = vpack.c.b16 %v1413, %v1412
      %v1474 = vpack.c.b16 %v1415, %v1414
      %v1475 = vpack.c.b16 %v1417, %v1416
      %v1476 = vpack.c.b16 %v1419, %v1418
      %v1477 = vpack.c.b16 %v1421, %v1420
      %v1478 = vpack.c.b16 %v1423, %v1422
      %v1479 = vpack.c.b16 %v1425, %v1424
      %v1480 = vpack.c.b16 %v1427, %v1426
      %v1481 = vpack.c.b16 %v1429, %v1428
      %v1482 = vpack.c.b16 %v1431, %v1430
      %v1483 = vpack.c.b16 %v1433, %v1432
      %v1484 = vpack.c.b16 %v1435, %v1434
      %v1485 = vpack.c.b16 %v1437, %v1436
      %v1486 = vpack.c.b16 %v1439, %v1438
      %v1487 = vpack.c.b16 %v1441, %v1440
      %v1488 = vpack.c.b16 %v1443, %v1442
      %v1489 = vpack.c.b16 %v1445, %v1444
      %v1490 = vpack.c.b16 %v1447, %v1446
      %v1491 = vpack.c.b16 %v1449, %v1448
      %v1492 = vpack.c.b16 %v1451, %v1450
      %v1493 = vpack.c.b16 %v1453, %v1452
      %v1494 = vpack.c.b16 %v1455, %v1454
      %v1495 = vpack.c.b16 %v1457, %v1456
      %v1496 = vpack.c.b16 %v1459, %v1458
      %v1497 = vpack.c.b16 %v1461, %v1460
      %v1498 = vpack.c.b16 %v1463, %v1462
      %v1499 = vpack.c.b16 %v1465, %v1464
      %v1500 = vpack.c.b16 %v1467, %v1466
      %v1501 = vpack.c.b16 %v1469, %v1468
      %1534 = vmatprep.subr.bf16.mxu0 0
      %1535 = vmatpush1.bf16.msra.mxu0 %v1470
      %1536 = vmatprep.subr.bf16.mxu0 0
      %1537 = vmatpush1.bf16.msra.mxu0 %v1471
      %1538 = vmatprep.subr.bf16.mxu0 0
      %1539 = vmatpush1.bf16.msra.mxu0 %v1472
      %1540 = vmatprep.subr.bf16.mxu0 0
      %1541 = vmatpush1.bf16.msra.mxu0 %v1473
      %1542 = vmatprep.subr.bf16.mxu0 0
      %1543 = vmatpush1.bf16.msra.mxu0 %v1474
      %1544 = vmatprep.subr.bf16.mxu0 0
      %1545 = vmatpush1.bf16.msra.mxu0 %v1475
      %1546 = vmatprep.subr.bf16.mxu0 0
      %1547 = vmatpush1.bf16.msra.mxu0 %v1476
      %1548 = vmatprep.subr.bf16.mxu0 0
      %1549 = vmatpush1.bf16.msra.mxu0 %v1477
      %1550 = vmatprep.subr.bf16.mxu0 0
      %1551 = vmatpush1.bf16.msra.mxu0 %v1478
      %1552 = vmatprep.subr.bf16.mxu0 0
      %1553 = vmatpush1.bf16.msra.mxu0 %v1479
      %1554 = vmatprep.subr.bf16.mxu0 0
      %1555 = vmatpush1.bf16.msra.mxu0 %v1480
      %1556 = vmatprep.subr.bf16.mxu0 0
      %1557 = vmatpush1.bf16.msra.mxu0 %v1481
      %1558 = vmatprep.subr.bf16.mxu0 0
      %1559 = vmatpush1.bf16.msra.mxu0 %v1482
      %1560 = vmatprep.subr.bf16.mxu0 0
      %1561 = vmatpush1.bf16.msra.mxu0 %v1483
      %1562 = vmatprep.subr.bf16.mxu0 0
      %1563 = vmatpush1.bf16.msra.mxu0 %v1484
      %1564 = vmatprep.subr.bf16.mxu0 0
      %1565 = vmatpush1.bf16.msra.mxu0 %v1485
      %1566 = vmatprep.mubr.bf16.mxu0 %v1279
      %1567 = vmatmul.mubr.bf16.gmra.mrb[0].mxu0 %v1278
      %v1568 = vpop.f32.mrb[0].mxu0
      %v1569 = vadd.f32 0.0, %v1568
      %v1570 = vpop.f32.mrb[0].mxu0
      %v1571 = vpop.f32.mrb[0].mxu0
      %v1572 = vadd.f32 0.0, %v1571
      %v1573 = vpop.f32.mrb[0].mxu0
      %1574 = vmatprep.mubr.bf16.mxu0 %v1283
      %1575 = vmatmul.mubr.bf16.gmra.mrb[0].mxu0 %v1282
      %v1576 = vpop.f32.mrb[0].mxu0
      %v1577 = vadd.f32 0.0, %v1576
      %v1578 = vpop.f32.mrb[0].mxu0
      %v1579 = vpop.f32.mrb[0].mxu0
      %v1580 = vadd.f32 0.0, %v1579
      %v1581 = vpop.f32.mrb[0].mxu0
      %1582 = vmatprep.mubr.bf16.mxu0 %v1287
      %1583 = vmatmul.mubr.bf16.gmra.mrb[0].mxu0 %v1286
      %v1584 = vpop.f32.mrb[0].mxu0
      %v1585 = vadd.f32 0.0, %v1584
      %v1586 = vpop.f32.mrb[0].mxu0
      %v1587 = vpop.f32.mrb[0].mxu0
      %v1588 = vadd.f32 0.0, %v1587
      %v1589 = vpop.f32.mrb[0].mxu0
      %1590 = vmatprep.mubr.bf16.mxu0 %v1291
      %1591 = vmatmul.mubr.bf16.gmra.mrb[0].mxu0 %v1290
      %v1592 = vpop.f32.mrb[0].mxu0
      %v1593 = vadd.f32 0.0, %v1592
      %v1594 = vpop.f32.mrb[0].mxu0
      %v1595 = vpop.f32.mrb[0].mxu0
      %v1596 = vadd.f32 0.0, %v1595
      %v1597 = vpop.f32.mrb[0].mxu0
      %1598 = vmatprep.mubr.bf16.mxu0 %v1295
      %1599 = vmatmul.mubr.bf16.gmra.mrb[0].mxu0 %v1294
      %v1600 = vpop.f32.mrb[0].mxu0
      %v1601 = vadd.f32 0.0, %v1600
      %v1602 = vpop.f32.mrb[0].mxu0
      %v1603 = vpop.f32.mrb[0].mxu0
      %v1604 = vadd.f32 0.0, %v1603
      %v1605 = vpop.f32.mrb[0].mxu0
      %1606 = vmatprep.mubr.bf16.mxu0 %v1299
      %1607 = vmatmul.mubr.bf16.gmra.mrb[0].mxu0 %v1298
      %v1608 = vpop.f32.mrb[0].mxu0
      %v1609 = vadd.f32 0.0, %v1608
      %v1610 = vpop.f32.mrb[0].mxu0
      %v1611 = vpop.f32.mrb[0].mxu0
      %v1612 = vadd.f32 0.0, %v1611
      %v1613 = vpop.f32.mrb[0].mxu0
      %1614 = vmatprep.mubr.bf16.mxu0 %v1303
      %1615 = vmatmul.mubr.bf16.gmra.mrb[0].mxu0 %v1302
      %v1616 = vpop.f32.mrb[0].mxu0
      %v1617 = vadd.f32 0.0, %v1616
      %v1618 = vpop.f32.mrb[0].mxu0
      %v1619 = vpop.f32.mrb[0].mxu0
      %v1620 = vadd.f32 0.0, %v1619
      %v1621 = vpop.f32.mrb[0].mxu0
      %1622 = vmatprep.mubr.bf16.mxu0 %v1307
      %1623 = vmatmul.mubr.bf16.gmra.mrb[0].mxu0 %v1306
      %v1624 = vpop.f32.mrb[0].mxu0
      %v1625 = vadd.f32 0.0, %v1624
      %v1626 = vpop.f32.mrb[0].mxu0
      %v1627 = vpop.f32.mrb[0].mxu0
      %v1628 = vadd.f32 0.0, %v1627
      %v1629 = vpop.f32.mrb[0].mxu0
      %1630 = vdwg.mxu0
      %1631 = vmatprep.subr.bf16.mxu0 0
      %1632 = vmatpush1.bf16.msra.mxu0 %v1486
      %1633 = vmatprep.subr.bf16.mxu0 0
      %1634 = vmatpush1.bf16.msra.mxu0 %v1487
      %1635 = vmatprep.subr.bf16.mxu0 0
      %1636 = vmatpush1.bf16.msra.mxu0 %v1488
      %1637 = vmatprep.subr.bf16.mxu0 0
      %1638 = vmatpush1.bf16.msra.mxu0 %v1489
      %1639 = vmatprep.subr.bf16.mxu0 0
      %1640 = vmatpush1.bf16.msra.mxu0 %v1490
      %1641 = vmatprep.subr.bf16.mxu0 0
      %1642 = vmatpush1.bf16.msra.mxu0 %v1491
      %1643 = vmatprep.subr.bf16.mxu0 0
      %1644 = vmatpush1.bf16.msra.mxu0 %v1492
      %1645 = vmatprep.subr.bf16.mxu0 0
      %1646 = vmatpush1.bf16.msra.mxu0 %v1493
      %1647 = vmatprep.subr.bf16.mxu0 0
      %1648 = vmatpush1.bf16.msra.mxu0 %v1494
      %1649 = vmatprep.subr.bf16.mxu0 0
      %1650 = vmatpush1.bf16.msra.mxu0 %v1495
      %1651 = vmatprep.subr.bf16.mxu0 0
      %1652 = vmatpush1.bf16.msra.mxu0 %v1496
      %1653 = vmatprep.subr.bf16.mxu0 0
      %1654 = vmatpush1.bf16.msra.mxu0 %v1497
      %1655 = vmatprep.subr.bf16.mxu0 0
      %1656 = vmatpush1.bf16.msra.mxu0 %v1498
      %1657 = vmatprep.subr.bf16.mxu0 0
      %1658 = vmatpush1.bf16.msra.mxu0 %v1499
      %1659 = vmatprep.subr.bf16.mxu0 0
      %1660 = vmatpush1.bf16.msra.mxu0 %v1500
      %1661 = vmatprep.subr.bf16.mxu0 0
      %1662 = vmatpush1.bf16.msra.mxu0 %v1501
      %1663 = vmatprep.mubr.bf16.mxu0 %v1281
      %1664 = vmatmul.mubr.bf16.gmra.mrb[0].mxu0 %v1280
      %v1665 = vpop.f32.mrb[0].mxu0
      %v1666 = vadd.f32 %v1569, %v1665
      %v1667 = vpop.f32.mrb[0].mxu0
      %v1668 = vpop.f32.mrb[0].mxu0
      %v1669 = vadd.f32 %v1572, %v1668
      %v1670 = vpop.f32.mrb[0].mxu0
      %1671 = vmatprep.mubr.bf16.mxu0 %v1285
      %1672 = vmatmul.mubr.bf16.gmra.mrb[0].mxu0 %v1284
      %v1673 = vpop.f32.mrb[0].mxu0
      %v1674 = vadd.f32 %v1577, %v1673
      %v1675 = vpop.f32.mrb[0].mxu0
      %v1676 = vpop.f32.mrb[0].mxu0
      %v1677 = vadd.f32 %v1580, %v1676
      %v1678 = vpop.f32.mrb[0].mxu0
      %1679 = vmatprep.mubr.bf16.mxu0 %v1289
      %1680 = vmatmul.mubr.bf16.gmra.mrb[0].mxu0 %v1288
      %v1681 = vpop.f32.mrb[0].mxu0
      %v1682 = vadd.f32 %v1585, %v1681
      %v1683 = vpop.f32.mrb[0].mxu0
      %v1684 = vpop.f32.mrb[0].mxu0
      %v1685 = vadd.f32 %v1588, %v1684
      %v1686 = vpop.f32.mrb[0].mxu0
      %1687 = vmatprep.mubr.bf16.mxu0 %v1293
      %1688 = vmatmul.mubr.bf16.gmra.mrb[0].mxu0 %v1292
      %v1689 = vpop.f32.mrb[0].mxu0
      %v1690 = vadd.f32 %v1593, %v1689
      %v1691 = vpop.f32.mrb[0].mxu0
      %v1692 = vpop.f32.mrb[0].mxu0
      %v1693 = vadd.f32 %v1596, %v1692
      %v1694 = vpop.f32.mrb[0].mxu0
      %1695 = vmatprep.mubr.bf16.mxu0 %v1297
      %1696 = vmatmul.mubr.bf16.gmra.mrb[0].mxu0 %v1296
      %v1697 = vpop.f32.mrb[0].mxu0
      %v1698 = vadd.f32 %v1601, %v1697
      %v1699 = vpop.f32.mrb[0].mxu0
      %v1700 = vpop.f32.mrb[0].mxu0
      %v1701 = vadd.f32 %v1604, %v1700
      %v1702 = vpop.f32.mrb[0].mxu0
      %1703 = vmatprep.mubr.bf16.mxu0 %v1301
      %1704 = vmatmul.mubr.bf16.gmra.mrb[0].mxu0 %v1300
      %v1705 = vpop.f32.mrb[0].mxu0
      %v1706 = vadd.f32 %v1609, %v1705
      %v1707 = vpop.f32.mrb[0].mxu0
      %v1708 = vpop.f32.mrb[0].mxu0
      %v1709 = vadd.f32 %v1612, %v1708
      %v1710 = vpop.f32.mrb[0].mxu0
      %1711 = vmatprep.mubr.bf16.mxu0 %v1305
      %1712 = vmatmul.mubr.bf16.gmra.mrb[0].mxu0 %v1304
      %v1713 = vpop.f32.mrb[0].mxu0
      %v1714 = vadd.f32 %v1617, %v1713
      %v1715 = vpop.f32.mrb[0].mxu0
      %v1716 = vpop.f32.mrb[0].mxu0
      %v1717 = vadd.f32 %v1620, %v1716
      %v1718 = vpop.f32.mrb[0].mxu0
      %1719 = vmatprep.mubr.bf16.mxu0 %v1309
      %1720 = vmatmul.mubr.bf16.gmra.mrb[0].mxu0 %v1308
      %v1721 = vpop.f32.mrb[0].mxu0
      %v1722 = vadd.f32 %v1625, %v1721
      %v1723 = vpop.f32.mrb[0].mxu0
      %v1724 = vpop.f32.mrb[0].mxu0
      %v1725 = vadd.f32 %v1628, %v1724
      %v1726 = vpop.f32.mrb[0].mxu0
      %1727 = vdwg.mxu0
      %v1792 = vunpack.c.l.b16 %v1022
      %v1793 = vunpack.c.l.b16 %v1023
      %v1794 = vunpack.c.l.b16 %v1024
      %v1795 = vunpack.c.l.b16 %v1025
      %v1796 = vunpack.c.l.b16 %v1026
      %v1797 = vunpack.c.l.b16 %v1027
      %v1798 = vunpack.c.l.b16 %v1028
      %v1799 = vunpack.c.l.b16 %v1029
      %v1800 = vunpack.c.l.b16 %v1030
      %v1801 = vunpack.c.l.b16 %v1031
      %v1802 = vunpack.c.l.b16 %v1032
      %v1803 = vunpack.c.l.b16 %v1033
      %v1804 = vunpack.c.l.b16 %v1034
      %v1805 = vunpack.c.l.b16 %v1035
      %v1806 = vunpack.c.l.b16 %v1036
      %v1807 = vunpack.c.l.b16 %v1037
      %v1808 = vunpack.c.l.b16 %v1038
      %v1809 = vunpack.c.l.b16 %v1039
      %v1810 = vunpack.c.l.b16 %v1040
      %v1811 = vunpack.c.l.b16 %v1041
      %v1812 = vunpack.c.l.b16 %v1042
      %v1813 = vunpack.c.l.b16 %v1043
      %v1814 = vunpack.c.l.b16 %v1044
      %v1815 = vunpack.c.l.b16 %v1045
      %v1816 = vunpack.c.l.b16 %v1046
      %v1817 = vunpack.c.l.b16 %v1047
      %v1818 = vunpack.c.l.b16 %v1048
      %v1819 = vunpack.c.l.b16 %v1049
      %v1820 = vunpack.c.l.b16 %v1050
      %v1821 = vunpack.c.l.b16 %v1051
      %v1822 = vunpack.c.l.b16 %v1052
      %v1823 = vunpack.c.l.b16 %v1053
      %v1824 = vunpack.c.l.b16 %v1054
      %v1825 = vunpack.c.l.b16 %v1055
      %v1826 = vunpack.c.l.b16 %v1056
      %v1827 = vunpack.c.l.b16 %v1057
      %v1828 = vunpack.c.l.b16 %v1058
      %v1829 = vunpack.c.l.b16 %v1059
      %v1830 = vunpack.c.l.b16 %v1060
      %v1831 = vunpack.c.l.b16 %v1061
      %v1832 = vunpack.c.l.b16 %v1062
      %v1833 = vunpack.c.l.b16 %v1063
      %v1834 = vunpack.c.l.b16 %v1064
      %v1835 = vunpack.c.l.b16 %v1065
      %v1836 = vunpack.c.l.b16 %v1066
      %v1837 = vunpack.c.l.b16 %v1067
      %v1838 = vunpack.c.l.b16 %v1068
      %v1839 = vunpack.c.l.b16 %v1069
      %v1840 = vunpack.c.l.b16 %v1070
      %v1841 = vunpack.c.l.b16 %v1071
      %v1842 = vunpack.c.l.b16 %v1072
      %v1843 = vunpack.c.l.b16 %v1073
      %v1844 = vunpack.c.l.b16 %v1074
      %v1845 = vunpack.c.l.b16 %v1075
      %v1846 = vunpack.c.l.b16 %v1076
      %v1847 = vunpack.c.l.b16 %v1077
      %v1848 = vunpack.c.l.b16 %v1078
      %v1849 = vunpack.c.l.b16 %v1079
      %v1850 = vunpack.c.l.b16 %v1080
      %v1851 = vunpack.c.l.b16 %v1081
      %v1852 = vunpack.c.l.b16 %v1082
      %v1853 = vunpack.c.l.b16 %v1083
      %v1854 = vunpack.c.l.b16 %v1084
      %v1855 = vunpack.c.l.b16 %v1085
      %v1856 = vpack.c.b16 %v1793, %v1792
      %v1857 = vpack.c.b16 %v1795, %v1794
      %v1858 = vpack.c.b16 %v1797, %v1796
      %v1859 = vpack.c.b16 %v1799, %v1798
      %v1860 = vpack.c.b16 %v1801, %v1800
      %v1861 = vpack.c.b16 %v1803, %v1802
      %v1862 = vpack.c.b16 %v1805, %v1804
      %v1863 = vpack.c.b16 %v1807, %v1806
      %v1864 = vpack.c.b16 %v1809, %v1808
      %v1865 = vpack.c.b16 %v1811, %v1810
      %v1866 = vpack.c.b16 %v1813, %v1812
      %v1867 = vpack.c.b16 %v1815, %v1814
      %v1868 = vpack.c.b16 %v1817, %v1816
      %v1869 = vpack.c.b16 %v1819, %v1818
      %v1870 = vpack.c.b16 %v1821, %v1820
      %v1871 = vpack.c.b16 %v1823, %v1822
      %v1872 = vpack.c.b16 %v1825, %v1824
      %v1873 = vpack.c.b16 %v1827, %v1826
      %v1874 = vpack.c.b16 %v1829, %v1828
      %v1875 = vpack.c.b16 %v1831, %v1830
      %v1876 = vpack.c.b16 %v1833, %v1832
      %v1877 = vpack.c.b16 %v1835, %v1834
      %v1878 = vpack.c.b16 %v1837, %v1836
      %v1879 = vpack.c.b16 %v1839, %v1838
      %v1880 = vpack.c.b16 %v1841, %v1840
      %v1881 = vpack.c.b16 %v1843, %v1842
      %v1882 = vpack.c.b16 %v1845, %v1844
      %v1883 = vpack.c.b16 %v1847, %v1846
      %v1884 = vpack.c.b16 %v1849, %v1848
      %v1885 = vpack.c.b16 %v1851, %v1850
      %v1886 = vpack.c.b16 %v1853, %v1852
      %v1887 = vpack.c.b16 %v1855, %v1854
      %1920 = vmatprep.subr.bf16.mxu0 0
      %1921 = vmatpush1.bf16.msra.mxu0 %v1856
      %1922 = vmatprep.subr.bf16.mxu0 0
      %1923 = vmatpush1.bf16.msra.mxu0 %v1857
      %1924 = vmatprep.subr.bf16.mxu0 0
      %1925 = vmatpush1.bf16.msra.mxu0 %v1858
      %1926 = vmatprep.subr.bf16.mxu0 0
      %1927 = vmatpush1.bf16.msra.mxu0 %v1859
      %1928 = vmatprep.subr.bf16.mxu0 0
      %1929 = vmatpush1.bf16.msra.mxu0 %v1860
      %1930 = vmatprep.subr.bf16.mxu0 0
      %1931 = vmatpush1.bf16.msra.mxu0 %v1861
      %1932 = vmatprep.subr.bf16.mxu0 0
      %1933 = vmatpush1.bf16.msra.mxu0 %v1862
      %1934 = vmatprep.subr.bf16.mxu0 0
      %1935 = vmatpush1.bf16.msra.mxu0 %v1863
      %1936 = vmatprep.subr.bf16.mxu0 0
      %1937 = vmatpush1.bf16.msra.mxu0 %v1864
      %1938 = vmatprep.subr.bf16.mxu0 0
      %1939 = vmatpush1.bf16.msra.mxu0 %v1865
      %1940 = vmatprep.subr.bf16.mxu0 0
      %1941 = vmatpush1.bf16.msra.mxu0 %v1866
      %1942 = vmatprep.subr.bf16.mxu0 0
      %1943 = vmatpush1.bf16.msra.mxu0 %v1867
      %1944 = vmatprep.subr.bf16.mxu0 0
      %1945 = vmatpush1.bf16.msra.mxu0 %v1868
      %1946 = vmatprep.subr.bf16.mxu0 0
      %1947 = vmatpush1.bf16.msra.mxu0 %v1869
      %1948 = vmatprep.subr.bf16.mxu0 0
      %1949 = vmatpush1.bf16.msra.mxu0 %v1870
      %1950 = vmatprep.subr.bf16.mxu0 0
      %1951 = vmatpush1.bf16.msra.mxu0 %v1871
      %1952 = vmatprep.mubr.bf16.mxu0 %v991
      %1953 = vmatmul.mubr.bf16.gmra.mrb[0].mxu0 %v990
      %v1954 = vpop.f32.mrb[0].mxu0
      %v1955 = vadd.f32 %v1666, %v1954
      %v1956 = vpop.f32.mrb[0].mxu0
      %v1957 = vpop.f32.mrb[0].mxu0
      %v1958 = vadd.f32 %v1669, %v1957
      %v1959 = vpop.f32.mrb[0].mxu0
      %1960 = vmatprep.mubr.bf16.mxu0 %v995
      %1961 = vmatmul.mubr.bf16.gmra.mrb[0].mxu0 %v994
      %v1962 = vpop.f32.mrb[0].mxu0
      %v1963 = vadd.f32 %v1674, %v1962
      %v1964 = vpop.f32.mrb[0].mxu0
      %v1965 = vpop.f32.mrb[0].mxu0
      %v1966 = vadd.f32 %v1677, %v1965
      %v1967 = vpop.f32.mrb[0].mxu0
      %1968 = vmatprep.mubr.bf16.mxu0 %v999
      %1969 = vmatmul.mubr.bf16.gmra.mrb[0].mxu0 %v998
      %v1970 = vpop.f32.mrb[0].mxu0
      %v1971 = vadd.f32 %v1682, %v1970
      %v1972 = vpop.f32.mrb[0].mxu0
      %v1973 = vpop.f32.mrb[0].mxu0
      %v1974 = vadd.f32 %v1685, %v1973
      %v1975 = vpop.f32.mrb[0].mxu0
      %1976 = vmatprep.mubr.bf16.mxu0 %v1003
      %1977 = vmatmul.mubr.bf16.gmra.mrb[0].mxu0 %v1002
      %v1978 = vpop.f32.mrb[0].mxu0
      %v1979 = vadd.f32 %v1690, %v1978
      %v1980 = vpop.f32.mrb[0].mxu0
      %v1981 = vpop.f32.mrb[0].mxu0
      %v1982 = vadd.f32 %v1693, %v1981
      %v1983 = vpop.f32.mrb[0].mxu0
      %1984 = vmatprep.mubr.bf16.mxu0 %v1007
      %1985 = vmatmul.mubr.bf16.gmra.mrb[0].mxu0 %v1006
      %v1986 = vpop.f32.mrb[0].mxu0
      %v1987 = vadd.f32 %v1698, %v1986
      %v1988 = vpop.f32.mrb[0].mxu0
      %v1989 = vpop.f32.mrb[0].mxu0
      %v1990 = vadd.f32 %v1701, %v1989
      %v1991 = vpop.f32.mrb[0].mxu0
      %1992 = vmatprep.mubr.bf16.mxu0 %v1011
      %1993 = vmatmul.mubr.bf16.gmra.mrb[0].mxu0 %v1010
      %v1994 = vpop.f32.mrb[0].mxu0
      %v1995 = vadd.f32 %v1706, %v1994
      %v1996 = vpop.f32.mrb[0].mxu0
      %v1997 = vpop.f32.mrb[0].mxu0
      %v1998 = vadd.f32 %v1709, %v1997
      %v1999 = vpop.f32.mrb[0].mxu0
      %2000 = vmatprep.mubr.bf16.mxu0 %v1015
      %2001 = vmatmul.mubr.bf16.gmra.mrb[0].mxu0 %v1014
      %v2002 = vpop.f32.mrb[0].mxu0
      %v2003 = vadd.f32 %v1714, %v2002
      %v2004 = vpop.f32.mrb[0].mxu0
      %v2005 = vpop.f32.mrb[0].mxu0
      %v2006 = vadd.f32 %v1717, %v2005
      %v2007 = vpop.f32.mrb[0].mxu0
      %2008 = vmatprep.mubr.bf16.mxu0 %v1019
      %2009 = vmatmul.mubr.bf16.gmra.mrb[0].mxu0 %v1018
      %v2010 = vpop.f32.mrb[0].mxu0
      %v2011 = vadd.f32 %v1722, %v2010
      %v2012 = vpop.f32.mrb[0].mxu0
      %v2013 = vpop.f32.mrb[0].mxu0
      %v2014 = vadd.f32 %v1725, %v2013
      %v2015 = vpop.f32.mrb[0].mxu0
      %2016 = vdwg.mxu0
      %2017 = vmatprep.subr.bf16.mxu0 0
      %2018 = vmatpush1.bf16.msra.mxu0 %v1872
      %2019 = vmatprep.subr.bf16.mxu0 0
      %2020 = vmatpush1.bf16.msra.mxu0 %v1873
      %2021 = vmatprep.subr.bf16.mxu0 0
      %2022 = vmatpush1.bf16.msra.mxu0 %v1874
      %2023 = vmatprep.subr.bf16.mxu0 0
      %2024 = vmatpush1.bf16.msra.mxu0 %v1875
      %2025 = vmatprep.subr.bf16.mxu0 0
      %2026 = vmatpush1.bf16.msra.mxu0 %v1876
      %2027 = vmatprep.subr.bf16.mxu0 0
      %2028 = vmatpush1.bf16.msra.mxu0 %v1877
      %2029 = vmatprep.subr.bf16.mxu0 0
      %2030 = vmatpush1.bf16.msra.mxu0 %v1878
      %2031 = vmatprep.subr.bf16.mxu0 0
      %2032 = vmatpush1.bf16.msra.mxu0 %v1879
      %2033 = vmatprep.subr.bf16.mxu0 0
      %2034 = vmatpush1.bf16.msra.mxu0 %v1880
      %2035 = vmatprep.subr.bf16.mxu0 0
      %2036 = vmatpush1.bf16.msra.mxu0 %v1881
      %2037 = vmatprep.subr.bf16.mxu0 0
      %2038 = vmatpush1.bf16.msra.mxu0 %v1882
      %2039 = vmatprep.subr.bf16.mxu0 0
      %2040 = vmatpush1.bf16.msra.mxu0 %v1883
      %2041 = vmatprep.subr.bf16.mxu0 0
      %2042 = vmatpush1.bf16.msra.mxu0 %v1884
      %2043 = vmatprep.subr.bf16.mxu0 0
      %2044 = vmatpush1.bf16.msra.mxu0 %v1885
      %2045 = vmatprep.subr.bf16.mxu0 0
      %2046 = vmatpush1.bf16.msra.mxu0 %v1886
      %2047 = vmatprep.subr.bf16.mxu0 0
      %2048 = vmatpush1.bf16.msra.mxu0 %v1887
      %2049 = vmatprep.mubr.bf16.mxu0 %v993
      %2050 = vmatmul.mubr.bf16.gmra.mrb[0].mxu0 %v992
      %v2051 = vpop.f32.mrb[0].mxu0
      %v2052 = vadd.f32 %v1955, %v2051
      %v2053 = vpop.f32.mrb[0].mxu0
      %v2054 = vpop.f32.mrb[0].mxu0
      %v2055 = vadd.f32 %v1958, %v2054
      %v2056 = vpop.f32.mrb[0].mxu0
      %2057 = vmatprep.mubr.bf16.mxu0 %v997
      %2058 = vmatmul.mubr.bf16.gmra.mrb[0].mxu0 %v996
      %v2059 = vpop.f32.mrb[0].mxu0
      %v2060 = vadd.f32 %v1963, %v2059
      %v2061 = vpop.f32.mrb[0].mxu0
      %v2062 = vpop.f32.mrb[0].mxu0
      %v2063 = vadd.f32 %v1966, %v2062
      %v2064 = vpop.f32.mrb[0].mxu0
      %2065 = vmatprep.mubr.bf16.mxu0 %v1001
      %2066 = vmatmul.mubr.bf16.gmra.mrb[0].mxu0 %v1000
      %v2067 = vpop.f32.mrb[0].mxu0
      %v2068 = vadd.f32 %v1971, %v2067
      %v2069 = vpop.f32.mrb[0].mxu0
      %v2070 = vpop.f32.mrb[0].mxu0
      %v2071 = vadd.f32 %v1974, %v2070
      %v2072 = vpop.f32.mrb[0].mxu0
      %2073 = vmatprep.mubr.bf16.mxu0 %v1005
      %2074 = vmatmul.mubr.bf16.gmra.mrb[0].mxu0 %v1004
      %v2075 = vpop.f32.mrb[0].mxu0
      %v2076 = vadd.f32 %v1979, %v2075
      %v2077 = vpop.f32.mrb[0].mxu0
      %v2078 = vpop.f32.mrb[0].mxu0
      %v2079 = vadd.f32 %v1982, %v2078
      %v2080 = vpop.f32.mrb[0].mxu0
      %2081 = vmatprep.mubr.bf16.mxu0 %v1009
      %2082 = vmatmul.mubr.bf16.gmra.mrb[0].mxu0 %v1008
      %v2083 = vpop.f32.mrb[0].mxu0
      %v2084 = vadd.f32 %v1987, %v2083
      %v2085 = vpop.f32.mrb[0].mxu0
      %v2086 = vpop.f32.mrb[0].mxu0
      %v2087 = vadd.f32 %v1990, %v2086
      %v2088 = vpop.f32.mrb[0].mxu0
      %2089 = vmatprep.mubr.bf16.mxu0 %v1013
      %2090 = vmatmul.mubr.bf16.gmra.mrb[0].mxu0 %v1012
      %v2091 = vpop.f32.mrb[0].mxu0
      %v2092 = vadd.f32 %v1995, %v2091
      %v2093 = vpop.f32.mrb[0].mxu0
      %v2094 = vpop.f32.mrb[0].mxu0
      %v2095 = vadd.f32 %v1998, %v2094
      %v2096 = vpop.f32.mrb[0].mxu0
      %2097 = vmatprep.mubr.bf16.mxu0 %v1017
      %2098 = vmatmul.mubr.bf16.gmra.mrb[0].mxu0 %v1016
      %v2099 = vpop.f32.mrb[0].mxu0
      %v2100 = vadd.f32 %v2003, %v2099
      %v2101 = vpop.f32.mrb[0].mxu0
      %v2102 = vpop.f32.mrb[0].mxu0
      %v2103 = vadd.f32 %v2006, %v2102
      %v2104 = vpop.f32.mrb[0].mxu0
      %2105 = vmatprep.mubr.bf16.mxu0 %v1021
      %2106 = vmatmul.mubr.bf16.gmra.mrb[0].mxu0 %v1020
      %v2107 = vpop.f32.mrb[0].mxu0
      %v2108 = vadd.f32 %v2011, %v2107
      %v2109 = vpop.f32.mrb[0].mxu0
      %v2110 = vpop.f32.mrb[0].mxu0
      %v2111 = vadd.f32 %v2014, %v2110
      %v2112 = vpop.f32.mrb[0].mxu0
      %2113 = vdwg.mxu0
      %v2114 = vld [vmem:[%s5] sm:$0x1]
      %v2115 = vlaneseq
      %v2116 = vshrl.u32 %v2115, 7
      %v2117 = vsub.s32 0, %v2116
      %v2118 = vrot.slane %v2114, %v2117
      %v2119 = vadd.f32 %v2052, %v2118
      %v2120 = vadd.f32 %v2055, %v2118
      %v2121 = vadd.f32 %v2060, %v2118
      %v2122 = vadd.f32 %v2063, %v2118
      %v2123 = vadd.f32 %v2068, %v2118
      %v2124 = vadd.f32 %v2071, %v2118
      %v2125 = vadd.f32 %v2076, %v2118
      %v2126 = vadd.f32 %v2079, %v2118
      %v2127 = vadd.f32 %v2084, %v2118
      %v2128 = vadd.f32 %v2087, %v2118
      %v2129 = vadd.f32 %v2092, %v2118
      %v2130 = vadd.f32 %v2095, %v2118
      %v2131 = vadd.f32 %v2100, %v2118
      %v2132 = vadd.f32 %v2103, %v2118
      %v2133 = vadd.f32 %v2108, %v2118
      %v2134 = vadd.f32 %v2111, %v2118
      %v2135 = vmax.f32 %v2119, 0.0
      %v2136 = vmax.f32 %v2120, 0.0
      %v2137 = vmax.f32 %v2121, 0.0
      %v2138 = vmax.f32 %v2122, 0.0
      %v2139 = vmax.f32 %v2123, 0.0
      %v2140 = vmax.f32 %v2124, 0.0
      %v2141 = vmax.f32 %v2125, 0.0
      %v2142 = vmax.f32 %v2126, 0.0
      %v2143 = vmax.f32 %v2127, 0.0
      %v2144 = vmax.f32 %v2128, 0.0
      %v2145 = vmax.f32 %v2129, 0.0
      %v2146 = vmax.f32 %v2130, 0.0
      %v2147 = vmax.f32 %v2131, 0.0
      %v2148 = vmax.f32 %v2132, 0.0
      %v2149 = vmax.f32 %v2133, 0.0
      %v2150 = vmax.f32 %v2134, 0.0
      %2151 = vst [vmem:[%s281] sm:$0xff] %v2135
      %2152 = vst [vmem:[%s281 + $0x8] sm:$0xff] %v2136
      %2153 = vst [vmem:[%s281 + $0x10] sm:$0xff] %v2137
      %2154 = vst [vmem:[%s281 + $0x18] sm:$0xff] %v2138
      %2155 = vst [vmem:[%s281 + $0x20] sm:$0xff] %v2139
      %2156 = vst [vmem:[%s281 + $0x28] sm:$0xff] %v2140
      %2157 = vst [vmem:[%s281 + $0x30] sm:$0xff] %v2141
      %2158 = vst [vmem:[%s281 + $0x38] sm:$0xff] %v2142
      %2159 = vst [vmem:[%s281 + $0x40] sm:$0xff] %v2143
      %2160 = vst [vmem:[%s281 + $0x48] sm:$0xff] %v2144
      %2161 = vst [vmem:[%s281 + $0x50] sm:$0xff] %v2145
      %2162 = vst [vmem:[%s281 + $0x58] sm:$0xff] %v2146
      %2163 = vst [vmem:[%s281 + $0x60] sm:$0xff] %v2147
      %2164 = vst [vmem:[%s281 + $0x68] sm:$0xff] %v2148
      %2165 = vst [vmem:[%s281 + $0x70] sm:$0xff] %v2149
      %2166 = vst [vmem:[%s281 + $0x78] sm:$0xff] %v2150
      %s2167 = smul.u32 16, %s17
      %p2168 = scmp.lt.s32.totalorder %s2167, 31
      %s2169 = scalar_select %p2168, %s2167, 31
      %s2170 = smul.addr %s2169, 8
      %s2171 = scalar_lea.vmem %s6, %s2170
      // Predicated region
      $region45: #{gnn_regressor_forward.5} parent=43 // pred_check
        %p2172 = pneg %p171
      $region46: #{gnn_regressor_forward.5} parent=43 // pred_check_branch
        %2174 = sbr.rel (%p2172) target = $region48
      $region47: #{gnn_regressor_forward.5} parent=43 // pred_region
        %s2175 = smul.u32 16, %s17
      $region48: #{gnn_regressor_forward.5} parent=43 // pred_fallthru
        _
    $region44: #{gnn_regressor_forward.5} parent=5 // pred_fallthru
      _
    %p2176 = scmp.le.s32.totalorder 2, %s12
    // Predicated region
    $region49: #{gnn_regressor_forward.5} parent=5 // pred_check
      %p2177 = pneg %p2176
    $region50: #{gnn_regressor_forward.5} parent=5 // pred_check_branch
      %2179 = sbr.rel (%p2177) target = $region52
    $region51: #{gnn_regressor_forward.5} parent=5 // pred_region
      %s2180 = ssub.s32 %s12, 2
      // Predicated region
      $region53: #{gnn_regressor_forward.5} parent=51 // pred_check
        %p2181 = pneg %p177
      $region54: #{gnn_regressor_forward.5} parent=51 // pred_check_branch
        %2183 = sbr.rel (%p2181) target = $region56
      $region55: #{gnn_regressor_forward.5} parent=51 // pred_region
        %s2184 = smul.u32 16, %s18
        %p2185 = scmp.lt.s32.totalorder %s2184, 31
        %s2186 = scalar_select %p2185, %s2184, 31
        %s2187 = smul.addr %s2186, 8
        %s2188 = scalar_lea.vmem %s6, %s2187
      $region56: #{gnn_regressor_forward.5} parent=51 // pred_fallthru
        _
    $region52: #{gnn_regressor_forward.5} parent=5 // pred_fallthru
      _
  $region6: #{gnn_regressor_forward.5} parent=0 // loop_footer
    %s16 = sadd.s32 1, %s12
  $region7: #{gnn_regressor_forward.5} parent=0 // loop_footer_branch
    %11 = sbr.rel target = $region3
  $region8: #{gnn_regressor_forward.5} parent=0 // loop_exit
    _

// kernel: gnn_regressor_forward.4
$region0: #{gnn_regressor_forward.4}
  #allocation0 [shape = 'u32[]', space=smem, size = 0x4, offset = 0x4, fixed_abs, tag = 'smem constant byte address 0x4 - core index']
  #allocation1 [shape = 'u32[144,128]{1,0:T(1,128)}', space=vmem, size = 0x12000, scoped, tag = 'internal scratch']
  %s0 = inlined_call_operand.vmem [shape: bf16[256,256], index: 0, kind: input, shape index: {}]
  %s1 = inlined_call_operand.vmem [shape: bf16[256,512], index: 1, kind: input, shape index: {}, may-alias: {1,2}]
  %s2 = inlined_call_operand.vmem [shape: bf16[256,512], index: 2, kind: input, shape index: {}, may-alias: {1,2}]
  %s3 = inlined_call_operand.vmem [shape: bf16[512,512], index: 3, kind: input, shape index: {}]
  %s4 = inlined_call_operand.vmem [shape: bf16[512,512], index: 4, kind: input, shape index: {}]
  %s5 = inlined_call_operand.vmem [shape: f32[3,512], index: 5, kind: input, shape index: {}]
  %s6 = inlined_call_operand.vmem [shape: bf16[256,512], index: 6, kind: output, shape index: {}]
  %s7 = sld [smem:[#allocation0]]
  $region57: #{gnn_regressor_forward.4} parent=0
    _
  %s9 = ssub.s32 1, %s7
  %s10 = scalar_select 0, %s9, %s7
  loop: start=0, step=1, limit=4
  $region2: #{gnn_regressor_forward.4} parent=0 // loop_pre_header
    _
  $region3: #{gnn_regressor_forward.4} parent=0 // loop_header
    %s12 = sphi 0, %s16
    %p13 = scmp.ge.s32.totalorder %s12, 4
    %s22 = sphi 0, %s24
    %s25 = sphi 0, %s22
    %s26 = sphi 0, %s25
    %s42 = sphi 0, %s26
    %s46 = sphi 0, %s46
    %s48 = sphi 0, %s46
    %s49 = sphi 0, %s48
    %s63 = sphi 0, %s49
    %s69 = sphi 0, %s71
    %s72 = sphi 0, %s69
    %s73 = sphi 0, %s72
    %s89 = sphi 0, %s73
    %s93 = sphi 0, %s93
    %s95 = sphi 0, %s93
    %s96 = sphi 0, %s95
    %s110 = sphi 0, %s96
    %s114 = sphi 0, %s114
    %s116 = sphi 0, %s114
    %s117 = sphi 0, %s116
    %s131 = sphi 0, %s117
    %s135 = sphi 0, %s135
    %s137 = sphi 0, %s135
    %s138 = sphi 0, %s137
    %s152 = sphi 0, %s138
    %s158 = sphi 0, %s160
    %s161 = sphi 0, %s158
    %s162 = sphi 0, %s161
    %s178 = sphi 0, %s162
  $region4: #{gnn_regressor_forward.4} parent=0 // loop_header_branch
    %15 = sbr.rel (%p13) target = $region8
  $region5: #{gnn_regressor_forward.4} parent=0 // loop_body
    %s17 = ssub.s32 %s12, 1
    %s18 = ssub.s32 %s12, 2
    %s19 = sadd.s32 %s12, 1
    %s20 = ssub.s32 %s12, %s19
    %p21 = scmp.eq.s32.totalorder %s20, 0
    %s23 = sadd.s32 %s22, 1
    %s24 = scalar_select %p21, %s22, %s23
    %p27 = pneg %p21
    %p28 = scmp.eq.s32.totalorder %s12, 1
    %p29 = por %p27, %p28
    %p30 = scmp.ne.s32.totalorder %s22, %s25
    %p31 = scmp.eq.s32.totalorder %s12, 0
    %p32 = por %p30, %p31
    %p33 = scmp.ne.s32.totalorder %s22, %s25
    %p34 = scmp.eq.s32.totalorder %s17, 1
    %p35 = por %p33, %p34
    %p36 = scmp.ne.s32.totalorder %s25, %s26
    %p37 = scmp.eq.s32.totalorder %s17, 0
    %p38 = por %p36, %p37
    %p39 = scmp.ne.s32.totalorder %s25, %s26
    %p40 = scmp.eq.s32.totalorder %s18, 1
    %p41 = por %p39, %p40
    %p43 = scmp.ne.s32.totalorder %s26, %s42
    %p44 = scmp.eq.s32.totalorder %s18, 0
    %p45 = por %p43, %p44
    %s47 = sadd.s32 %s46, 1
    %p50 = scmp.eq.s32.totalorder %s12, 1
    %p51 = scmp.ne.s32.totalorder %s46, %s48
    %p52 = scmp.eq.s32.totalorder %s12, 0
    %p53 = por %p51, %p52
    %p54 = scmp.ne.s32.totalorder %s46, %s48
    %p55 = scmp.eq.s32.totalorder %s17, 1
    %p56 = por %p54, %p55
    %p57 = scmp.ne.s32.totalorder %s48, %s49
    %p58 = scmp.eq.s32.totalorder %s17, 0
    %p59 = por %p57, %p58
    %p60 = scmp.ne.s32.totalorder %s48, %s49
    %p61 = scmp.eq.s32.totalorder %s18, 1
    %p62 = por %p60, %p61
    %p64 = scmp.ne.s32.totalorder %s49, %s63
    %p65 = scmp.eq.s32.totalorder %s18, 0
    %p66 = por %p64, %p65
    %s67 = ssub.s32 %s12, %s19
    %p68 = scmp.eq.s32.totalorder %s67, 0
    %s70 = sadd.s32 %s69, 1
    %s71 = scalar_select %p68, %s69, %s70
    %p74 = pneg %p68
    %p75 = scmp.eq.s32.totalorder %s12, 1
    %p76 = por %p74, %p75
    %p77 = scmp.ne.s32.totalorder %s69, %s72
    %p78 = scmp.eq.s32.totalorder %s12, 0
    %p79 = por %p77, %p78
    %p80 = scmp.ne.s32.totalorder %s69, %s72
    %p81 = scmp.eq.s32.totalorder %s17, 1
    %p82 = por %p80, %p81
    %p83 = scmp.ne.s32.totalorder %s72, %s73
    %p84 = scmp.eq.s32.totalorder %s17, 0
    %p85 = por %p83, %p84
    %p86 = scmp.ne.s32.totalorder %s72, %s73
    %p87 = scmp.eq.s32.totalorder %s18, 1
    %p88 = por %p86, %p87
    %p90 = scmp.ne.s32.totalorder %s73, %s89
    %p91 = scmp.eq.s32.totalorder %s18, 0
    %p92 = por %p90, %p91
    %s94 = sadd.s32 %s93, 1
    %p97 = scmp.eq.s32.totalorder %s12, 1
    %p98 = scmp.ne.s32.totalorder %s93, %s95
    %p99 = scmp.eq.s32.totalorder %s12, 0
    %p100 = por %p98, %p99
    %p101 = scmp.ne.s32.totalorder %s93, %s95
    %p102 = scmp.eq.s32.totalorder %s17, 1
    %p103 = por %p101, %p102
    %p104 = scmp.ne.s32.totalorder %s95, %s96
    %p105 = scmp.eq.s32.totalorder %s17, 0
    %p106 = por %p104, %p105
    %p107 = scmp.ne.s32.totalorder %s95, %s96
    %p108 = scmp.eq.s32.totalorder %s18, 1
    %p109 = por %p107, %p108
    %p111 = scmp.ne.s32.totalorder %s96, %s110
    %p112 = scmp.eq.s32.totalorder %s18, 0
    %p113 = por %p111, %p112
    %s115 = sadd.s32 %s114, 1
    %p118 = scmp.eq.s32.totalorder %s12, 1
    %p119 = scmp.ne.s32.totalorder %s114, %s116
    %p120 = scmp.eq.s32.totalorder %s12, 0
    %p121 = por %p119, %p120
    %p122 = scmp.ne.s32.totalorder %s114, %s116
    %p123 = scmp.eq.s32.totalorder %s17, 1
    %p124 = por %p122, %p123
    %p125 = scmp.ne.s32.totalorder %s116, %s117
    %p126 = scmp.eq.s32.totalorder %s17, 0
    %p127 = por %p125, %p126
    %p128 = scmp.ne.s32.totalorder %s116, %s117
    %p129 = scmp.eq.s32.totalorder %s18, 1
    %p130 = por %p128, %p129
    %p132 = scmp.ne.s32.totalorder %s117, %s131
    %p133 = scmp.eq.s32.totalorder %s18, 0
    %p134 = por %p132, %p133
    %s136 = sadd.s32 %s135, 1
    %p139 = scmp.eq.s32.totalorder %s12, 1
    %p140 = scmp.ne.s32.totalorder %s135, %s137
    %p141 = scmp.eq.s32.totalorder %s12, 0
    %p142 = por %p140, %p141
    %p143 = scmp.ne.s32.totalorder %s135, %s137
    %p144 = scmp.eq.s32.totalorder %s17, 1
    %p145 = por %p143, %p144
    %p146 = scmp.ne.s32.totalorder %s137, %s138
    %p147 = scmp.eq.s32.totalorder %s17, 0
    %p148 = por %p146, %p147
    %p149 = scmp.ne.s32.totalorder %s137, %s138
    %p150 = scmp.eq.s32.totalorder %s18, 1
    %p151 = por %p149, %p150
    %p153 = scmp.ne.s32.totalorder %s138, %s152
    %p154 = scmp.eq.s32.totalorder %s18, 0
    %p155 = por %p153, %p154
    %s156 = ssub.s32 %s12, %s19
    %p157 = scmp.eq.s32.totalorder %s156, 0
    %s159 = sadd.s32 %s158, 1
    %s160 = scalar_select %p157, %s158, %s159
    %p163 = pneg %p157
    %p164 = scmp.eq.s32.totalorder %s12, 1
    %p165 = por %p163, %p164
    %p166 = scmp.ne.s32.totalorder %s158, %s161
    %p167 = scmp.eq.s32.totalorder %s12, 0
    %p168 = por %p166, %p167
    %p169 = scmp.ne.s32.totalorder %s158, %s161
    %p170 = scmp.eq.s32.totalorder %s17, 1
    %p171 = por %p169, %p170
    %p172 = scmp.ne.s32.totalorder %s161, %s162
    %p173 = scmp.eq.s32.totalorder %s17, 0
    %p174 = por %p172, %p173
    %p175 = scmp.ne.s32.totalorder %s161, %s162
    %p176 = scmp.eq.s32.totalorder %s18, 1
    %p177 = por %p175, %p176
    %p179 = scmp.ne.s32.totalorder %s162, %s178
    %p180 = scmp.eq.s32.totalorder %s18, 0
    %p181 = por %p179, %p180
    %p182 = scmp.le.s32.totalorder 1, %s12
    %p183 = scmp.lt.s32.totalorder %s12, 3
    %p184 = pnand %p182, %p183
    %p185 = pneg %p184
    // Predicated region
    $region9: #{gnn_regressor_forward.4} parent=5 // pred_check
      _
    $region10: #{gnn_regressor_forward.4} parent=5 // pred_check_branch
      %187 = sbr.rel (%p184) target = $region12
    $region11: #{gnn_regressor_forward.4} parent=5 // pred_region
      %s188 = ssub.s32 %s12, 1
      // Predicated region
      $region13: #{gnn_regressor_forward.4} parent=11 // pred_check
        %p189 = pneg %p59
      $region14: #{gnn_regressor_forward.4} parent=11 // pred_check_branch
        %191 = sbr.rel (%p189) target = $region16
      $region15: #{gnn_regressor_forward.4} parent=11 // pred_region
        _
      $region16: #{gnn_regressor_forward.4} parent=11 // pred_fallthru
        _
      // Predicated region
      $region17: #{gnn_regressor_forward.4} parent=11 // pred_check
        %p192 = pneg %p106
      $region18: #{gnn_regressor_forward.4} parent=11 // pred_check_branch
        %194 = sbr.rel (%p192) target = $region20
      $region19: #{gnn_regressor_forward.4} parent=11 // pred_region
        _
      $region20: #{gnn_regressor_forward.4} parent=11 // pred_fallthru
        _
      // Predicated region
      $region21: #{gnn_regressor_forward.4} parent=11 // pred_check
        %p195 = pneg %p127
      $region22: #{gnn_regressor_forward.4} parent=11 // pred_check_branch
        %197 = sbr.rel (%p195) target = $region24
      $region23: #{gnn_regressor_forward.4} parent=11 // pred_region
        _
      $region24: #{gnn_regressor_forward.4} parent=11 // pred_fallthru
        _
      // Predicated region
      $region25: #{gnn_regressor_forward.4} parent=11 // pred_check
        %p198 = pneg %p148
      $region26: #{gnn_regressor_forward.4} parent=11 // pred_check_branch
        %200 = sbr.rel (%p198) target = $region28
      $region27: #{gnn_regressor_forward.4} parent=11 // pred_region
        _
      $region28: #{gnn_regressor_forward.4} parent=11 // pred_fallthru
        _
    $region12: #{gnn_regressor_forward.4} parent=5 // pred_fallthru
      _
    %p201 = scmp.lt.s32.totalorder %s12, 2
    // Predicated region
    $region29: #{gnn_regressor_forward.4} parent=5 // pred_check
      %p202 = pneg %p201
    $region30: #{gnn_regressor_forward.4} parent=5 // pred_check_branch
      %204 = sbr.rel (%p202) target = $region32
    $region31: #{gnn_regressor_forward.4} parent=5 // pred_region
      // Predicated region
      $region33: #{gnn_regressor_forward.4} parent=31 // pred_check
        %p205 = pneg %p32
      $region34: #{gnn_regressor_forward.4} parent=31 // pred_check_branch
        %207 = sbr.rel (%p205) target = $region36
      $region35: #{gnn_regressor_forward.4} parent=31 // pred_region
        %s208 = smul.u32 16, %s12
        %p209 = scmp.lt.s32.totalorder %s208, 31
        %s210 = scalar_select %p209, %s208, 31
        %s211 = smul.addr %s210, 2
        %s212 = smul.addr %s211, 4
        %s213 = scalar_lea.vmem %s0, %s212
        %s214 = smul.u32 16, %s12
      $region36: #{gnn_regressor_forward.4} parent=31 // pred_fallthru
        _
      // Predicated region
      $region37: #{gnn_regressor_forward.4} parent=31 // pred_check
        %p215 = pneg %p79
      $region38: #{gnn_regressor_forward.4} parent=31 // pred_check_branch
        %217 = sbr.rel (%p215) target = $region40
      $region39: #{gnn_regressor_forward.4} parent=31 // pred_region
        %s218 = smul.u32 16, %s12
        %p219 = scmp.lt.s32.totalorder %s218, 31
        %s220 = scalar_select %p219, %s218, 31
        %s221 = smul.addr %s220, 4
        %s222 = smul.addr %s221, 4
        %s223 = scalar_lea.vmem %s2, %s222
        %s224 = smul.u32 16, %s12
      $region40: #{gnn_regressor_forward.4} parent=31 // pred_fallthru
        _
    $region32: #{gnn_regressor_forward.4} parent=5 // pred_fallthru
      _
    %p225 = scmp.le.s32.totalorder 1, %s12
    %p226 = scmp.lt.s32.totalorder %s12, 3
    %p227 = pnand %p225, %p226
    %p228 = pneg %p227
    // Predicated region
    $region41: #{gnn_regressor_forward.4} parent=5 // pred_check
      _
    $region42: #{gnn_regressor_forward.4} parent=5 // pred_check_branch
      %230 = sbr.rel (%p227) target = $region44
    $region43: #{gnn_regressor_forward.4} parent=5 // pred_region
      %s231 = ssub.s32 %s12, 1
      %s232 = smul.u32 16, %s17
      %p233 = scmp.lt.s32.totalorder %s232, 31
      %s234 = scalar_select %p233, %s232, 31
      %s235 = smul.addr %s234, 2
      %s236 = smul.addr %s235, 4
      %s237 = scalar_lea.vmem %s0, %s236
      %p238 = pneg %p38
      %p239 = pneg %p35
      %p240 = pneg %p59
      %p241 = pneg %p56
      %s242 = smul.u32 16, %s17
      %p243 = scmp.lt.s32.totalorder %s242, 31
      %s244 = scalar_select %p243, %s242, 31
      %s245 = smul.addr %s244, 4
      %s246 = smul.addr %s245, 4
      %s247 = scalar_lea.vmem %s2, %s246
      %p248 = pneg %p85
      %p249 = pneg %p82
      %p250 = pneg %p106
      %p251 = pneg %p103
      %p252 = pneg %p127
      %p253 = pneg %p124
      %p254 = pneg %p148
      %p255 = pneg %p145
      %p256 = pneg %p174
      %p257 = pneg %p171
      %s258 = smul.u32 16, %s17
      %p259 = scmp.lt.s32.totalorder %s258, 31
      %s260 = scalar_select %p259, %s258, 31
      %s261 = smul.addr %s260, 4
      %s262 = smul.addr %s261, 4
      %s263 = scalar_lea.vmem %s6, %s262
      %s264 = smul.u32 16, %s17
      %p265 = scmp.lt.s32.totalorder %s264, 31
      %s266 = scalar_select %p265, %s264, 31
      %s267 = smul.addr %s266, 2
      %s268 = smul.addr %s267, 4
      %s269 = scalar_lea.vmem %s0, %s268
      %s270 = smul.u32 16, %s17
      %s271 = smul.u32 16, %s17
      %p272 = scmp.lt.s32.totalorder %s271, 31
      %s273 = scalar_select %p272, %s271, 31
      %s274 = smul.addr %s273, 4
      %s275 = smul.addr %s274, 4
      %s276 = scalar_lea.vmem %s2, %s275
      %s277 = smul.u32 16, %s17
      %s278 = smul.u32 16, %s17
      %p279 = scmp.lt.s32.totalorder %s278, 31
      %s280 = scalar_select %p279, %s278, 31
      %s281 = smul.addr %s280, 4
      %s282 = smul.addr %s281, 4
      %s283 = scalar_lea.vmem %s6, %s282
      %s284 = smul.u32 16, %s17
      %v285 = vld [vmem:[%s269] sm:$0xff]
      %v286 = vld [vmem:[%s269 + $0x8] sm:$0xff]
      %v287 = vld [vmem:[%s269 + $0x10] sm:$0xff]
      %v288 = vld [vmem:[%s269 + $0x18] sm:$0xff]
      %v289 = vld [vmem:[%s269 + $0x20] sm:$0xff]
      %v290 = vld [vmem:[%s269 + $0x28] sm:$0xff]
      %v291 = vld [vmem:[%s269 + $0x30] sm:$0xff]
      %v292 = vld [vmem:[%s269 + $0x38] sm:$0xff]
      %v293 = vld [vmem:[%s269 + $0x40] sm:$0xff]
      %v294 = vld [vmem:[%s269 + $0x48] sm:$0xff]
      %v295 = vld [vmem:[%s269 + $0x50] sm:$0xff]
      %v296 = vld [vmem:[%s269 + $0x58] sm:$0xff]
      %v297 = vld [vmem:[%s269 + $0x60] sm:$0xff]
      %v298 = vld [vmem:[%s269 + $0x68] sm:$0xff]
      %v299 = vld [vmem:[%s269 + $0x70] sm:$0xff]
      %v300 = vld [vmem:[%s269 + $0x78] sm:$0xff]
      %v301 = vld [vmem:[%s1] sm:$0xff]
      %v302 = vld [vmem:[%s1 + $0x8] sm:$0xff]
      %v303 = vld [vmem:[%s1 + $0x10] sm:$0xff]
      %v304 = vld [vmem:[%s1 + $0x18] sm:$0xff]
      %v305 = vld [vmem:[%s1 + $0x20] sm:$0xff]
      %v306 = vld [vmem:[%s1 + $0x28] sm:$0xff]
      %v307 = vld [vmem:[%s1 + $0x30] sm:$0xff]
      %v308 = vld [vmem:[%s1 + $0x38] sm:$0xff]
      %v309 = vld [vmem:[%s1 + $0x40] sm:$0xff]
      %v310 = vld [vmem:[%s1 + $0x48] sm:$0xff]
      %v311 = vld [vmem:[%s1 + $0x50] sm:$0xff]
      %v312 = vld [vmem:[%s1 + $0x58] sm:$0xff]
      %v313 = vld [vmem:[%s1 + $0x60] sm:$0xff]
      %v314 = vld [vmem:[%s1 + $0x68] sm:$0xff]
      %v315 = vld [vmem:[%s1 + $0x70] sm:$0xff]
      %v316 = vld [vmem:[%s1 + $0x78] sm:$0xff]
      %v317 = vld [vmem:[%s1 + $0x80] sm:$0xff]
      %v318 = vld [vmem:[%s1 + $0x88] sm:$0xff]
      %v319 = vld [vmem:[%s1 + $0x90] sm:$0xff]
      %v320 = vld [vmem:[%s1 + $0x98] sm:$0xff]
      %v321 = vld [vmem:[%s1 + $0xa0] sm:$0xff]
      %v322 = vld [vmem:[%s1 + $0xa8] sm:$0xff]
      %v323 = vld [vmem:[%s1 + $0xb0] sm:$0xff]
      %v324 = vld [vmem:[%s1 + $0xb8] sm:$0xff]
      %v325 = vld [vmem:[%s1 + $0xc0] sm:$0xff]
      %v326 = vld [vmem:[%s1 + $0xc8] sm:$0xff]
      %v327 = vld [vmem:[%s1 + $0xd0] sm:$0xff]
      %v328 = vld [vmem:[%s1 + $0xd8] sm:$0xff]
      %v329 = vld [vmem:[%s1 + $0xe0] sm:$0xff]
      %v330 = vld [vmem:[%s1 + $0xe8] sm:$0xff]
      %v331 = vld [vmem:[%s1 + $0xf0] sm:$0xff]
      %v332 = vld [vmem:[%s1 + $0xf8] sm:$0xff]
      %v333 = vld [vmem:[%s1 + $0x100] sm:$0xff]
      %v334 = vld [vmem:[%s1 + $0x108] sm:$0xff]
      %v335 = vld [vmem:[%s1 + $0x110] sm:$0xff]
      %v336 = vld [vmem:[%s1 + $0x118] sm:$0xff]
      %v337 = vld [vmem:[%s1 + $0x120] sm:$0xff]
      %v338 = vld [vmem:[%s1 + $0x128] sm:$0xff]
      %v339 = vld [vmem:[%s1 + $0x130] sm:$0xff]
      %v340 = vld [vmem:[%s1 + $0x138] sm:$0xff]
      %v341 = vld [vmem:[%s1 + $0x140] sm:$0xff]
      %v342 = vld [vmem:[%s1 + $0x148] sm:$0xff]
      %v343 = vld [vmem:[%s1 + $0x150] sm:$0xff]
      %v344 = vld [vmem:[%s1 + $0x158] sm:$0xff]
      %v345 = vld [vmem:[%s1 + $0x160] sm:$0xff]
      %v346 = vld [vmem:[%s1 + $0x168] sm:$0xff]
      %v347 = vld [vmem:[%s1 + $0x170] sm:$0xff]
      %v348 = vld [vmem:[%s1 + $0x178] sm:$0xff]
      %v349 = vld [vmem:[%s1 + $0x180] sm:$0xff]
      %v350 = vld [vmem:[%s1 + $0x188] sm:$0xff]
      %v351 = vld [vmem:[%s1 + $0x190] sm:$0xff]
      %v352 = vld [vmem:[%s1 + $0x198] sm:$0xff]
      %v353 = vld [vmem:[%s1 + $0x1a0] sm:$0xff]
      %v354 = vld [vmem:[%s1 + $0x1a8] sm:$0xff]
      %v355 = vld [vmem:[%s1 + $0x1b0] sm:$0xff]
      %v356 = vld [vmem:[%s1 + $0x1b8] sm:$0xff]
      %v357 = vld [vmem:[%s1 + $0x1c0] sm:$0xff]
      %v358 = vld [vmem:[%s1 + $0x1c8] sm:$0xff]
      %v359 = vld [vmem:[%s1 + $0x1d0] sm:$0xff]
      %v360 = vld [vmem:[%s1 + $0x1d8] sm:$0xff]
      %v361 = vld [vmem:[%s1 + $0x1e0] sm:$0xff]
      %v362 = vld [vmem:[%s1 + $0x1e8] sm:$0xff]
      %v363 = vld [vmem:[%s1 + $0x1f0] sm:$0xff]
      %v364 = vld [vmem:[%s1 + $0x1f8] sm:$0xff]
      %v381 = vunpack.c.l.b16 %v285
      %v382 = vunpack.c.h.b16 %v285
      %v383 = vunpack.c.l.b16 %v286
      %v384 = vunpack.c.h.b16 %v286
      %v385 = vunpack.c.l.b16 %v287
      %v386 = vunpack.c.h.b16 %v287
      %v387 = vunpack.c.l.b16 %v288
      %v388 = vunpack.c.h.b16 %v288
      %v389 = vunpack.c.l.b16 %v289
      %v390 = vunpack.c.h.b16 %v289
      %v391 = vunpack.c.l.b16 %v290
      %v392 = vunpack.c.h.b16 %v290
      %v393 = vunpack.c.l.b16 %v291
      %v394 = vunpack.c.h.b16 %v291
      %v395 = vunpack.c.l.b16 %v292
      %v396 = vunpack.c.h.b16 %v292
      %v397 = vunpack.c.l.b16 %v293
      %v398 = vunpack.c.h.b16 %v293
      %v399 = vunpack.c.l.b16 %v294
      %v400 = vunpack.c.h.b16 %v294
      %v401 = vunpack.c.l.b16 %v295
      %v402 = vunpack.c.h.b16 %v295
      %v403 = vunpack.c.l.b16 %v296
      %v404 = vunpack.c.h.b16 %v296
      %v405 = vunpack.c.l.b16 %v297
      %v406 = vunpack.c.h.b16 %v297
      %v407 = vunpack.c.l.b16 %v298
      %v408 = vunpack.c.h.b16 %v298
      %v409 = vunpack.c.l.b16 %v299
      %v410 = vunpack.c.h.b16 %v299
      %v411 = vunpack.c.l.b16 %v300
      %v412 = vunpack.c.h.b16 %v300
      %v413 = vpack.c.b16 %v383, %v381
      %v414 = vpack.c.b16 %v384, %v382
      %v415 = vpack.c.b16 %v387, %v385
      %v416 = vpack.c.b16 %v388, %v386
      %v417 = vpack.c.b16 %v391, %v389
      %v418 = vpack.c.b16 %v392, %v390
      %v419 = vpack.c.b16 %v395, %v393
      %v420 = vpack.c.b16 %v396, %v394
      %v421 = vpack.c.b16 %v399, %v397
      %v422 = vpack.c.b16 %v400, %v398
      %v423 = vpack.c.b16 %v403, %v401
      %v424 = vpack.c.b16 %v404, %v402
      %v425 = vpack.c.b16 %v407, %v405
      %v426 = vpack.c.b16 %v408, %v406
      %v427 = vpack.c.b16 %v411, %v409
      %v428 = vpack.c.b16 %v412, %v410
      %v509 = vunpack.c.l.b16 %v301
      %v510 = vunpack.c.h.b16 %v301
      %v511 = vunpack.c.l.b16 %v302
      %v512 = vunpack.c.h.b16 %v302
      %v513 = vunpack.c.l.b16 %v303
      %v514 = vunpack.c.h.b16 %v303
      %v515 = vunpack.c.l.b16 %v304
      %v516 = vunpack.c.h.b16 %v304
      %v517 = vunpack.c.l.b16 %v305
      %v518 = vunpack.c.h.b16 %v305
      %v519 = vunpack.c.l.b16 %v306
      %v520 = vunpack.c.h.b16 %v306
      %v521 = vunpack.c.l.b16 %v307
      %v522 = vunpack.c.h.b16 %v307
      %v523 = vunpack.c.l.b16 %v308
      %v524 = vunpack.c.h.b16 %v308
      %v525 = vunpack.c.l.b16 %v309
      %v526 = vunpack.c.h.b16 %v309
      %v527 = vunpack.c.l.b16 %v310
      %v528 = vunpack.c.h.b16 %v310
      %v529 = vunpack.c.l.b16 %v311
      %v530 = vunpack.c.h.b16 %v311
      %v531 = vunpack.c.l.b16 %v312
      %v532 = vunpack.c.h.b16 %v312
      %v533 = vunpack.c.l.b16 %v313
      %v534 = vunpack.c.h.b16 %v313
      %v535 = vunpack.c.l.b16 %v314
      %v536 = vunpack.c.h.b16 %v314
      %v537 = vunpack.c.l.b16 %v315
      %v538 = vunpack.c.h.b16 %v315
      %v539 = vunpack.c.l.b16 %v316
      %v540 = vunpack.c.h.b16 %v316
      %v541 = vunpack.c.l.b16 %v317
      %v542 = vunpack.c.h.b16 %v317
      %v543 = vunpack.c.l.b16 %v318
      %v544 = vunpack.c.h.b16 %v318
      %v545 = vunpack.c.l.b16 %v319
      %v546 = vunpack.c.h.b16 %v319
      %v547 = vunpack.c.l.b16 %v320
      %v548 = vunpack.c.h.b16 %v320
      %v549 = vunpack.c.l.b16 %v321
      %v550 = vunpack.c.h.b16 %v321
      %v551 = vunpack.c.l.b16 %v322
      %v552 = vunpack.c.h.b16 %v322
      %v553 = vunpack.c.l.b16 %v323
      %v554 = vunpack.c.h.b16 %v323
      %v555 = vunpack.c.l.b16 %v324
      %v556 = vunpack.c.h.b16 %v324
      %v557 = vunpack.c.l.b16 %v325
      %v558 = vunpack.c.h.b16 %v325
      %v559 = vunpack.c.l.b16 %v326
      %v560 = vunpack.c.h.b16 %v326
      %v561 = vunpack.c.l.b16 %v327
      %v562 = vunpack.c.h.b16 %v327
      %v563 = vunpack.c.l.b16 %v328
      %v564 = vunpack.c.h.b16 %v328
      %v565 = vunpack.c.l.b16 %v329
      %v566 = vunpack.c.h.b16 %v329
      %v567 = vunpack.c.l.b16 %v330
      %v568 = vunpack.c.h.b16 %v330
      %v569 = vunpack.c.l.b16 %v331
      %v570 = vunpack.c.h.b16 %v331
      %v571 = vunpack.c.l.b16 %v332
      %v572 = vunpack.c.h.b16 %v332
      %v573 = vunpack.c.l.b16 %v333
      %v574 = vunpack.c.h.b16 %v333
      %v575 = vunpack.c.l.b16 %v334
      %v576 = vunpack.c.h.b16 %v334
      %v577 = vunpack.c.l.b16 %v335
      %v578 = vunpack.c.h.b16 %v335
      %v579 = vunpack.c.l.b16 %v336
      %v580 = vunpack.c.h.b16 %v336
      %v581 = vunpack.c.l.b16 %v337
      %v582 = vunpack.c.h.b16 %v337
      %v583 = vunpack.c.l.b16 %v338
      %v584 = vunpack.c.h.b16 %v338
      %v585 = vunpack.c.l.b16 %v339
      %v586 = vunpack.c.h.b16 %v339
      %v587 = vunpack.c.l.b16 %v340
      %v588 = vunpack.c.h.b16 %v340
      %v589 = vunpack.c.l.b16 %v341
      %v590 = vunpack.c.h.b16 %v341
      %v591 = vunpack.c.l.b16 %v342
      %v592 = vunpack.c.h.b16 %v342
      %v593 = vunpack.c.l.b16 %v343
      %v594 = vunpack.c.h.b16 %v343
      %v595 = vunpack.c.l.b16 %v344
      %v596 = vunpack.c.h.b16 %v344
      %v597 = vunpack.c.l.b16 %v345
      %v598 = vunpack.c.h.b16 %v345
      %v599 = vunpack.c.l.b16 %v346
      %v600 = vunpack.c.h.b16 %v346
      %v601 = vunpack.c.l.b16 %v347
      %v602 = vunpack.c.h.b16 %v347
      %v603 = vunpack.c.l.b16 %v348
      %v604 = vunpack.c.h.b16 %v348
      %v605 = vunpack.c.l.b16 %v349
      %v606 = vunpack.c.h.b16 %v349
      %v607 = vunpack.c.l.b16 %v350
      %v608 = vunpack.c.h.b16 %v350
      %v609 = vunpack.c.l.b16 %v351
      %v610 = vunpack.c.h.b16 %v351
      %v611 = vunpack.c.l.b16 %v352
      %v612 = vunpack.c.h.b16 %v352
      %v613 = vunpack.c.l.b16 %v353
      %v614 = vunpack.c.h.b16 %v353
      %v615 = vunpack.c.l.b16 %v354
      %v616 = vunpack.c.h.b16 %v354
      %v617 = vunpack.c.l.b16 %v355
      %v618 = vunpack.c.h.b16 %v355
      %v619 = vunpack.c.l.b16 %v356
      %v620 = vunpack.c.h.b16 %v356
      %v621 = vunpack.c.l.b16 %v357
      %v622 = vunpack.c.h.b16 %v357
      %v623 = vunpack.c.l.b16 %v358
      %v624 = vunpack.c.h.b16 %v358
      %v625 = vunpack.c.l.b16 %v359
      %v626 = vunpack.c.h.b16 %v359
      %v627 = vunpack.c.l.b16 %v360
      %v628 = vunpack.c.h.b16 %v360
      %v629 = vunpack.c.l.b16 %v361
      %v630 = vunpack.c.h.b16 %v361
      %v631 = vunpack.c.l.b16 %v362
      %v632 = vunpack.c.h.b16 %v362
      %v633 = vunpack.c.l.b16 %v363
      %v634 = vunpack.c.h.b16 %v363
      %v635 = vunpack.c.l.b16 %v364
      %v636 = vunpack.c.h.b16 %v364
      %v637 = vpack.c.b16 %v513, %v509
      %v638 = vpack.c.b16 %v514, %v510
      %v639 = vpack.c.b16 %v515, %v511
      %v640 = vpack.c.b16 %v516, %v512
      %v641 = vpack.c.b16 %v521, %v517
      %v642 = vpack.c.b16 %v522, %v518
      %v643 = vpack.c.b16 %v523, %v519
      %v644 = vpack.c.b16 %v524, %v520
      %v645 = vpack.c.b16 %v529, %v525
      %v646 = vpack.c.b16 %v530, %v526
      %v647 = vpack.c.b16 %v531, %v527
      %v648 = vpack.c.b16 %v532, %v528
      %v649 = vpack.c.b16 %v537, %v533
      %v650 = vpack.c.b16 %v538, %v534
      %v651 = vpack.c.b16 %v539, %v535
      %v652 = vpack.c.b16 %v540, %v536
      %v653 = vpack.c.b16 %v545, %v541
      %v654 = vpack.c.b16 %v546, %v542
      %v655 = vpack.c.b16 %v547, %v543
      %v656 = vpack.c.b16 %v548, %v544
      %v657 = vpack.c.b16 %v553, %v549
      %v658 = vpack.c.b16 %v554, %v550
      %v659 = vpack.c.b16 %v555, %v551
      %v660 = vpack.c.b16 %v556, %v552
      %v661 = vpack.c.b16 %v561, %v557
      %v662 = vpack.c.b16 %v562, %v558
      %v663 = vpack.c.b16 %v563, %v559
      %v664 = vpack.c.b16 %v564, %v560
      %v665 = vpack.c.b16 %v569, %v565
      %v666 = vpack.c.b16 %v570, %v566
      %v667 = vpack.c.b16 %v571, %v567
      %v668 = vpack.c.b16 %v572, %v568
      %v669 = vpack.c.b16 %v577, %v573
      %v670 = vpack.c.b16 %v578, %v574
      %v671 = vpack.c.b16 %v579, %v575
      %v672 = vpack.c.b16 %v580, %v576
      %v673 = vpack.c.b16 %v585, %v581
      %v674 = vpack.c.b16 %v586, %v582
      %v675 = vpack.c.b16 %v587, %v583
      %v676 = vpack.c.b16 %v588, %v584
      %v677 = vpack.c.b16 %v593, %v589
      %v678 = vpack.c.b16 %v594, %v590
      %v679 = vpack.c.b16 %v595, %v591
      %v680 = vpack.c.b16 %v596, %v592
      %v681 = vpack.c.b16 %v601, %v597
      %v682 = vpack.c.b16 %v602, %v598
      %v683 = vpack.c.b16 %v603, %v599
      %v684 = vpack.c.b16 %v604, %v600
      %v685 = vpack.c.b16 %v609, %v605
      %v686 = vpack.c.b16 %v610, %v606
      %v687 = vpack.c.b16 %v611, %v607
      %v688 = vpack.c.b16 %v612, %v608
      %v689 = vpack.c.b16 %v617, %v613
      %v690 = vpack.c.b16 %v618, %v614
      %v691 = vpack.c.b16 %v619, %v615
      %v692 = vpack.c.b16 %v620, %v616
      %v693 = vpack.c.b16 %v625, %v621
      %v694 = vpack.c.b16 %v626, %v622
      %v695 = vpack.c.b16 %v627, %v623
      %v696 = vpack.c.b16 %v628, %v624
      %v697 = vpack.c.b16 %v633, %v629
      %v698 = vpack.c.b16 %v634, %v630
      %v699 = vpack.c.b16 %v635, %v631
      %v700 = vpack.c.b16 %v636, %v632
      %765 = vmatprep.subr.bf16.mxu0 %v638
      %766 = vmatpush1.bf16.msra.mxu0 %v637
      %767 = vmatprep.subr.bf16.mxu0 %v642
      %768 = vmatpush1.bf16.msra.mxu0 %v641
      %769 = vmatprep.subr.bf16.mxu0 %v646
      %770 = vmatpush1.bf16.msra.mxu0 %v645
      %771 = vmatprep.subr.bf16.mxu0 %v650
      %772 = vmatpush1.bf16.msra.mxu0 %v649
      %773 = vmatprep.subr.bf16.mxu0 %v654
      %774 = vmatpush1.bf16.msra.mxu0 %v653
      %775 = vmatprep.subr.bf16.mxu0 %v658
      %776 = vmatpush1.bf16.msra.mxu0 %v657
      %777 = vmatprep.subr.bf16.mxu0 %v662
      %778 = vmatpush1.bf16.msra.mxu0 %v661
      %779 = vmatprep.subr.bf16.mxu0 %v666
      %780 = vmatpush1.bf16.msra.mxu0 %v665
      %781 = vmatprep.subr.bf16.mxu0 %v670
      %782 = vmatpush1.bf16.msra.mxu0 %v669
      %783 = vmatprep.subr.bf16.mxu0 %v674
      %784 = vmatpush1.bf16.msra.mxu0 %v673
      %785 = vmatprep.subr.bf16.mxu0 %v678
      %786 = vmatpush1.bf16.msra.mxu0 %v677
      %787 = vmatprep.subr.bf16.mxu0 %v682
      %788 = vmatpush1.bf16.msra.mxu0 %v681
      %789 = vmatprep.subr.bf16.mxu0 %v686
      %790 = vmatpush1.bf16.msra.mxu0 %v685
      %791 = vmatprep.subr.bf16.mxu0 %v690
      %792 = vmatpush1.bf16.msra.mxu0 %v689
      %793 = vmatprep.subr.bf16.mxu0 %v694
      %794 = vmatpush1.bf16.msra.mxu0 %v693
      %795 = vmatprep.subr.bf16.mxu0 %v698
      %796 = vmatpush1.bf16.msra.mxu0 %v697
      %797 = vmatprep.mubr.bf16.mxu0 %v414
      %798 = vmatmul.mubr.bf16.gmra.mrb[0].mxu0 %v413
      %v799 = vpop.f32.mrb[0].mxu0
      %v800 = vadd.f32 0.0, %v799
      %v801 = vpop.f32.mrb[0].mxu0
      %v802 = vadd.f32 0.0, %v801
      %v803 = vpop.f32.mrb[0].mxu0
      %v804 = vadd.f32 0.0, %v803
      %v805 = vpop.f32.mrb[0].mxu0
      %v806 = vadd.f32 0.0, %v805
      %807 = vmatprep.mubr.bf16.mxu0 %v416
      %808 = vmatmul.mubr.bf16.gmra.mrb[0].mxu0 %v415
      %v809 = vpop.f32.mrb[0].mxu0
      %v810 = vadd.f32 0.0, %v809
      %v811 = vpop.f32.mrb[0].mxu0
      %v812 = vadd.f32 0.0, %v811
      %v813 = vpop.f32.mrb[0].mxu0
      %v814 = vadd.f32 0.0, %v813
      %v815 = vpop.f32.mrb[0].mxu0
      %v816 = vadd.f32 0.0, %v815
      %817 = vmatprep.mubr.bf16.mxu0 %v418
      %818 = vmatmul.mubr.bf16.gmra.mrb[0].mxu0 %v417
      %v819 = vpop.f32.mrb[0].mxu0
      %v820 = vadd.f32 0.0, %v819
      %v821 = vpop.f32.mrb[0].mxu0
      %v822 = vadd.f32 0.0, %v821
      %v823 = vpop.f32.mrb[0].mxu0
      %v824 = vadd.f32 0.0, %v823
      %v825 = vpop.f32.mrb[0].mxu0
      %v826 = vadd.f32 0.0, %v825
      %827 = vmatprep.mubr.bf16.mxu0 %v420
      %828 = vmatmul.mubr.bf16.gmra.mrb[0].mxu0 %v419
      %v829 = vpop.f32.mrb[0].mxu0
      %v830 = vadd.f32 0.0, %v829
      %v831 = vpop.f32.mrb[0].mxu0
      %v832 = vadd.f32 0.0, %v831
      %v833 = vpop.f32.mrb[0].mxu0
      %v834 = vadd.f32 0.0, %v833
      %v835 = vpop.f32.mrb[0].mxu0
      %v836 = vadd.f32 0.0, %v835
      %837 = vmatprep.mubr.bf16.mxu0 %v422
      %838 = vmatmul.mubr.bf16.gmra.mrb[0].mxu0 %v421
      %v839 = vpop.f32.mrb[0].mxu0
      %v840 = vadd.f32 0.0, %v839
      %v841 = vpop.f32.mrb[0].mxu0
      %v842 = vadd.f32 0.0, %v841
      %v843 = vpop.f32.mrb[0].mxu0
      %v844 = vadd.f32 0.0, %v843
      %v845 = vpop.f32.mrb[0].mxu0
      %v846 = vadd.f32 0.0, %v845
      %847 = vmatprep.mubr.bf16.mxu0 %v424
      %848 = vmatmul.mubr.bf16.gmra.mrb[0].mxu0 %v423
      %v849 = vpop.f32.mrb[0].mxu0
      %v850 = vadd.f32 0.0, %v849
      %v851 = vpop.f32.mrb[0].mxu0
      %v852 = vadd.f32 0.0, %v851
      %v853 = vpop.f32.mrb[0].mxu0
      %v854 = vadd.f32 0.0, %v853
      %v855 = vpop.f32.mrb[0].mxu0
      %v856 = vadd.f32 0.0, %v855
      %857 = vmatprep.mubr.bf16.mxu0 %v426
      %858 = vmatmul.mubr.bf16.gmra.mrb[0].mxu0 %v425
      %v859 = vpop.f32.mrb[0].mxu0
      %v860 = vadd.f32 0.0, %v859
      %v861 = vpop.f32.mrb[0].mxu0
      %v862 = vadd.f32 0.0, %v861
      %v863 = vpop.f32.mrb[0].mxu0
      %v864 = vadd.f32 0.0, %v863
      %v865 = vpop.f32.mrb[0].mxu0
      %v866 = vadd.f32 0.0, %v865
      %867 = vmatprep.mubr.bf16.mxu0 %v428
      %868 = vmatmul.mubr.bf16.gmra.mrb[0].mxu0 %v427
      %v869 = vpop.f32.mrb[0].mxu0
      %v870 = vadd.f32 0.0, %v869
      %v871 = vpop.f32.mrb[0].mxu0
      %v872 = vadd.f32 0.0, %v871
      %v873 = vpop.f32.mrb[0].mxu0
      %v874 = vadd.f32 0.0, %v873
      %v875 = vpop.f32.mrb[0].mxu0
      %v876 = vadd.f32 0.0, %v875
      %877 = vdwg.mxu0
      %878 = vmatprep.subr.bf16.mxu0 %v640
      %879 = vmatpush1.bf16.msra.mxu0 %v639
      %880 = vmatprep.subr.bf16.mxu0 %v644
      %881 = vmatpush1.bf16.msra.mxu0 %v643
      %882 = vmatprep.subr.bf16.mxu0 %v648
      %883 = vmatpush1.bf16.msra.mxu0 %v647
      %884 = vmatprep.subr.bf16.mxu0 %v652
      %885 = vmatpush1.bf16.msra.mxu0 %v651
      %886 = vmatprep.subr.bf16.mxu0 %v656
      %887 = vmatpush1.bf16.msra.mxu0 %v655
      %888 = vmatprep.subr.bf16.mxu0 %v660
      %889 = vmatpush1.bf16.msra.mxu0 %v659
      %890 = vmatprep.subr.bf16.mxu0 %v664
      %891 = vmatpush1.bf16.msra.mxu0 %v663
      %892 = vmatprep.subr.bf16.mxu0 %v668
      %893 = vmatpush1.bf16.msra.mxu0 %v667
      %894 = vmatprep.subr.bf16.mxu0 %v672
      %895 = vmatpush1.bf16.msra.mxu0 %v671
      %896 = vmatprep.subr.bf16.mxu0 %v676
      %897 = vmatpush1.bf16.msra.mxu0 %v675
      %898 = vmatprep.subr.bf16.mxu0 %v680
      %899 = vmatpush1.bf16.msra.mxu0 %v679
      %900 = vmatprep.subr.bf16.mxu0 %v684
      %901 = vmatpush1.bf16.msra.mxu0 %v683
      %902 = vmatprep.subr.bf16.mxu0 %v688
      %903 = vmatpush1.bf16.msra.mxu0 %v687
      %904 = vmatprep.subr.bf16.mxu0 %v692
      %905 = vmatpush1.bf16.msra.mxu0 %v691
      %906 = vmatprep.subr.bf16.mxu0 %v696
      %907 = vmatpush1.bf16.msra.mxu0 %v695
      %908 = vmatprep.subr.bf16.mxu0 %v700
      %909 = vmatpush1.bf16.msra.mxu0 %v699
      %910 = vmatprep.mubr.bf16.mxu0 %v414
      %911 = vmatmul.mubr.bf16.gmra.mrb[0].mxu0 %v413
      %v912 = vpop.f32.mrb[0].mxu0
      %v913 = vadd.f32 0.0, %v912
      %v914 = vpop.f32.mrb[0].mxu0
      %v915 = vadd.f32 0.0, %v914
      %v916 = vpop.f32.mrb[0].mxu0
      %v917 = vadd.f32 0.0, %v916
      %v918 = vpop.f32.mrb[0].mxu0
      %v919 = vadd.f32 0.0, %v918
      %920 = vmatprep.mubr.bf16.mxu0 %v416
      %921 = vmatmul.mubr.bf16.gmra.mrb[0].mxu0 %v415
      %v922 = vpop.f32.mrb[0].mxu0
      %v923 = vadd.f32 0.0, %v922
      %v924 = vpop.f32.mrb[0].mxu0
      %v925 = vadd.f32 0.0, %v924
      %v926 = vpop.f32.mrb[0].mxu0
      %v927 = vadd.f32 0.0, %v926
      %v928 = vpop.f32.mrb[0].mxu0
      %v929 = vadd.f32 0.0, %v928
      %930 = vmatprep.mubr.bf16.mxu0 %v418
      %931 = vmatmul.mubr.bf16.gmra.mrb[0].mxu0 %v417
      %v932 = vpop.f32.mrb[0].mxu0
      %v933 = vadd.f32 0.0, %v932
      %v934 = vpop.f32.mrb[0].mxu0
      %v935 = vadd.f32 0.0, %v934
      %v936 = vpop.f32.mrb[0].mxu0
      %v937 = vadd.f32 0.0, %v936
      %v938 = vpop.f32.mrb[0].mxu0
      %v939 = vadd.f32 0.0, %v938
      %940 = vmatprep.mubr.bf16.mxu0 %v420
      %941 = vmatmul.mubr.bf16.gmra.mrb[0].mxu0 %v419
      %v942 = vpop.f32.mrb[0].mxu0
      %v943 = vadd.f32 0.0, %v942
      %v944 = vpop.f32.mrb[0].mxu0
      %v945 = vadd.f32 0.0, %v944
      %v946 = vpop.f32.mrb[0].mxu0
      %v947 = vadd.f32 0.0, %v946
      %v948 = vpop.f32.mrb[0].mxu0
      %v949 = vadd.f32 0.0, %v948
      %950 = vmatprep.mubr.bf16.mxu0 %v422
      %951 = vmatmul.mubr.bf16.gmra.mrb[0].mxu0 %v421
      %v952 = vpop.f32.mrb[0].mxu0
      %v953 = vadd.f32 0.0, %v952
      %v954 = vpop.f32.mrb[0].mxu0
      %v955 = vadd.f32 0.0, %v954
      %v956 = vpop.f32.mrb[0].mxu0
      %v957 = vadd.f32 0.0, %v956
      %v958 = vpop.f32.mrb[0].mxu0
      %v959 = vadd.f32 0.0, %v958
      %960 = vmatprep.mubr.bf16.mxu0 %v424
      %961 = vmatmul.mubr.bf16.gmra.mrb[0].mxu0 %v423
      %v962 = vpop.f32.mrb[0].mxu0
      %v963 = vadd.f32 0.0, %v962
      %v964 = vpop.f32.mrb[0].mxu0
      %v965 = vadd.f32 0.0, %v964
      %v966 = vpop.f32.mrb[0].mxu0
      %v967 = vadd.f32 0.0, %v966
      %v968 = vpop.f32.mrb[0].mxu0
      %v969 = vadd.f32 0.0, %v968
      %970 = vmatprep.mubr.bf16.mxu0 %v426
      %971 = vmatmul.mubr.bf16.gmra.mrb[0].mxu0 %v425
      %v972 = vpop.f32.mrb[0].mxu0
      %v973 = vadd.f32 0.0, %v972
      %v974 = vpop.f32.mrb[0].mxu0
      %v975 = vadd.f32 0.0, %v974
      %v976 = vpop.f32.mrb[0].mxu0
      %v977 = vadd.f32 0.0, %v976
      %v978 = vpop.f32.mrb[0].mxu0
      %v979 = vadd.f32 0.0, %v978
      %980 = vmatprep.mubr.bf16.mxu0 %v428
      %981 = vmatmul.mubr.bf16.gmra.mrb[0].mxu0 %v427
      %v982 = vpop.f32.mrb[0].mxu0
      %v983 = vadd.f32 0.0, %v982
      %v984 = vpop.f32.mrb[0].mxu0
      %v985 = vadd.f32 0.0, %v984
      %v986 = vpop.f32.mrb[0].mxu0
      %v987 = vadd.f32 0.0, %v986
      %v988 = vpop.f32.mrb[0].mxu0
      %v989 = vadd.f32 0.0, %v988
      %990 = vdwg.mxu0
      %v991 = vpack.c.bf16 %v804, %v800
      %v992 = vpack.c.bf16 %v806, %v802
      %v993 = vpack.c.bf16 %v917, %v913
      %v994 = vpack.c.bf16 %v919, %v915
      %v995 = vpack.c.bf16 %v814, %v810
      %v996 = vpack.c.bf16 %v816, %v812
      %v997 = vpack.c.bf16 %v927, %v923
      %v998 = vpack.c.bf16 %v929, %v925
      %v999 = vpack.c.bf16 %v824, %v820
      %v1000 = vpack.c.bf16 %v826, %v822
      %v1001 = vpack.c.bf16 %v937, %v933
      %v1002 = vpack.c.bf16 %v939, %v935
      %v1003 = vpack.c.bf16 %v834, %v830
      %v1004 = vpack.c.bf16 %v836, %v832
      %v1005 = vpack.c.bf16 %v947, %v943
      %v1006 = vpack.c.bf16 %v949, %v945
      %v1007 = vpack.c.bf16 %v844, %v840
      %v1008 = vpack.c.bf16 %v846, %v842
      %v1009 = vpack.c.bf16 %v957, %v953
      %v1010 = vpack.c.bf16 %v959, %v955
      %v1011 = vpack.c.bf16 %v854, %v850
      %v1012 = vpack.c.bf16 %v856, %v852
      %v1013 = vpack.c.bf16 %v967, %v963
      %v1014 = vpack.c.bf16 %v969, %v965
      %v1015 = vpack.c.bf16 %v864, %v860
      %v1016 = vpack.c.bf16 %v866, %v862
      %v1017 = vpack.c.bf16 %v977, %v973
      %v1018 = vpack.c.bf16 %v979, %v975
      %v1019 = vpack.c.bf16 %v874, %v870
      %v1020 = vpack.c.bf16 %v876, %v872
      %v1021 = vpack.c.bf16 %v987, %v983
      %v1022 = vpack.c.bf16 %v989, %v985
      %v1023 = vld [vmem:[%s3] sm:$0xff]
      %v1024 = vld [vmem:[%s3 + $0x8] sm:$0xff]
      %v1025 = vld [vmem:[%s3 + $0x10] sm:$0xff]
      %v1026 = vld [vmem:[%s3 + $0x18] sm:$0xff]
      %v1027 = vld [vmem:[%s3 + $0x20] sm:$0xff]
      %v1028 = vld [vmem:[%s3 + $0x28] sm:$0xff]
      %v1029 = vld [vmem:[%s3 + $0x30] sm:$0xff]
      %v1030 = vld [vmem:[%s3 + $0x38] sm:$0xff]
      %v1031 = vld [vmem:[%s3 + $0x40] sm:$0xff]
      %v1032 = vld [vmem:[%s3 + $0x48] sm:$0xff]
      %v1033 = vld [vmem:[%s3 + $0x50] sm:$0xff]
      %v1034 = vld [vmem:[%s3 + $0x58] sm:$0xff]
      %v1035 = vld [vmem:[%s3 + $0x60] sm:$0xff]
      %v1036 = vld [vmem:[%s3 + $0x68] sm:$0xff]
      %v1037 = vld [vmem:[%s3 + $0x70] sm:$0xff]
      %v1038 = vld [vmem:[%s3 + $0x78] sm:$0xff]
      %v1039 = vld [vmem:[%s3 + $0x80] sm:$0xff]
      %v1040 = vld [vmem:[%s3 + $0x88] sm:$0xff]
      %v1041 = vld [vmem:[%s3 + $0x90] sm:$0xff]
      %v1042 = vld [vmem:[%s3 + $0x98] sm:$0xff]
      %v1043 = vld [vmem:[%s3 + $0xa0] sm:$0xff]
      %v1044 = vld [vmem:[%s3 + $0xa8] sm:$0xff]
      %v1045 = vld [vmem:[%s3 + $0xb0] sm:$0xff]
      %v1046 = vld [vmem:[%s3 + $0xb8] sm:$0xff]
      %v1047 = vld [vmem:[%s3 + $0xc0] sm:$0xff]
      %v1048 = vld [vmem:[%s3 + $0xc8] sm:$0xff]
      %v1049 = vld [vmem:[%s3 + $0xd0] sm:$0xff]
      %v1050 = vld [vmem:[%s3 + $0xd8] sm:$0xff]
      %v1051 = vld [vmem:[%s3 + $0xe0] sm:$0xff]
      %v1052 = vld [vmem:[%s3 + $0xe8] sm:$0xff]
      %v1053 = vld [vmem:[%s3 + $0xf0] sm:$0xff]
      %v1054 = vld [vmem:[%s3 + $0xf8] sm:$0xff]
      %v1055 = vld [vmem:[%s3 + $0x100] sm:$0xff]
      %v1056 = vld [vmem:[%s3 + $0x108] sm:$0xff]
      %v1057 = vld [vmem:[%s3 + $0x110] sm:$0xff]
      %v1058 = vld [vmem:[%s3 + $0x118] sm:$0xff]
      %v1059 = vld [vmem:[%s3 + $0x120] sm:$0xff]
      %v1060 = vld [vmem:[%s3 + $0x128] sm:$0xff]
      %v1061 = vld [vmem:[%s3 + $0x130] sm:$0xff]
      %v1062 = vld [vmem:[%s3 + $0x138] sm:$0xff]
      %v1063 = vld [vmem:[%s3 + $0x140] sm:$0xff]
      %v1064 = vld [vmem:[%s3 + $0x148] sm:$0xff]
      %v1065 = vld [vmem:[%s3 + $0x150] sm:$0xff]
      %v1066 = vld [vmem:[%s3 + $0x158] sm:$0xff]
      %v1067 = vld [vmem:[%s3 + $0x160] sm:$0xff]
      %v1068 = vld [vmem:[%s3 + $0x168] sm:$0xff]
      %v1069 = vld [vmem:[%s3 + $0x170] sm:$0xff]
      %v1070 = vld [vmem:[%s3 + $0x178] sm:$0xff]
      %v1071 = vld [vmem:[%s3 + $0x180] sm:$0xff]
      %v1072 = vld [vmem:[%s3 + $0x188] sm:$0xff]
      %v1073 = vld [vmem:[%s3 + $0x190] sm:$0xff]
      %v1074 = vld [vmem:[%s3 + $0x198] sm:$0xff]
      %v1075 = vld [vmem:[%s3 + $0x1a0] sm:$0xff]
      %v1076 = vld [vmem:[%s3 + $0x1a8] sm:$0xff]
      %v1077 = vld [vmem:[%s3 + $0x1b0] sm:$0xff]
      %v1078 = vld [vmem:[%s3 + $0x1b8] sm:$0xff]
      %v1079 = vld [vmem:[%s3 + $0x1c0] sm:$0xff]
      %v1080 = vld [vmem:[%s3 + $0x1c8] sm:$0xff]
      %v1081 = vld [vmem:[%s3 + $0x1d0] sm:$0xff]
      %v1082 = vld [vmem:[%s3 + $0x1d8] sm:$0xff]
      %v1083 = vld [vmem:[%s3 + $0x1e0] sm:$0xff]
      %v1084 = vld [vmem:[%s3 + $0x1e8] sm:$0xff]
      %v1085 = vld [vmem:[%s3 + $0x1f0] sm:$0xff]
      %v1086 = vld [vmem:[%s3 + $0x1f8] sm:$0xff]
      %v1087 = vld [vmem:[%s3 + $0x200] sm:$0xff]
      %v1088 = vld [vmem:[%s3 + $0x208] sm:$0xff]
      %v1089 = vld [vmem:[%s3 + $0x210] sm:$0xff]
      %v1090 = vld [vmem:[%s3 + $0x218] sm:$0xff]
      %v1091 = vld [vmem:[%s3 + $0x220] sm:$0xff]
      %v1092 = vld [vmem:[%s3 + $0x228] sm:$0xff]
      %v1093 = vld [vmem:[%s3 + $0x230] sm:$0xff]
      %v1094 = vld [vmem:[%s3 + $0x238] sm:$0xff]
      %v1095 = vld [vmem:[%s3 + $0x240] sm:$0xff]
      %v1096 = vld [vmem:[%s3 + $0x248] sm:$0xff]
      %v1097 = vld [vmem:[%s3 + $0x250] sm:$0xff]
      %v1098 = vld [vmem:[%s3 + $0x258] sm:$0xff]
      %v1099 = vld [vmem:[%s3 + $0x260] sm:$0xff]
      %v1100 = vld [vmem:[%s3 + $0x268] sm:$0xff]
      %v1101 = vld [vmem:[%s3 + $0x270] sm:$0xff]
      %v1102 = vld [vmem:[%s3 + $0x278] sm:$0xff]
      %v1103 = vld [vmem:[%s3 + $0x280] sm:$0xff]
      %v1104 = vld [vmem:[%s3 + $0x288] sm:$0xff]
      %v1105 = vld [vmem:[%s3 + $0x290] sm:$0xff]
      %v1106 = vld [vmem:[%s3 + $0x298] sm:$0xff]
      %v1107 = vld [vmem:[%s3 + $0x2a0] sm:$0xff]
      %v1108 = vld [vmem:[%s3 + $0x2a8] sm:$0xff]
      %v1109 = vld [vmem:[%s3 + $0x2b0] sm:$0xff]
      %v1110 = vld [vmem:[%s3 + $0x2b8] sm:$0xff]
      %v1111 = vld [vmem:[%s3 + $0x2c0] sm:$0xff]
      %v1112 = vld [vmem:[%s3 + $0x2c8] sm:$0xff]
      %v1113 = vld [vmem:[%s3 + $0x2d0] sm:$0xff]
      %v1114 = vld [vmem:[%s3 + $0x2d8] sm:$0xff]
      %v1115 = vld [vmem:[%s3 + $0x2e0] sm:$0xff]
      %v1116 = vld [vmem:[%s3 + $0x2e8] sm:$0xff]
      %v1117 = vld [vmem:[%s3 + $0x2f0] sm:$0xff]
      %v1118 = vld [vmem:[%s3 + $0x2f8] sm:$0xff]
      %v1119 = vld [vmem:[%s3 + $0x300] sm:$0xff]
      %v1120 = vld [vmem:[%s3 + $0x308] sm:$0xff]
      %v1121 = vld [vmem:[%s3 + $0x310] sm:$0xff]
      %v1122 = vld [vmem:[%s3 + $0x318] sm:$0xff]
      %v1123 = vld [vmem:[%s3 + $0x320] sm:$0xff]
      %v1124 = vld [vmem:[%s3 + $0x328] sm:$0xff]
      %v1125 = vld [vmem:[%s3 + $0x330] sm:$0xff]
      %v1126 = vld [vmem:[%s3 + $0x338] sm:$0xff]
      %v1127 = vld [vmem:[%s3 + $0x340] sm:$0xff]
      %v1128 = vld [vmem:[%s3 + $0x348] sm:$0xff]
      %v1129 = vld [vmem:[%s3 + $0x350] sm:$0xff]
      %v1130 = vld [vmem:[%s3 + $0x358] sm:$0xff]
      %v1131 = vld [vmem:[%s3 + $0x360] sm:$0xff]
      %v1132 = vld [vmem:[%s3 + $0x368] sm:$0xff]
      %v1133 = vld [vmem:[%s3 + $0x370] sm:$0xff]
      %v1134 = vld [vmem:[%s3 + $0x378] sm:$0xff]
      %v1135 = vld [vmem:[%s3 + $0x380] sm:$0xff]
      %v1136 = vld [vmem:[%s3 + $0x388] sm:$0xff]
      %v1137 = vld [vmem:[%s3 + $0x390] sm:$0xff]
      %v1138 = vld [vmem:[%s3 + $0x398] sm:$0xff]
      %v1139 = vld [vmem:[%s3 + $0x3a0] sm:$0xff]
      %v1140 = vld [vmem:[%s3 + $0x3a8] sm:$0xff]
      %v1141 = vld [vmem:[%s3 + $0x3b0] sm:$0xff]
      %v1142 = vld [vmem:[%s3 + $0x3b8] sm:$0xff]
      %v1143 = vld [vmem:[%s3 + $0x3c0] sm:$0xff]
      %v1144 = vld [vmem:[%s3 + $0x3c8] sm:$0xff]
      %v1145 = vld [vmem:[%s3 + $0x3d0] sm:$0xff]
      %v1146 = vld [vmem:[%s3 + $0x3d8] sm:$0xff]
      %v1147 = vld [vmem:[%s3 + $0x3e0] sm:$0xff]
      %v1148 = vld [vmem:[%s3 + $0x3e8] sm:$0xff]
      %v1149 = vld [vmem:[%s3 + $0x3f0] sm:$0xff]
      %v1150 = vld [vmem:[%s3 + $0x3f8] sm:$0xff]
      %v1151 = vld [vmem:[%s276] sm:$0xff]
      %v1152 = vld [vmem:[%s276 + $0x8] sm:$0xff]
      %v1153 = vld [vmem:[%s276 + $0x10] sm:$0xff]
      %v1154 = vld [vmem:[%s276 + $0x18] sm:$0xff]
      %v1155 = vld [vmem:[%s276 + $0x20] sm:$0xff]
      %v1156 = vld [vmem:[%s276 + $0x28] sm:$0xff]
      %v1157 = vld [vmem:[%s276 + $0x30] sm:$0xff]
      %v1158 = vld [vmem:[%s276 + $0x38] sm:$0xff]
      %v1159 = vld [vmem:[%s276 + $0x40] sm:$0xff]
      %v1160 = vld [vmem:[%s276 + $0x48] sm:$0xff]
      %v1161 = vld [vmem:[%s276 + $0x50] sm:$0xff]
      %v1162 = vld [vmem:[%s276 + $0x58] sm:$0xff]
      %v1163 = vld [vmem:[%s276 + $0x60] sm:$0xff]
      %v1164 = vld [vmem:[%s276 + $0x68] sm:$0xff]
      %v1165 = vld [vmem:[%s276 + $0x70] sm:$0xff]
      %v1166 = vld [vmem:[%s276 + $0x78] sm:$0xff]
      %v1167 = vld [vmem:[%s276 + $0x80] sm:$0xff]
      %v1168 = vld [vmem:[%s276 + $0x88] sm:$0xff]
      %v1169 = vld [vmem:[%s276 + $0x90] sm:$0xff]
      %v1170 = vld [vmem:[%s276 + $0x98] sm:$0xff]
      %v1171 = vld [vmem:[%s276 + $0xa0] sm:$0xff]
      %v1172 = vld [vmem:[%s276 + $0xa8] sm:$0xff]
      %v1173 = vld [vmem:[%s276 + $0xb0] sm:$0xff]
      %v1174 = vld [vmem:[%s276 + $0xb8] sm:$0xff]
      %v1175 = vld [vmem:[%s276 + $0xc0] sm:$0xff]
      %v1176 = vld [vmem:[%s276 + $0xc8] sm:$0xff]
      %v1177 = vld [vmem:[%s276 + $0xd0] sm:$0xff]
      %v1178 = vld [vmem:[%s276 + $0xd8] sm:$0xff]
      %v1179 = vld [vmem:[%s276 + $0xe0] sm:$0xff]
      %v1180 = vld [vmem:[%s276 + $0xe8] sm:$0xff]
      %v1181 = vld [vmem:[%s276 + $0xf0] sm:$0xff]
      %v1182 = vld [vmem:[%s276 + $0xf8] sm:$0xff]
      %v1183 = vld [vmem:[%s4] sm:$0xff]
      %v1184 = vld [vmem:[%s4 + $0x8] sm:$0xff]
      %v1185 = vld [vmem:[%s4 + $0x10] sm:$0xff]
      %v1186 = vld [vmem:[%s4 + $0x18] sm:$0xff]
      %v1187 = vld [vmem:[%s4 + $0x20] sm:$0xff]
      %v1188 = vld [vmem:[%s4 + $0x28] sm:$0xff]
      %v1189 = vld [vmem:[%s4 + $0x30] sm:$0xff]
      %v1190 = vld [vmem:[%s4 + $0x38] sm:$0xff]
      %v1191 = vld [vmem:[%s4 + $0x40] sm:$0xff]
      %v1192 = vld [vmem:[%s4 + $0x48] sm:$0xff]
      %v1193 = vld [vmem:[%s4 + $0x50] sm:$0xff]
      %v1194 = vld [vmem:[%s4 + $0x58] sm:$0xff]
      %v1195 = vld [vmem:[%s4 + $0x60] sm:$0xff]
      %v1196 = vld [vmem:[%s4 + $0x68] sm:$0xff]
      %v1197 = vld [vmem:[%s4 + $0x70] sm:$0xff]
      %v1198 = vld [vmem:[%s4 + $0x78] sm:$0xff]
      %v1199 = vld [vmem:[%s4 + $0x80] sm:$0xff]
      %v1200 = vld [vmem:[%s4 + $0x88] sm:$0xff]
      %v1201 = vld [vmem:[%s4 + $0x90] sm:$0xff]
      %v1202 = vld [vmem:[%s4 + $0x98] sm:$0xff]
      %v1203 = vld [vmem:[%s4 + $0xa0] sm:$0xff]
      %v1204 = vld [vmem:[%s4 + $0xa8] sm:$0xff]
      %v1205 = vld [vmem:[%s4 + $0xb0] sm:$0xff]
      %v1206 = vld [vmem:[%s4 + $0xb8] sm:$0xff]
      %v1207 = vld [vmem:[%s4 + $0xc0] sm:$0xff]
      %v1208 = vld [vmem:[%s4 + $0xc8] sm:$0xff]
      %v1209 = vld [vmem:[%s4 + $0xd0] sm:$0xff]
      %v1210 = vld [vmem:[%s4 + $0xd8] sm:$0xff]
      %v1211 = vld [vmem:[%s4 + $0xe0] sm:$0xff]
      %v1212 = vld [vmem:[%s4 + $0xe8] sm:$0xff]
      %v1213 = vld [vmem:[%s4 + $0xf0] sm:$0xff]
      %v1214 = vld [vmem:[%s4 + $0xf8] sm:$0xff]
      %v1215 = vld [vmem:[%s4 + $0x100] sm:$0xff]
      %v1216 = vld [vmem:[%s4 + $0x108] sm:$0xff]
      %v1217 = vld [vmem:[%s4 + $0x110] sm:$0xff]
      %v1218 = vld [vmem:[%s4 + $0x118] sm:$0xff]
      %v1219 = vld [vmem:[%s4 + $0x120] sm:$0xff]
      %v1220 = vld [vmem:[%s4 + $0x128] sm:$0xff]
      %v1221 = vld [vmem:[%s4 + $0x130] sm:$0xff]
      %v1222 = vld [vmem:[%s4 + $0x138] sm:$0xff]
      %v1223 = vld [vmem:[%s4 + $0x140] sm:$0xff]
      %v1224 = vld [vmem:[%s4 + $0x148] sm:$0xff]
      %v1225 = vld [vmem:[%s4 + $0x150] sm:$0xff]
      %v1226 = vld [vmem:[%s4 + $0x158] sm:$0xff]
      %v1227 = vld [vmem:[%s4 + $0x160] sm:$0xff]
      %v1228 = vld [vmem:[%s4 + $0x168] sm:$0xff]
      %v1229 = vld [vmem:[%s4 + $0x170] sm:$0xff]
      %v1230 = vld [vmem:[%s4 + $0x178] sm:$0xff]
      %v1231 = vld [vmem:[%s4 + $0x180] sm:$0xff]
      %v1232 = vld [vmem:[%s4 + $0x188] sm:$0xff]
      %v1233 = vld [vmem:[%s4 + $0x190] sm:$0xff]
      %v1234 = vld [vmem:[%s4 + $0x198] sm:$0xff]
      %v1235 = vld [vmem:[%s4 + $0x1a0] sm:$0xff]
      %v1236 = vld [vmem:[%s4 + $0x1a8] sm:$0xff]
      %v1237 = vld [vmem:[%s4 + $0x1b0] sm:$0xff]
      %v1238 = vld [vmem:[%s4 + $0x1b8] sm:$0xff]
      %v1239 = vld [vmem:[%s4 + $0x1c0] sm:$0xff]
      %v1240 = vld [vmem:[%s4 + $0x1c8] sm:$0xff]
      %v1241 = vld [vmem:[%s4 + $0x1d0] sm:$0xff]
      %v1242 = vld [vmem:[%s4 + $0x1d8] sm:$0xff]
      %v1243 = vld [vmem:[%s4 + $0x1e0] sm:$0xff]
      %v1244 = vld [vmem:[%s4 + $0x1e8] sm:$0xff]
      %v1245 = vld [vmem:[%s4 + $0x1f0] sm:$0xff]
      %v1246 = vld [vmem:[%s4 + $0x1f8] sm:$0xff]
      %v1247 = vld [vmem:[%s4 + $0x200] sm:$0xff]
      %v1248 = vld [vmem:[%s4 + $0x208] sm:$0xff]
      %v1249 = vld [vmem:[%s4 + $0x210] sm:$0xff]
      %v1250 = vld [vmem:[%s4 + $0x218] sm:$0xff]
      %v1251 = vld [vmem:[%s4 + $0x220] sm:$0xff]
      %v1252 = vld [vmem:[%s4 + $0x228] sm:$0xff]
      %v1253 = vld [vmem:[%s4 + $0x230] sm:$0xff]
      %v1254 = vld [vmem:[%s4 + $0x238] sm:$0xff]
      %v1255 = vld [vmem:[%s4 + $0x240] sm:$0xff]
      %v1256 = vld [vmem:[%s4 + $0x248] sm:$0xff]
      %v1257 = vld [vmem:[%s4 + $0x250] sm:$0xff]
      %v1258 = vld [vmem:[%s4 + $0x258] sm:$0xff]
      %v1259 = vld [vmem:[%s4 + $0x260] sm:$0xff]
      %v1260 = vld [vmem:[%s4 + $0x268] sm:$0xff]
      %v1261 = vld [vmem:[%s4 + $0x270] sm:$0xff]
      %v1262 = vld [vmem:[%s4 + $0x278] sm:$0xff]
      %v1263 = vld [vmem:[%s4 + $0x280] sm:$0xff]
      %v1264 = vld [vmem:[%s4 + $0x288] sm:$0xff]
      %v1265 = vld [vmem:[%s4 + $0x290] sm:$0xff]
      %v1266 = vld [vmem:[%s4 + $0x298] sm:$0xff]
      %v1267 = vld [vmem:[%s4 + $0x2a0] sm:$0xff]
      %v1268 = vld [vmem:[%s4 + $0x2a8] sm:$0xff]
      %v1269 = vld [vmem:[%s4 + $0x2b0] sm:$0xff]
      %v1270 = vld [vmem:[%s4 + $0x2b8] sm:$0xff]
      %v1271 = vld [vmem:[%s4 + $0x2c0] sm:$0xff]
      %v1272 = vld [vmem:[%s4 + $0x2c8] sm:$0xff]
      %v1273 = vld [vmem:[%s4 + $0x2d0] sm:$0xff]
      %v1274 = vld [vmem:[%s4 + $0x2d8] sm:$0xff]
      %v1275 = vld [vmem:[%s4 + $0x2e0] sm:$0xff]
      %v1276 = vld [vmem:[%s4 + $0x2e8] sm:$0xff]
      %v1277 = vld [vmem:[%s4 + $0x2f0] sm:$0xff]
      %v1278 = vld [vmem:[%s4 + $0x2f8] sm:$0xff]
      %v1279 = vld [vmem:[%s4 + $0x300] sm:$0xff]
      %v1280 = vld [vmem:[%s4 + $0x308] sm:$0xff]
      %v1281 = vld [vmem:[%s4 + $0x310] sm:$0xff]
      %v1282 = vld [vmem:[%s4 + $0x318] sm:$0xff]
      %v1283 = vld [vmem:[%s4 + $0x320] sm:$0xff]
      %v1284 = vld [vmem:[%s4 + $0x328] sm:$0xff]
      %v1285 = vld [vmem:[%s4 + $0x330] sm:$0xff]
      %v1286 = vld [vmem:[%s4 + $0x338] sm:$0xff]
      %v1287 = vld [vmem:[%s4 + $0x340] sm:$0xff]
      %v1288 = vld [vmem:[%s4 + $0x348] sm:$0xff]
      %v1289 = vld [vmem:[%s4 + $0x350] sm:$0xff]
      %v1290 = vld [vmem:[%s4 + $0x358] sm:$0xff]
      %v1291 = vld [vmem:[%s4 + $0x360] sm:$0xff]
      %v1292 = vld [vmem:[%s4 + $0x368] sm:$0xff]
      %v1293 = vld [vmem:[%s4 + $0x370] sm:$0xff]
      %v1294 = vld [vmem:[%s4 + $0x378] sm:$0xff]
      %v1295 = vld [vmem:[%s4 + $0x380] sm:$0xff]
      %v1296 = vld [vmem:[%s4 + $0x388] sm:$0xff]
      %v1297 = vld [vmem:[%s4 + $0x390] sm:$0xff]
      %v1298 = vld [vmem:[%s4 + $0x398] sm:$0xff]
      %v1299 = vld [vmem:[%s4 + $0x3a0] sm:$0xff]
      %v1300 = vld [vmem:[%s4 + $0x3a8] sm:$0xff]
      %v1301 = vld [vmem:[%s4 + $0x3b0] sm:$0xff]
      %v1302 = vld [vmem:[%s4 + $0x3b8] sm:$0xff]
      %v1303 = vld [vmem:[%s4 + $0x3c0] sm:$0xff]
      %v1304 = vld [vmem:[%s4 + $0x3c8] sm:$0xff]
      %v1305 = vld [vmem:[%s4 + $0x3d0] sm:$0xff]
      %v1306 = vld [vmem:[%s4 + $0x3d8] sm:$0xff]
      %v1307 = vld [vmem:[%s4 + $0x3e0] sm:$0xff]
      %v1308 = vld [vmem:[%s4 + $0x3e8] sm:$0xff]
      %v1309 = vld [vmem:[%s4 + $0x3f0] sm:$0xff]
      %v1310 = vld [vmem:[%s4 + $0x3f8] sm:$0xff]
      %v1343 = vunpack.c.l.b16 %v1151
      %v1344 = vunpack.c.h.b16 %v1151
      %v1345 = vunpack.c.l.b16 %v1152
      %v1346 = vunpack.c.h.b16 %v1152
      %v1347 = vunpack.c.l.b16 %v1153
      %v1348 = vunpack.c.h.b16 %v1153
      %v1349 = vunpack.c.l.b16 %v1154
      %v1350 = vunpack.c.h.b16 %v1154
      %v1351 = vunpack.c.l.b16 %v1155
      %v1352 = vunpack.c.h.b16 %v1155
      %v1353 = vunpack.c.l.b16 %v1156
      %v1354 = vunpack.c.h.b16 %v1156
      %v1355 = vunpack.c.l.b16 %v1157
      %v1356 = vunpack.c.h.b16 %v1157
      %v1357 = vunpack.c.l.b16 %v1158
      %v1358 = vunpack.c.h.b16 %v1158
      %v1359 = vunpack.c.l.b16 %v1159
      %v1360 = vunpack.c.h.b16 %v1159
      %v1361 = vunpack.c.l.b16 %v1160
      %v1362 = vunpack.c.h.b16 %v1160
      %v1363 = vunpack.c.l.b16 %v1161
      %v1364 = vunpack.c.h.b16 %v1161
      %v1365 = vunpack.c.l.b16 %v1162
      %v1366 = vunpack.c.h.b16 %v1162
      %v1367 = vunpack.c.l.b16 %v1163
      %v1368 = vunpack.c.h.b16 %v1163
      %v1369 = vunpack.c.l.b16 %v1164
      %v1370 = vunpack.c.h.b16 %v1164
      %v1371 = vunpack.c.l.b16 %v1165
      %v1372 = vunpack.c.h.b16 %v1165
      %v1373 = vunpack.c.l.b16 %v1166
      %v1374 = vunpack.c.h.b16 %v1166
      %v1375 = vunpack.c.l.b16 %v1167
      %v1376 = vunpack.c.h.b16 %v1167
      %v1377 = vunpack.c.l.b16 %v1168
      %v1378 = vunpack.c.h.b16 %v1168
      %v1379 = vunpack.c.l.b16 %v1169
      %v1380 = vunpack.c.h.b16 %v1169
      %v1381 = vunpack.c.l.b16 %v1170
      %v1382 = vunpack.c.h.b16 %v1170
      %v1383 = vunpack.c.l.b16 %v1171
      %v1384 = vunpack.c.h.b16 %v1171
      %v1385 = vunpack.c.l.b16 %v1172
      %v1386 = vunpack.c.h.b16 %v1172
      %v1387 = vunpack.c.l.b16 %v1173
      %v1388 = vunpack.c.h.b16 %v1173
      %v1389 = vunpack.c.l.b16 %v1174
      %v1390 = vunpack.c.h.b16 %v1174
      %v1391 = vunpack.c.l.b16 %v1175
      %v1392 = vunpack.c.h.b16 %v1175
      %v1393 = vunpack.c.l.b16 %v1176
      %v1394 = vunpack.c.h.b16 %v1176
      %v1395 = vunpack.c.l.b16 %v1177
      %v1396 = vunpack.c.h.b16 %v1177
      %v1397 = vunpack.c.l.b16 %v1178
      %v1398 = vunpack.c.h.b16 %v1178
      %v1399 = vunpack.c.l.b16 %v1179
      %v1400 = vunpack.c.h.b16 %v1179
      %v1401 = vunpack.c.l.b16 %v1180
      %v1402 = vunpack.c.h.b16 %v1180
      %v1403 = vunpack.c.l.b16 %v1181
      %v1404 = vunpack.c.h.b16 %v1181
      %v1405 = vunpack.c.l.b16 %v1182
      %v1406 = vunpack.c.h.b16 %v1182
      %v1407 = vpack.c.b16 %v1347, %v1343
      %v1408 = vpack.c.b16 %v1348, %v1344
      %v1409 = vpack.c.b16 %v1349, %v1345
      %v1410 = vpack.c.b16 %v1350, %v1346
      %v1411 = vpack.c.b16 %v1355, %v1351
      %v1412 = vpack.c.b16 %v1356, %v1352
      %v1413 = vpack.c.b16 %v1357, %v1353
      %v1414 = vpack.c.b16 %v1358, %v1354
      %v1415 = vpack.c.b16 %v1363, %v1359
      %v1416 = vpack.c.b16 %v1364, %v1360
      %v1417 = vpack.c.b16 %v1365, %v1361
      %v1418 = vpack.c.b16 %v1366, %v1362
      %v1419 = vpack.c.b16 %v1371, %v1367
      %v1420 = vpack.c.b16 %v1372, %v1368
      %v1421 = vpack.c.b16 %v1373, %v1369
      %v1422 = vpack.c.b16 %v1374, %v1370
      %v1423 = vpack.c.b16 %v1379, %v1375
      %v1424 = vpack.c.b16 %v1380, %v1376
      %v1425 = vpack.c.b16 %v1381, %v1377
      %v1426 = vpack.c.b16 %v1382, %v1378
      %v1427 = vpack.c.b16 %v1387, %v1383
      %v1428 = vpack.c.b16 %v1388, %v1384
      %v1429 = vpack.c.b16 %v1389, %v1385
      %v1430 = vpack.c.b16 %v1390, %v1386
      %v1431 = vpack.c.b16 %v1395, %v1391
      %v1432 = vpack.c.b16 %v1396, %v1392
      %v1433 = vpack.c.b16 %v1397, %v1393
      %v1434 = vpack.c.b16 %v1398, %v1394
      %v1435 = vpack.c.b16 %v1403, %v1399
      %v1436 = vpack.c.b16 %v1404, %v1400
      %v1437 = vpack.c.b16 %v1405, %v1401
      %v1438 = vpack.c.b16 %v1406, %v1402
      %v1599 = vunpack.c.l.b16 %v1183
      %v1600 = vunpack.c.h.b16 %v1183
      %v1601 = vunpack.c.l.b16 %v1184
      %v1602 = vunpack.c.h.b16 %v1184
      %v1603 = vunpack.c.l.b16 %v1185
      %v1604 = vunpack.c.h.b16 %v1185
      %v1605 = vunpack.c.l.b16 %v1186
      %v1606 = vunpack.c.h.b16 %v1186
      %v1607 = vunpack.c.l.b16 %v1187
      %v1608 = vunpack.c.h.b16 %v1187
      %v1609 = vunpack.c.l.b16 %v1188
      %v1610 = vunpack.c.h.b16 %v1188
      %v1611 = vunpack.c.l.b16 %v1189
      %v1612 = vunpack.c.h.b16 %v1189
      %v1613 = vunpack.c.l.b16 %v1190
      %v1614 = vunpack.c.h.b16 %v1190
      %v1615 = vunpack.c.l.b16 %v1191
      %v1616 = vunpack.c.h.b16 %v1191
      %v1617 = vunpack.c.l.b16 %v1192
      %v1618 = vunpack.c.h.b16 %v1192
      %v1619 = vunpack.c.l.b16 %v1193
      %v1620 = vunpack.c.h.b16 %v1193
      %v1621 = vunpack.c.l.b16 %v1194
      %v1622 = vunpack.c.h.b16 %v1194
      %v1623 = vunpack.c.l.b16 %v1195
      %v1624 = vunpack.c.h.b16 %v1195
      %v1625 = vunpack.c.l.b16 %v1196
      %v1626 = vunpack.c.h.b16 %v1196
      %v1627 = vunpack.c.l.b16 %v1197
      %v1628 = vunpack.c.h.b16 %v1197
      %v1629 = vunpack.c.l.b16 %v1198
      %v1630 = vunpack.c.h.b16 %v1198
      %v1631 = vunpack.c.l.b16 %v1199
      %v1632 = vunpack.c.h.b16 %v1199
      %v1633 = vunpack.c.l.b16 %v1200
      %v1634 = vunpack.c.h.b16 %v1200
      %v1635 = vunpack.c.l.b16 %v1201
      %v1636 = vunpack.c.h.b16 %v1201
      %v1637 = vunpack.c.l.b16 %v1202
      %v1638 = vunpack.c.h.b16 %v1202
      %v1639 = vunpack.c.l.b16 %v1203
      %v1640 = vunpack.c.h.b16 %v1203
      %v1641 = vunpack.c.l.b16 %v1204
      %v1642 = vunpack.c.h.b16 %v1204
      %v1643 = vunpack.c.l.b16 %v1205
      %v1644 = vunpack.c.h.b16 %v1205
      %v1645 = vunpack.c.l.b16 %v1206
      %v1646 = vunpack.c.h.b16 %v1206
      %v1647 = vunpack.c.l.b16 %v1207
      %v1648 = vunpack.c.h.b16 %v1207
      %v1649 = vunpack.c.l.b16 %v1208
      %v1650 = vunpack.c.h.b16 %v1208
      %v1651 = vunpack.c.l.b16 %v1209
      %v1652 = vunpack.c.h.b16 %v1209
      %v1653 = vunpack.c.l.b16 %v1210
      %v1654 = vunpack.c.h.b16 %v1210
      %v1655 = vunpack.c.l.b16 %v1211
      %v1656 = vunpack.c.h.b16 %v1211
      %v1657 = vunpack.c.l.b16 %v1212
      %v1658 = vunpack.c.h.b16 %v1212
      %v1659 = vunpack.c.l.b16 %v1213
      %v1660 = vunpack.c.h.b16 %v1213
      %v1661 = vunpack.c.l.b16 %v1214
      %v1662 = vunpack.c.h.b16 %v1214
      %v1663 = vunpack.c.l.b16 %v1215
      %v1664 = vunpack.c.h.b16 %v1215
      %v1665 = vunpack.c.l.b16 %v1216
      %v1666 = vunpack.c.h.b16 %v1216
      %v1667 = vunpack.c.l.b16 %v1217
      %v1668 = vunpack.c.h.b16 %v1217
      %v1669 = vunpack.c.l.b16 %v1218
      %v1670 = vunpack.c.h.b16 %v1218
      %v1671 = vunpack.c.l.b16 %v1219
      %v1672 = vunpack.c.h.b16 %v1219
      %v1673 = vunpack.c.l.b16 %v1220
      %v1674 = vunpack.c.h.b16 %v1220
      %v1675 = vunpack.c.l.b16 %v1221
      %v1676 = vunpack.c.h.b16 %v1221
      %v1677 = vunpack.c.l.b16 %v1222
      %v1678 = vunpack.c.h.b16 %v1222
      %v1679 = vunpack.c.l.b16 %v1223
      %v1680 = vunpack.c.h.b16 %v1223
      %v1681 = vunpack.c.l.b16 %v1224
      %v1682 = vunpack.c.h.b16 %v1224
      %v1683 = vunpack.c.l.b16 %v1225
      %v1684 = vunpack.c.h.b16 %v1225
      %v1685 = vunpack.c.l.b16 %v1226
      %v1686 = vunpack.c.h.b16 %v1226
      %v1687 = vunpack.c.l.b16 %v1227
      %v1688 = vunpack.c.h.b16 %v1227
      %v1689 = vunpack.c.l.b16 %v1228
      %v1690 = vunpack.c.h.b16 %v1228
      %v1691 = vunpack.c.l.b16 %v1229
      %v1692 = vunpack.c.h.b16 %v1229
      %v1693 = vunpack.c.l.b16 %v1230
      %v1694 = vunpack.c.h.b16 %v1230
      %v1695 = vunpack.c.l.b16 %v1231
      %v1696 = vunpack.c.h.b16 %v1231
      %v1697 = vunpack.c.l.b16 %v1232
      %v1698 = vunpack.c.h.b16 %v1232
      %v1699 = vunpack.c.l.b16 %v1233
      %v1700 = vunpack.c.h.b16 %v1233
      %v1701 = vunpack.c.l.b16 %v1234
      %v1702 = vunpack.c.h.b16 %v1234
      %v1703 = vunpack.c.l.b16 %v1235
      %v1704 = vunpack.c.h.b16 %v1235
      %v1705 = vunpack.c.l.b16 %v1236
      %v1706 = vunpack.c.h.b16 %v1236
      %v1707 = vunpack.c.l.b16 %v1237
      %v1708 = vunpack.c.h.b16 %v1237
      %v1709 = vunpack.c.l.b16 %v1238
      %v1710 = vunpack.c.h.b16 %v1238
      %v1711 = vunpack.c.l.b16 %v1239
      %v1712 = vunpack.c.h.b16 %v1239
      %v1713 = vunpack.c.l.b16 %v1240
      %v1714 = vunpack.c.h.b16 %v1240
      %v1715 = vunpack.c.l.b16 %v1241
      %v1716 = vunpack.c.h.b16 %v1241
      %v1717 = vunpack.c.l.b16 %v1242
      %v1718 = vunpack.c.h.b16 %v1242
      %v1719 = vunpack.c.l.b16 %v1243
      %v1720 = vunpack.c.h.b16 %v1243
      %v1721 = vunpack.c.l.b16 %v1244
      %v1722 = vunpack.c.h.b16 %v1244
      %v1723 = vunpack.c.l.b16 %v1245
      %v1724 = vunpack.c.h.b16 %v1245
      %v1725 = vunpack.c.l.b16 %v1246
      %v1726 = vunpack.c.h.b16 %v1246
      %v1727 = vunpack.c.l.b16 %v1247
      %v1728 = vunpack.c.h.b16 %v1247
      %v1729 = vunpack.c.l.b16 %v1248
      %v1730 = vunpack.c.h.b16 %v1248
      %v1731 = vunpack.c.l.b16 %v1249
      %v1732 = vunpack.c.h.b16 %v1249
      %v1733 = vunpack.c.l.b16 %v1250
      %v1734 = vunpack.c.h.b16 %v1250
      %v1735 = vunpack.c.l.b16 %v1251
      %v1736 = vunpack.c.h.b16 %v1251
      %v1737 = vunpack.c.l.b16 %v1252
      %v1738 = vunpack.c.h.b16 %v1252
      %v1739 = vunpack.c.l.b16 %v1253
      %v1740 = vunpack.c.h.b16 %v1253
      %v1741 = vunpack.c.l.b16 %v1254
      %v1742 = vunpack.c.h.b16 %v1254
      %v1743 = vunpack.c.l.b16 %v1255
      %v1744 = vunpack.c.h.b16 %v1255
      %v1745 = vunpack.c.l.b16 %v1256
      %v1746 = vunpack.c.h.b16 %v1256
      %v1747 = vunpack.c.l.b16 %v1257
      %v1748 = vunpack.c.h.b16 %v1257
      %v1749 = vunpack.c.l.b16 %v1258
      %v1750 = vunpack.c.h.b16 %v1258
      %v1751 = vunpack.c.l.b16 %v1259
      %v1752 = vunpack.c.h.b16 %v1259
      %v1753 = vunpack.c.l.b16 %v1260
      %v1754 = vunpack.c.h.b16 %v1260
      %v1755 = vunpack.c.l.b16 %v1261
      %v1756 = vunpack.c.h.b16 %v1261
      %v1757 = vunpack.c.l.b16 %v1262
      %v1758 = vunpack.c.h.b16 %v1262
      %v1759 = vunpack.c.l.b16 %v1263
      %v1760 = vunpack.c.h.b16 %v1263
      %v1761 = vunpack.c.l.b16 %v1264
      %v1762 = vunpack.c.h.b16 %v1264
      %v1763 = vunpack.c.l.b16 %v1265
      %v1764 = vunpack.c.h.b16 %v1265
      %v1765 = vunpack.c.l.b16 %v1266
      %v1766 = vunpack.c.h.b16 %v1266
      %v1767 = vunpack.c.l.b16 %v1267
      %v1768 = vunpack.c.h.b16 %v1267
      %v1769 = vunpack.c.l.b16 %v1268
      %v1770 = vunpack.c.h.b16 %v1268
      %v1771 = vunpack.c.l.b16 %v1269
      %v1772 = vunpack.c.h.b16 %v1269
      %v1773 = vunpack.c.l.b16 %v1270
      %v1774 = vunpack.c.h.b16 %v1270
      %v1775 = vunpack.c.l.b16 %v1271
      %v1776 = vunpack.c.h.b16 %v1271
      %v1777 = vunpack.c.l.b16 %v1272
      %v1778 = vunpack.c.h.b16 %v1272
      %v1779 = vunpack.c.l.b16 %v1273
      %v1780 = vunpack.c.h.b16 %v1273
      %v1781 = vunpack.c.l.b16 %v1274
      %v1782 = vunpack.c.h.b16 %v1274
      %v1783 = vunpack.c.l.b16 %v1275
      %v1784 = vunpack.c.h.b16 %v1275
      %v1785 = vunpack.c.l.b16 %v1276
      %v1786 = vunpack.c.h.b16 %v1276
      %v1787 = vunpack.c.l.b16 %v1277
      %v1788 = vunpack.c.h.b16 %v1277
      %v1789 = vunpack.c.l.b16 %v1278
      %v1790 = vunpack.c.h.b16 %v1278
      %v1791 = vunpack.c.l.b16 %v1279
      %v1792 = vunpack.c.h.b16 %v1279
      %v1793 = vunpack.c.l.b16 %v1280
      %v1794 = vunpack.c.h.b16 %v1280
      %v1795 = vunpack.c.l.b16 %v1281
      %v1796 = vunpack.c.h.b16 %v1281
      %v1797 = vunpack.c.l.b16 %v1282
      %v1798 = vunpack.c.h.b16 %v1282
      %v1799 = vunpack.c.l.b16 %v1283
      %v1800 = vunpack.c.h.b16 %v1283
      %v1801 = vunpack.c.l.b16 %v1284
      %v1802 = vunpack.c.h.b16 %v1284
      %v1803 = vunpack.c.l.b16 %v1285
      %v1804 = vunpack.c.h.b16 %v1285
      %v1805 = vunpack.c.l.b16 %v1286
      %v1806 = vunpack.c.h.b16 %v1286
      %v1807 = vunpack.c.l.b16 %v1287
      %v1808 = vunpack.c.h.b16 %v1287
      %v1809 = vunpack.c.l.b16 %v1288
      %v1810 = vunpack.c.h.b16 %v1288
      %v1811 = vunpack.c.l.b16 %v1289
      %v1812 = vunpack.c.h.b16 %v1289
      %v1813 = vunpack.c.l.b16 %v1290
      %v1814 = vunpack.c.h.b16 %v1290
      %v1815 = vunpack.c.l.b16 %v1291
      %v1816 = vunpack.c.h.b16 %v1291
      %v1817 = vunpack.c.l.b16 %v1292
      %v1818 = vunpack.c.h.b16 %v1292
      %v1819 = vunpack.c.l.b16 %v1293
      %v1820 = vunpack.c.h.b16 %v1293
      %v1821 = vunpack.c.l.b16 %v1294
      %v1822 = vunpack.c.h.b16 %v1294
      %v1823 = vunpack.c.l.b16 %v1295
      %v1824 = vunpack.c.h.b16 %v1295
      %v1825 = vunpack.c.l.b16 %v1296
      %v1826 = vunpack.c.h.b16 %v1296
      %v1827 = vunpack.c.l.b16 %v1297
      %v1828 = vunpack.c.h.b16 %v1297
      %v1829 = vunpack.c.l.b16 %v1298
      %v1830 = vunpack.c.h.b16 %v1298
      %v1831 = vunpack.c.l.b16 %v1299
      %v1832 = vunpack.c.h.b16 %v1299
      %v1833 = vunpack.c.l.b16 %v1300
      %v1834 = vunpack.c.h.b16 %v1300
      %v1835 = vunpack.c.l.b16 %v1301
      %v1836 = vunpack.c.h.b16 %v1301
      %v1837 = vunpack.c.l.b16 %v1302
      %v1838 = vunpack.c.h.b16 %v1302
      %v1839 = vunpack.c.l.b16 %v1303
      %v1840 = vunpack.c.h.b16 %v1303
      %v1841 = vunpack.c.l.b16 %v1304
      %v1842 = vunpack.c.h.b16 %v1304
      %v1843 = vunpack.c.l.b16 %v1305
      %v1844 = vunpack.c.h.b16 %v1305
      %v1845 = vunpack.c.l.b16 %v1306
      %v1846 = vunpack.c.h.b16 %v1306
      %v1847 = vunpack.c.l.b16 %v1307
      %v1848 = vunpack.c.h.b16 %v1307
      %v1849 = vunpack.c.l.b16 %v1308
      %v1850 = vunpack.c.h.b16 %v1308
      %v1851 = vunpack.c.l.b16 %v1309
      %v1852 = vunpack.c.h.b16 %v1309
      %v1853 = vunpack.c.l.b16 %v1310
      %v1854 = vunpack.c.h.b16 %v1310
      %v1855 = vpack.c.b16 %v1603, %v1599
      %v1856 = vpack.c.b16 %v1604, %v1600
      %v1857 = vpack.c.b16 %v1605, %v1601
      %v1858 = vpack.c.b16 %v1606, %v1602
      %v1859 = vpack.c.b16 %v1611, %v1607
      %v1860 = vpack.c.b16 %v1612, %v1608
      %v1861 = vpack.c.b16 %v1613, %v1609
      %v1862 = vpack.c.b16 %v1614, %v1610
      %v1863 = vpack.c.b16 %v1619, %v1615
      %v1864 = vpack.c.b16 %v1620, %v1616
      %v1865 = vpack.c.b16 %v1621, %v1617
      %v1866 = vpack.c.b16 %v1622, %v1618
      %v1867 = vpack.c.b16 %v1627, %v1623
      %v1868 = vpack.c.b16 %v1628, %v1624
      %v1869 = vpack.c.b16 %v1629, %v1625
      %v1870 = vpack.c.b16 %v1630, %v1626
      %v1871 = vpack.c.b16 %v1635, %v1631
      %v1872 = vpack.c.b16 %v1636, %v1632
      %v1873 = vpack.c.b16 %v1637, %v1633
      %v1874 = vpack.c.b16 %v1638, %v1634
      %v1875 = vpack.c.b16 %v1643, %v1639
      %v1876 = vpack.c.b16 %v1644, %v1640
      %v1877 = vpack.c.b16 %v1645, %v1641
      %v1878 = vpack.c.b16 %v1646, %v1642
      %v1879 = vpack.c.b16 %v1651, %v1647
      %v1880 = vpack.c.b16 %v1652, %v1648
      %v1881 = vpack.c.b16 %v1653, %v1649
      %v1882 = vpack.c.b16 %v1654, %v1650
      %v1883 = vpack.c.b16 %v1659, %v1655
      %v1884 = vpack.c.b16 %v1660, %v1656
      %v1885 = vpack.c.b16 %v1661, %v1657
      %v1886 = vpack.c.b16 %v1662, %v1658
      %v1887 = vpack.c.b16 %v1667, %v1663
      %v1888 = vpack.c.b16 %v1668, %v1664
      %v1889 = vpack.c.b16 %v1669, %v1665
      %v1890 = vpack.c.b16 %v1670, %v1666
      %v1891 = vpack.c.b16 %v1675, %v1671
      %v1892 = vpack.c.b16 %v1676, %v1672
      %v1893 = vpack.c.b16 %v1677, %v1673
      %v1894 = vpack.c.b16 %v1678, %v1674
      %v1895 = vpack.c.b16 %v1683, %v1679
      %v1896 = vpack.c.b16 %v1684, %v1680
      %v1897 = vpack.c.b16 %v1685, %v1681
      %v1898 = vpack.c.b16 %v1686, %v1682
      %v1899 = vpack.c.b16 %v1691, %v1687
      %v1900 = vpack.c.b16 %v1692, %v1688
      %v1901 = vpack.c.b16 %v1693, %v1689
      %v1902 = vpack.c.b16 %v1694, %v1690
      %v1903 = vpack.c.b16 %v1699, %v1695
      %v1904 = vpack.c.b16 %v1700, %v1696
      %v1905 = vpack.c.b16 %v1701, %v1697
      %v1906 = vpack.c.b16 %v1702, %v1698
      %v1907 = vpack.c.b16 %v1707, %v1703
      %v1908 = vpack.c.b16 %v1708, %v1704
      %v1909 = vpack.c.b16 %v1709, %v1705
      %v1910 = vpack.c.b16 %v1710, %v1706
      %v1911 = vpack.c.b16 %v1715, %v1711
      %v1912 = vpack.c.b16 %v1716, %v1712
      %v1913 = vpack.c.b16 %v1717, %v1713
      %v1914 = vpack.c.b16 %v1718, %v1714
      %v1915 = vpack.c.b16 %v1723, %v1719
      %v1916 = vpack.c.b16 %v1724, %v1720
      %v1917 = vpack.c.b16 %v1725, %v1721
      %v1918 = vpack.c.b16 %v1726, %v1722
      %v1919 = vpack.c.b16 %v1731, %v1727
      %v1920 = vpack.c.b16 %v1732, %v1728
      %v1921 = vpack.c.b16 %v1733, %v1729
      %v1922 = vpack.c.b16 %v1734, %v1730
      %v1923 = vpack.c.b16 %v1739, %v1735
      %v1924 = vpack.c.b16 %v1740, %v1736
      %v1925 = vpack.c.b16 %v1741, %v1737
      %v1926 = vpack.c.b16 %v1742, %v1738
      %v1927 = vpack.c.b16 %v1747, %v1743
      %v1928 = vpack.c.b16 %v1748, %v1744
      %v1929 = vpack.c.b16 %v1749, %v1745
      %v1930 = vpack.c.b16 %v1750, %v1746
      %v1931 = vpack.c.b16 %v1755, %v1751
      %v1932 = vpack.c.b16 %v1756, %v1752
      %v1933 = vpack.c.b16 %v1757, %v1753
      %v1934 = vpack.c.b16 %v1758, %v1754
      %v1935 = vpack.c.b16 %v1763, %v1759
      %v1936 = vpack.c.b16 %v1764, %v1760
      %v1937 = vpack.c.b16 %v1765, %v1761
      %v1938 = vpack.c.b16 %v1766, %v1762
      %v1939 = vpack.c.b16 %v1771, %v1767
      %v1940 = vpack.c.b16 %v1772, %v1768
      %v1941 = vpack.c.b16 %v1773, %v1769
      %v1942 = vpack.c.b16 %v1774, %v1770
      %v1943 = vpack.c.b16 %v1779, %v1775
      %v1944 = vpack.c.b16 %v1780, %v1776
      %v1945 = vpack.c.b16 %v1781, %v1777
      %v1946 = vpack.c.b16 %v1782, %v1778
      %v1947 = vpack.c.b16 %v1787, %v1783
      %v1948 = vpack.c.b16 %v1788, %v1784
      %v1949 = vpack.c.b16 %v1789, %v1785
      %v1950 = vpack.c.b16 %v1790, %v1786
      %v1951 = vpack.c.b16 %v1795, %v1791
      %v1952 = vpack.c.b16 %v1796, %v1792
      %v1953 = vpack.c.b16 %v1797, %v1793
      %v1954 = vpack.c.b16 %v1798, %v1794
      %v1955 = vpack.c.b16 %v1803, %v1799
      %v1956 = vpack.c.b16 %v1804, %v1800
      %v1957 = vpack.c.b16 %v1805, %v1801
      %v1958 = vpack.c.b16 %v1806, %v1802
      %v1959 = vpack.c.b16 %v1811, %v1807
      %v1960 = vpack.c.b16 %v1812, %v1808
      %v1961 = vpack.c.b16 %v1813, %v1809
      %v1962 = vpack.c.b16 %v1814, %v1810
      %v1963 = vpack.c.b16 %v1819, %v1815
      %v1964 = vpack.c.b16 %v1820, %v1816
      %v1965 = vpack.c.b16 %v1821, %v1817
      %v1966 = vpack.c.b16 %v1822, %v1818
      %v1967 = vpack.c.b16 %v1827, %v1823
      %v1968 = vpack.c.b16 %v1828, %v1824
      %v1969 = vpack.c.b16 %v1829, %v1825
      %v1970 = vpack.c.b16 %v1830, %v1826
      %v1971 = vpack.c.b16 %v1835, %v1831
      %v1972 = vpack.c.b16 %v1836, %v1832
      %v1973 = vpack.c.b16 %v1837, %v1833
      %v1974 = vpack.c.b16 %v1838, %v1834
      %v1975 = vpack.c.b16 %v1843, %v1839
      %v1976 = vpack.c.b16 %v1844, %v1840
      %v1977 = vpack.c.b16 %v1845, %v1841
      %v1978 = vpack.c.b16 %v1846, %v1842
      %v1979 = vpack.c.b16 %v1851, %v1847
      %v1980 = vpack.c.b16 %v1852, %v1848
      %v1981 = vpack.c.b16 %v1853, %v1849
      %v1982 = vpack.c.b16 %v1854, %v1850
      %2111 = vmatprep.subr.bf16.mxu0 %v1856
      %2112 = vmatpush1.bf16.msra.mxu0 %v1855
      %2113 = vmatprep.subr.bf16.mxu0 %v1860
      %2114 = vmatpush1.bf16.msra.mxu0 %v1859
      %2115 = vmatprep.subr.bf16.mxu0 %v1864
      %2116 = vmatpush1.bf16.msra.mxu0 %v1863
      %2117 = vmatprep.subr.bf16.mxu0 %v1868
      %2118 = vmatpush1.bf16.msra.mxu0 %v1867
      %2119 = vmatprep.subr.bf16.mxu0 %v1872
      %2120 = vmatpush1.bf16.msra.mxu0 %v1871
      %2121 = vmatprep.subr.bf16.mxu0 %v1876
      %2122 = vmatpush1.bf16.msra.mxu0 %v1875
      %2123 = vmatprep.subr.bf16.mxu0 %v1880
      %2124 = vmatpush1.bf16.msra.mxu0 %v1879
      %2125 = vmatprep.subr.bf16.mxu0 %v1884
      %2126 = vmatpush1.bf16.msra.mxu0 %v1883
      %2127 = vmatprep.subr.bf16.mxu0 %v1888
      %2128 = vmatpush1.bf16.msra.mxu0 %v1887
      %2129 = vmatprep.subr.bf16.mxu0 %v1892
      %2130 = vmatpush1.bf16.msra.mxu0 %v1891
      %2131 = vmatprep.subr.bf16.mxu0 %v1896
      %2132 = vmatpush1.bf16.msra.mxu0 %v1895
      %2133 = vmatprep.subr.bf16.mxu0 %v1900
      %2134 = vmatpush1.bf16.msra.mxu0 %v1899
      %2135 = vmatprep.subr.bf16.mxu0 %v1904
      %2136 = vmatpush1.bf16.msra.mxu0 %v1903
      %2137 = vmatprep.subr.bf16.mxu0 %v1908
      %2138 = vmatpush1.bf16.msra.mxu0 %v1907
      %2139 = vmatprep.subr.bf16.mxu0 %v1912
      %2140 = vmatpush1.bf16.msra.mxu0 %v1911
      %2141 = vmatprep.subr.bf16.mxu0 %v1916
      %2142 = vmatpush1.bf16.msra.mxu0 %v1915
      %2143 = vmatprep.mubr.bf16.mxu0 %v1408
      %2144 = vmatmul.mubr.bf16.gmra.mrb[0].mxu0 %v1407
      %v2145 = vpop.f32.mrb[0].mxu0
      %v2146 = vadd.f32 0.0, %v2145
      %v2147 = vpop.f32.mrb[0].mxu0
      %v2148 = vadd.f32 0.0, %v2147
      %v2149 = vpop.f32.mrb[0].mxu0
      %v2150 = vadd.f32 0.0, %v2149
      %v2151 = vpop.f32.mrb[0].mxu0
      %v2152 = vadd.f32 0.0, %v2151
      %2153 = vmatprep.mubr.bf16.mxu0 %v1412
      %2154 = vmatmul.mubr.bf16.gmra.mrb[0].mxu0 %v1411
      %v2155 = vpop.f32.mrb[0].mxu0
      %v2156 = vadd.f32 0.0, %v2155
      %v2157 = vpop.f32.mrb[0].mxu0
      %v2158 = vadd.f32 0.0, %v2157
      %v2159 = vpop.f32.mrb[0].mxu0
      %v2160 = vadd.f32 0.0, %v2159
      %v2161 = vpop.f32.mrb[0].mxu0
      %v2162 = vadd.f32 0.0, %v2161
      %2163 = vmatprep.mubr.bf16.mxu0 %v1416
      %2164 = vmatmul.mubr.bf16.gmra.mrb[0].mxu0 %v1415
      %v2165 = vpop.f32.mrb[0].mxu0
      %v2166 = vadd.f32 0.0, %v2165
      %v2167 = vpop.f32.mrb[0].mxu0
      %v2168 = vadd.f32 0.0, %v2167
      %v2169 = vpop.f32.mrb[0].mxu0
      %v2170 = vadd.f32 0.0, %v2169
      %v2171 = vpop.f32.mrb[0].mxu0
      %v2172 = vadd.f32 0.0, %v2171
      %2173 = vmatprep.mubr.bf16.mxu0 %v1420
      %2174 = vmatmul.mubr.bf16.gmra.mrb[0].mxu0 %v1419
      %v2175 = vpop.f32.mrb[0].mxu0
      %v2176 = vadd.f32 0.0, %v2175
      %v2177 = vpop.f32.mrb[0].mxu0
      %v2178 = vadd.f32 0.0, %v2177
      %v2179 = vpop.f32.mrb[0].mxu0
      %v2180 = vadd.f32 0.0, %v2179
      %v2181 = vpop.f32.mrb[0].mxu0
      %v2182 = vadd.f32 0.0, %v2181
      %2183 = vmatprep.mubr.bf16.mxu0 %v1424
      %2184 = vmatmul.mubr.bf16.gmra.mrb[0].mxu0 %v1423
      %v2185 = vpop.f32.mrb[0].mxu0
      %v2186 = vadd.f32 0.0, %v2185
      %v2187 = vpop.f32.mrb[0].mxu0
      %v2188 = vadd.f32 0.0, %v2187
      %v2189 = vpop.f32.mrb[0].mxu0
      %v2190 = vadd.f32 0.0, %v2189
      %v2191 = vpop.f32.mrb[0].mxu0
      %v2192 = vadd.f32 0.0, %v2191
      %2193 = vmatprep.mubr.bf16.mxu0 %v1428
      %2194 = vmatmul.mubr.bf16.gmra.mrb[0].mxu0 %v1427
      %v2195 = vpop.f32.mrb[0].mxu0
      %v2196 = vadd.f32 0.0, %v2195
      %v2197 = vpop.f32.mrb[0].mxu0
      %v2198 = vadd.f32 0.0, %v2197
      %v2199 = vpop.f32.mrb[0].mxu0
      %v2200 = vadd.f32 0.0, %v2199
      %v2201 = vpop.f32.mrb[0].mxu0
      %v2202 = vadd.f32 0.0, %v2201
      %2203 = vmatprep.mubr.bf16.mxu0 %v1432
      %2204 = vmatmul.mubr.bf16.gmra.mrb[0].mxu0 %v1431
      %v2205 = vpop.f32.mrb[0].mxu0
      %v2206 = vadd.f32 0.0, %v2205
      %v2207 = vpop.f32.mrb[0].mxu0
      %v2208 = vadd.f32 0.0, %v2207
      %v2209 = vpop.f32.mrb[0].mxu0
      %v2210 = vadd.f32 0.0, %v2209
      %v2211 = vpop.f32.mrb[0].mxu0
      %v2212 = vadd.f32 0.0, %v2211
      %2213 = vmatprep.mubr.bf16.mxu0 %v1436
      %2214 = vmatmul.mubr.bf16.gmra.mrb[0].mxu0 %v1435
      %v2215 = vpop.f32.mrb[0].mxu0
      %v2216 = vadd.f32 0.0, %v2215
      %v2217 = vpop.f32.mrb[0].mxu0
      %v2218 = vadd.f32 0.0, %v2217
      %v2219 = vpop.f32.mrb[0].mxu0
      %v2220 = vadd.f32 0.0, %v2219
      %v2221 = vpop.f32.mrb[0].mxu0
      %v2222 = vadd.f32 0.0, %v2221
      %2223 = vdwg.mxu0
      %2224 = vmatprep.subr.bf16.mxu0 %v1920
      %2225 = vmatpush1.bf16.msra.mxu0 %v1919
      %2226 = vmatprep.subr.bf16.mxu0 %v1924
      %2227 = vmatpush1.bf16.msra.mxu0 %v1923
      %2228 = vmatprep.subr.bf16.mxu0 %v1928
      %2229 = vmatpush1.bf16.msra.mxu0 %v1927
      %2230 = vmatprep.subr.bf16.mxu0 %v1932
      %2231 = vmatpush1.bf16.msra.mxu0 %v1931
      %2232 = vmatprep.subr.bf16.mxu0 %v1936
      %2233 = vmatpush1.bf16.msra.mxu0 %v1935
      %2234 = vmatprep.subr.bf16.mxu0 %v1940
      %2235 = vmatpush1.bf16.msra.mxu0 %v1939
      %2236 = vmatprep.subr.bf16.mxu0 %v1944
      %2237 = vmatpush1.bf16.msra.mxu0 %v1943
      %2238 = vmatprep.subr.bf16.mxu0 %v1948
      %2239 = vmatpush1.bf16.msra.mxu0 %v1947
      %2240 = vmatprep.subr.bf16.mxu0 %v1952
      %2241 = vmatpush1.bf16.msra.mxu0 %v1951
      %2242 = vmatprep.subr.bf16.mxu0 %v1956
      %2243 = vmatpush1.bf16.msra.mxu0 %v1955
      %2244 = vmatprep.subr.bf16.mxu0 %v1960
      %2245 = vmatpush1.bf16.msra.mxu0 %v1959
      %2246 = vmatprep.subr.bf16.mxu0 %v1964
      %2247 = vmatpush1.bf16.msra.mxu0 %v1963
      %2248 = vmatprep.subr.bf16.mxu0 %v1968
      %2249 = vmatpush1.bf16.msra.mxu0 %v1967
      %2250 = vmatprep.subr.bf16.mxu0 %v1972
      %2251 = vmatpush1.bf16.msra.mxu0 %v1971
      %2252 = vmatprep.subr.bf16.mxu0 %v1976
      %2253 = vmatpush1.bf16.msra.mxu0 %v1975
      %2254 = vmatprep.subr.bf16.mxu0 %v1980
      %2255 = vmatpush1.bf16.msra.mxu0 %v1979
      %2256 = vmatprep.mubr.bf16.mxu0 %v1410
      %2257 = vmatmul.mubr.bf16.gmra.mrb[0].mxu0 %v1409
      %v2258 = vpop.f32.mrb[0].mxu0
      %v2259 = vadd.f32 %v2146, %v2258
      %v2260 = vpop.f32.mrb[0].mxu0
      %v2261 = vadd.f32 %v2148, %v2260
      %v2262 = vpop.f32.mrb[0].mxu0
      %v2263 = vadd.f32 %v2150, %v2262
      %v2264 = vpop.f32.mrb[0].mxu0
      %v2265 = vadd.f32 %v2152, %v2264
      %2266 = vmatprep.mubr.bf16.mxu0 %v1414
      %2267 = vmatmul.mubr.bf16.gmra.mrb[0].mxu0 %v1413
      %v2268 = vpop.f32.mrb[0].mxu0
      %v2269 = vadd.f32 %v2156, %v2268
      %v2270 = vpop.f32.mrb[0].mxu0
      %v2271 = vadd.f32 %v2158, %v2270
      %v2272 = vpop.f32.mrb[0].mxu0
      %v2273 = vadd.f32 %v2160, %v2272
      %v2274 = vpop.f32.mrb[0].mxu0
      %v2275 = vadd.f32 %v2162, %v2274
      %2276 = vmatprep.mubr.bf16.mxu0 %v1418
      %2277 = vmatmul.mubr.bf16.gmra.mrb[0].mxu0 %v1417
      %v2278 = vpop.f32.mrb[0].mxu0
      %v2279 = vadd.f32 %v2166, %v2278
      %v2280 = vpop.f32.mrb[0].mxu0
      %v2281 = vadd.f32 %v2168, %v2280
      %v2282 = vpop.f32.mrb[0].mxu0
      %v2283 = vadd.f32 %v2170, %v2282
      %v2284 = vpop.f32.mrb[0].mxu0
      %v2285 = vadd.f32 %v2172, %v2284
      %2286 = vmatprep.mubr.bf16.mxu0 %v1422
      %2287 = vmatmul.mubr.bf16.gmra.mrb[0].mxu0 %v1421
      %v2288 = vpop.f32.mrb[0].mxu0
      %v2289 = vadd.f32 %v2176, %v2288
      %v2290 = vpop.f32.mrb[0].mxu0
      %v2291 = vadd.f32 %v2178, %v2290
      %v2292 = vpop.f32.mrb[0].mxu0
      %v2293 = vadd.f32 %v2180, %v2292
      %v2294 = vpop.f32.mrb[0].mxu0
      %v2295 = vadd.f32 %v2182, %v2294
      %2296 = vmatprep.mubr.bf16.mxu0 %v1426
      %2297 = vmatmul.mubr.bf16.gmra.mrb[0].mxu0 %v1425
      %v2298 = vpop.f32.mrb[0].mxu0
      %v2299 = vadd.f32 %v2186, %v2298
      %v2300 = vpop.f32.mrb[0].mxu0
      %v2301 = vadd.f32 %v2188, %v2300
      %v2302 = vpop.f32.mrb[0].mxu0
      %v2303 = vadd.f32 %v2190, %v2302
      %v2304 = vpop.f32.mrb[0].mxu0
      %v2305 = vadd.f32 %v2192, %v2304
      %2306 = vmatprep.mubr.bf16.mxu0 %v1430
      %2307 = vmatmul.mubr.bf16.gmra.mrb[0].mxu0 %v1429
      %v2308 = vpop.f32.mrb[0].mxu0
      %v2309 = vadd.f32 %v2196, %v2308
      %v2310 = vpop.f32.mrb[0].mxu0
      %v2311 = vadd.f32 %v2198, %v2310
      %v2312 = vpop.f32.mrb[0].mxu0
      %v2313 = vadd.f32 %v2200, %v2312
      %v2314 = vpop.f32.mrb[0].mxu0
      %v2315 = vadd.f32 %v2202, %v2314
      %2316 = vmatprep.mubr.bf16.mxu0 %v1434
      %2317 = vmatmul.mubr.bf16.gmra.mrb[0].mxu0 %v1433
      %v2318 = vpop.f32.mrb[0].mxu0
      %v2319 = vadd.f32 %v2206, %v2318
      %v2320 = vpop.f32.mrb[0].mxu0
      %v2321 = vadd.f32 %v2208, %v2320
      %v2322 = vpop.f32.mrb[0].mxu0
      %v2323 = vadd.f32 %v2210, %v2322
      %v2324 = vpop.f32.mrb[0].mxu0
      %v2325 = vadd.f32 %v2212, %v2324
      %2326 = vmatprep.mubr.bf16.mxu0 %v1438
      %2327 = vmatmul.mubr.bf16.gmra.mrb[0].mxu0 %v1437
      %v2328 = vpop.f32.mrb[0].mxu0
      %v2329 = vadd.f32 %v2216, %v2328
      %v2330 = vpop.f32.mrb[0].mxu0
      %v2331 = vadd.f32 %v2218, %v2330
      %v2332 = vpop.f32.mrb[0].mxu0
      %v2333 = vadd.f32 %v2220, %v2332
      %v2334 = vpop.f32.mrb[0].mxu0
      %v2335 = vadd.f32 %v2222, %v2334
      %2336 = vdwg.mxu0
      %2337 = vmatprep.subr.bf16.mxu0 %v1858
      %2338 = vmatpush1.bf16.msra.mxu0 %v1857
      %2339 = vmatprep.subr.bf16.mxu0 %v1862
      %2340 = vmatpush1.bf16.msra.mxu0 %v1861
      %2341 = vmatprep.subr.bf16.mxu0 %v1866
      %2342 = vmatpush1.bf16.msra.mxu0 %v1865
      %2343 = vmatprep.subr.bf16.mxu0 %v1870
      %2344 = vmatpush1.bf16.msra.mxu0 %v1869
      %2345 = vmatprep.subr.bf16.mxu0 %v1874
      %2346 = vmatpush1.bf16.msra.mxu0 %v1873
      %2347 = vmatprep.subr.bf16.mxu0 %v1878
      %2348 = vmatpush1.bf16.msra.mxu0 %v1877
      %2349 = vmatprep.subr.bf16.mxu0 %v1882
      %2350 = vmatpush1.bf16.msra.mxu0 %v1881
      %2351 = vmatprep.subr.bf16.mxu0 %v1886
      %2352 = vmatpush1.bf16.msra.mxu0 %v1885
      %2353 = vmatprep.subr.bf16.mxu0 %v1890
      %2354 = vmatpush1.bf16.msra.mxu0 %v1889
      %2355 = vmatprep.subr.bf16.mxu0 %v1894
      %2356 = vmatpush1.bf16.msra.mxu0 %v1893
      %2357 = vmatprep.subr.bf16.mxu0 %v1898
      %2358 = vmatpush1.bf16.msra.mxu0 %v1897
      %2359 = vmatprep.subr.bf16.mxu0 %v1902
      %2360 = vmatpush1.bf16.msra.mxu0 %v1901
      %2361 = vmatprep.subr.bf16.mxu0 %v1906
      %2362 = vmatpush1.bf16.msra.mxu0 %v1905
      %2363 = vmatprep.subr.bf16.mxu0 %v1910
      %2364 = vmatpush1.bf16.msra.mxu0 %v1909
      %2365 = vmatprep.subr.bf16.mxu0 %v1914
      %2366 = vmatpush1.bf16.msra.mxu0 %v1913
      %2367 = vmatprep.subr.bf16.mxu0 %v1918
      %2368 = vmatpush1.bf16.msra.mxu0 %v1917
      %2369 = vmatprep.mubr.bf16.mxu0 %v1408
      %2370 = vmatmul.mubr.bf16.gmra.mrb[0].mxu0 %v1407
      %v2371 = vpop.f32.mrb[0].mxu0
      %v2372 = vadd.f32 0.0, %v2371
      %v2373 = vpop.f32.mrb[0].mxu0
      %v2374 = vadd.f32 0.0, %v2373
      %v2375 = vpop.f32.mrb[0].mxu0
      %v2376 = vadd.f32 0.0, %v2375
      %v2377 = vpop.f32.mrb[0].mxu0
      %v2378 = vadd.f32 0.0, %v2377
      %2379 = vmatprep.mubr.bf16.mxu0 %v1412
      %2380 = vmatmul.mubr.bf16.gmra.mrb[0].mxu0 %v1411
      %v2381 = vpop.f32.mrb[0].mxu0
      %v2382 = vadd.f32 0.0, %v2381
      %v2383 = vpop.f32.mrb[0].mxu0
      %v2384 = vadd.f32 0.0, %v2383
      %v2385 = vpop.f32.mrb[0].mxu0
      %v2386 = vadd.f32 0.0, %v2385
      %v2387 = vpop.f32.mrb[0].mxu0
      %v2388 = vadd.f32 0.0, %v2387
      %2389 = vmatprep.mubr.bf16.mxu0 %v1416
      %2390 = vmatmul.mubr.bf16.gmra.mrb[0].mxu0 %v1415
      %v2391 = vpop.f32.mrb[0].mxu0
      %v2392 = vadd.f32 0.0, %v2391
      %v2393 = vpop.f32.mrb[0].mxu0
      %v2394 = vadd.f32 0.0, %v2393
      %v2395 = vpop.f32.mrb[0].mxu0
      %v2396 = vadd.f32 0.0, %v2395
      %v2397 = vpop.f32.mrb[0].mxu0
      %v2398 = vadd.f32 0.0, %v2397
      %2399 = vmatprep.mubr.bf16.mxu0 %v1420
      %2400 = vmatmul.mubr.bf16.gmra.mrb[0].mxu0 %v1419
      %v2401 = vpop.f32.mrb[0].mxu0
      %v2402 = vadd.f32 0.0, %v2401
      %v2403 = vpop.f32.mrb[0].mxu0
      %v2404 = vadd.f32 0.0, %v2403
      %v2405 = vpop.f32.mrb[0].mxu0
      %v2406 = vadd.f32 0.0, %v2405
      %v2407 = vpop.f32.mrb[0].mxu0
      %v2408 = vadd.f32 0.0, %v2407
      %2409 = vmatprep.mubr.bf16.mxu0 %v1424
      %2410 = vmatmul.mubr.bf16.gmra.mrb[0].mxu0 %v1423
      %v2411 = vpop.f32.mrb[0].mxu0
      %v2412 = vadd.f32 0.0, %v2411
      %v2413 = vpop.f32.mrb[0].mxu0
      %v2414 = vadd.f32 0.0, %v2413
      %v2415 = vpop.f32.mrb[0].mxu0
      %v2416 = vadd.f32 0.0, %v2415
      %v2417 = vpop.f32.mrb[0].mxu0
      %v2418 = vadd.f32 0.0, %v2417
      %2419 = vmatprep.mubr.bf16.mxu0 %v1428
      %2420 = vmatmul.mubr.bf16.gmra.mrb[0].mxu0 %v1427
      %v2421 = vpop.f32.mrb[0].mxu0
      %v2422 = vadd.f32 0.0, %v2421
      %v2423 = vpop.f32.mrb[0].mxu0
      %v2424 = vadd.f32 0.0, %v2423
      %v2425 = vpop.f32.mrb[0].mxu0
      %v2426 = vadd.f32 0.0, %v2425
      %v2427 = vpop.f32.mrb[0].mxu0
      %v2428 = vadd.f32 0.0, %v2427
      %2429 = vmatprep.mubr.bf16.mxu0 %v1432
      %2430 = vmatmul.mubr.bf16.gmra.mrb[0].mxu0 %v1431
      %v2431 = vpop.f32.mrb[0].mxu0
      %v2432 = vadd.f32 0.0, %v2431
      %v2433 = vpop.f32.mrb[0].mxu0
      %v2434 = vadd.f32 0.0, %v2433
      %v2435 = vpop.f32.mrb[0].mxu0
      %v2436 = vadd.f32 0.0, %v2435
      %v2437 = vpop.f32.mrb[0].mxu0
      %v2438 = vadd.f32 0.0, %v2437
      %2439 = vmatprep.mubr.bf16.mxu0 %v1436
      %2440 = vmatmul.mubr.bf16.gmra.mrb[0].mxu0 %v1435
      %v2441 = vpop.f32.mrb[0].mxu0
      %v2442 = vadd.f32 0.0, %v2441
      %v2443 = vpop.f32.mrb[0].mxu0
      %v2444 = vadd.f32 0.0, %v2443
      %v2445 = vpop.f32.mrb[0].mxu0
      %v2446 = vadd.f32 0.0, %v2445
      %v2447 = vpop.f32.mrb[0].mxu0
      %v2448 = vadd.f32 0.0, %v2447
      %2449 = vdwg.mxu0
      %2450 = vmatprep.subr.bf16.mxu0 %v1922
      %2451 = vmatpush1.bf16.msra.mxu0 %v1921
      %2452 = vmatprep.subr.bf16.mxu0 %v1926
      %2453 = vmatpush1.bf16.msra.mxu0 %v1925
      %2454 = vmatprep.subr.bf16.mxu0 %v1930
      %2455 = vmatpush1.bf16.msra.mxu0 %v1929
      %2456 = vmatprep.subr.bf16.mxu0 %v1934
      %2457 = vmatpush1.bf16.msra.mxu0 %v1933
      %2458 = vmatprep.subr.bf16.mxu0 %v1938
      %2459 = vmatpush1.bf16.msra.mxu0 %v1937
      %2460 = vmatprep.subr.bf16.mxu0 %v1942
      %2461 = vmatpush1.bf16.msra.mxu0 %v1941
      %2462 = vmatprep.subr.bf16.mxu0 %v1946
      %2463 = vmatpush1.bf16.msra.mxu0 %v1945
      %2464 = vmatprep.subr.bf16.mxu0 %v1950
      %2465 = vmatpush1.bf16.msra.mxu0 %v1949
      %2466 = vmatprep.subr.bf16.mxu0 %v1954
      %2467 = vmatpush1.bf16.msra.mxu0 %v1953
      %2468 = vmatprep.subr.bf16.mxu0 %v1958
      %2469 = vmatpush1.bf16.msra.mxu0 %v1957
      %2470 = vmatprep.subr.bf16.mxu0 %v1962
      %2471 = vmatpush1.bf16.msra.mxu0 %v1961
      %2472 = vmatprep.subr.bf16.mxu0 %v1966
      %2473 = vmatpush1.bf16.msra.mxu0 %v1965
      %2474 = vmatprep.subr.bf16.mxu0 %v1970
      %2475 = vmatpush1.bf16.msra.mxu0 %v1969
      %2476 = vmatprep.subr.bf16.mxu0 %v1974
      %2477 = vmatpush1.bf16.msra.mxu0 %v1973
      %2478 = vmatprep.subr.bf16.mxu0 %v1978
      %2479 = vmatpush1.bf16.msra.mxu0 %v1977
      %2480 = vmatprep.subr.bf16.mxu0 %v1982
      %2481 = vmatpush1.bf16.msra.mxu0 %v1981
      %2482 = vmatprep.mubr.bf16.mxu0 %v1410
      %2483 = vmatmul.mubr.bf16.gmra.mrb[0].mxu0 %v1409
      %v2484 = vpop.f32.mrb[0].mxu0
      %v2485 = vadd.f32 %v2372, %v2484
      %v2486 = vpop.f32.mrb[0].mxu0
      %v2487 = vadd.f32 %v2374, %v2486
      %v2488 = vpop.f32.mrb[0].mxu0
      %v2489 = vadd.f32 %v2376, %v2488
      %v2490 = vpop.f32.mrb[0].mxu0
      %v2491 = vadd.f32 %v2378, %v2490
      %2492 = vmatprep.mubr.bf16.mxu0 %v1414
      %2493 = vmatmul.mubr.bf16.gmra.mrb[0].mxu0 %v1413
      %v2494 = vpop.f32.mrb[0].mxu0
      %v2495 = vadd.f32 %v2382, %v2494
      %v2496 = vpop.f32.mrb[0].mxu0
      %v2497 = vadd.f32 %v2384, %v2496
      %v2498 = vpop.f32.mrb[0].mxu0
      %v2499 = vadd.f32 %v2386, %v2498
      %v2500 = vpop.f32.mrb[0].mxu0
      %v2501 = vadd.f32 %v2388, %v2500
      %2502 = vmatprep.mubr.bf16.mxu0 %v1418
      %2503 = vmatmul.mubr.bf16.gmra.mrb[0].mxu0 %v1417
      %v2504 = vpop.f32.mrb[0].mxu0
      %v2505 = vadd.f32 %v2392, %v2504
      %v2506 = vpop.f32.mrb[0].mxu0
      %v2507 = vadd.f32 %v2394, %v2506
      %v2508 = vpop.f32.mrb[0].mxu0
      %v2509 = vadd.f32 %v2396, %v2508
      %v2510 = vpop.f32.mrb[0].mxu0
      %v2511 = vadd.f32 %v2398, %v2510
      %2512 = vmatprep.mubr.bf16.mxu0 %v1422
      %2513 = vmatmul.mubr.bf16.gmra.mrb[0].mxu0 %v1421
      %v2514 = vpop.f32.mrb[0].mxu0
      %v2515 = vadd.f32 %v2402, %v2514
      %v2516 = vpop.f32.mrb[0].mxu0
      %v2517 = vadd.f32 %v2404, %v2516
      %v2518 = vpop.f32.mrb[0].mxu0
      %v2519 = vadd.f32 %v2406, %v2518
      %v2520 = vpop.f32.mrb[0].mxu0
      %v2521 = vadd.f32 %v2408, %v2520
      %2522 = vmatprep.mubr.bf16.mxu0 %v1426
      %2523 = vmatmul.mubr.bf16.gmra.mrb[0].mxu0 %v1425
      %v2524 = vpop.f32.mrb[0].mxu0
      %v2525 = vadd.f32 %v2412, %v2524
      %v2526 = vpop.f32.mrb[0].mxu0
      %v2527 = vadd.f32 %v2414, %v2526
      %v2528 = vpop.f32.mrb[0].mxu0
      %v2529 = vadd.f32 %v2416, %v2528
      %v2530 = vpop.f32.mrb[0].mxu0
      %v2531 = vadd.f32 %v2418, %v2530
      %2532 = vmatprep.mubr.bf16.mxu0 %v1430
      %2533 = vmatmul.mubr.bf16.gmra.mrb[0].mxu0 %v1429
      %v2534 = vpop.f32.mrb[0].mxu0
      %v2535 = vadd.f32 %v2422, %v2534
      %v2536 = vpop.f32.mrb[0].mxu0
      %v2537 = vadd.f32 %v2424, %v2536
      %v2538 = vpop.f32.mrb[0].mxu0
      %v2539 = vadd.f32 %v2426, %v2538
      %v2540 = vpop.f32.mrb[0].mxu0
      %v2541 = vadd.f32 %v2428, %v2540
      %2542 = vmatprep.mubr.bf16.mxu0 %v1434
      %2543 = vmatmul.mubr.bf16.gmra.mrb[0].mxu0 %v1433
      %v2544 = vpop.f32.mrb[0].mxu0
      %v2545 = vadd.f32 %v2432, %v2544
      %v2546 = vpop.f32.mrb[0].mxu0
      %v2547 = vadd.f32 %v2434, %v2546
      %v2548 = vpop.f32.mrb[0].mxu0
      %v2549 = vadd.f32 %v2436, %v2548
      %v2550 = vpop.f32.mrb[0].mxu0
      %v2551 = vadd.f32 %v2438, %v2550
      %2552 = vmatprep.mubr.bf16.mxu0 %v1438
      %2553 = vmatmul.mubr.bf16.gmra.mrb[0].mxu0 %v1437
      %v2554 = vpop.f32.mrb[0].mxu0
      %v2555 = vadd.f32 %v2442, %v2554
      %v2556 = vpop.f32.mrb[0].mxu0
      %v2557 = vadd.f32 %v2444, %v2556
      %v2558 = vpop.f32.mrb[0].mxu0
      %v2559 = vadd.f32 %v2446, %v2558
      %v2560 = vpop.f32.mrb[0].mxu0
      %v2561 = vadd.f32 %v2448, %v2560
      %2562 = vdwg.mxu0
      %v2691 = vunpack.c.l.b16 %v1023
      %v2692 = vunpack.c.h.b16 %v1023
      %v2693 = vunpack.c.l.b16 %v1024
      %v2694 = vunpack.c.h.b16 %v1024
      %v2695 = vunpack.c.l.b16 %v1025
      %v2696 = vunpack.c.h.b16 %v1025
      %v2697 = vunpack.c.l.b16 %v1026
      %v2698 = vunpack.c.h.b16 %v1026
      %v2699 = vunpack.c.l.b16 %v1027
      %v2700 = vunpack.c.h.b16 %v1027
      %v2701 = vunpack.c.l.b16 %v1028
      %v2702 = vunpack.c.h.b16 %v1028
      %v2703 = vunpack.c.l.b16 %v1029
      %v2704 = vunpack.c.h.b16 %v1029
      %v2705 = vunpack.c.l.b16 %v1030
      %v2706 = vunpack.c.h.b16 %v1030
      %v2707 = vunpack.c.l.b16 %v1031
      %v2708 = vunpack.c.h.b16 %v1031
      %v2709 = vunpack.c.l.b16 %v1032
      %v2710 = vunpack.c.h.b16 %v1032
      %v2711 = vunpack.c.l.b16 %v1033
      %v2712 = vunpack.c.h.b16 %v1033
      %v2713 = vunpack.c.l.b16 %v1034
      %v2714 = vunpack.c.h.b16 %v1034
      %v2715 = vunpack.c.l.b16 %v1035
      %v2716 = vunpack.c.h.b16 %v1035
      %v2717 = vunpack.c.l.b16 %v1036
      %v2718 = vunpack.c.h.b16 %v1036
      %v2719 = vunpack.c.l.b16 %v1037
      %v2720 = vunpack.c.h.b16 %v1037
      %v2721 = vunpack.c.l.b16 %v1038
      %v2722 = vunpack.c.h.b16 %v1038
      %v2723 = vunpack.c.l.b16 %v1039
      %v2724 = vunpack.c.h.b16 %v1039
      %v2725 = vunpack.c.l.b16 %v1040
      %v2726 = vunpack.c.h.b16 %v1040
      %v2727 = vunpack.c.l.b16 %v1041
      %v2728 = vunpack.c.h.b16 %v1041
      %v2729 = vunpack.c.l.b16 %v1042
      %v2730 = vunpack.c.h.b16 %v1042
      %v2731 = vunpack.c.l.b16 %v1043
      %v2732 = vunpack.c.h.b16 %v1043
      %v2733 = vunpack.c.l.b16 %v1044
      %v2734 = vunpack.c.h.b16 %v1044
      %v2735 = vunpack.c.l.b16 %v1045
      %v2736 = vunpack.c.h.b16 %v1045
      %v2737 = vunpack.c.l.b16 %v1046
      %v2738 = vunpack.c.h.b16 %v1046
      %v2739 = vunpack.c.l.b16 %v1047
      %v2740 = vunpack.c.h.b16 %v1047
      %v2741 = vunpack.c.l.b16 %v1048
      %v2742 = vunpack.c.h.b16 %v1048
      %v2743 = vunpack.c.l.b16 %v1049
      %v2744 = vunpack.c.h.b16 %v1049
      %v2745 = vunpack.c.l.b16 %v1050
      %v2746 = vunpack.c.h.b16 %v1050
      %v2747 = vunpack.c.l.b16 %v1051
      %v2748 = vunpack.c.h.b16 %v1051
      %v2749 = vunpack.c.l.b16 %v1052
      %v2750 = vunpack.c.h.b16 %v1052
      %v2751 = vunpack.c.l.b16 %v1053
      %v2752 = vunpack.c.h.b16 %v1053
      %v2753 = vunpack.c.l.b16 %v1054
      %v2754 = vunpack.c.h.b16 %v1054
      %v2755 = vunpack.c.l.b16 %v1055
      %v2756 = vunpack.c.h.b16 %v1055
      %v2757 = vunpack.c.l.b16 %v1056
      %v2758 = vunpack.c.h.b16 %v1056
      %v2759 = vunpack.c.l.b16 %v1057
      %v2760 = vunpack.c.h.b16 %v1057
      %v2761 = vunpack.c.l.b16 %v1058
      %v2762 = vunpack.c.h.b16 %v1058
      %v2763 = vunpack.c.l.b16 %v1059
      %v2764 = vunpack.c.h.b16 %v1059
      %v2765 = vunpack.c.l.b16 %v1060
      %v2766 = vunpack.c.h.b16 %v1060
      %v2767 = vunpack.c.l.b16 %v1061
      %v2768 = vunpack.c.h.b16 %v1061
      %v2769 = vunpack.c.l.b16 %v1062
      %v2770 = vunpack.c.h.b16 %v1062
      %v2771 = vunpack.c.l.b16 %v1063
      %v2772 = vunpack.c.h.b16 %v1063
      %v2773 = vunpack.c.l.b16 %v1064
      %v2774 = vunpack.c.h.b16 %v1064
      %v2775 = vunpack.c.l.b16 %v1065
      %v2776 = vunpack.c.h.b16 %v1065
      %v2777 = vunpack.c.l.b16 %v1066
      %v2778 = vunpack.c.h.b16 %v1066
      %v2779 = vunpack.c.l.b16 %v1067
      %v2780 = vunpack.c.h.b16 %v1067
      %v2781 = vunpack.c.l.b16 %v1068
      %v2782 = vunpack.c.h.b16 %v1068
      %v2783 = vunpack.c.l.b16 %v1069
      %v2784 = vunpack.c.h.b16 %v1069
      %v2785 = vunpack.c.l.b16 %v1070
      %v2786 = vunpack.c.h.b16 %v1070
      %v2787 = vunpack.c.l.b16 %v1071
      %v2788 = vunpack.c.h.b16 %v1071
      %v2789 = vunpack.c.l.b16 %v1072
      %v2790 = vunpack.c.h.b16 %v1072
      %v2791 = vunpack.c.l.b16 %v1073
      %v2792 = vunpack.c.h.b16 %v1073
      %v2793 = vunpack.c.l.b16 %v1074
      %v2794 = vunpack.c.h.b16 %v1074
      %v2795 = vunpack.c.l.b16 %v1075
      %v2796 = vunpack.c.h.b16 %v1075
      %v2797 = vunpack.c.l.b16 %v1076
      %v2798 = vunpack.c.h.b16 %v1076
      %v2799 = vunpack.c.l.b16 %v1077
      %v2800 = vunpack.c.h.b16 %v1077
      %v2801 = vunpack.c.l.b16 %v1078
      %v2802 = vunpack.c.h.b16 %v1078
      %v2803 = vunpack.c.l.b16 %v1079
      %v2804 = vunpack.c.h.b16 %v1079
      %v2805 = vunpack.c.l.b16 %v1080
      %v2806 = vunpack.c.h.b16 %v1080
      %v2807 = vunpack.c.l.b16 %v1081
      %v2808 = vunpack.c.h.b16 %v1081
      %v2809 = vunpack.c.l.b16 %v1082
      %v2810 = vunpack.c.h.b16 %v1082
      %v2811 = vunpack.c.l.b16 %v1083
      %v2812 = vunpack.c.h.b16 %v1083
      %v2813 = vunpack.c.l.b16 %v1084
      %v2814 = vunpack.c.h.b16 %v1084
      %v2815 = vunpack.c.l.b16 %v1085
      %v2816 = vunpack.c.h.b16 %v1085
      %v2817 = vunpack.c.l.b16 %v1086
      %v2818 = vunpack.c.h.b16 %v1086
      %v2819 = vunpack.c.l.b16 %v1087
      %v2820 = vunpack.c.h.b16 %v1087
      %v2821 = vunpack.c.l.b16 %v1088
      %v2822 = vunpack.c.h.b16 %v1088
      %v2823 = vunpack.c.l.b16 %v1089
      %v2824 = vunpack.c.h.b16 %v1089
      %v2825 = vunpack.c.l.b16 %v1090
      %v2826 = vunpack.c.h.b16 %v1090
      %v2827 = vunpack.c.l.b16 %v1091
      %v2828 = vunpack.c.h.b16 %v1091
      %v2829 = vunpack.c.l.b16 %v1092
      %v2830 = vunpack.c.h.b16 %v1092
      %v2831 = vunpack.c.l.b16 %v1093
      %v2832 = vunpack.c.h.b16 %v1093
      %v2833 = vunpack.c.l.b16 %v1094
      %v2834 = vunpack.c.h.b16 %v1094
      %v2835 = vunpack.c.l.b16 %v1095
      %v2836 = vunpack.c.h.b16 %v1095
      %v2837 = vunpack.c.l.b16 %v1096
      %v2838 = vunpack.c.h.b16 %v1096
      %v2839 = vunpack.c.l.b16 %v1097
      %v2840 = vunpack.c.h.b16 %v1097
      %v2841 = vunpack.c.l.b16 %v1098
      %v2842 = vunpack.c.h.b16 %v1098
      %v2843 = vunpack.c.l.b16 %v1099
      %v2844 = vunpack.c.h.b16 %v1099
      %v2845 = vunpack.c.l.b16 %v1100
      %v2846 = vunpack.c.h.b16 %v1100
      %v2847 = vunpack.c.l.b16 %v1101
      %v2848 = vunpack.c.h.b16 %v1101
      %v2849 = vunpack.c.l.b16 %v1102
      %v2850 = vunpack.c.h.b16 %v1102
      %v2851 = vunpack.c.l.b16 %v1103
      %v2852 = vunpack.c.h.b16 %v1103
      %v2853 = vunpack.c.l.b16 %v1104
      %v2854 = vunpack.c.h.b16 %v1104
      %v2855 = vunpack.c.l.b16 %v1105
      %v2856 = vunpack.c.h.b16 %v1105
      %v2857 = vunpack.c.l.b16 %v1106
      %v2858 = vunpack.c.h.b16 %v1106
      %v2859 = vunpack.c.l.b16 %v1107
      %v2860 = vunpack.c.h.b16 %v1107
      %v2861 = vunpack.c.l.b16 %v1108
      %v2862 = vunpack.c.h.b16 %v1108
      %v2863 = vunpack.c.l.b16 %v1109
      %v2864 = vunpack.c.h.b16 %v1109
      %v2865 = vunpack.c.l.b16 %v1110
      %v2866 = vunpack.c.h.b16 %v1110
      %v2867 = vunpack.c.l.b16 %v1111
      %v2868 = vunpack.c.h.b16 %v1111
      %v2869 = vunpack.c.l.b16 %v1112
      %v2870 = vunpack.c.h.b16 %v1112
      %v2871 = vunpack.c.l.b16 %v1113
      %v2872 = vunpack.c.h.b16 %v1113
      %v2873 = vunpack.c.l.b16 %v1114
      %v2874 = vunpack.c.h.b16 %v1114
      %v2875 = vunpack.c.l.b16 %v1115
      %v2876 = vunpack.c.h.b16 %v1115
      %v2877 = vunpack.c.l.b16 %v1116
      %v2878 = vunpack.c.h.b16 %v1116
      %v2879 = vunpack.c.l.b16 %v1117
      %v2880 = vunpack.c.h.b16 %v1117
      %v2881 = vunpack.c.l.b16 %v1118
      %v2882 = vunpack.c.h.b16 %v1118
      %v2883 = vunpack.c.l.b16 %v1119
      %v2884 = vunpack.c.h.b16 %v1119
      %v2885 = vunpack.c.l.b16 %v1120
      %v2886 = vunpack.c.h.b16 %v1120
      %v2887 = vunpack.c.l.b16 %v1121
      %v2888 = vunpack.c.h.b16 %v1121
      %v2889 = vunpack.c.l.b16 %v1122
      %v2890 = vunpack.c.h.b16 %v1122
      %v2891 = vunpack.c.l.b16 %v1123
      %v2892 = vunpack.c.h.b16 %v1123
      %v2893 = vunpack.c.l.b16 %v1124
      %v2894 = vunpack.c.h.b16 %v1124
      %v2895 = vunpack.c.l.b16 %v1125
      %v2896 = vunpack.c.h.b16 %v1125
      %v2897 = vunpack.c.l.b16 %v1126
      %v2898 = vunpack.c.h.b16 %v1126
      %v2899 = vunpack.c.l.b16 %v1127
      %v2900 = vunpack.c.h.b16 %v1127
      %v2901 = vunpack.c.l.b16 %v1128
      %v2902 = vunpack.c.h.b16 %v1128
      %v2903 = vunpack.c.l.b16 %v1129
      %v2904 = vunpack.c.h.b16 %v1129
      %v2905 = vunpack.c.l.b16 %v1130
      %v2906 = vunpack.c.h.b16 %v1130
      %v2907 = vunpack.c.l.b16 %v1131
      %v2908 = vunpack.c.h.b16 %v1131
      %v2909 = vunpack.c.l.b16 %v1132
      %v2910 = vunpack.c.h.b16 %v1132
      %v2911 = vunpack.c.l.b16 %v1133
      %v2912 = vunpack.c.h.b16 %v1133
      %v2913 = vunpack.c.l.b16 %v1134
      %v2914 = vunpack.c.h.b16 %v1134
      %v2915 = vunpack.c.l.b16 %v1135
      %v2916 = vunpack.c.h.b16 %v1135
      %v2917 = vunpack.c.l.b16 %v1136
      %v2918 = vunpack.c.h.b16 %v1136
      %v2919 = vunpack.c.l.b16 %v1137
      %v2920 = vunpack.c.h.b16 %v1137
      %v2921 = vunpack.c.l.b16 %v1138
      %v2922 = vunpack.c.h.b16 %v1138
      %v2923 = vunpack.c.l.b16 %v1139
      %v2924 = vunpack.c.h.b16 %v1139
      %v2925 = vunpack.c.l.b16 %v1140
      %v2926 = vunpack.c.h.b16 %v1140
      %v2927 = vunpack.c.l.b16 %v1141
      %v2928 = vunpack.c.h.b16 %v1141
      %v2929 = vunpack.c.l.b16 %v1142
      %v2930 = vunpack.c.h.b16 %v1142
      %v2931 = vunpack.c.l.b16 %v1143
      %v2932 = vunpack.c.h.b16 %v1143
      %v2933 = vunpack.c.l.b16 %v1144
      %v2934 = vunpack.c.h.b16 %v1144
      %v2935 = vunpack.c.l.b16 %v1145
      %v2936 = vunpack.c.h.b16 %v1145
      %v2937 = vunpack.c.l.b16 %v1146
      %v2938 = vunpack.c.h.b16 %v1146
      %v2939 = vunpack.c.l.b16 %v1147
      %v2940 = vunpack.c.h.b16 %v1147
      %v2941 = vunpack.c.l.b16 %v1148
      %v2942 = vunpack.c.h.b16 %v1148
      %v2943 = vunpack.c.l.b16 %v1149
      %v2944 = vunpack.c.h.b16 %v1149
      %v2945 = vunpack.c.l.b16 %v1150
      %v2946 = vunpack.c.h.b16 %v1150
      %v2947 = vpack.c.b16 %v2695, %v2691
      %v2948 = vpack.c.b16 %v2696, %v2692
      %v2949 = vpack.c.b16 %v2697, %v2693
      %v2950 = vpack.c.b16 %v2698, %v2694
      %v2951 = vpack.c.b16 %v2703, %v2699
      %v2952 = vpack.c.b16 %v2704, %v2700
      %v2953 = vpack.c.b16 %v2705, %v2701
      %v2954 = vpack.c.b16 %v2706, %v2702
      %v2955 = vpack.c.b16 %v2711, %v2707
      %v2956 = vpack.c.b16 %v2712, %v2708
      %v2957 = vpack.c.b16 %v2713, %v2709
      %v2958 = vpack.c.b16 %v2714, %v2710
      %v2959 = vpack.c.b16 %v2719, %v2715
      %v2960 = vpack.c.b16 %v2720, %v2716
      %v2961 = vpack.c.b16 %v2721, %v2717
      %v2962 = vpack.c.b16 %v2722, %v2718
      %v2963 = vpack.c.b16 %v2727, %v2723
      %v2964 = vpack.c.b16 %v2728, %v2724
      %v2965 = vpack.c.b16 %v2729, %v2725
      %v2966 = vpack.c.b16 %v2730, %v2726
      %v2967 = vpack.c.b16 %v2735, %v2731
      %v2968 = vpack.c.b16 %v2736, %v2732
      %v2969 = vpack.c.b16 %v2737, %v2733
      %v2970 = vpack.c.b16 %v2738, %v2734
      %v2971 = vpack.c.b16 %v2743, %v2739
      %v2972 = vpack.c.b16 %v2744, %v2740
      %v2973 = vpack.c.b16 %v2745, %v2741
      %v2974 = vpack.c.b16 %v2746, %v2742
      %v2975 = vpack.c.b16 %v2751, %v2747
      %v2976 = vpack.c.b16 %v2752, %v2748
      %v2977 = vpack.c.b16 %v2753, %v2749
      %v2978 = vpack.c.b16 %v2754, %v2750
      %v2979 = vpack.c.b16 %v2759, %v2755
      %v2980 = vpack.c.b16 %v2760, %v2756
      %v2981 = vpack.c.b16 %v2761, %v2757
      %v2982 = vpack.c.b16 %v2762, %v2758
      %v2983 = vpack.c.b16 %v2767, %v2763
      %v2984 = vpack.c.b16 %v2768, %v2764
      %v2985 = vpack.c.b16 %v2769, %v2765
      %v2986 = vpack.c.b16 %v2770, %v2766
      %v2987 = vpack.c.b16 %v2775, %v2771
      %v2988 = vpack.c.b16 %v2776, %v2772
      %v2989 = vpack.c.b16 %v2777, %v2773
      %v2990 = vpack.c.b16 %v2778, %v2774
      %v2991 = vpack.c.b16 %v2783, %v2779
      %v2992 = vpack.c.b16 %v2784, %v2780
      %v2993 = vpack.c.b16 %v2785, %v2781
      %v2994 = vpack.c.b16 %v2786, %v2782
      %v2995 = vpack.c.b16 %v2791, %v2787
      %v2996 = vpack.c.b16 %v2792, %v2788
      %v2997 = vpack.c.b16 %v2793, %v2789
      %v2998 = vpack.c.b16 %v2794, %v2790
      %v2999 = vpack.c.b16 %v2799, %v2795
      %v3000 = vpack.c.b16 %v2800, %v2796
      %v3001 = vpack.c.b16 %v2801, %v2797
      %v3002 = vpack.c.b16 %v2802, %v2798
      %v3003 = vpack.c.b16 %v2807, %v2803
      %v3004 = vpack.c.b16 %v2808, %v2804
      %v3005 = vpack.c.b16 %v2809, %v2805
      %v3006 = vpack.c.b16 %v2810, %v2806
      %v3007 = vpack.c.b16 %v2815, %v2811
      %v3008 = vpack.c.b16 %v2816, %v2812
      %v3009 = vpack.c.b16 %v2817, %v2813
      %v3010 = vpack.c.b16 %v2818, %v2814
      %v3011 = vpack.c.b16 %v2823, %v2819
      %v3012 = vpack.c.b16 %v2824, %v2820
      %v3013 = vpack.c.b16 %v2825, %v2821
      %v3014 = vpack.c.b16 %v2826, %v2822
      %v3015 = vpack.c.b16 %v2831, %v2827
      %v3016 = vpack.c.b16 %v2832, %v2828
      %v3017 = vpack.c.b16 %v2833, %v2829
      %v3018 = vpack.c.b16 %v2834, %v2830
      %v3019 = vpack.c.b16 %v2839, %v2835
      %v3020 = vpack.c.b16 %v2840, %v2836
      %v3021 = vpack.c.b16 %v2841, %v2837
      %v3022 = vpack.c.b16 %v2842, %v2838
      %v3023 = vpack.c.b16 %v2847, %v2843
      %v3024 = vpack.c.b16 %v2848, %v2844
      %v3025 = vpack.c.b16 %v2849, %v2845
      %v3026 = vpack.c.b16 %v2850, %v2846
      %v3027 = vpack.c.b16 %v2855, %v2851
      %v3028 = vpack.c.b16 %v2856, %v2852
      %v3029 = vpack.c.b16 %v2857, %v2853
      %v3030 = vpack.c.b16 %v2858, %v2854
      %v3031 = vpack.c.b16 %v2863, %v2859
      %v3032 = vpack.c.b16 %v2864, %v2860
      %v3033 = vpack.c.b16 %v2865, %v2861
      %v3034 = vpack.c.b16 %v2866, %v2862
      %v3035 = vpack.c.b16 %v2871, %v2867
      %v3036 = vpack.c.b16 %v2872, %v2868
      %v3037 = vpack.c.b16 %v2873, %v2869
      %v3038 = vpack.c.b16 %v2874, %v2870
      %v3039 = vpack.c.b16 %v2879, %v2875
      %v3040 = vpack.c.b16 %v2880, %v2876
      %v3041 = vpack.c.b16 %v2881, %v2877
      %v3042 = vpack.c.b16 %v2882, %v2878
      %v3043 = vpack.c.b16 %v2887, %v2883
      %v3044 = vpack.c.b16 %v2888, %v2884
      %v3045 = vpack.c.b16 %v2889, %v2885
      %v3046 = vpack.c.b16 %v2890, %v2886
      %v3047 = vpack.c.b16 %v2895, %v2891
      %v3048 = vpack.c.b16 %v2896, %v2892
      %v3049 = vpack.c.b16 %v2897, %v2893
      %v3050 = vpack.c.b16 %v2898, %v2894
      %v3051 = vpack.c.b16 %v2903, %v2899
      %v3052 = vpack.c.b16 %v2904, %v2900
      %v3053 = vpack.c.b16 %v2905, %v2901
      %v3054 = vpack.c.b16 %v2906, %v2902
      %v3055 = vpack.c.b16 %v2911, %v2907
      %v3056 = vpack.c.b16 %v2912, %v2908
      %v3057 = vpack.c.b16 %v2913, %v2909
      %v3058 = vpack.c.b16 %v2914, %v2910
      %v3059 = vpack.c.b16 %v2919, %v2915
      %v3060 = vpack.c.b16 %v2920, %v2916
      %v3061 = vpack.c.b16 %v2921, %v2917
      %v3062 = vpack.c.b16 %v2922, %v2918
      %v3063 = vpack.c.b16 %v2927, %v2923
      %v3064 = vpack.c.b16 %v2928, %v2924
      %v3065 = vpack.c.b16 %v2929, %v2925
      %v3066 = vpack.c.b16 %v2930, %v2926
      %v3067 = vpack.c.b16 %v2935, %v2931
      %v3068 = vpack.c.b16 %v2936, %v2932
      %v3069 = vpack.c.b16 %v2937, %v2933
      %v3070 = vpack.c.b16 %v2938, %v2934
      %v3071 = vpack.c.b16 %v2943, %v2939
      %v3072 = vpack.c.b16 %v2944, %v2940
      %v3073 = vpack.c.b16 %v2945, %v2941
      %v3074 = vpack.c.b16 %v2946, %v2942
      %3203 = vmatprep.subr.bf16.mxu0 %v2948
      %3204 = vmatpush1.bf16.msra.mxu0 %v2947
      %3205 = vmatprep.subr.bf16.mxu0 %v2952
      %3206 = vmatpush1.bf16.msra.mxu0 %v2951
      %3207 = vmatprep.subr.bf16.mxu0 %v2956
      %3208 = vmatpush1.bf16.msra.mxu0 %v2955
      %3209 = vmatprep.subr.bf16.mxu0 %v2960
      %3210 = vmatpush1.bf16.msra.mxu0 %v2959
      %3211 = vmatprep.subr.bf16.mxu0 %v2964
      %3212 = vmatpush1.bf16.msra.mxu0 %v2963
      %3213 = vmatprep.subr.bf16.mxu0 %v2968
      %3214 = vmatpush1.bf16.msra.mxu0 %v2967
      %3215 = vmatprep.subr.bf16.mxu0 %v2972
      %3216 = vmatpush1.bf16.msra.mxu0 %v2971
      %3217 = vmatprep.subr.bf16.mxu0 %v2976
      %3218 = vmatpush1.bf16.msra.mxu0 %v2975
      %3219 = vmatprep.subr.bf16.mxu0 %v2980
      %3220 = vmatpush1.bf16.msra.mxu0 %v2979
      %3221 = vmatprep.subr.bf16.mxu0 %v2984
      %3222 = vmatpush1.bf16.msra.mxu0 %v2983
      %3223 = vmatprep.subr.bf16.mxu0 %v2988
      %3224 = vmatpush1.bf16.msra.mxu0 %v2987
      %3225 = vmatprep.subr.bf16.mxu0 %v2992
      %3226 = vmatpush1.bf16.msra.mxu0 %v2991
      %3227 = vmatprep.subr.bf16.mxu0 %v2996
      %3228 = vmatpush1.bf16.msra.mxu0 %v2995
      %3229 = vmatprep.subr.bf16.mxu0 %v3000
      %3230 = vmatpush1.bf16.msra.mxu0 %v2999
      %3231 = vmatprep.subr.bf16.mxu0 %v3004
      %3232 = vmatpush1.bf16.msra.mxu0 %v3003
      %3233 = vmatprep.subr.bf16.mxu0 %v3008
      %3234 = vmatpush1.bf16.msra.mxu0 %v3007
      %3235 = vmatprep.mubr.bf16.mxu0 %v992
      %3236 = vmatmul.mubr.bf16.gmra.mrb[0].mxu0 %v991
      %v3237 = vpop.f32.mrb[0].mxu0
      %v3238 = vadd.f32 %v2259, %v3237
      %v3239 = vpop.f32.mrb[0].mxu0
      %v3240 = vadd.f32 %v2261, %v3239
      %v3241 = vpop.f32.mrb[0].mxu0
      %v3242 = vadd.f32 %v2263, %v3241
      %v3243 = vpop.f32.mrb[0].mxu0
      %v3244 = vadd.f32 %v2265, %v3243
      %3245 = vmatprep.mubr.bf16.mxu0 %v996
      %3246 = vmatmul.mubr.bf16.gmra.mrb[0].mxu0 %v995
      %v3247 = vpop.f32.mrb[0].mxu0
      %v3248 = vadd.f32 %v2269, %v3247
      %v3249 = vpop.f32.mrb[0].mxu0
      %v3250 = vadd.f32 %v2271, %v3249
      %v3251 = vpop.f32.mrb[0].mxu0
      %v3252 = vadd.f32 %v2273, %v3251
      %v3253 = vpop.f32.mrb[0].mxu0
      %v3254 = vadd.f32 %v2275, %v3253
      %3255 = vmatprep.mubr.bf16.mxu0 %v1000
      %3256 = vmatmul.mubr.bf16.gmra.mrb[0].mxu0 %v999
      %v3257 = vpop.f32.mrb[0].mxu0
      %v3258 = vadd.f32 %v2279, %v3257
      %v3259 = vpop.f32.mrb[0].mxu0
      %v3260 = vadd.f32 %v2281, %v3259
      %v3261 = vpop.f32.mrb[0].mxu0
      %v3262 = vadd.f32 %v2283, %v3261
      %v3263 = vpop.f32.mrb[0].mxu0
      %v3264 = vadd.f32 %v2285, %v3263
      %3265 = vmatprep.mubr.bf16.mxu0 %v1004
      %3266 = vmatmul.mubr.bf16.gmra.mrb[0].mxu0 %v1003
      %v3267 = vpop.f32.mrb[0].mxu0
      %v3268 = vadd.f32 %v2289, %v3267
      %v3269 = vpop.f32.mrb[0].mxu0
      %v3270 = vadd.f32 %v2291, %v3269
      %v3271 = vpop.f32.mrb[0].mxu0
      %v3272 = vadd.f32 %v2293, %v3271
      %v3273 = vpop.f32.mrb[0].mxu0
      %v3274 = vadd.f32 %v2295, %v3273
      %3275 = vmatprep.mubr.bf16.mxu0 %v1008
      %3276 = vmatmul.mubr.bf16.gmra.mrb[0].mxu0 %v1007
      %v3277 = vpop.f32.mrb[0].mxu0
      %v3278 = vadd.f32 %v2299, %v3277
      %v3279 = vpop.f32.mrb[0].mxu0
      %v3280 = vadd.f32 %v2301, %v3279
      %v3281 = vpop.f32.mrb[0].mxu0
      %v3282 = vadd.f32 %v2303, %v3281
      %v3283 = vpop.f32.mrb[0].mxu0
      %v3284 = vadd.f32 %v2305, %v3283
      %3285 = vmatprep.mubr.bf16.mxu0 %v1012
      %3286 = vmatmul.mubr.bf16.gmra.mrb[0].mxu0 %v1011
      %v3287 = vpop.f32.mrb[0].mxu0
      %v3288 = vadd.f32 %v2309, %v3287
      %v3289 = vpop.f32.mrb[0].mxu0
      %v3290 = vadd.f32 %v2311, %v3289
      %v3291 = vpop.f32.mrb[0].mxu0
      %v3292 = vadd.f32 %v2313, %v3291
      %v3293 = vpop.f32.mrb[0].mxu0
      %v3294 = vadd.f32 %v2315, %v3293
      %3295 = vmatprep.mubr.bf16.mxu0 %v1016
      %3296 = vmatmul.mubr.bf16.gmra.mrb[0].mxu0 %v1015
      %v3297 = vpop.f32.mrb[0].mxu0
      %v3298 = vadd.f32 %v2319, %v3297
      %v3299 = vpop.f32.mrb[0].mxu0
      %v3300 = vadd.f32 %v2321, %v3299
      %v3301 = vpop.f32.mrb[0].mxu0
      %v3302 = vadd.f32 %v2323, %v3301
      %v3303 = vpop.f32.mrb[0].mxu0
      %v3304 = vadd.f32 %v2325, %v3303
      %3305 = vmatprep.mubr.bf16.mxu0 %v1020
      %3306 = vmatmul.mubr.bf16.gmra.mrb[0].mxu0 %v1019
      %v3307 = vpop.f32.mrb[0].mxu0
      %v3308 = vadd.f32 %v2329, %v3307
      %v3309 = vpop.f32.mrb[0].mxu0
      %v3310 = vadd.f32 %v2331, %v3309
      %v3311 = vpop.f32.mrb[0].mxu0
      %v3312 = vadd.f32 %v2333, %v3311
      %v3313 = vpop.f32.mrb[0].mxu0
      %v3314 = vadd.f32 %v2335, %v3313
      %3315 = vdwg.mxu0
      %3316 = vmatprep.subr.bf16.mxu0 %v3012
      %3317 = vmatpush1.bf16.msra.mxu0 %v3011
      %3318 = vmatprep.subr.bf16.mxu0 %v3016
      %3319 = vmatpush1.bf16.msra.mxu0 %v3015
      %3320 = vmatprep.subr.bf16.mxu0 %v3020
      %3321 = vmatpush1.bf16.msra.mxu0 %v3019
      %3322 = vmatprep.subr.bf16.mxu0 %v3024
      %3323 = vmatpush1.bf16.msra.mxu0 %v3023
      %3324 = vmatprep.subr.bf16.mxu0 %v3028
      %3325 = vmatpush1.bf16.msra.mxu0 %v3027
      %3326 = vmatprep.subr.bf16.mxu0 %v3032
      %3327 = vmatpush1.bf16.msra.mxu0 %v3031
      %3328 = vmatprep.subr.bf16.mxu0 %v3036
      %3329 = vmatpush1.bf16.msra.mxu0 %v3035
      %3330 = vmatprep.subr.bf16.mxu0 %v3040
      %3331 = vmatpush1.bf16.msra.mxu0 %v3039
      %3332 = vmatprep.subr.bf16.mxu0 %v3044
      %3333 = vmatpush1.bf16.msra.mxu0 %v3043
      %3334 = vmatprep.subr.bf16.mxu0 %v3048
      %3335 = vmatpush1.bf16.msra.mxu0 %v3047
      %3336 = vmatprep.subr.bf16.mxu0 %v3052
      %3337 = vmatpush1.bf16.msra.mxu0 %v3051
      %3338 = vmatprep.subr.bf16.mxu0 %v3056
      %3339 = vmatpush1.bf16.msra.mxu0 %v3055
      %3340 = vmatprep.subr.bf16.mxu0 %v3060
      %3341 = vmatpush1.bf16.msra.mxu0 %v3059
      %3342 = vmatprep.subr.bf16.mxu0 %v3064
      %3343 = vmatpush1.bf16.msra.mxu0 %v3063
      %3344 = vmatprep.subr.bf16.mxu0 %v3068
      %3345 = vmatpush1.bf16.msra.mxu0 %v3067
      %3346 = vmatprep.subr.bf16.mxu0 %v3072
      %3347 = vmatpush1.bf16.msra.mxu0 %v3071
      %3348 = vmatprep.mubr.bf16.mxu0 %v994
      %3349 = vmatmul.mubr.bf16.gmra.mrb[0].mxu0 %v993
      %v3350 = vpop.f32.mrb[0].mxu0
      %v3351 = vadd.f32 %v3238, %v3350
      %v3352 = vpop.f32.mrb[0].mxu0
      %v3353 = vadd.f32 %v3240, %v3352
      %v3354 = vpop.f32.mrb[0].mxu0
      %v3355 = vadd.f32 %v3242, %v3354
      %v3356 = vpop.f32.mrb[0].mxu0
      %v3357 = vadd.f32 %v3244, %v3356
      %3358 = vmatprep.mubr.bf16.mxu0 %v998
      %3359 = vmatmul.mubr.bf16.gmra.mrb[0].mxu0 %v997
      %v3360 = vpop.f32.mrb[0].mxu0
      %v3361 = vadd.f32 %v3248, %v3360
      %v3362 = vpop.f32.mrb[0].mxu0
      %v3363 = vadd.f32 %v3250, %v3362
      %v3364 = vpop.f32.mrb[0].mxu0
      %v3365 = vadd.f32 %v3252, %v3364
      %v3366 = vpop.f32.mrb[0].mxu0
      %v3367 = vadd.f32 %v3254, %v3366
      %3368 = vmatprep.mubr.bf16.mxu0 %v1002
      %3369 = vmatmul.mubr.bf16.gmra.mrb[0].mxu0 %v1001
      %v3370 = vpop.f32.mrb[0].mxu0
      %v3371 = vadd.f32 %v3258, %v3370
      %v3372 = vpop.f32.mrb[0].mxu0
      %v3373 = vadd.f32 %v3260, %v3372
      %v3374 = vpop.f32.mrb[0].mxu0
      %v3375 = vadd.f32 %v3262, %v3374
      %v3376 = vpop.f32.mrb[0].mxu0
      %v3377 = vadd.f32 %v3264, %v3376
      %3378 = vmatprep.mubr.bf16.mxu0 %v1006
      %3379 = vmatmul.mubr.bf16.gmra.mrb[0].mxu0 %v1005
      %v3380 = vpop.f32.mrb[0].mxu0
      %v3381 = vadd.f32 %v3268, %v3380
      %v3382 = vpop.f32.mrb[0].mxu0
      %v3383 = vadd.f32 %v3270, %v3382
      %v3384 = vpop.f32.mrb[0].mxu0
      %v3385 = vadd.f32 %v3272, %v3384
      %v3386 = vpop.f32.mrb[0].mxu0
      %v3387 = vadd.f32 %v3274, %v3386
      %3388 = vmatprep.mubr.bf16.mxu0 %v1010
      %3389 = vmatmul.mubr.bf16.gmra.mrb[0].mxu0 %v1009
      %v3390 = vpop.f32.mrb[0].mxu0
      %v3391 = vadd.f32 %v3278, %v3390
      %v3392 = vpop.f32.mrb[0].mxu0
      %v3393 = vadd.f32 %v3280, %v3392
      %v3394 = vpop.f32.mrb[0].mxu0
      %v3395 = vadd.f32 %v3282, %v3394
      %v3396 = vpop.f32.mrb[0].mxu0
      %v3397 = vadd.f32 %v3284, %v3396
      %3398 = vmatprep.mubr.bf16.mxu0 %v1014
      %3399 = vmatmul.mubr.bf16.gmra.mrb[0].mxu0 %v1013
      %v3400 = vpop.f32.mrb[0].mxu0
      %v3401 = vadd.f32 %v3288, %v3400
      %v3402 = vpop.f32.mrb[0].mxu0
      %v3403 = vadd.f32 %v3290, %v3402
      %v3404 = vpop.f32.mrb[0].mxu0
      %v3405 = vadd.f32 %v3292, %v3404
      %v3406 = vpop.f32.mrb[0].mxu0
      %v3407 = vadd.f32 %v3294, %v3406
      %3408 = vmatprep.mubr.bf16.mxu0 %v1018
      %3409 = vmatmul.mubr.bf16.gmra.mrb[0].mxu0 %v1017
      %v3410 = vpop.f32.mrb[0].mxu0
      %v3411 = vadd.f32 %v3298, %v3410
      %v3412 = vpop.f32.mrb[0].mxu0
      %v3413 = vadd.f32 %v3300, %v3412
      %v3414 = vpop.f32.mrb[0].mxu0
      %v3415 = vadd.f32 %v3302, %v3414
      %v3416 = vpop.f32.mrb[0].mxu0
      %v3417 = vadd.f32 %v3304, %v3416
      %3418 = vmatprep.mubr.bf16.mxu0 %v1022
      %3419 = vmatmul.mubr.bf16.gmra.mrb[0].mxu0 %v1021
      %v3420 = vpop.f32.mrb[0].mxu0
      %v3421 = vadd.f32 %v3308, %v3420
      %v3422 = vpop.f32.mrb[0].mxu0
      %v3423 = vadd.f32 %v3310, %v3422
      %v3424 = vpop.f32.mrb[0].mxu0
      %v3425 = vadd.f32 %v3312, %v3424
      %v3426 = vpop.f32.mrb[0].mxu0
      %v3427 = vadd.f32 %v3314, %v3426
      %3428 = vdwg.mxu0
      %3429 = vmatprep.subr.bf16.mxu0 %v2950
      %3430 = vmatpush1.bf16.msra.mxu0 %v2949
      %3431 = vmatprep.subr.bf16.mxu0 %v2954
      %3432 = vmatpush1.bf16.msra.mxu0 %v2953
      %3433 = vmatprep.subr.bf16.mxu0 %v2958
      %3434 = vmatpush1.bf16.msra.mxu0 %v2957
      %3435 = vmatprep.subr.bf16.mxu0 %v2962
      %3436 = vmatpush1.bf16.msra.mxu0 %v2961
      %3437 = vmatprep.subr.bf16.mxu0 %v2966
      %3438 = vmatpush1.bf16.msra.mxu0 %v2965
      %3439 = vmatprep.subr.bf16.mxu0 %v2970
      %3440 = vmatpush1.bf16.msra.mxu0 %v2969
      %3441 = vmatprep.subr.bf16.mxu0 %v2974
      %3442 = vmatpush1.bf16.msra.mxu0 %v2973
      %3443 = vmatprep.subr.bf16.mxu0 %v2978
      %3444 = vmatpush1.bf16.msra.mxu0 %v2977
      %3445 = vmatprep.subr.bf16.mxu0 %v2982
      %3446 = vmatpush1.bf16.msra.mxu0 %v2981
      %3447 = vmatprep.subr.bf16.mxu0 %v2986
      %3448 = vmatpush1.bf16.msra.mxu0 %v2985
      %3449 = vmatprep.subr.bf16.mxu0 %v2990
      %3450 = vmatpush1.bf16.msra.mxu0 %v2989
      %3451 = vmatprep.subr.bf16.mxu0 %v2994
      %3452 = vmatpush1.bf16.msra.mxu0 %v2993
      %3453 = vmatprep.subr.bf16.mxu0 %v2998
      %3454 = vmatpush1.bf16.msra.mxu0 %v2997
      %3455 = vmatprep.subr.bf16.mxu0 %v3002
      %3456 = vmatpush1.bf16.msra.mxu0 %v3001
      %3457 = vmatprep.subr.bf16.mxu0 %v3006
      %3458 = vmatpush1.bf16.msra.mxu0 %v3005
      %3459 = vmatprep.subr.bf16.mxu0 %v3010
      %3460 = vmatpush1.bf16.msra.mxu0 %v3009
      %3461 = vmatprep.mubr.bf16.mxu0 %v992
      %3462 = vmatmul.mubr.bf16.gmra.mrb[0].mxu0 %v991
      %v3463 = vpop.f32.mrb[0].mxu0
      %v3464 = vadd.f32 %v2485, %v3463
      %v3465 = vpop.f32.mrb[0].mxu0
      %v3466 = vadd.f32 %v2487, %v3465
      %v3467 = vpop.f32.mrb[0].mxu0
      %v3468 = vadd.f32 %v2489, %v3467
      %v3469 = vpop.f32.mrb[0].mxu0
      %v3470 = vadd.f32 %v2491, %v3469
      %3471 = vmatprep.mubr.bf16.mxu0 %v996
      %3472 = vmatmul.mubr.bf16.gmra.mrb[0].mxu0 %v995
      %v3473 = vpop.f32.mrb[0].mxu0
      %v3474 = vadd.f32 %v2495, %v3473
      %v3475 = vpop.f32.mrb[0].mxu0
      %v3476 = vadd.f32 %v2497, %v3475
      %v3477 = vpop.f32.mrb[0].mxu0
      %v3478 = vadd.f32 %v2499, %v3477
      %v3479 = vpop.f32.mrb[0].mxu0
      %v3480 = vadd.f32 %v2501, %v3479
      %3481 = vmatprep.mubr.bf16.mxu0 %v1000
      %3482 = vmatmul.mubr.bf16.gmra.mrb[0].mxu0 %v999
      %v3483 = vpop.f32.mrb[0].mxu0
      %v3484 = vadd.f32 %v2505, %v3483
      %v3485 = vpop.f32.mrb[0].mxu0
      %v3486 = vadd.f32 %v2507, %v3485
      %v3487 = vpop.f32.mrb[0].mxu0
      %v3488 = vadd.f32 %v2509, %v3487
      %v3489 = vpop.f32.mrb[0].mxu0
      %v3490 = vadd.f32 %v2511, %v3489
      %3491 = vmatprep.mubr.bf16.mxu0 %v1004
      %3492 = vmatmul.mubr.bf16.gmra.mrb[0].mxu0 %v1003
      %v3493 = vpop.f32.mrb[0].mxu0
      %v3494 = vadd.f32 %v2515, %v3493
      %v3495 = vpop.f32.mrb[0].mxu0
      %v3496 = vadd.f32 %v2517, %v3495
      %v3497 = vpop.f32.mrb[0].mxu0
      %v3498 = vadd.f32 %v2519, %v3497
      %v3499 = vpop.f32.mrb[0].mxu0
      %v3500 = vadd.f32 %v2521, %v3499
      %3501 = vmatprep.mubr.bf16.mxu0 %v1008
      %3502 = vmatmul.mubr.bf16.gmra.mrb[0].mxu0 %v1007
      %v3503 = vpop.f32.mrb[0].mxu0
      %v3504 = vadd.f32 %v2525, %v3503
      %v3505 = vpop.f32.mrb[0].mxu0
      %v3506 = vadd.f32 %v2527, %v3505
      %v3507 = vpop.f32.mrb[0].mxu0
      %v3508 = vadd.f32 %v2529, %v3507
      %v3509 = vpop.f32.mrb[0].mxu0
      %v3510 = vadd.f32 %v2531, %v3509
      %3511 = vmatprep.mubr.bf16.mxu0 %v1012
      %3512 = vmatmul.mubr.bf16.gmra.mrb[0].mxu0 %v1011
      %v3513 = vpop.f32.mrb[0].mxu0
      %v3514 = vadd.f32 %v2535, %v3513
      %v3515 = vpop.f32.mrb[0].mxu0
      %v3516 = vadd.f32 %v2537, %v3515
      %v3517 = vpop.f32.mrb[0].mxu0
      %v3518 = vadd.f32 %v2539, %v3517
      %v3519 = vpop.f32.mrb[0].mxu0
      %v3520 = vadd.f32 %v2541, %v3519
      %3521 = vmatprep.mubr.bf16.mxu0 %v1016
      %3522 = vmatmul.mubr.bf16.gmra.mrb[0].mxu0 %v1015
      %v3523 = vpop.f32.mrb[0].mxu0
      %v3524 = vadd.f32 %v2545, %v3523
      %v3525 = vpop.f32.mrb[0].mxu0
      %v3526 = vadd.f32 %v2547, %v3525
      %v3527 = vpop.f32.mrb[0].mxu0
      %v3528 = vadd.f32 %v2549, %v3527
      %v3529 = vpop.f32.mrb[0].mxu0
      %v3530 = vadd.f32 %v2551, %v3529
      %3531 = vmatprep.mubr.bf16.mxu0 %v1020
      %3532 = vmatmul.mubr.bf16.gmra.mrb[0].mxu0 %v1019
      %v3533 = vpop.f32.mrb[0].mxu0
      %v3534 = vadd.f32 %v2555, %v3533
      %v3535 = vpop.f32.mrb[0].mxu0
      %v3536 = vadd.f32 %v2557, %v3535
      %v3537 = vpop.f32.mrb[0].mxu0
      %v3538 = vadd.f32 %v2559, %v3537
      %v3539 = vpop.f32.mrb[0].mxu0
      %v3540 = vadd.f32 %v2561, %v3539
      %3541 = vdwg.mxu0
      %3542 = vmatprep.subr.bf16.mxu0 %v3014
      %3543 = vmatpush1.bf16.msra.mxu0 %v3013
      %3544 = vmatprep.subr.bf16.mxu0 %v3018
      %3545 = vmatpush1.bf16.msra.mxu0 %v3017
      %3546 = vmatprep.subr.bf16.mxu0 %v3022
      %3547 = vmatpush1.bf16.msra.mxu0 %v3021
      %3548 = vmatprep.subr.bf16.mxu0 %v3026
      %3549 = vmatpush1.bf16.msra.mxu0 %v3025
      %3550 = vmatprep.subr.bf16.mxu0 %v3030
      %3551 = vmatpush1.bf16.msra.mxu0 %v3029
      %3552 = vmatprep.subr.bf16.mxu0 %v3034
      %3553 = vmatpush1.bf16.msra.mxu0 %v3033
      %3554 = vmatprep.subr.bf16.mxu0 %v3038
      %3555 = vmatpush1.bf16.msra.mxu0 %v3037
      %3556 = vmatprep.subr.bf16.mxu0 %v3042
      %3557 = vmatpush1.bf16.msra.mxu0 %v3041
      %3558 = vmatprep.subr.bf16.mxu0 %v3046
      %3559 = vmatpush1.bf16.msra.mxu0 %v3045
      %3560 = vmatprep.subr.bf16.mxu0 %v3050
      %3561 = vmatpush1.bf16.msra.mxu0 %v3049
      %3562 = vmatprep.subr.bf16.mxu0 %v3054
      %3563 = vmatpush1.bf16.msra.mxu0 %v3053
      %3564 = vmatprep.subr.bf16.mxu0 %v3058
      %3565 = vmatpush1.bf16.msra.mxu0 %v3057
      %3566 = vmatprep.subr.bf16.mxu0 %v3062
      %3567 = vmatpush1.bf16.msra.mxu0 %v3061
      %3568 = vmatprep.subr.bf16.mxu0 %v3066
      %3569 = vmatpush1.bf16.msra.mxu0 %v3065
      %3570 = vmatprep.subr.bf16.mxu0 %v3070
      %3571 = vmatpush1.bf16.msra.mxu0 %v3069
      %3572 = vmatprep.subr.bf16.mxu0 %v3074
      %3573 = vmatpush1.bf16.msra.mxu0 %v3073
      %3574 = vmatprep.mubr.bf16.mxu0 %v994
      %3575 = vmatmul.mubr.bf16.gmra.mrb[0].mxu0 %v993
      %v3576 = vpop.f32.mrb[0].mxu0
      %v3577 = vadd.f32 %v3464, %v3576
      %v3578 = vpop.f32.mrb[0].mxu0
      %v3579 = vadd.f32 %v3466, %v3578
      %v3580 = vpop.f32.mrb[0].mxu0
      %v3581 = vadd.f32 %v3468, %v3580
      %v3582 = vpop.f32.mrb[0].mxu0
      %v3583 = vadd.f32 %v3470, %v3582
      %3584 = vmatprep.mubr.bf16.mxu0 %v998
      %3585 = vmatmul.mubr.bf16.gmra.mrb[0].mxu0 %v997
      %v3586 = vpop.f32.mrb[0].mxu0
      %v3587 = vadd.f32 %v3474, %v3586
      %v3588 = vpop.f32.mrb[0].mxu0
      %v3589 = vadd.f32 %v3476, %v3588
      %v3590 = vpop.f32.mrb[0].mxu0
      %v3591 = vadd.f32 %v3478, %v3590
      %v3592 = vpop.f32.mrb[0].mxu0
      %v3593 = vadd.f32 %v3480, %v3592
      %3594 = vmatprep.mubr.bf16.mxu0 %v1002
      %3595 = vmatmul.mubr.bf16.gmra.mrb[0].mxu0 %v1001
      %v3596 = vpop.f32.mrb[0].mxu0
      %v3597 = vadd.f32 %v3484, %v3596
      %v3598 = vpop.f32.mrb[0].mxu0
      %v3599 = vadd.f32 %v3486, %v3598
      %v3600 = vpop.f32.mrb[0].mxu0
      %v3601 = vadd.f32 %v3488, %v3600
      %v3602 = vpop.f32.mrb[0].mxu0
      %v3603 = vadd.f32 %v3490, %v3602
      %3604 = vmatprep.mubr.bf16.mxu0 %v1006
      %3605 = vmatmul.mubr.bf16.gmra.mrb[0].mxu0 %v1005
      %v3606 = vpop.f32.mrb[0].mxu0
      %v3607 = vadd.f32 %v3494, %v3606
      %v3608 = vpop.f32.mrb[0].mxu0
      %v3609 = vadd.f32 %v3496, %v3608
      %v3610 = vpop.f32.mrb[0].mxu0
      %v3611 = vadd.f32 %v3498, %v3610
      %v3612 = vpop.f32.mrb[0].mxu0
      %v3613 = vadd.f32 %v3500, %v3612
      %3614 = vmatprep.mubr.bf16.mxu0 %v1010
      %3615 = vmatmul.mubr.bf16.gmra.mrb[0].mxu0 %v1009
      %v3616 = vpop.f32.mrb[0].mxu0
      %v3617 = vadd.f32 %v3504, %v3616
      %v3618 = vpop.f32.mrb[0].mxu0
      %v3619 = vadd.f32 %v3506, %v3618
      %v3620 = vpop.f32.mrb[0].mxu0
      %v3621 = vadd.f32 %v3508, %v3620
      %v3622 = vpop.f32.mrb[0].mxu0
      %v3623 = vadd.f32 %v3510, %v3622
      %3624 = vmatprep.mubr.bf16.mxu0 %v1014
      %3625 = vmatmul.mubr.bf16.gmra.mrb[0].mxu0 %v1013
      %v3626 = vpop.f32.mrb[0].mxu0
      %v3627 = vadd.f32 %v3514, %v3626
      %v3628 = vpop.f32.mrb[0].mxu0
      %v3629 = vadd.f32 %v3516, %v3628
      %v3630 = vpop.f32.mrb[0].mxu0
      %v3631 = vadd.f32 %v3518, %v3630
      %v3632 = vpop.f32.mrb[0].mxu0
      %v3633 = vadd.f32 %v3520, %v3632
      %3634 = vmatprep.mubr.bf16.mxu0 %v1018
      %3635 = vmatmul.mubr.bf16.gmra.mrb[0].mxu0 %v1017
      %v3636 = vpop.f32.mrb[0].mxu0
      %v3637 = vadd.f32 %v3524, %v3636
      %v3638 = vpop.f32.mrb[0].mxu0
      %v3639 = vadd.f32 %v3526, %v3638
      %v3640 = vpop.f32.mrb[0].mxu0
      %v3641 = vadd.f32 %v3528, %v3640
      %v3642 = vpop.f32.mrb[0].mxu0
      %v3643 = vadd.f32 %v3530, %v3642
      %3644 = vmatprep.mubr.bf16.mxu0 %v1022
      %3645 = vmatmul.mubr.bf16.gmra.mrb[0].mxu0 %v1021
      %v3646 = vpop.f32.mrb[0].mxu0
      %v3647 = vadd.f32 %v3534, %v3646
      %v3648 = vpop.f32.mrb[0].mxu0
      %v3649 = vadd.f32 %v3536, %v3648
      %v3650 = vpop.f32.mrb[0].mxu0
      %v3651 = vadd.f32 %v3538, %v3650
      %v3652 = vpop.f32.mrb[0].mxu0
      %v3653 = vadd.f32 %v3540, %v3652
      %3654 = vdwg.mxu0
      %v3655 = vld [vmem:[%s5] ss:$4 sm:$0xf]
      %v3657 = vlaneseq
      %v3658 = vshrl.u32 %v3657, 7
      %v3659 = vsub.s32 0, %v3658
      %v3660 = vrot.slane %v3655, %v3659
      %v3661 = vlaneseq
      %v3662 = vshrl.u32 %v3661, 7
      %v3663 = vsub.s32 1, %v3662
      %v3664 = vrot.slane %v3655, %v3663
      %v3665 = vlaneseq
      %v3666 = vshrl.u32 %v3665, 7
      %v3667 = vsub.s32 2, %v3666
      %v3668 = vrot.slane %v3655, %v3667
      %v3669 = vlaneseq
      %v3670 = vshrl.u32 %v3669, 7
      %v3671 = vsub.s32 3, %v3670
      %v3672 = vrot.slane %v3655, %v3671
      %v3677 = vadd.f32 %v3351, %v3660
      %v3678 = vadd.f32 %v3353, %v3664
      %v3679 = vadd.f32 %v3577, %v3668
      %v3680 = vadd.f32 %v3579, %v3672
      %v3681 = vadd.f32 %v3355, %v3660
      %v3682 = vadd.f32 %v3357, %v3664
      %v3683 = vadd.f32 %v3581, %v3668
      %v3684 = vadd.f32 %v3583, %v3672
      %v3685 = vadd.f32 %v3361, %v3660
      %v3686 = vadd.f32 %v3363, %v3664
      %v3687 = vadd.f32 %v3587, %v3668
      %v3688 = vadd.f32 %v3589, %v3672
      %v3689 = vadd.f32 %v3365, %v3660
      %v3690 = vadd.f32 %v3367, %v3664
      %v3691 = vadd.f32 %v3591, %v3668
      %v3692 = vadd.f32 %v3593, %v3672
      %v3693 = vadd.f32 %v3371, %v3660
      %v3694 = vadd.f32 %v3373, %v3664
      %v3695 = vadd.f32 %v3597, %v3668
      %v3696 = vadd.f32 %v3599, %v3672
      %v3697 = vadd.f32 %v3375, %v3660
      %v3698 = vadd.f32 %v3377, %v3664
      %v3699 = vadd.f32 %v3601, %v3668
      %v3700 = vadd.f32 %v3603, %v3672
      %v3701 = vadd.f32 %v3381, %v3660
      %v3702 = vadd.f32 %v3383, %v3664
      %v3703 = vadd.f32 %v3607, %v3668
      %v3704 = vadd.f32 %v3609, %v3672
      %v3705 = vadd.f32 %v3385, %v3660
      %v3706 = vadd.f32 %v3387, %v3664
      %v3707 = vadd.f32 %v3611, %v3668
      %v3708 = vadd.f32 %v3613, %v3672
      %v3709 = vadd.f32 %v3391, %v3660
      %v3710 = vadd.f32 %v3393, %v3664
      %v3711 = vadd.f32 %v3617, %v3668
      %v3712 = vadd.f32 %v3619, %v3672
      %v3713 = vadd.f32 %v3395, %v3660
      %v3714 = vadd.f32 %v3397, %v3664
      %v3715 = vadd.f32 %v3621, %v3668
      %v3716 = vadd.f32 %v3623, %v3672
      %v3717 = vadd.f32 %v3401, %v3660
      %v3718 = vadd.f32 %v3403, %v3664
      %v3719 = vadd.f32 %v3627, %v3668
      %v3720 = vadd.f32 %v3629, %v3672
      %v3721 = vadd.f32 %v3405, %v3660
      %v3722 = vadd.f32 %v3407, %v3664
      %v3723 = vadd.f32 %v3631, %v3668
      %v3724 = vadd.f32 %v3633, %v3672
      %v3725 = vadd.f32 %v3411, %v3660
      %v3726 = vadd.f32 %v3413, %v3664
      %v3727 = vadd.f32 %v3637, %v3668
      %v3728 = vadd.f32 %v3639, %v3672
      %v3729 = vadd.f32 %v3415, %v3660
      %v3730 = vadd.f32 %v3417, %v3664
      %v3731 = vadd.f32 %v3641, %v3668
      %v3732 = vadd.f32 %v3643, %v3672
      %v3733 = vadd.f32 %v3421, %v3660
      %v3734 = vadd.f32 %v3423, %v3664
      %v3735 = vadd.f32 %v3647, %v3668
      %v3736 = vadd.f32 %v3649, %v3672
      %v3737 = vadd.f32 %v3425, %v3660
      %v3738 = vadd.f32 %v3427, %v3664
      %v3739 = vadd.f32 %v3651, %v3668
      %v3740 = vadd.f32 %v3653, %v3672
      %s3741 = scalar_lea.vmem %s5, 1
      %v3742 = vld [vmem:[%s3741] ss:$4 sm:$0xf]
      %s3743 = scalar_lea.vmem %s5, 2
      %v3744 = vld [vmem:[%s3743] ss:$4 sm:$0xf]
      %v3745 = vadd.f32 %v3677, %v3678
      %v3746 = vadd.f32 %v3745, %v3679
      %v3747 = vadd.f32 %v3746, %v3680
      %3748 = vadd.xlane.f32.xlu0 %v3747
      %v3749 = vpop.xlane.xlu0 %3748
      %v3750 = vadd.f32 %v3681, %v3682
      %v3751 = vadd.f32 %v3750, %v3683
      %v3752 = vadd.f32 %v3751, %v3684
      %3753 = vadd.xlane.f32.xlu0 %v3752
      %v3754 = vpop.xlane.xlu0 %3753
      %v3755 = vadd.f32 %v3685, %v3686
      %v3756 = vadd.f32 %v3755, %v3687
      %v3757 = vadd.f32 %v3756, %v3688
      %3758 = vadd.xlane.f32.xlu0 %v3757
      %v3759 = vpop.xlane.xlu0 %3758
      %v3760 = vadd.f32 %v3689, %v3690
      %v3761 = vadd.f32 %v3760, %v3691
      %v3762 = vadd.f32 %v3761, %v3692
      %3763 = vadd.xlane.f32.xlu0 %v3762
      %v3764 = vpop.xlane.xlu0 %3763
      %v3765 = vadd.f32 %v3693, %v3694
      %v3766 = vadd.f32 %v3765, %v3695
      %v3767 = vadd.f32 %v3766, %v3696
      %3768 = vadd.xlane.f32.xlu0 %v3767
      %v3769 = vpop.xlane.xlu0 %3768
      %v3770 = vadd.f32 %v3697, %v3698
      %v3771 = vadd.f32 %v3770, %v3699
      %v3772 = vadd.f32 %v3771, %v3700
      %3773 = vadd.xlane.f32.xlu0 %v3772
      %v3774 = vpop.xlane.xlu0 %3773
      %v3775 = vadd.f32 %v3701, %v3702
      %v3776 = vadd.f32 %v3775, %v3703
      %v3777 = vadd.f32 %v3776, %v3704
      %3778 = vadd.xlane.f32.xlu0 %v3777
      %v3779 = vpop.xlane.xlu0 %3778
      %v3780 = vadd.f32 %v3705, %v3706
      %v3781 = vadd.f32 %v3780, %v3707
      %v3782 = vadd.f32 %v3781, %v3708
      %3783 = vadd.xlane.f32.xlu0 %v3782
      %v3784 = vpop.xlane.xlu0 %3783
      %v3785 = vadd.f32 %v3709, %v3710
      %v3786 = vadd.f32 %v3785, %v3711
      %v3787 = vadd.f32 %v3786, %v3712
      %3788 = vadd.xlane.f32.xlu0 %v3787
      %v3789 = vpop.xlane.xlu0 %3788
      %v3790 = vadd.f32 %v3713, %v3714
      %v3791 = vadd.f32 %v3790, %v3715
      %v3792 = vadd.f32 %v3791, %v3716
      %3793 = vadd.xlane.f32.xlu0 %v3792
      %v3794 = vpop.xlane.xlu0 %3793
      %v3795 = vadd.f32 %v3717, %v3718
      %v3796 = vadd.f32 %v3795, %v3719
      %v3797 = vadd.f32 %v3796, %v3720
      %3798 = vadd.xlane.f32.xlu0 %v3797
      %v3799 = vpop.xlane.xlu0 %3798
      %v3800 = vadd.f32 %v3721, %v3722
      %v3801 = vadd.f32 %v3800, %v3723
      %v3802 = vadd.f32 %v3801, %v3724
      %3803 = vadd.xlane.f32.xlu0 %v3802
      %v3804 = vpop.xlane.xlu0 %3803
      %v3805 = vadd.f32 %v3725, %v3726
      %v3806 = vadd.f32 %v3805, %v3727
      %v3807 = vadd.f32 %v3806, %v3728
      %3808 = vadd.xlane.f32.xlu0 %v3807
      %v3809 = vpop.xlane.xlu0 %3808
      %v3810 = vadd.f32 %v3729, %v3730
      %v3811 = vadd.f32 %v3810, %v3731
      %v3812 = vadd.f32 %v3811, %v3732
      %3813 = vadd.xlane.f32.xlu0 %v3812
      %v3814 = vpop.xlane.xlu0 %3813
      %v3815 = vadd.f32 %v3733, %v3734
      %v3816 = vadd.f32 %v3815, %v3735
      %v3817 = vadd.f32 %v3816, %v3736
      %3818 = vadd.xlane.f32.xlu0 %v3817
      %v3819 = vpop.xlane.xlu0 %3818
      %v3820 = vadd.f32 %v3737, %v3738
      %v3821 = vadd.f32 %v3820, %v3739
      %v3822 = vadd.f32 %v3821, %v3740
      %3823 = vadd.xlane.f32.xlu0 %v3822
      %v3824 = vpop.xlane.xlu0 %3823
      %v3825 = vrcp.pop 512.0
      %v3826 = vmul.f32 %v3749, %v3825
      %v3827 = vmul.f32 %v3754, %v3825
      %v3828 = vmul.f32 %v3759, %v3825
      %v3829 = vmul.f32 %v3764, %v3825
      %v3830 = vmul.f32 %v3769, %v3825
      %v3831 = vmul.f32 %v3774, %v3825
      %v3832 = vmul.f32 %v3779, %v3825
      %v3833 = vmul.f32 %v3784, %v3825
      %v3834 = vmul.f32 %v3789, %v3825
      %v3835 = vmul.f32 %v3794, %v3825
      %v3836 = vmul.f32 %v3799, %v3825
      %v3837 = vmul.f32 %v3804, %v3825
      %v3838 = vmul.f32 %v3809, %v3825
      %v3839 = vmul.f32 %v3814, %v3825
      %v3840 = vmul.f32 %v3819, %v3825
      %v3841 = vmul.f32 %v3824, %v3825
      %v3842 = vsub.f32 %v3677, %v3826
      %v3843 = vsub.f32 %v3678, %v3826
      %v3844 = vsub.f32 %v3679, %v3826
      %v3845 = vsub.f32 %v3680, %v3826
      %v3846 = vsub.f32 %v3681, %v3827
      %v3847 = vsub.f32 %v3682, %v3827
      %v3848 = vsub.f32 %v3683, %v3827
      %v3849 = vsub.f32 %v3684, %v3827
      %v3850 = vsub.f32 %v3685, %v3828
      %v3851 = vsub.f32 %v3686, %v3828
      %v3852 = vsub.f32 %v3687, %v3828
      %v3853 = vsub.f32 %v3688, %v3828
      %v3854 = vsub.f32 %v3689, %v3829
      %v3855 = vsub.f32 %v3690, %v3829
      %v3856 = vsub.f32 %v3691, %v3829
      %v3857 = vsub.f32 %v3692, %v3829
      %v3858 = vsub.f32 %v3693, %v3830
      %v3859 = vsub.f32 %v3694, %v3830
      %v3860 = vsub.f32 %v3695, %v3830
      %v3861 = vsub.f32 %v3696, %v3830
      %v3862 = vsub.f32 %v3697, %v3831
      %v3863 = vsub.f32 %v3698, %v3831
      %v3864 = vsub.f32 %v3699, %v3831
      %v3865 = vsub.f32 %v3700, %v3831
      %v3866 = vsub.f32 %v3701, %v3832
      %v3867 = vsub.f32 %v3702, %v3832
      %v3868 = vsub.f32 %v3703, %v3832
      %v3869 = vsub.f32 %v3704, %v3832
      %v3870 = vsub.f32 %v3705, %v3833
      %v3871 = vsub.f32 %v3706, %v3833
      %v3872 = vsub.f32 %v3707, %v3833
      %v3873 = vsub.f32 %v3708, %v3833
      %v3874 = vsub.f32 %v3709, %v3834
      %v3875 = vsub.f32 %v3710, %v3834
      %v3876 = vsub.f32 %v3711, %v3834
      %v3877 = vsub.f32 %v3712, %v3834
      %v3878 = vsub.f32 %v3713, %v3835
      %v3879 = vsub.f32 %v3714, %v3835
      %v3880 = vsub.f32 %v3715, %v3835
      %v3881 = vsub.f32 %v3716, %v3835
      %v3882 = vsub.f32 %v3717, %v3836
      %v3883 = vsub.f32 %v3718, %v3836
      %v3884 = vsub.f32 %v3719, %v3836
      %v3885 = vsub.f32 %v3720, %v3836
      %v3886 = vsub.f32 %v3721, %v3837
      %v3887 = vsub.f32 %v3722, %v3837
      %v3888 = vsub.f32 %v3723, %v3837
      %v3889 = vsub.f32 %v3724, %v3837
      %v3890 = vsub.f32 %v3725, %v3838
      %v3891 = vsub.f32 %v3726, %v3838
      %v3892 = vsub.f32 %v3727, %v3838
      %v3893 = vsub.f32 %v3728, %v3838
      %v3894 = vsub.f32 %v3729, %v3839
      %v3895 = vsub.f32 %v3730, %v3839
      %v3896 = vsub.f32 %v3731, %v3839
      %v3897 = vsub.f32 %v3732, %v3839
      %v3898 = vsub.f32 %v3733, %v3840
      %v3899 = vsub.f32 %v3734, %v3840
      %v3900 = vsub.f32 %v3735, %v3840
      %v3901 = vsub.f32 %v3736, %v3840
      %v3902 = vsub.f32 %v3737, %v3841
      %v3903 = vsub.f32 %v3738, %v3841
      %v3904 = vsub.f32 %v3739, %v3841
      %v3905 = vsub.f32 %v3740, %v3841
      %v3906 = vmul.f32 %v3842, %v3842
      %v3907 = vmul.f32 %v3843, %v3843
      %v3908 = vmul.f32 %v3844, %v3844
      %v3909 = vmul.f32 %v3845, %v3845
      %v3910 = vmul.f32 %v3846, %v3846
      %v3911 = vmul.f32 %v3847, %v3847
      %v3912 = vmul.f32 %v3848, %v3848
      %v3913 = vmul.f32 %v3849, %v3849
      %v3914 = vmul.f32 %v3850, %v3850
      %v3915 = vmul.f32 %v3851, %v3851
      %v3916 = vmul.f32 %v3852, %v3852
      %v3917 = vmul.f32 %v3853, %v3853
      %v3918 = vmul.f32 %v3854, %v3854
      %v3919 = vmul.f32 %v3855, %v3855
      %v3920 = vmul.f32 %v3856, %v3856
      %v3921 = vmul.f32 %v3857, %v3857
      %v3922 = vmul.f32 %v3858, %v3858
      %v3923 = vmul.f32 %v3859, %v3859
      %v3924 = vmul.f32 %v3860, %v3860
      %v3925 = vmul.f32 %v3861, %v3861
      %v3926 = vmul.f32 %v3862, %v3862
      %v3927 = vmul.f32 %v3863, %v3863
      %v3928 = vmul.f32 %v3864, %v3864
      %v3929 = vmul.f32 %v3865, %v3865
      %v3930 = vmul.f32 %v3866, %v3866
      %v3931 = vmul.f32 %v3867, %v3867
      %v3932 = vmul.f32 %v3868, %v3868
      %v3933 = vmul.f32 %v3869, %v3869
      %v3934 = vmul.f32 %v3870, %v3870
      %v3935 = vmul.f32 %v3871, %v3871
      %v3936 = vmul.f32 %v3872, %v3872
      %v3937 = vmul.f32 %v3873, %v3873
      %v3938 = vmul.f32 %v3874, %v3874
      %v3939 = vmul.f32 %v3875, %v3875
      %v3940 = vmul.f32 %v3876, %v3876
      %v3941 = vmul.f32 %v3877, %v3877
      %v3942 = vmul.f32 %v3878, %v3878
      %v3943 = vmul.f32 %v3879, %v3879
      %v3944 = vmul.f32 %v3880, %v3880
      %v3945 = vmul.f32 %v3881, %v3881
      %v3946 = vmul.f32 %v3882, %v3882
      %v3947 = vmul.f32 %v3883, %v3883
      %v3948 = vmul.f32 %v3884, %v3884
      %v3949 = vmul.f32 %v3885, %v3885
      %v3950 = vmul.f32 %v3886, %v3886
      %v3951 = vmul.f32 %v3887, %v3887
      %v3952 = vmul.f32 %v3888, %v3888
      %v3953 = vmul.f32 %v3889, %v3889
      %v3954 = vmul.f32 %v3890, %v3890
      %v3955 = vmul.f32 %v3891, %v3891
      %v3956 = vmul.f32 %v3892, %v3892
      %v3957 = vmul.f32 %v3893, %v3893
      %v3958 = vmul.f32 %v3894, %v3894
      %v3959 = vmul.f32 %v3895, %v3895
      %v3960 = vmul.f32 %v3896, %v3896
      %v3961 = vmul.f32 %v3897, %v3897
      %v3962 = vmul.f32 %v3898, %v3898
      %v3963 = vmul.f32 %v3899, %v3899
      %v3964 = vmul.f32 %v3900, %v3900
      %v3965 = vmul.f32 %v3901, %v3901
      %v3966 = vmul.f32 %v3902, %v3902
      %v3967 = vmul.f32 %v3903, %v3903
      %v3968 = vmul.f32 %v3904, %v3904
      %v3969 = vmul.f32 %v3905, %v3905
      %v3970 = vadd.f32 %v3906, %v3907
      %v3971 = vadd.f32 %v3970, %v3908
      %v3972 = vadd.f32 %v3971, %v3909
      %3973 = vadd.xlane.f32.xlu0 %v3972
      %v3974 = vpop.xlane.xlu0 %3973
      %v3975 = vadd.f32 %v3910, %v3911
      %v3976 = vadd.f32 %v3975, %v3912
      %v3977 = vadd.f32 %v3976, %v3913
      %3978 = vadd.xlane.f32.xlu0 %v3977
      %v3979 = vpop.xlane.xlu0 %3978
      %v3980 = vadd.f32 %v3914, %v3915
      %v3981 = vadd.f32 %v3980, %v3916
      %v3982 = vadd.f32 %v3981, %v3917
      %3983 = vadd.xlane.f32.xlu0 %v3982
      %v3984 = vpop.xlane.xlu0 %3983
      %v3985 = vadd.f32 %v3918, %v3919
      %v3986 = vadd.f32 %v3985, %v3920
      %v3987 = vadd.f32 %v3986, %v3921
      %3988 = vadd.xlane.f32.xlu0 %v3987
      %v3989 = vpop.xlane.xlu0 %3988
      %v3990 = vadd.f32 %v3922, %v3923
      %v3991 = vadd.f32 %v3990, %v3924
      %v3992 = vadd.f32 %v3991, %v3925
      %3993 = vadd.xlane.f32.xlu0 %v3992
      %v3994 = vpop.xlane.xlu0 %3993
      %v3995 = vadd.f32 %v3926, %v3927
      %v3996 = vadd.f32 %v3995, %v3928
      %v3997 = vadd.f32 %v3996, %v3929
      %3998 = vadd.xlane.f32.xlu0 %v3997
      %v3999 = vpop.xlane.xlu0 %3998
      %v4000 = vadd.f32 %v3930, %v3931
      %v4001 = vadd.f32 %v4000, %v3932
      %v4002 = vadd.f32 %v4001, %v3933
      %4003 = vadd.xlane.f32.xlu0 %v4002
      %v4004 = vpop.xlane.xlu0 %4003
      %v4005 = vadd.f32 %v3934, %v3935
      %v4006 = vadd.f32 %v4005, %v3936
      %v4007 = vadd.f32 %v4006, %v3937
      %4008 = vadd.xlane.f32.xlu0 %v4007
      %v4009 = vpop.xlane.xlu0 %4008
      %v4010 = vadd.f32 %v3938, %v3939
      %v4011 = vadd.f32 %v4010, %v3940
      %v4012 = vadd.f32 %v4011, %v3941
      %4013 = vadd.xlane.f32.xlu0 %v4012
      %v4014 = vpop.xlane.xlu0 %4013
      %v4015 = vadd.f32 %v3942, %v3943
      %v4016 = vadd.f32 %v4015, %v3944
      %v4017 = vadd.f32 %v4016, %v3945
      %4018 = vadd.xlane.f32.xlu0 %v4017
      %v4019 = vpop.xlane.xlu0 %4018
      %v4020 = vadd.f32 %v3946, %v3947
      %v4021 = vadd.f32 %v4020, %v3948
      %v4022 = vadd.f32 %v4021, %v3949
      %4023 = vadd.xlane.f32.xlu0 %v4022
      %v4024 = vpop.xlane.xlu0 %4023
      %v4025 = vadd.f32 %v3950, %v3951
      %v4026 = vadd.f32 %v4025, %v3952
      %v4027 = vadd.f32 %v4026, %v3953
      %4028 = vadd.xlane.f32.xlu0 %v4027
      %v4029 = vpop.xlane.xlu0 %4028
      %v4030 = vadd.f32 %v3954, %v3955
      %v4031 = vadd.f32 %v4030, %v3956
      %v4032 = vadd.f32 %v4031, %v3957
      %4033 = vadd.xlane.f32.xlu0 %v4032
      %v4034 = vpop.xlane.xlu0 %4033
      %v4035 = vadd.f32 %v3958, %v3959
      %v4036 = vadd.f32 %v4035, %v3960
      %v4037 = vadd.f32 %v4036, %v3961
      %4038 = vadd.xlane.f32.xlu0 %v4037
      %v4039 = vpop.xlane.xlu0 %4038
      %v4040 = vadd.f32 %v3962, %v3963
      %v4041 = vadd.f32 %v4040, %v3964
      %v4042 = vadd.f32 %v4041, %v3965
      %4043 = vadd.xlane.f32.xlu0 %v4042
      %v4044 = vpop.xlane.xlu0 %4043
      %v4045 = vadd.f32 %v3966, %v3967
      %v4046 = vadd.f32 %v4045, %v3968
      %v4047 = vadd.f32 %v4046, %v3969
      %4048 = vadd.xlane.f32.xlu0 %v4047
      %v4049 = vpop.xlane.xlu0 %4048
      %v4050 = vmul.f32 %v3974, %v3825
      %v4051 = vmul.f32 %v3979, %v3825
      %v4052 = vmul.f32 %v3984, %v3825
      %v4053 = vmul.f32 %v3989, %v3825
      %v4054 = vmul.f32 %v3994, %v3825
      %v4055 = vmul.f32 %v3999, %v3825
      %v4056 = vmul.f32 %v4004, %v3825
      %v4057 = vmul.f32 %v4009, %v3825
      %v4058 = vmul.f32 %v4014, %v3825
      %v4059 = vmul.f32 %v4019, %v3825
      %v4060 = vmul.f32 %v4024, %v3825
      %v4061 = vmul.f32 %v4029, %v3825
      %v4062 = vmul.f32 %v4034, %v3825
      %v4063 = vmul.f32 %v4039, %v3825
      %v4064 = vmul.f32 %v4044, %v3825
      %v4065 = vmul.f32 %v4049, %v3825
      %v4066 = vadd.f32 %v4050, 1e-05
      %v4067 = vadd.f32 %v4051, 1e-05
      %v4068 = vadd.f32 %v4052, 1e-05
      %v4069 = vadd.f32 %v4053, 1e-05
      %v4070 = vadd.f32 %v4054, 1e-05
      %v4071 = vadd.f32 %v4055, 1e-05
      %v4072 = vadd.f32 %v4056, 1e-05
      %v4073 = vadd.f32 %v4057, 1e-05
      %v4074 = vadd.f32 %v4058, 1e-05
      %v4075 = vadd.f32 %v4059, 1e-05
      %v4076 = vadd.f32 %v4060, 1e-05
      %v4077 = vadd.f32 %v4061, 1e-05
      %v4078 = vadd.f32 %v4062, 1e-05
      %v4079 = vadd.f32 %v4063, 1e-05
      %v4080 = vadd.f32 %v4064, 1e-05
      %v4081 = vadd.f32 %v4065, 1e-05
      %v4082 = vrsqrt.pop %v4066
      %v4083 = vrsqrt.pop %v4067
      %v4084 = vrsqrt.pop %v4068
      %v4085 = vrsqrt.pop %v4069
      %v4086 = vrsqrt.pop %v4070
      %v4087 = vrsqrt.pop %v4071
      %v4088 = vrsqrt.pop %v4072
      %v4089 = vrsqrt.pop %v4073
      %v4090 = vrsqrt.pop %v4074
      %v4091 = vrsqrt.pop %v4075
      %v4092 = vrsqrt.pop %v4076
      %v4093 = vrsqrt.pop %v4077
      %v4094 = vrsqrt.pop %v4078
      %v4095 = vrsqrt.pop %v4079
      %v4096 = vrsqrt.pop %v4080
      %v4097 = vrsqrt.pop %v4081
      %v4098 = vmul.f32 %v3842, %v4082
      %v4099 = vmul.f32 %v3843, %v4082
      %v4100 = vmul.f32 %v3844, %v4082
      %v4101 = vmul.f32 %v3845, %v4082
      %v4102 = vmul.f32 %v3846, %v4083
      %v4103 = vmul.f32 %v3847, %v4083
      %v4104 = vmul.f32 %v3848, %v4083
      %v4105 = vmul.f32 %v3849, %v4083
      %v4106 = vmul.f32 %v3850, %v4084
      %v4107 = vmul.f32 %v3851, %v4084
      %v4108 = vmul.f32 %v3852, %v4084
      %v4109 = vmul.f32 %v3853, %v4084
      %v4110 = vmul.f32 %v3854, %v4085
      %v4111 = vmul.f32 %v3855, %v4085
      %v4112 = vmul.f32 %v3856, %v4085
      %v4113 = vmul.f32 %v3857, %v4085
      %v4114 = vmul.f32 %v3858, %v4086
      %v4115 = vmul.f32 %v3859, %v4086
      %v4116 = vmul.f32 %v3860, %v4086
      %v4117 = vmul.f32 %v3861, %v4086
      %v4118 = vmul.f32 %v3862, %v4087
      %v4119 = vmul.f32 %v3863, %v4087
      %v4120 = vmul.f32 %v3864, %v4087
      %v4121 = vmul.f32 %v3865, %v4087
      %v4122 = vmul.f32 %v3866, %v4088
      %v4123 = vmul.f32 %v3867, %v4088
      %v4124 = vmul.f32 %v3868, %v4088
      %v4125 = vmul.f32 %v3869, %v4088
      %v4126 = vmul.f32 %v3870, %v4089
      %v4127 = vmul.f32 %v3871, %v4089
      %v4128 = vmul.f32 %v3872, %v4089
      %v4129 = vmul.f32 %v3873, %v4089
      %v4130 = vmul.f32 %v3874, %v4090
      %v4131 = vmul.f32 %v3875, %v4090
      %v4132 = vmul.f32 %v3876, %v4090
      %v4133 = vmul.f32 %v3877, %v4090
      %v4134 = vmul.f32 %v3878, %v4091
      %v4135 = vmul.f32 %v3879, %v4091
      %v4136 = vmul.f32 %v3880, %v4091
      %v4137 = vmul.f32 %v3881, %v4091
      %v4138 = vmul.f32 %v3882, %v4092
      %v4139 = vmul.f32 %v3883, %v4092
      %v4140 = vmul.f32 %v3884, %v4092
      %v4141 = vmul.f32 %v3885, %v4092
      %v4142 = vmul.f32 %v3886, %v4093
      %v4143 = vmul.f32 %v3887, %v4093
      %v4144 = vmul.f32 %v3888, %v4093
      %v4145 = vmul.f32 %v3889, %v4093
      %v4146 = vmul.f32 %v3890, %v4094
      %v4147 = vmul.f32 %v3891, %v4094
      %v4148 = vmul.f32 %v3892, %v4094
      %v4149 = vmul.f32 %v3893, %v4094
      %v4150 = vmul.f32 %v3894, %v4095
      %v4151 = vmul.f32 %v3895, %v4095
      %v4152 = vmul.f32 %v3896, %v4095
      %v4153 = vmul.f32 %v3897, %v4095
      %v4154 = vmul.f32 %v3898, %v4096
      %v4155 = vmul.f32 %v3899, %v4096
      %v4156 = vmul.f32 %v3900, %v4096
      %v4157 = vmul.f32 %v3901, %v4096
      %v4158 = vmul.f32 %v3902, %v4097
      %v4159 = vmul.f32 %v3903, %v4097
      %v4160 = vmul.f32 %v3904, %v4097
      %v4161 = vmul.f32 %v3905, %v4097
      %v4163 = vlaneseq
      %v4164 = vshrl.u32 %v4163, 7
      %v4165 = vsub.s32 0, %v4164
      %v4166 = vrot.slane %v3742, %v4165
      %v4167 = vlaneseq
      %v4168 = vshrl.u32 %v4167, 7
      %v4169 = vsub.s32 1, %v4168
      %v4170 = vrot.slane %v3742, %v4169
      %v4171 = vlaneseq
      %v4172 = vshrl.u32 %v4171, 7
      %v4173 = vsub.s32 2, %v4172
      %v4174 = vrot.slane %v3742, %v4173
      %v4175 = vlaneseq
      %v4176 = vshrl.u32 %v4175, 7
      %v4177 = vsub.s32 3, %v4176
      %v4178 = vrot.slane %v3742, %v4177
      %v4183 = vmul.f32 %v4098, %v4166
      %v4184 = vmul.f32 %v4099, %v4170
      %v4185 = vmul.f32 %v4100, %v4174
      %v4186 = vmul.f32 %v4101, %v4178
      %v4187 = vmul.f32 %v4102, %v4166
      %v4188 = vmul.f32 %v4103, %v4170
      %v4189 = vmul.f32 %v4104, %v4174
      %v4190 = vmul.f32 %v4105, %v4178
      %v4191 = vmul.f32 %v4106, %v4166
      %v4192 = vmul.f32 %v4107, %v4170
      %v4193 = vmul.f32 %v4108, %v4174
      %v4194 = vmul.f32 %v4109, %v4178
      %v4195 = vmul.f32 %v4110, %v4166
      %v4196 = vmul.f32 %v4111, %v4170
      %v4197 = vmul.f32 %v4112, %v4174
      %v4198 = vmul.f32 %v4113, %v4178
      %v4199 = vmul.f32 %v4114, %v4166
      %v4200 = vmul.f32 %v4115, %v4170
      %v4201 = vmul.f32 %v4116, %v4174
      %v4202 = vmul.f32 %v4117, %v4178
      %v4203 = vmul.f32 %v4118, %v4166
      %v4204 = vmul.f32 %v4119, %v4170
      %v4205 = vmul.f32 %v4120, %v4174
      %v4206 = vmul.f32 %v4121, %v4178
      %v4207 = vmul.f32 %v4122, %v4166
      %v4208 = vmul.f32 %v4123, %v4170
      %v4209 = vmul.f32 %v4124, %v4174
      %v4210 = vmul.f32 %v4125, %v4178
      %v4211 = vmul.f32 %v4126, %v4166
      %v4212 = vmul.f32 %v4127, %v4170
      %v4213 = vmul.f32 %v4128, %v4174
      %v4214 = vmul.f32 %v4129, %v4178
      %v4215 = vmul.f32 %v4130, %v4166
      %v4216 = vmul.f32 %v4131, %v4170
      %v4217 = vmul.f32 %v4132, %v4174
      %v4218 = vmul.f32 %v4133, %v4178
      %v4219 = vmul.f32 %v4134, %v4166
      %v4220 = vmul.f32 %v4135, %v4170
      %v4221 = vmul.f32 %v4136, %v4174
      %v4222 = vmul.f32 %v4137, %v4178
      %v4223 = vmul.f32 %v4138, %v4166
      %v4224 = vmul.f32 %v4139, %v4170
      %v4225 = vmul.f32 %v4140, %v4174
      %v4226 = vmul.f32 %v4141, %v4178
      %v4227 = vmul.f32 %v4142, %v4166
      %v4228 = vmul.f32 %v4143, %v4170
      %v4229 = vmul.f32 %v4144, %v4174
      %v4230 = vmul.f32 %v4145, %v4178
      %v4231 = vmul.f32 %v4146, %v4166
      %v4232 = vmul.f32 %v4147, %v4170
      %v4233 = vmul.f32 %v4148, %v4174
      %v4234 = vmul.f32 %v4149, %v4178
      %v4235 = vmul.f32 %v4150, %v4166
      %v4236 = vmul.f32 %v4151, %v4170
      %v4237 = vmul.f32 %v4152, %v4174
      %v4238 = vmul.f32 %v4153, %v4178
      %v4239 = vmul.f32 %v4154, %v4166
      %v4240 = vmul.f32 %v4155, %v4170
      %v4241 = vmul.f32 %v4156, %v4174
      %v4242 = vmul.f32 %v4157, %v4178
      %v4243 = vmul.f32 %v4158, %v4166
      %v4244 = vmul.f32 %v4159, %v4170
      %v4245 = vmul.f32 %v4160, %v4174
      %v4246 = vmul.f32 %v4161, %v4178
      %v4248 = vlaneseq
      %v4249 = vshrl.u32 %v4248, 7
      %v4250 = vsub.s32 0, %v4249
      %v4251 = vrot.slane %v3744, %v4250
      %v4252 = vlaneseq
      %v4253 = vshrl.u32 %v4252, 7
      %v4254 = vsub.s32 1, %v4253
      %v4255 = vrot.slane %v3744, %v4254
      %v4256 = vlaneseq
      %v4257 = vshrl.u32 %v4256, 7
      %v4258 = vsub.s32 2, %v4257
      %v4259 = vrot.slane %v3744, %v4258
      %v4260 = vlaneseq
      %v4261 = vshrl.u32 %v4260, 7
      %v4262 = vsub.s32 3, %v4261
      %v4263 = vrot.slane %v3744, %v4262
      %v4268 = vadd.f32 %v4183, %v4251
      %v4269 = vadd.f32 %v4184, %v4255
      %v4270 = vadd.f32 %v4185, %v4259
      %v4271 = vadd.f32 %v4186, %v4263
      %v4272 = vadd.f32 %v4187, %v4251
      %v4273 = vadd.f32 %v4188, %v4255
      %v4274 = vadd.f32 %v4189, %v4259
      %v4275 = vadd.f32 %v4190, %v4263
      %v4276 = vadd.f32 %v4191, %v4251
      %v4277 = vadd.f32 %v4192, %v4255
      %v4278 = vadd.f32 %v4193, %v4259
      %v4279 = vadd.f32 %v4194, %v4263
      %v4280 = vadd.f32 %v4195, %v4251
      %v4281 = vadd.f32 %v4196, %v4255
      %v4282 = vadd.f32 %v4197, %v4259
      %v4283 = vadd.f32 %v4198, %v4263
      %v4284 = vadd.f32 %v4199, %v4251
      %v4285 = vadd.f32 %v4200, %v4255
      %v4286 = vadd.f32 %v4201, %v4259
      %v4287 = vadd.f32 %v4202, %v4263
      %v4288 = vadd.f32 %v4203, %v4251
      %v4289 = vadd.f32 %v4204, %v4255
      %v4290 = vadd.f32 %v4205, %v4259
      %v4291 = vadd.f32 %v4206, %v4263
      %v4292 = vadd.f32 %v4207, %v4251
      %v4293 = vadd.f32 %v4208, %v4255
      %v4294 = vadd.f32 %v4209, %v4259
      %v4295 = vadd.f32 %v4210, %v4263
      %v4296 = vadd.f32 %v4211, %v4251
      %v4297 = vadd.f32 %v4212, %v4255
      %v4298 = vadd.f32 %v4213, %v4259
      %v4299 = vadd.f32 %v4214, %v4263
      %v4300 = vadd.f32 %v4215, %v4251
      %v4301 = vadd.f32 %v4216, %v4255
      %v4302 = vadd.f32 %v4217, %v4259
      %v4303 = vadd.f32 %v4218, %v4263
      %v4304 = vadd.f32 %v4219, %v4251
      %v4305 = vadd.f32 %v4220, %v4255
      %v4306 = vadd.f32 %v4221, %v4259
      %v4307 = vadd.f32 %v4222, %v4263
      %v4308 = vadd.f32 %v4223, %v4251
      %v4309 = vadd.f32 %v4224, %v4255
      %v4310 = vadd.f32 %v4225, %v4259
      %v4311 = vadd.f32 %v4226, %v4263
      %v4312 = vadd.f32 %v4227, %v4251
      %v4313 = vadd.f32 %v4228, %v4255
      %v4314 = vadd.f32 %v4229, %v4259
      %v4315 = vadd.f32 %v4230, %v4263
      %v4316 = vadd.f32 %v4231, %v4251
      %v4317 = vadd.f32 %v4232, %v4255
      %v4318 = vadd.f32 %v4233, %v4259
      %v4319 = vadd.f32 %v4234, %v4263
      %v4320 = vadd.f32 %v4235, %v4251
      %v4321 = vadd.f32 %v4236, %v4255
      %v4322 = vadd.f32 %v4237, %v4259
      %v4323 = vadd.f32 %v4238, %v4263
      %v4324 = vadd.f32 %v4239, %v4251
      %v4325 = vadd.f32 %v4240, %v4255
      %v4326 = vadd.f32 %v4241, %v4259
      %v4327 = vadd.f32 %v4242, %v4263
      %v4328 = vadd.f32 %v4243, %v4251
      %v4329 = vadd.f32 %v4244, %v4255
      %v4330 = vadd.f32 %v4245, %v4259
      %v4331 = vadd.f32 %v4246, %v4263
      %v4332 = vmax.f32 %v4268, 0.0
      %v4333 = vmax.f32 %v4269, 0.0
      %v4334 = vmax.f32 %v4270, 0.0
      %v4335 = vmax.f32 %v4271, 0.0
      %v4336 = vmax.f32 %v4272, 0.0
      %v4337 = vmax.f32 %v4273, 0.0
      %v4338 = vmax.f32 %v4274, 0.0
      %v4339 = vmax.f32 %v4275, 0.0
      %v4340 = vmax.f32 %v4276, 0.0
      %v4341 = vmax.f32 %v4277, 0.0
      %v4342 = vmax.f32 %v4278, 0.0
      %v4343 = vmax.f32 %v4279, 0.0
      %v4344 = vmax.f32 %v4280, 0.0
      %v4345 = vmax.f32 %v4281, 0.0
      %v4346 = vmax.f32 %v4282, 0.0
      %v4347 = vmax.f32 %v4283, 0.0
      %v4348 = vmax.f32 %v4284, 0.0
      %v4349 = vmax.f32 %v4285, 0.0
      %v4350 = vmax.f32 %v4286, 0.0
      %v4351 = vmax.f32 %v4287, 0.0
      %v4352 = vmax.f32 %v4288, 0.0
      %v4353 = vmax.f32 %v4289, 0.0
      %v4354 = vmax.f32 %v4290, 0.0
      %v4355 = vmax.f32 %v4291, 0.0
      %v4356 = vmax.f32 %v4292, 0.0
      %v4357 = vmax.f32 %v4293, 0.0
      %v4358 = vmax.f32 %v4294, 0.0
      %v4359 = vmax.f32 %v4295, 0.0
      %v4360 = vmax.f32 %v4296, 0.0
      %v4361 = vmax.f32 %v4297, 0.0
      %v4362 = vmax.f32 %v4298, 0.0
      %v4363 = vmax.f32 %v4299, 0.0
      %v4364 = vmax.f32 %v4300, 0.0
      %v4365 = vmax.f32 %v4301, 0.0
      %v4366 = vmax.f32 %v4302, 0.0
      %v4367 = vmax.f32 %v4303, 0.0
      %v4368 = vmax.f32 %v4304, 0.0
      %v4369 = vmax.f32 %v4305, 0.0
      %v4370 = vmax.f32 %v4306, 0.0
      %v4371 = vmax.f32 %v4307, 0.0
      %v4372 = vmax.f32 %v4308, 0.0
      %v4373 = vmax.f32 %v4309, 0.0
      %v4374 = vmax.f32 %v4310, 0.0
      %v4375 = vmax.f32 %v4311, 0.0
      %v4376 = vmax.f32 %v4312, 0.0
      %v4377 = vmax.f32 %v4313, 0.0
      %v4378 = vmax.f32 %v4314, 0.0
      %v4379 = vmax.f32 %v4315, 0.0
      %v4380 = vmax.f32 %v4316, 0.0
      %v4381 = vmax.f32 %v4317, 0.0
      %v4382 = vmax.f32 %v4318, 0.0
      %v4383 = vmax.f32 %v4319, 0.0
      %v4384 = vmax.f32 %v4320, 0.0
      %v4385 = vmax.f32 %v4321, 0.0
      %v4386 = vmax.f32 %v4322, 0.0
      %v4387 = vmax.f32 %v4323, 0.0
      %v4388 = vmax.f32 %v4324, 0.0
      %v4389 = vmax.f32 %v4325, 0.0
      %v4390 = vmax.f32 %v4326, 0.0
      %v4391 = vmax.f32 %v4327, 0.0
      %v4392 = vmax.f32 %v4328, 0.0
      %v4393 = vmax.f32 %v4329, 0.0
      %v4394 = vmax.f32 %v4330, 0.0
      %v4395 = vmax.f32 %v4331, 0.0
      %v4396 = vpack.c.bf16 %v4336, %v4332
      %v4397 = vpack.c.bf16 %v4337, %v4333
      %v4398 = vpack.c.bf16 %v4338, %v4334
      %v4399 = vpack.c.bf16 %v4339, %v4335
      %v4400 = vpack.c.bf16 %v4344, %v4340
      %v4401 = vpack.c.bf16 %v4345, %v4341
      %v4402 = vpack.c.bf16 %v4346, %v4342
      %v4403 = vpack.c.bf16 %v4347, %v4343
      %v4404 = vpack.c.bf16 %v4352, %v4348
      %v4405 = vpack.c.bf16 %v4353, %v4349
      %v4406 = vpack.c.bf16 %v4354, %v4350
      %v4407 = vpack.c.bf16 %v4355, %v4351
      %v4408 = vpack.c.bf16 %v4360, %v4356
      %v4409 = vpack.c.bf16 %v4361, %v4357
      %v4410 = vpack.c.bf16 %v4362, %v4358
      %v4411 = vpack.c.bf16 %v4363, %v4359
      %v4412 = vpack.c.bf16 %v4368, %v4364
      %v4413 = vpack.c.bf16 %v4369, %v4365
      %v4414 = vpack.c.bf16 %v4370, %v4366
      %v4415 = vpack.c.bf16 %v4371, %v4367
      %v4416 = vpack.c.bf16 %v4376, %v4372
      %v4417 = vpack.c.bf16 %v4377, %v4373
      %v4418 = vpack.c.bf16 %v4378, %v4374
      %v4419 = vpack.c.bf16 %v4379, %v4375
      %v4420 = vpack.c.bf16 %v4384, %v4380
      %v4421 = vpack.c.bf16 %v4385, %v4381
      %v4422 = vpack.c.bf16 %v4386, %v4382
      %v4423 = vpack.c.bf16 %v4387, %v4383
      %v4424 = vpack.c.bf16 %v4392, %v4388
      %v4425 = vpack.c.bf16 %v4393, %v4389
      %v4426 = vpack.c.bf16 %v4394, %v4390
      %v4427 = vpack.c.bf16 %v4395, %v4391
      %v4460 = vunpack.c.l.b16 %v4396
      %v4461 = vunpack.c.l.b16 %v4397
      %v4462 = vunpack.c.l.b16 %v4398
      %v4463 = vunpack.c.l.b16 %v4399
      %v4464 = vunpack.c.h.b16 %v4396
      %v4465 = vunpack.c.h.b16 %v4397
      %v4466 = vunpack.c.h.b16 %v4398
      %v4467 = vunpack.c.h.b16 %v4399
      %v4468 = vunpack.c.l.b16 %v4400
      %v4469 = vunpack.c.l.b16 %v4401
      %v4470 = vunpack.c.l.b16 %v4402
      %v4471 = vunpack.c.l.b16 %v4403
      %v4472 = vunpack.c.h.b16 %v4400
      %v4473 = vunpack.c.h.b16 %v4401
      %v4474 = vunpack.c.h.b16 %v4402
      %v4475 = vunpack.c.h.b16 %v4403
      %v4476 = vunpack.c.l.b16 %v4404
      %v4477 = vunpack.c.l.b16 %v4405
      %v4478 = vunpack.c.l.b16 %v4406
      %v4479 = vunpack.c.l.b16 %v4407
      %v4480 = vunpack.c.h.b16 %v4404
      %v4481 = vunpack.c.h.b16 %v4405
      %v4482 = vunpack.c.h.b16 %v4406
      %v4483 = vunpack.c.h.b16 %v4407
      %v4484 = vunpack.c.l.b16 %v4408
      %v4485 = vunpack.c.l.b16 %v4409
      %v4486 = vunpack.c.l.b16 %v4410
      %v4487 = vunpack.c.l.b16 %v4411
      %v4488 = vunpack.c.h.b16 %v4408
      %v4489 = vunpack.c.h.b16 %v4409
      %v4490 = vunpack.c.h.b16 %v4410
      %v4491 = vunpack.c.h.b16 %v4411
      %v4492 = vunpack.c.l.b16 %v4412
      %v4493 = vunpack.c.l.b16 %v4413
      %v4494 = vunpack.c.l.b16 %v4414
      %v4495 = vunpack.c.l.b16 %v4415
      %v4496 = vunpack.c.h.b16 %v4412
      %v4497 = vunpack.c.h.b16 %v4413
      %v4498 = vunpack.c.h.b16 %v4414
      %v4499 = vunpack.c.h.b16 %v4415
      %v4500 = vunpack.c.l.b16 %v4416
      %v4501 = vunpack.c.l.b16 %v4417
      %v4502 = vunpack.c.l.b16 %v4418
      %v4503 = vunpack.c.l.b16 %v4419
      %v4504 = vunpack.c.h.b16 %v4416
      %v4505 = vunpack.c.h.b16 %v4417
      %v4506 = vunpack.c.h.b16 %v4418
      %v4507 = vunpack.c.h.b16 %v4419
      %v4508 = vunpack.c.l.b16 %v4420
      %v4509 = vunpack.c.l.b16 %v4421
      %v4510 = vunpack.c.l.b16 %v4422
      %v4511 = vunpack.c.l.b16 %v4423
      %v4512 = vunpack.c.h.b16 %v4420
      %v4513 = vunpack.c.h.b16 %v4421
      %v4514 = vunpack.c.h.b16 %v4422
      %v4515 = vunpack.c.h.b16 %v4423
      %v4516 = vunpack.c.l.b16 %v4424
      %v4517 = vunpack.c.l.b16 %v4425
      %v4518 = vunpack.c.l.b16 %v4426
      %v4519 = vunpack.c.l.b16 %v4427
      %v4520 = vunpack.c.h.b16 %v4424
      %v4521 = vunpack.c.h.b16 %v4425
      %v4522 = vunpack.c.h.b16 %v4426
      %v4523 = vunpack.c.h.b16 %v4427
      %v4524 = vpack.c.b16 %v4461, %v4460
      %v4525 = vpack.c.b16 %v4463, %v4462
      %v4526 = vpack.c.b16 %v4465, %v4464
      %v4527 = vpack.c.b16 %v4467, %v4466
      %v4528 = vpack.c.b16 %v4469, %v4468
      %v4529 = vpack.c.b16 %v4471, %v4470
      %v4530 = vpack.c.b16 %v4473, %v4472
      %v4531 = vpack.c.b16 %v4475, %v4474
      %v4532 = vpack.c.b16 %v4477, %v4476
      %v4533 = vpack.c.b16 %v4479, %v4478
      %v4534 = vpack.c.b16 %v4481, %v4480
      %v4535 = vpack.c.b16 %v4483, %v4482
      %v4536 = vpack.c.b16 %v4485, %v4484
      %v4537 = vpack.c.b16 %v4487, %v4486
      %v4538 = vpack.c.b16 %v4489, %v4488
      %v4539 = vpack.c.b16 %v4491, %v4490
      %v4540 = vpack.c.b16 %v4493, %v4492
      %v4541 = vpack.c.b16 %v4495, %v4494
      %v4542 = vpack.c.b16 %v4497, %v4496
      %v4543 = vpack.c.b16 %v4499, %v4498
      %v4544 = vpack.c.b16 %v4501, %v4500
      %v4545 = vpack.c.b16 %v4503, %v4502
      %v4546 = vpack.c.b16 %v4505, %v4504
      %v4547 = vpack.c.b16 %v4507, %v4506
      %v4548 = vpack.c.b16 %v4509, %v4508
      %v4549 = vpack.c.b16 %v4511, %v4510
      %v4550 = vpack.c.b16 %v4513, %v4512
      %v4551 = vpack.c.b16 %v4515, %v4514
      %v4552 = vpack.c.b16 %v4517, %v4516
      %v4553 = vpack.c.b16 %v4519, %v4518
      %v4554 = vpack.c.b16 %v4521, %v4520
      %v4555 = vpack.c.b16 %v4523, %v4522
      %4588 = vst [vmem:[%s283] sm:$0xff] %v4524
      %4589 = vst [vmem:[%s283 + $0x8] sm:$0xff] %v4525
      %4590 = vst [vmem:[%s283 + $0x10] sm:$0xff] %v4526
      %4591 = vst [vmem:[%s283 + $0x18] sm:$0xff] %v4527
      %4592 = vst [vmem:[%s283 + $0x20] sm:$0xff] %v4528
      %4593 = vst [vmem:[%s283 + $0x28] sm:$0xff] %v4529
      %4594 = vst [vmem:[%s283 + $0x30] sm:$0xff] %v4530
      %4595 = vst [vmem:[%s283 + $0x38] sm:$0xff] %v4531
      %4596 = vst [vmem:[%s283 + $0x40] sm:$0xff] %v4532
      %4597 = vst [vmem:[%s283 + $0x48] sm:$0xff] %v4533
      %4598 = vst [vmem:[%s283 + $0x50] sm:$0xff] %v4534
      %4599 = vst [vmem:[%s283 + $0x58] sm:$0xff] %v4535
      %4600 = vst [vmem:[%s283 + $0x60] sm:$0xff] %v4536
      %4601 = vst [vmem:[%s283 + $0x68] sm:$0xff] %v4537
      %4602 = vst [vmem:[%s283 + $0x70] sm:$0xff] %v4538
      %4603 = vst [vmem:[%s283 + $0x78] sm:$0xff] %v4539
      %4604 = vst [vmem:[%s283 + $0x80] sm:$0xff] %v4540
      %4605 = vst [vmem:[%s283 + $0x88] sm:$0xff] %v4541
      %4606 = vst [vmem:[%s283 + $0x90] sm:$0xff] %v4542
      %4607 = vst [vmem:[%s283 + $0x98] sm:$0xff] %v4543
      %4608 = vst [vmem:[%s283 + $0xa0] sm:$0xff] %v4544
      %4609 = vst [vmem:[%s283 + $0xa8] sm:$0xff] %v4545
      %4610 = vst [vmem:[%s283 + $0xb0] sm:$0xff] %v4546
      %4611 = vst [vmem:[%s283 + $0xb8] sm:$0xff] %v4547
      %4612 = vst [vmem:[%s283 + $0xc0] sm:$0xff] %v4548
      %4613 = vst [vmem:[%s283 + $0xc8] sm:$0xff] %v4549
      %4614 = vst [vmem:[%s283 + $0xd0] sm:$0xff] %v4550
      %4615 = vst [vmem:[%s283 + $0xd8] sm:$0xff] %v4551
      %4616 = vst [vmem:[%s283 + $0xe0] sm:$0xff] %v4552
      %4617 = vst [vmem:[%s283 + $0xe8] sm:$0xff] %v4553
      %4618 = vst [vmem:[%s283 + $0xf0] sm:$0xff] %v4554
      %4619 = vst [vmem:[%s283 + $0xf8] sm:$0xff] %v4555
      %s4620 = smul.u32 16, %s17
      %p4621 = scmp.lt.s32.totalorder %s4620, 31
      %s4622 = scalar_select %p4621, %s4620, 31
      %s4623 = smul.addr %s4622, 4
      %s4624 = smul.addr %s4623, 4
      %s4625 = scalar_lea.vmem %s6, %s4624
      // Predicated region
      $region45: #{gnn_regressor_forward.4} parent=43 // pred_check
        %p4626 = pneg %p171
      $region46: #{gnn_regressor_forward.4} parent=43 // pred_check_branch
        %4628 = sbr.rel (%p4626) target = $region48
      $region47: #{gnn_regressor_forward.4} parent=43 // pred_region
        %s4629 = smul.u32 16, %s17
      $region48: #{gnn_regressor_forward.4} parent=43 // pred_fallthru
        _
    $region44: #{gnn_regressor_forward.4} parent=5 // pred_fallthru
      _
    %p4630 = scmp.le.s32.totalorder 2, %s12
    // Predicated region
    $region49: #{gnn_regressor_forward.4} parent=5 // pred_check
      %p4631 = pneg %p4630
    $region50: #{gnn_regressor_forward.4} parent=5 // pred_check_branch
      %4633 = sbr.rel (%p4631) target = $region52
    $region51: #{gnn_regressor_forward.4} parent=5 // pred_region
      %s4634 = ssub.s32 %s12, 2
      // Predicated region
      $region53: #{gnn_regressor_forward.4} parent=51 // pred_check
        %p4635 = pneg %p177
      $region54: #{gnn_regressor_forward.4} parent=51 // pred_check_branch
        %4637 = sbr.rel (%p4635) target = $region56
      $region55: #{gnn_regressor_forward.4} parent=51 // pred_region
        %s4638 = smul.u32 16, %s18
        %p4639 = scmp.lt.s32.totalorder %s4638, 31
        %s4640 = scalar_select %p4639, %s4638, 31
        %s4641 = smul.addr %s4640, 4
        %s4642 = smul.addr %s4641, 4
        %s4643 = scalar_lea.vmem %s6, %s4642
      $region56: #{gnn_regressor_forward.4} parent=51 // pred_fallthru
        _
    $region52: #{gnn_regressor_forward.4} parent=5 // pred_fallthru
      _
  $region6: #{gnn_regressor_forward.4} parent=0 // loop_footer
    %s16 = sadd.s32 1, %s12
  $region7: #{gnn_regressor_forward.4} parent=0 // loop_footer_branch
    %11 = sbr.rel target = $region3
  $region8: #{gnn_regressor_forward.4} parent=0 // loop_exit
    _

</llo_original>
